<compile_context>
chip_gen: v7x
topology: tpu7x:2x2x1
jax: 0.10.0
libtpu: 0.0.40
codegen_flags: <defaults>
</compile_context>

<pallas_src>
import functools
import numpy as np
import jax
import jax.numpy as jnp
from jax import lax
from jax.experimental import pallas as pl
from jax.experimental.pallas import tpu as pltpu

# ---- model hyperparameters (small, structurally consistent with the module) ----
N_EMBD = 128          # module uses 384; scaled down (lane-friendly: multiple of 128)
N_HEAD = 4            # module uses 6
HEAD_SIZE = N_EMBD // N_HEAD
BLOCK_SIZE = 256      # max sequence length for the causal mask
LN_EPS = 1e-5
NEG_INF = -1e30       # large finite negative (robust vs -inf NaN corner cases)

# TODO(synk): nn.Dropout is stochastic; implemented as identity (eval-mode forward).


def _layernorm(x, gamma, beta):
    # x: (rows, C), gamma/beta: (1, C) — f32 throughout
    mu = jnp.mean(x, axis=-1, keepdims=True)
    var = jnp.mean((x - mu) ** 2, axis=-1, keepdims=True)
    return (x - mu) * lax.rsqrt(var + LN_EPS) * gamma + beta


def block_kernel(x_ref,
                 ln1_g_ref, ln1_b_ref, ln2_g_ref, ln2_b_ref,
                 wq_ref, wk_ref, wv_ref,
                 wproj_ref, bproj_ref,
                 w1_ref, b1_ref, w2_ref, b2_ref,
                 out_ref,
                 *, batch, seq, n_head, head_size):
    x = x_ref[...]                                   # (B*T, C) f32, batch folded into rows
    BT, C = x.shape

    # ---------------- x = x + sa(ln1(x)) ----------------
    xn = _layernorm(x, ln1_g_ref[...], ln1_b_ref[...])
    xn_bf = xn.astype(jnp.bfloat16)

    # Causal mask, hoisted out of the head loop, in *transposed* (key, query) layout:
    # allowed where key_idx <= query_idx  (i.e. tril != 0 in the original layout).
    s_idx = lax.broadcasted_iota(jnp.int32, (1, seq, seq), 1)   # key index
    t_idx = lax.broadcasted_iota(jnp.int32, (1, seq, seq), 2)   # query index
    allowed = s_idx <= t_idx

    scale = float(head_size) ** 0.5        # NOTE: MULTIPLY by sqrt(hs) — reference quirk
    sa = None
    for h in range(n_head):                # static unroll; head-major (leading-axis) weights
        q = jnp.dot(xn_bf, wq_ref[h], preferred_element_type=jnp.float32)   # (BT, hs)
        k = jnp.dot(xn_bf, wk_ref[h], preferred_element_type=jnp.float32)
        v = jnp.dot(xn_bf, wv_ref[h], preferred_element_type=jnp.float32)
        q3 = q.reshape(batch, seq, head_size).astype(jnp.bfloat16)
        k3 = k.reshape(batch, seq, head_size).astype(jnp.bfloat16)
        v3 = v.reshape(batch, seq, head_size).astype(jnp.bfloat16)

        # Transposed scores: sT[b, s, t] = k[b,s]·q[b,t]  (== wei[b,t,s] of the reference),
        # so the reference's softmax over dim=1 (queries) is a lane-axis reduce here.
        sT = lax.dot_general(k3, q3, (((2,), (2,)), ((0,), (0,))),
                             preferred_element_type=jnp.float32) * scale
        sT = jnp.where(allowed, sT, NEG_INF)
        m = jnp.max(sT, axis=-1, keepdims=True)
        e = jnp.exp(sT - m)
        p = e * pl.reciprocal(jnp.sum(e, axis=-1, keepdims=True), approx=True)

        # out[b, t, :] = sum_s p[b, s, t] * v[b, s, :]
        o = lax.dot_general(p.astype(jnp.bfloat16), v3,
                            (((1,), (1,)), ((0,), (0,))),
                            preferred_element_type=jnp.float32)             # (B, T, hs)
        o2 = o.reshape(BT, head_size).astype(jnp.bfloat16)

        # Fused per-head output projection (no lane-axis concat): sa += o_h @ Wproj[h]
        contrib = jnp.dot(o2, wproj_ref[h], preferred_element_type=jnp.float32)
        sa = contrib if sa is None else sa + contrib

    x1 = x + sa + bproj_ref[...]

    # ---------------- x = x + ffwd(ln2(x)) ----------------
    xn2 = _layernorm(x1, ln2_g_ref[...], ln2_b_ref[...]).astype(jnp.bfloat16)
    h1 = jnp.dot(xn2, w1_ref[...], preferred_element_type=jnp.float32) + b1_ref[...]
    h1 = jnp.maximum(h1, 0.0).astype(jnp.bfloat16)                           # ReLU
    ff = jnp.dot(h1, w2_ref[...], preferred_element_type=jnp.float32) + b2_ref[...]

    out_ref[...] = x1 + ff


def block_forward(x, params):
    B, T, C = x.shape
    (ln1_g, ln1_b, ln2_g, ln2_b,
     wq, wk, wv, wproj, bproj, w1, b1, w2, b2) = params
    H, hs = N_HEAD, HEAD_SIZE

    # Kernel-friendly layouts: head-major QKV / proj weights, bf16 MXU weights.
    def head_major(w):   # (C, H*hs) -> (H, C, hs)
        return jnp.transpose(w.reshape(C, H, hs), (1, 0, 2)).astype(jnp.bfloat16)

    wq_h = head_major(wq)
    wk_h = head_major(wk)
    wv_h = head_major(wv)
    wproj_h = wproj.reshape(H, hs, C).astype(jnp.bfloat16)   # (H, hs, C)
    w1_bf = w1.astype(jnp.bfloat16)
    w2_bf = w2.astype(jnp.bfloat16)

    x2d = x.reshape(B * T, C)   # fold batch into rows -> M = B*T matmuls

    kern_params = (ln1_g, ln1_b, ln2_g, ln2_b,
                   wq_h, wk_h, wv_h, wproj_h, bproj,
                   w1_bf, b1, w2_bf, b2)

    kernel = functools.partial(block_kernel, batch=B, seq=T,
                               n_head=H, head_size=hs)

    def full_spec(a):
        nd = a.ndim
        return pl.BlockSpec(a.shape, lambda i, _nd=nd: (0,) * _nd)

    out2d = pl.pallas_call(
        kernel,
        out_shape=jax.ShapeDtypeStruct((B * T, C), x.dtype),
        grid_spec=pl.GridSpec(
            grid=(1,),
            in_specs=[full_spec(x2d)] + [full_spec(p) for p in kern_params],
            out_specs=pl.BlockSpec((B * T, C), lambda i: (0, 0)),
        ),
        compiler_params=pltpu.CompilerParams(
            dimension_semantics=("arbitrary",),
        ),
    )(x2d, *kern_params)

    return out2d.reshape(B, T, C)


# ---------------- pure-JAX reference (mirrors the PyTorch forward, f32) ----------------
def block_reference(x, params):
    (ln1_g, ln1_b, ln2_g, ln2_b,
     wq, wk, wv, wproj, bproj, w1, b1, w2, b2) = params
    B, T, C = x.shape

    def ln(x, g, b):
        mu = jnp.mean(x, axis=-1, keepdims=True)
        var = jnp.mean((x - mu) ** 2, axis=-1, keepdims=True)
        return (x - mu) / jnp.sqrt(var + LN_EPS) * g + b

    xn = ln(x, ln1_g, ln1_b)
    q_all = xn @ wq
    k_all = xn @ wk
    v_all = xn @ wv
    tril = jnp.tril(jnp.ones((T, T)))
    outs = []
    for h in range(N_HEAD):
        sl = slice(h * HEAD_SIZE, (h + 1) * HEAD_SIZE)
        q, k, v = q_all[..., sl], k_all[..., sl], v_all[..., sl]
        wei = jnp.einsum("btd,bsd->bts", q, k) * (HEAD_SIZE ** 0.5)
        wei = jnp.where(tril == 0, -jnp.inf, wei)
        wei = jax.nn.softmax(wei, axis=1)           # dim=1, as in the reference
        outs.append(jnp.einsum("bts,bsd->btd", wei, v))
    sa = jnp.concatenate(outs, axis=-1) @ wproj + bproj
    x1 = x + sa
    xn2 = ln(x1, ln2_g, ln2_b)
    ff = jnp.maximum(xn2 @ w1 + b1, 0.0) @ w2 + b2
    return x1 + ff


def init_params(key):
    ks = jax.random.split(key, 8)
    scale = 0.02
    C, H, hs = N_EMBD, N_HEAD, HEAD_SIZE
    ln1_g = jnp.ones((1, C), jnp.float32)
    ln1_b = jnp.zeros((1, C), jnp.float32)
    ln2_g = jnp.ones((1, C), jnp.float32)
    ln2_b = jnp.zeros((1, C), jnp.float32)
    wq = scale * jax.random.normal(ks[0], (C, H * hs), jnp.float32)
    wk = scale * jax.random.normal(ks[1], (C, H * hs), jnp.float32)
    wv = scale * jax.random.normal(ks[2], (C, H * hs), jnp.float32)
    wproj = scale * jax.random.normal(ks[3], (H * hs, C), jnp.float32)
    bproj = scale * jax.random.normal(ks[4], (1, C), jnp.float32)
    w1 = scale * jax.random.normal(ks[5], (C, 4 * C), jnp.float32)
    b1 = scale * jax.random.normal(ks[6], (1, 4 * C), jnp.float32)
    w2 = scale * jax.random.normal(ks[7], (4 * C, C), jnp.float32)
    b2 = jnp.zeros((1, C), jnp.float32)
    return (ln1_g, ln1_b, ln2_g, ln2_b, wq, wk, wv, wproj, bproj, w1, b1, w2, b2)


if __name__ == "__main__":
    key = jax.random.PRNGKey(0)
    k_x, k_p = jax.random.split(key)

    B, T = 2, 64          # T <= BLOCK_SIZE
    x = jax.random.normal(k_x, (B, T, N_EMBD), jnp.float32)
    params = init_params(k_p)

    out = block_forward(x, params)
    out = jax.block_until_ready(out)

    ref = jax.block_until_ready(block_reference(x, params))
    # bf16 MXU operands (f32 accumulation) -> loosened tolerance vs the f32 reference.
    np.testing.assert_allclose(np.asarray(out), np.asarray(ref), atol=2e-2, rtol=2e-2)

    print("KERNEL_OK")
</pallas_src>

<mosaic_0001>
module attributes {stable_mosaic.version = 11 : i64} {
  func.func @block_kernel(%arg0: i32, %arg1: memref<128x128xf32, #tpu.memory_space<vmem>>, %arg2: memref<1x128xf32, #tpu.memory_space<vmem>>, %arg3: memref<1x128xf32, #tpu.memory_space<vmem>>, %arg4: memref<1x128xf32, #tpu.memory_space<vmem>>, %arg5: memref<1x128xf32, #tpu.memory_space<vmem>>, %arg6: memref<4x128x32xbf16, #tpu.memory_space<vmem>>, %arg7: memref<4x128x32xbf16, #tpu.memory_space<vmem>>, %arg8: memref<4x128x32xbf16, #tpu.memory_space<vmem>>, %arg9: memref<4x32x128xbf16, #tpu.memory_space<vmem>>, %arg10: memref<1x128xf32, #tpu.memory_space<vmem>>, %arg11: memref<128x512xbf16, #tpu.memory_space<vmem>>, %arg12: memref<1x512xf32, #tpu.memory_space<vmem>>, %arg13: memref<512x128xbf16, #tpu.memory_space<vmem>>, %arg14: memref<1x128xf32, #tpu.memory_space<vmem>>, %arg15: memref<128x128xf32, #tpu.memory_space<vmem>>) attributes {dimension_semantics = [#tpu.dimension_semantics<arbitrary>], iteration_bounds = array<i64: 1>, scalar_prefetch = 0 : i64, scratch_operands = 0 : i64, tpu.core_type = #tpu.core_type<tc>, window_params = [{pipeline_mode = #tpu.pipeline_mode<synchronous>, transform_indices = @transform_0, window_bounds = array<i64: 128, 128>}, {pipeline_mode = #tpu.pipeline_mode<synchronous>, transform_indices = @transform_1, window_bounds = array<i64: 1, 128>}, {pipeline_mode = #tpu.pipeline_mode<synchronous>, transform_indices = @transform_2, window_bounds = array<i64: 1, 128>}, {pipeline_mode = #tpu.pipeline_mode<synchronous>, transform_indices = @transform_3, window_bounds = array<i64: 1, 128>}, {pipeline_mode = #tpu.pipeline_mode<synchronous>, transform_indices = @transform_4, window_bounds = array<i64: 1, 128>}, {pipeline_mode = #tpu.pipeline_mode<synchronous>, transform_indices = @transform_5, window_bounds = array<i64: 4, 128, 32>}, {pipeline_mode = #tpu.pipeline_mode<synchronous>, transform_indices = @transform_6, window_bounds = array<i64: 4, 128, 32>}, {pipeline_mode = #tpu.pipeline_mode<synchronous>, transform_indices = @transform_7, window_bounds = array<i64: 4, 128, 32>}, {pipeline_mode = #tpu.pipeline_mode<synchronous>, transform_indices = @transform_8, window_bounds = array<i64: 4, 32, 128>}, {pipeline_mode = #tpu.pipeline_mode<synchronous>, transform_indices = @transform_9, window_bounds = array<i64: 1, 128>}, {pipeline_mode = #tpu.pipeline_mode<synchronous>, transform_indices = @transform_10, window_bounds = array<i64: 128, 512>}, {pipeline_mode = #tpu.pipeline_mode<synchronous>, transform_indices = @transform_11, window_bounds = array<i64: 1, 512>}, {pipeline_mode = #tpu.pipeline_mode<synchronous>, transform_indices = @transform_12, window_bounds = array<i64: 512, 128>}, {pipeline_mode = #tpu.pipeline_mode<synchronous>, transform_indices = @transform_13, window_bounds = array<i64: 1, 128>}, {pipeline_mode = #tpu.pipeline_mode<synchronous>, transform_indices = @transform_14, window_bounds = array<i64: 128, 128>}]} {
    %c0 = arith.constant 0 : index
    %c0_0 = arith.constant 0 : index
    %0 = vector.load %arg1[%c0, %c0_0] : memref<128x128xf32, #tpu.memory_space<vmem>>, vector<128x128xf32>
    %c0_1 = arith.constant 0 : index
    %c0_2 = arith.constant 0 : index
    %1 = vector.load %arg2[%c0_1, %c0_2] : memref<1x128xf32, #tpu.memory_space<vmem>>, vector<1x128xf32>
    %c0_3 = arith.constant 0 : index
    %c0_4 = arith.constant 0 : index
    %2 = vector.load %arg3[%c0_3, %c0_4] : memref<1x128xf32, #tpu.memory_space<vmem>>, vector<1x128xf32>
    %cst = arith.constant dense<0.000000e+00> : vector<128xf32>
    %3 = vector.multi_reduction <add>, %0, %cst [1] : vector<128x128xf32> to vector<128xf32>
    %4 = vector.shape_cast %3 : vector<128xf32> to vector<128x1xf32>
    %cst_5 = arith.constant 1.280000e+02 : f32
    %5 = vector.broadcast %cst_5 : f32 to vector<128x1xf32>
    %6 = arith.divf %4, %5 : vector<128x1xf32>
    %7 = vector.broadcast %6 : vector<128x1xf32> to vector<128x128xf32>
    %8 = arith.subf %0, %7 : vector<128x128xf32>
    %9 = arith.mulf %8, %8 : vector<128x128xf32>
    %cst_6 = arith.constant dense<0.000000e+00> : vector<128xf32>
    %10 = vector.multi_reduction <add>, %9, %cst_6 [1] : vector<128x128xf32> to vector<128xf32>
    %11 = vector.shape_cast %10 : vector<128xf32> to vector<128x1xf32>
    %cst_7 = arith.constant 1.280000e+02 : f32
    %12 = vector.broadcast %cst_7 : f32 to vector<128x1xf32>
    %13 = arith.divf %11, %12 : vector<128x1xf32>
    %14 = vector.broadcast %6 : vector<128x1xf32> to vector<128x128xf32>
    %15 = arith.subf %0, %14 : vector<128x128xf32>
    %cst_8 = arith.constant 9.99999974E-6 : f32
    %16 = vector.broadcast %cst_8 : f32 to vector<128x1xf32>
    %17 = arith.addf %13, %16 : vector<128x1xf32>
    %18 = math.rsqrt %17 : vector<128x1xf32>
    %19 = vector.broadcast %18 : vector<128x1xf32> to vector<128x128xf32>
    %20 = arith.mulf %15, %19 : vector<128x128xf32>
    %21 = vector.broadcast %1 : vector<1x128xf32> to vector<128x128xf32>
    %22 = arith.mulf %20, %21 : vector<128x128xf32>
    %23 = vector.broadcast %2 : vector<1x128xf32> to vector<128x128xf32>
    %24 = arith.addf %22, %23 : vector<128x128xf32>
    %25 = arith.truncf %24 : vector<128x128xf32> to vector<128x128xbf16>
    %26 = tpu.iota {dimensions = array<i32: 1>} : vector<1x64x64xi32>
    %27 = tpu.iota {dimensions = array<i32: 2>} : vector<1x64x64xi32>
    %28 = arith.cmpi sle, %26, %27 : vector<1x64x64xi32>
    %c0_9 = arith.constant 0 : index
    %c0_10 = arith.constant 0 : index
    %c0_11 = arith.constant 0 : index
    %29 = vector.load %arg6[%c0_9, %c0_10, %c0_11] : memref<4x128x32xbf16, #tpu.memory_space<vmem>>, vector<1x128x32xbf16>
    %30 = vector.shape_cast %29 : vector<1x128x32xbf16> to vector<128x32xbf16>
    %cst_12 = arith.constant dense<0.000000e+00> : vector<128x32xf32>
    %31 = tpu.matmul %25, %30, %cst_12 {dimension_numbers = #tpu.dot_dimension_numbers<[1], [0], [0], [1], [0, 0, 1, 1], [], []>} : vector<128x128xbf16>, vector<128x32xbf16>, vector<128x32xf32> -> vector<128x32xf32>
    %c0_13 = arith.constant 0 : index
    %c0_14 = arith.constant 0 : index
    %c0_15 = arith.constant 0 : index
    %32 = vector.load %arg7[%c0_13, %c0_14, %c0_15] : memref<4x128x32xbf16, #tpu.memory_space<vmem>>, vector<1x128x32xbf16>
    %33 = vector.shape_cast %32 : vector<1x128x32xbf16> to vector<128x32xbf16>
    %cst_16 = arith.constant dense<0.000000e+00> : vector<128x32xf32>
    %34 = tpu.matmul %25, %33, %cst_16 {dimension_numbers = #tpu.dot_dimension_numbers<[1], [0], [0], [1], [0, 0, 1, 1], [], []>} : vector<128x128xbf16>, vector<128x32xbf16>, vector<128x32xf32> -> vector<128x32xf32>
    %c0_17 = arith.constant 0 : index
    %c0_18 = arith.constant 0 : index
    %c0_19 = arith.constant 0 : index
    %35 = vector.load %arg8[%c0_17, %c0_18, %c0_19] : memref<4x128x32xbf16, #tpu.memory_space<vmem>>, vector<1x128x32xbf16>
    %36 = vector.shape_cast %35 : vector<1x128x32xbf16> to vector<128x32xbf16>
    %cst_20 = arith.constant dense<0.000000e+00> : vector<128x32xf32>
    %37 = tpu.matmul %25, %36, %cst_20 {dimension_numbers = #tpu.dot_dimension_numbers<[1], [0], [0], [1], [0, 0, 1, 1], [], []>} : vector<128x128xbf16>, vector<128x32xbf16>, vector<128x32xf32> -> vector<128x32xf32>
    %38 = vector.shape_cast %31 : vector<128x32xf32> to vector<2x64x32xf32>
    %39 = arith.truncf %38 : vector<2x64x32xf32> to vector<2x64x32xbf16>
    %40 = vector.shape_cast %34 : vector<128x32xf32> to vector<2x64x32xf32>
    %41 = arith.truncf %40 : vector<2x64x32xf32> to vector<2x64x32xbf16>
    %42 = vector.shape_cast %37 : vector<128x32xf32> to vector<2x64x32xf32>
    %43 = arith.truncf %42 : vector<2x64x32xf32> to vector<2x64x32xbf16>
    %cst_21 = arith.constant dense<0.000000e+00> : vector<2x64x64xf32>
    %44 = tpu.matmul %41, %39, %cst_21 {dimension_numbers = #tpu.dot_dimension_numbers<[2], [2], [1], [1], [0, 0, 0, 1, 1, 1], [0], [0]>} : vector<2x64x32xbf16>, vector<2x64x32xbf16>, vector<2x64x64xf32> -> vector<2x64x64xf32>
    %cst_22 = arith.constant 5.65685415 : f32
    %45 = vector.broadcast %cst_22 : f32 to vector<2x64x64xf32>
    %46 = arith.mulf %44, %45 : vector<2x64x64xf32>
    %cst_23 = arith.constant -1.000000e+30 : f32
    %47 = vector.shape_cast %28 : vector<1x64x64xi1> to vector<1x64x64xi1>
    %48 = vector.broadcast %47 : vector<1x64x64xi1> to vector<2x64x64xi1>
    %49 = vector.broadcast %cst_23 : f32 to vector<2x64x64xf32>
    %50 = arith.select %48, %46, %49 : vector<2x64x64xi1>, vector<2x64x64xf32>
    %cst_24 = arith.constant dense<0xFF800000> : vector<2x64xf32>
    %51 = vector.multi_reduction <maximumf>, %50, %cst_24 [2] : vector<2x64x64xf32> to vector<2x64xf32>
    %52 = vector.shape_cast %51 : vector<2x64xf32> to vector<2x64x1xf32>
    %53 = vector.broadcast %52 : vector<2x64x1xf32> to vector<2x64x64xf32>
    %54 = arith.subf %50, %53 : vector<2x64x64xf32>
    %55 = math.exp %54 : vector<2x64x64xf32>
    %cst_25 = arith.constant dense<0.000000e+00> : vector<2x64xf32>
    %56 = vector.multi_reduction <add>, %55, %cst_25 [2] : vector<2x64x64xf32> to vector<2x64xf32>
    %57 = vector.shape_cast %56 : vector<2x64xf32> to vector<2x64x1xf32>
    %58 = tpu.reciprocal %57 {approx = true} : vector<2x64x1xf32> -> vector<2x64x1xf32>
    %59 = vector.broadcast %58 : vector<2x64x1xf32> to vector<2x64x64xf32>
    %60 = arith.mulf %55, %59 : vector<2x64x64xf32>
    %61 = arith.truncf %60 : vector<2x64x64xf32> to vector<2x64x64xbf16>
    %cst_26 = arith.constant dense<0.000000e+00> : vector<2x64x32xf32>
    %62 = tpu.matmul %61, %43, %cst_26 {dimension_numbers = #tpu.dot_dimension_numbers<[1], [1], [2], [2], [0, 0, 0, 2, 1, 2], [0], [0]>} : vector<2x64x64xbf16>, vector<2x64x32xbf16>, vector<2x64x32xf32> -> vector<2x64x32xf32>
    %63 = vector.shape_cast %62 : vector<2x64x32xf32> to vector<128x32xf32>
    %64 = arith.truncf %63 : vector<128x32xf32> to vector<128x32xbf16>
    %c0_27 = arith.constant 0 : index
    %c0_28 = arith.constant 0 : index
    %c0_29 = arith.constant 0 : index
    %65 = vector.load %arg9[%c0_27, %c0_28, %c0_29] : memref<4x32x128xbf16, #tpu.memory_space<vmem>>, vector<1x32x128xbf16>
    %66 = vector.shape_cast %65 : vector<1x32x128xbf16> to vector<32x128xbf16>
    %cst_30 = arith.constant dense<0.000000e+00> : vector<128x128xf32>
    %67 = tpu.matmul %64, %66, %cst_30 {dimension_numbers = #tpu.dot_dimension_numbers<[1], [0], [0], [1], [0, 0, 1, 1], [], []>} : vector<128x32xbf16>, vector<32x128xbf16>, vector<128x128xf32> -> vector<128x128xf32>
    %c1 = arith.constant 1 : index
    %c0_31 = arith.constant 0 : index
    %c0_32 = arith.constant 0 : index
    %68 = vector.load %arg6[%c1, %c0_31, %c0_32] : memref<4x128x32xbf16, #tpu.memory_space<vmem>>, vector<1x128x32xbf16>
    %69 = vector.shape_cast %68 : vector<1x128x32xbf16> to vector<128x32xbf16>
    %cst_33 = arith.constant dense<0.000000e+00> : vector<128x32xf32>
    %70 = tpu.matmul %25, %69, %cst_33 {dimension_numbers = #tpu.dot_dimension_numbers<[1], [0], [0], [1], [0, 0, 1, 1], [], []>} : vector<128x128xbf16>, vector<128x32xbf16>, vector<128x32xf32> -> vector<128x32xf32>
    %c1_34 = arith.constant 1 : index
    %c0_35 = arith.constant 0 : index
    %c0_36 = arith.constant 0 : index
    %71 = vector.load %arg7[%c1_34, %c0_35, %c0_36] : memref<4x128x32xbf16, #tpu.memory_space<vmem>>, vector<1x128x32xbf16>
    %72 = vector.shape_cast %71 : vector<1x128x32xbf16> to vector<128x32xbf16>
    %cst_37 = arith.constant dense<0.000000e+00> : vector<128x32xf32>
    %73 = tpu.matmul %25, %72, %cst_37 {dimension_numbers = #tpu.dot_dimension_numbers<[1], [0], [0], [1], [0, 0, 1, 1], [], []>} : vector<128x128xbf16>, vector<128x32xbf16>, vector<128x32xf32> -> vector<128x32xf32>
    %c1_38 = arith.constant 1 : index
    %c0_39 = arith.constant 0 : index
    %c0_40 = arith.constant 0 : index
    %74 = vector.load %arg8[%c1_38, %c0_39, %c0_40] : memref<4x128x32xbf16, #tpu.memory_space<vmem>>, vector<1x128x32xbf16>
    %75 = vector.shape_cast %74 : vector<1x128x32xbf16> to vector<128x32xbf16>
    %cst_41 = arith.constant dense<0.000000e+00> : vector<128x32xf32>
    %76 = tpu.matmul %25, %75, %cst_41 {dimension_numbers = #tpu.dot_dimension_numbers<[1], [0], [0], [1], [0, 0, 1, 1], [], []>} : vector<128x128xbf16>, vector<128x32xbf16>, vector<128x32xf32> -> vector<128x32xf32>
    %77 = vector.shape_cast %70 : vector<128x32xf32> to vector<2x64x32xf32>
    %78 = arith.truncf %77 : vector<2x64x32xf32> to vector<2x64x32xbf16>
    %79 = vector.shape_cast %73 : vector<128x32xf32> to vector<2x64x32xf32>
    %80 = arith.truncf %79 : vector<2x64x32xf32> to vector<2x64x32xbf16>
    %81 = vector.shape_cast %76 : vector<128x32xf32> to vector<2x64x32xf32>
    %82 = arith.truncf %81 : vector<2x64x32xf32> to vector<2x64x32xbf16>
    %cst_42 = arith.constant dense<0.000000e+00> : vector<2x64x64xf32>
    %83 = tpu.matmul %80, %78, %cst_42 {dimension_numbers = #tpu.dot_dimension_numbers<[2], [2], [1], [1], [0, 0, 0, 1, 1, 1], [0], [0]>} : vector<2x64x32xbf16>, vector<2x64x32xbf16>, vector<2x64x64xf32> -> vector<2x64x64xf32>
    %cst_43 = arith.constant 5.65685415 : f32
    %84 = vector.broadcast %cst_43 : f32 to vector<2x64x64xf32>
    %85 = arith.mulf %83, %84 : vector<2x64x64xf32>
    %cst_44 = arith.constant -1.000000e+30 : f32
    %86 = vector.shape_cast %28 : vector<1x64x64xi1> to vector<1x64x64xi1>
    %87 = vector.broadcast %86 : vector<1x64x64xi1> to vector<2x64x64xi1>
    %88 = vector.broadcast %cst_44 : f32 to vector<2x64x64xf32>
    %89 = arith.select %87, %85, %88 : vector<2x64x64xi1>, vector<2x64x64xf32>
    %cst_45 = arith.constant dense<0xFF800000> : vector<2x64xf32>
    %90 = vector.multi_reduction <maximumf>, %89, %cst_45 [2] : vector<2x64x64xf32> to vector<2x64xf32>
    %91 = vector.shape_cast %90 : vector<2x64xf32> to vector<2x64x1xf32>
    %92 = vector.broadcast %91 : vector<2x64x1xf32> to vector<2x64x64xf32>
    %93 = arith.subf %89, %92 : vector<2x64x64xf32>
    %94 = math.exp %93 : vector<2x64x64xf32>
    %cst_46 = arith.constant dense<0.000000e+00> : vector<2x64xf32>
    %95 = vector.multi_reduction <add>, %94, %cst_46 [2] : vector<2x64x64xf32> to vector<2x64xf32>
    %96 = vector.shape_cast %95 : vector<2x64xf32> to vector<2x64x1xf32>
    %97 = tpu.reciprocal %96 {approx = true} : vector<2x64x1xf32> -> vector<2x64x1xf32>
    %98 = vector.broadcast %97 : vector<2x64x1xf32> to vector<2x64x64xf32>
    %99 = arith.mulf %94, %98 : vector<2x64x64xf32>
    %100 = arith.truncf %99 : vector<2x64x64xf32> to vector<2x64x64xbf16>
    %cst_47 = arith.constant dense<0.000000e+00> : vector<2x64x32xf32>
    %101 = tpu.matmul %100, %82, %cst_47 {dimension_numbers = #tpu.dot_dimension_numbers<[1], [1], [2], [2], [0, 0, 0, 2, 1, 2], [0], [0]>} : vector<2x64x64xbf16>, vector<2x64x32xbf16>, vector<2x64x32xf32> -> vector<2x64x32xf32>
    %102 = vector.shape_cast %101 : vector<2x64x32xf32> to vector<128x32xf32>
    %103 = arith.truncf %102 : vector<128x32xf32> to vector<128x32xbf16>
    %c1_48 = arith.constant 1 : index
    %c0_49 = arith.constant 0 : index
    %c0_50 = arith.constant 0 : index
    %104 = vector.load %arg9[%c1_48, %c0_49, %c0_50] : memref<4x32x128xbf16, #tpu.memory_space<vmem>>, vector<1x32x128xbf16>
    %105 = vector.shape_cast %104 : vector<1x32x128xbf16> to vector<32x128xbf16>
    %cst_51 = arith.constant dense<0.000000e+00> : vector<128x128xf32>
    %106 = tpu.matmul %103, %105, %cst_51 {dimension_numbers = #tpu.dot_dimension_numbers<[1], [0], [0], [1], [0, 0, 1, 1], [], []>} : vector<128x32xbf16>, vector<32x128xbf16>, vector<128x128xf32> -> vector<128x128xf32>
    %107 = arith.addf %67, %106 : vector<128x128xf32>
    %c2 = arith.constant 2 : index
    %c0_52 = arith.constant 0 : index
    %c0_53 = arith.constant 0 : index
    %108 = vector.load %arg6[%c2, %c0_52, %c0_53] : memref<4x128x32xbf16, #tpu.memory_space<vmem>>, vector<1x128x32xbf16>
    %109 = vector.shape_cast %108 : vector<1x128x32xbf16> to vector<128x32xbf16>
    %cst_54 = arith.constant dense<0.000000e+00> : vector<128x32xf32>
    %110 = tpu.matmul %25, %109, %cst_54 {dimension_numbers = #tpu.dot_dimension_numbers<[1], [0], [0], [1], [0, 0, 1, 1], [], []>} : vector<128x128xbf16>, vector<128x32xbf16>, vector<128x32xf32> -> vector<128x32xf32>
    %c2_55 = arith.constant 2 : index
    %c0_56 = arith.constant 0 : index
    %c0_57 = arith.constant 0 : index
    %111 = vector.load %arg7[%c2_55, %c0_56, %c0_57] : memref<4x128x32xbf16, #tpu.memory_space<vmem>>, vector<1x128x32xbf16>
    %112 = vector.shape_cast %111 : vector<1x128x32xbf16> to vector<128x32xbf16>
    %cst_58 = arith.constant dense<0.000000e+00> : vector<128x32xf32>
    %113 = tpu.matmul %25, %112, %cst_58 {dimension_numbers = #tpu.dot_dimension_numbers<[1], [0], [0], [1], [0, 0, 1, 1], [], []>} : vector<128x128xbf16>, vector<128x32xbf16>, vector<128x32xf32> -> vector<128x32xf32>
    %c2_59 = arith.constant 2 : index
    %c0_60 = arith.constant 0 : index
    %c0_61 = arith.constant 0 : index
    %114 = vector.load %arg8[%c2_59, %c0_60, %c0_61] : memref<4x128x32xbf16, #tpu.memory_space<vmem>>, vector<1x128x32xbf16>
    %115 = vector.shape_cast %114 : vector<1x128x32xbf16> to vector<128x32xbf16>
    %cst_62 = arith.constant dense<0.000000e+00> : vector<128x32xf32>
    %116 = tpu.matmul %25, %115, %cst_62 {dimension_numbers = #tpu.dot_dimension_numbers<[1], [0], [0], [1], [0, 0, 1, 1], [], []>} : vector<128x128xbf16>, vector<128x32xbf16>, vector<128x32xf32> -> vector<128x32xf32>
    %117 = vector.shape_cast %110 : vector<128x32xf32> to vector<2x64x32xf32>
    %118 = arith.truncf %117 : vector<2x64x32xf32> to vector<2x64x32xbf16>
    %119 = vector.shape_cast %113 : vector<128x32xf32> to vector<2x64x32xf32>
    %120 = arith.truncf %119 : vector<2x64x32xf32> to vector<2x64x32xbf16>
    %121 = vector.shape_cast %116 : vector<128x32xf32> to vector<2x64x32xf32>
    %122 = arith.truncf %121 : vector<2x64x32xf32> to vector<2x64x32xbf16>
    %cst_63 = arith.constant dense<0.000000e+00> : vector<2x64x64xf32>
    %123 = tpu.matmul %120, %118, %cst_63 {dimension_numbers = #tpu.dot_dimension_numbers<[2], [2], [1], [1], [0, 0, 0, 1, 1, 1], [0], [0]>} : vector<2x64x32xbf16>, vector<2x64x32xbf16>, vector<2x64x64xf32> -> vector<2x64x64xf32>
    %cst_64 = arith.constant 5.65685415 : f32
    %124 = vector.broadcast %cst_64 : f32 to vector<2x64x64xf32>
    %125 = arith.mulf %123, %124 : vector<2x64x64xf32>
    %cst_65 = arith.constant -1.000000e+30 : f32
    %126 = vector.shape_cast %28 : vector<1x64x64xi1> to vector<1x64x64xi1>
    %127 = vector.broadcast %126 : vector<1x64x64xi1> to vector<2x64x64xi1>
    %128 = vector.broadcast %cst_65 : f32 to vector<2x64x64xf32>
    %129 = arith.select %127, %125, %128 : vector<2x64x64xi1>, vector<2x64x64xf32>
    %cst_66 = arith.constant dense<0xFF800000> : vector<2x64xf32>
    %130 = vector.multi_reduction <maximumf>, %129, %cst_66 [2] : vector<2x64x64xf32> to vector<2x64xf32>
    %131 = vector.shape_cast %130 : vector<2x64xf32> to vector<2x64x1xf32>
    %132 = vector.broadcast %131 : vector<2x64x1xf32> to vector<2x64x64xf32>
    %133 = arith.subf %129, %132 : vector<2x64x64xf32>
    %134 = math.exp %133 : vector<2x64x64xf32>
    %cst_67 = arith.constant dense<0.000000e+00> : vector<2x64xf32>
    %135 = vector.multi_reduction <add>, %134, %cst_67 [2] : vector<2x64x64xf32> to vector<2x64xf32>
    %136 = vector.shape_cast %135 : vector<2x64xf32> to vector<2x64x1xf32>
    %137 = tpu.reciprocal %136 {approx = true} : vector<2x64x1xf32> -> vector<2x64x1xf32>
    %138 = vector.broadcast %137 : vector<2x64x1xf32> to vector<2x64x64xf32>
    %139 = arith.mulf %134, %138 : vector<2x64x64xf32>
    %140 = arith.truncf %139 : vector<2x64x64xf32> to vector<2x64x64xbf16>
    %cst_68 = arith.constant dense<0.000000e+00> : vector<2x64x32xf32>
    %141 = tpu.matmul %140, %122, %cst_68 {dimension_numbers = #tpu.dot_dimension_numbers<[1], [1], [2], [2], [0, 0, 0, 2, 1, 2], [0], [0]>} : vector<2x64x64xbf16>, vector<2x64x32xbf16>, vector<2x64x32xf32> -> vector<2x64x32xf32>
    %142 = vector.shape_cast %141 : vector<2x64x32xf32> to vector<128x32xf32>
    %143 = arith.truncf %142 : vector<128x32xf32> to vector<128x32xbf16>
    %c2_69 = arith.constant 2 : index
    %c0_70 = arith.constant 0 : index
    %c0_71 = arith.constant 0 : index
    %144 = vector.load %arg9[%c2_69, %c0_70, %c0_71] : memref<4x32x128xbf16, #tpu.memory_space<vmem>>, vector<1x32x128xbf16>
    %145 = vector.shape_cast %144 : vector<1x32x128xbf16> to vector<32x128xbf16>
    %cst_72 = arith.constant dense<0.000000e+00> : vector<128x128xf32>
    %146 = tpu.matmul %143, %145, %cst_72 {dimension_numbers = #tpu.dot_dimension_numbers<[1], [0], [0], [1], [0, 0, 1, 1], [], []>} : vector<128x32xbf16>, vector<32x128xbf16>, vector<128x128xf32> -> vector<128x128xf32>
    %147 = arith.addf %107, %146 : vector<128x128xf32>
    %c3 = arith.constant 3 : index
    %c0_73 = arith.constant 0 : index
    %c0_74 = arith.constant 0 : index
    %148 = vector.load %arg6[%c3, %c0_73, %c0_74] : memref<4x128x32xbf16, #tpu.memory_space<vmem>>, vector<1x128x32xbf16>
    %149 = vector.shape_cast %148 : vector<1x128x32xbf16> to vector<128x32xbf16>
    %cst_75 = arith.constant dense<0.000000e+00> : vector<128x32xf32>
    %150 = tpu.matmul %25, %149, %cst_75 {dimension_numbers = #tpu.dot_dimension_numbers<[1], [0], [0], [1], [0, 0, 1, 1], [], []>} : vector<128x128xbf16>, vector<128x32xbf16>, vector<128x32xf32> -> vector<128x32xf32>
    %c3_76 = arith.constant 3 : index
    %c0_77 = arith.constant 0 : index
    %c0_78 = arith.constant 0 : index
    %151 = vector.load %arg7[%c3_76, %c0_77, %c0_78] : memref<4x128x32xbf16, #tpu.memory_space<vmem>>, vector<1x128x32xbf16>
    %152 = vector.shape_cast %151 : vector<1x128x32xbf16> to vector<128x32xbf16>
    %cst_79 = arith.constant dense<0.000000e+00> : vector<128x32xf32>
    %153 = tpu.matmul %25, %152, %cst_79 {dimension_numbers = #tpu.dot_dimension_numbers<[1], [0], [0], [1], [0, 0, 1, 1], [], []>} : vector<128x128xbf16>, vector<128x32xbf16>, vector<128x32xf32> -> vector<128x32xf32>
    %c3_80 = arith.constant 3 : index
    %c0_81 = arith.constant 0 : index
    %c0_82 = arith.constant 0 : index
    %154 = vector.load %arg8[%c3_80, %c0_81, %c0_82] : memref<4x128x32xbf16, #tpu.memory_space<vmem>>, vector<1x128x32xbf16>
    %155 = vector.shape_cast %154 : vector<1x128x32xbf16> to vector<128x32xbf16>
    %cst_83 = arith.constant dense<0.000000e+00> : vector<128x32xf32>
    %156 = tpu.matmul %25, %155, %cst_83 {dimension_numbers = #tpu.dot_dimension_numbers<[1], [0], [0], [1], [0, 0, 1, 1], [], []>} : vector<128x128xbf16>, vector<128x32xbf16>, vector<128x32xf32> -> vector<128x32xf32>
    %157 = vector.shape_cast %150 : vector<128x32xf32> to vector<2x64x32xf32>
    %158 = arith.truncf %157 : vector<2x64x32xf32> to vector<2x64x32xbf16>
    %159 = vector.shape_cast %153 : vector<128x32xf32> to vector<2x64x32xf32>
    %160 = arith.truncf %159 : vector<2x64x32xf32> to vector<2x64x32xbf16>
    %161 = vector.shape_cast %156 : vector<128x32xf32> to vector<2x64x32xf32>
    %162 = arith.truncf %161 : vector<2x64x32xf32> to vector<2x64x32xbf16>
    %cst_84 = arith.constant dense<0.000000e+00> : vector<2x64x64xf32>
    %163 = tpu.matmul %160, %158, %cst_84 {dimension_numbers = #tpu.dot_dimension_numbers<[2], [2], [1], [1], [0, 0, 0, 1, 1, 1], [0], [0]>} : vector<2x64x32xbf16>, vector<2x64x32xbf16>, vector<2x64x64xf32> -> vector<2x64x64xf32>
    %cst_85 = arith.constant 5.65685415 : f32
    %164 = vector.broadcast %cst_85 : f32 to vector<2x64x64xf32>
    %165 = arith.mulf %163, %164 : vector<2x64x64xf32>
    %cst_86 = arith.constant -1.000000e+30 : f32
    %166 = vector.shape_cast %28 : vector<1x64x64xi1> to vector<1x64x64xi1>
    %167 = vector.broadcast %166 : vector<1x64x64xi1> to vector<2x64x64xi1>
    %168 = vector.broadcast %cst_86 : f32 to vector<2x64x64xf32>
    %169 = arith.select %167, %165, %168 : vector<2x64x64xi1>, vector<2x64x64xf32>
    %cst_87 = arith.constant dense<0xFF800000> : vector<2x64xf32>
    %170 = vector.multi_reduction <maximumf>, %169, %cst_87 [2] : vector<2x64x64xf32> to vector<2x64xf32>
    %171 = vector.shape_cast %170 : vector<2x64xf32> to vector<2x64x1xf32>
    %172 = vector.broadcast %171 : vector<2x64x1xf32> to vector<2x64x64xf32>
    %173 = arith.subf %169, %172 : vector<2x64x64xf32>
    %174 = math.exp %173 : vector<2x64x64xf32>
    %cst_88 = arith.constant dense<0.000000e+00> : vector<2x64xf32>
    %175 = vector.multi_reduction <add>, %174, %cst_88 [2] : vector<2x64x64xf32> to vector<2x64xf32>
    %176 = vector.shape_cast %175 : vector<2x64xf32> to vector<2x64x1xf32>
    %177 = tpu.reciprocal %176 {approx = true} : vector<2x64x1xf32> -> vector<2x64x1xf32>
    %178 = vector.broadcast %177 : vector<2x64x1xf32> to vector<2x64x64xf32>
    %179 = arith.mulf %174, %178 : vector<2x64x64xf32>
    %180 = arith.truncf %179 : vector<2x64x64xf32> to vector<2x64x64xbf16>
    %cst_89 = arith.constant dense<0.000000e+00> : vector<2x64x32xf32>
    %181 = tpu.matmul %180, %162, %cst_89 {dimension_numbers = #tpu.dot_dimension_numbers<[1], [1], [2], [2], [0, 0, 0, 2, 1, 2], [0], [0]>} : vector<2x64x64xbf16>, vector<2x64x32xbf16>, vector<2x64x32xf32> -> vector<2x64x32xf32>
    %182 = vector.shape_cast %181 : vector<2x64x32xf32> to vector<128x32xf32>
    %183 = arith.truncf %182 : vector<128x32xf32> to vector<128x32xbf16>
    %c3_90 = arith.constant 3 : index
    %c0_91 = arith.constant 0 : index
    %c0_92 = arith.constant 0 : index
    %184 = vector.load %arg9[%c3_90, %c0_91, %c0_92] : memref<4x32x128xbf16, #tpu.memory_space<vmem>>, vector<1x32x128xbf16>
    %185 = vector.shape_cast %184 : vector<1x32x128xbf16> to vector<32x128xbf16>
    %cst_93 = arith.constant dense<0.000000e+00> : vector<128x128xf32>
    %186 = tpu.matmul %183, %185, %cst_93 {dimension_numbers = #tpu.dot_dimension_numbers<[1], [0], [0], [1], [0, 0, 1, 1], [], []>} : vector<128x32xbf16>, vector<32x128xbf16>, vector<128x128xf32> -> vector<128x128xf32>
    %187 = arith.addf %147, %186 : vector<128x128xf32>
    %188 = arith.addf %0, %187 : vector<128x128xf32>
    %c0_94 = arith.constant 0 : index
    %c0_95 = arith.constant 0 : index
    %189 = vector.load %arg10[%c0_94, %c0_95] : memref<1x128xf32, #tpu.memory_space<vmem>>, vector<1x128xf32>
    %190 = vector.broadcast %189 : vector<1x128xf32> to vector<128x128xf32>
    %191 = arith.addf %188, %190 : vector<128x128xf32>
    %c0_96 = arith.constant 0 : index
    %c0_97 = arith.constant 0 : index
    %192 = vector.load %arg4[%c0_96, %c0_97] : memref<1x128xf32, #tpu.memory_space<vmem>>, vector<1x128xf32>
    %c0_98 = arith.constant 0 : index
    %c0_99 = arith.constant 0 : index
    %193 = vector.load %arg5[%c0_98, %c0_99] : memref<1x128xf32, #tpu.memory_space<vmem>>, vector<1x128xf32>
    %cst_100 = arith.constant dense<0.000000e+00> : vector<128xf32>
    %194 = vector.multi_reduction <add>, %191, %cst_100 [1] : vector<128x128xf32> to vector<128xf32>
    %195 = vector.shape_cast %194 : vector<128xf32> to vector<128x1xf32>
    %cst_101 = arith.constant 1.280000e+02 : f32
    %196 = vector.broadcast %cst_101 : f32 to vector<128x1xf32>
    %197 = arith.divf %195, %196 : vector<128x1xf32>
    %198 = vector.broadcast %197 : vector<128x1xf32> to vector<128x128xf32>
    %199 = arith.subf %191, %198 : vector<128x128xf32>
    %200 = arith.mulf %199, %199 : vector<128x128xf32>
    %cst_102 = arith.constant dense<0.000000e+00> : vector<128xf32>
    %201 = vector.multi_reduction <add>, %200, %cst_102 [1] : vector<128x128xf32> to vector<128xf32>
    %202 = vector.shape_cast %201 : vector<128xf32> to vector<128x1xf32>
    %cst_103 = arith.constant 1.280000e+02 : f32
    %203 = vector.broadcast %cst_103 : f32 to vector<128x1xf32>
    %204 = arith.divf %202, %203 : vector<128x1xf32>
    %205 = vector.broadcast %197 : vector<128x1xf32> to vector<128x128xf32>
    %206 = arith.subf %191, %205 : vector<128x128xf32>
    %cst_104 = arith.constant 9.99999974E-6 : f32
    %207 = vector.broadcast %cst_104 : f32 to vector<128x1xf32>
    %208 = arith.addf %204, %207 : vector<128x1xf32>
    %209 = math.rsqrt %208 : vector<128x1xf32>
    %210 = vector.broadcast %209 : vector<128x1xf32> to vector<128x128xf32>
    %211 = arith.mulf %206, %210 : vector<128x128xf32>
    %212 = vector.broadcast %192 : vector<1x128xf32> to vector<128x128xf32>
    %213 = arith.mulf %211, %212 : vector<128x128xf32>
    %214 = vector.broadcast %193 : vector<1x128xf32> to vector<128x128xf32>
    %215 = arith.addf %213, %214 : vector<128x128xf32>
    %216 = arith.truncf %215 : vector<128x128xf32> to vector<128x128xbf16>
    %c0_105 = arith.constant 0 : index
    %c0_106 = arith.constant 0 : index
    %217 = vector.load %arg11[%c0_105, %c0_106] : memref<128x512xbf16, #tpu.memory_space<vmem>>, vector<128x512xbf16>
    %cst_107 = arith.constant dense<0.000000e+00> : vector<128x512xf32>
    %218 = tpu.matmul %216, %217, %cst_107 {dimension_numbers = #tpu.dot_dimension_numbers<[1], [0], [0], [1], [0, 0, 1, 1], [], []>} : vector<128x128xbf16>, vector<128x512xbf16>, vector<128x512xf32> -> vector<128x512xf32>
    %c0_108 = arith.constant 0 : index
    %c0_109 = arith.constant 0 : index
    %219 = vector.load %arg12[%c0_108, %c0_109] : memref<1x512xf32, #tpu.memory_space<vmem>>, vector<1x512xf32>
    %220 = vector.broadcast %219 : vector<1x512xf32> to vector<128x512xf32>
    %221 = arith.addf %218, %220 : vector<128x512xf32>
    %cst_110 = arith.constant 0.000000e+00 : f32
    %222 = vector.broadcast %cst_110 : f32 to vector<128x512xf32>
    %223 = arith.maximumf %221, %222 : vector<128x512xf32>
    %224 = arith.truncf %223 : vector<128x512xf32> to vector<128x512xbf16>
    %c0_111 = arith.constant 0 : index
    %c0_112 = arith.constant 0 : index
    %225 = vector.load %arg13[%c0_111, %c0_112] : memref<512x128xbf16, #tpu.memory_space<vmem>>, vector<512x128xbf16>
    %cst_113 = arith.constant dense<0.000000e+00> : vector<128x128xf32>
    %226 = tpu.matmul %224, %225, %cst_113 {dimension_numbers = #tpu.dot_dimension_numbers<[1], [0], [0], [1], [0, 0, 1, 1], [], []>} : vector<128x512xbf16>, vector<512x128xbf16>, vector<128x128xf32> -> vector<128x128xf32>
    %c0_114 = arith.constant 0 : index
    %c0_115 = arith.constant 0 : index
    %227 = vector.load %arg14[%c0_114, %c0_115] : memref<1x128xf32, #tpu.memory_space<vmem>>, vector<1x128xf32>
    %228 = vector.broadcast %227 : vector<1x128xf32> to vector<128x128xf32>
    %229 = arith.addf %226, %228 : vector<128x128xf32>
    %230 = arith.addf %191, %229 : vector<128x128xf32>
    %c0_116 = arith.constant 0 : index
    %c0_117 = arith.constant 0 : index
    %231 = vector.load %arg15[%c0_116, %c0_117] : memref<128x128xf32, #tpu.memory_space<vmem>>, vector<128x128xf32>
    tpu.vector_store %arg15[%c0_116, %c0_117], %230 {strides = array<i32>} : memref<128x128xf32, #tpu.memory_space<vmem>>, vector<128x128xf32>,
    return
  }
  func.func @transform_0(%arg0: i32) -> (i32, i32) {
    %c0_i32 = arith.constant 0 : i32
    %c0_i32_0 = arith.constant 0 : i32
    %c0_i32_1 = arith.constant 0 : i32
    return %c0_i32, %c0_i32_0 : i32, i32
  }
  func.func @transform_1(%arg0: i32) -> (i32, i32) {
    %c0_i32 = arith.constant 0 : i32
    %c0_i32_0 = arith.constant 0 : i32
    %c0_i32_1 = arith.constant 0 : i32
    return %c0_i32, %c0_i32_0 : i32, i32
  }
  func.func @transform_2(%arg0: i32) -> (i32, i32) {
    %c0_i32 = arith.constant 0 : i32
    %c0_i32_0 = arith.constant 0 : i32
    %c0_i32_1 = arith.constant 0 : i32
    return %c0_i32, %c0_i32_0 : i32, i32
  }
  func.func @transform_3(%arg0: i32) -> (i32, i32) {
    %c0_i32 = arith.constant 0 : i32
    %c0_i32_0 = arith.constant 0 : i32
    %c0_i32_1 = arith.constant 0 : i32
    return %c0_i32, %c0_i32_0 : i32, i32
  }
  func.func @transform_4(%arg0: i32) -> (i32, i32) {
    %c0_i32 = arith.constant 0 : i32
    %c0_i32_0 = arith.constant 0 : i32
    %c0_i32_1 = arith.constant 0 : i32
    return %c0_i32, %c0_i32_0 : i32, i32
  }
  func.func @transform_5(%arg0: i32) -> (i32, i32, i32) {
    %c0_i32 = arith.constant 0 : i32
    %c0_i32_0 = arith.constant 0 : i32
    %c0_i32_1 = arith.constant 0 : i32
    %c0_i32_2 = arith.constant 0 : i32
    return %c0_i32, %c0_i32_0, %c0_i32_1 : i32, i32, i32
  }
  func.func @transform_6(%arg0: i32) -> (i32, i32, i32) {
    %c0_i32 = arith.constant 0 : i32
    %c0_i32_0 = arith.constant 0 : i32
    %c0_i32_1 = arith.constant 0 : i32
    %c0_i32_2 = arith.constant 0 : i32
    return %c0_i32, %c0_i32_0, %c0_i32_1 : i32, i32, i32
  }
  func.func @transform_7(%arg0: i32) -> (i32, i32, i32) {
    %c0_i32 = arith.constant 0 : i32
    %c0_i32_0 = arith.constant 0 : i32
    %c0_i32_1 = arith.constant 0 : i32
    %c0_i32_2 = arith.constant 0 : i32
    return %c0_i32, %c0_i32_0, %c0_i32_1 : i32, i32, i32
  }
  func.func @transform_8(%arg0: i32) -> (i32, i32, i32) {
    %c0_i32 = arith.constant 0 : i32
    %c0_i32_0 = arith.constant 0 : i32
    %c0_i32_1 = arith.constant 0 : i32
    %c0_i32_2 = arith.constant 0 : i32
    return %c0_i32, %c0_i32_0, %c0_i32_1 : i32, i32, i32
  }
  func.func @transform_9(%arg0: i32) -> (i32, i32) {
    %c0_i32 = arith.constant 0 : i32
    %c0_i32_0 = arith.constant 0 : i32
    %c0_i32_1 = arith.constant 0 : i32
    return %c0_i32, %c0_i32_0 : i32, i32
  }
  func.func @transform_10(%arg0: i32) -> (i32, i32) {
    %c0_i32 = arith.constant 0 : i32
    %c0_i32_0 = arith.constant 0 : i32
    %c0_i32_1 = arith.constant 0 : i32
    return %c0_i32, %c0_i32_0 : i32, i32
  }
  func.func @transform_11(%arg0: i32) -> (i32, i32) {
    %c0_i32 = arith.constant 0 : i32
    %c0_i32_0 = arith.constant 0 : i32
    %c0_i32_1 = arith.constant 0 : i32
    return %c0_i32, %c0_i32_0 : i32, i32
  }
  func.func @transform_12(%arg0: i32) -> (i32, i32) {
    %c0_i32 = arith.constant 0 : i32
    %c0_i32_0 = arith.constant 0 : i32
    %c0_i32_1 = arith.constant 0 : i32
    return %c0_i32, %c0_i32_0 : i32, i32
  }
  func.func @transform_13(%arg0: i32) -> (i32, i32) {
    %c0_i32 = arith.constant 0 : i32
    %c0_i32_0 = arith.constant 0 : i32
    %c0_i32_1 = arith.constant 0 : i32
    return %c0_i32, %c0_i32_0 : i32, i32
  }
  func.func @transform_14(%arg0: i32) -> (i32, i32) {
    %c0_i32 = arith.constant 0 : i32
    %c0_i32_0 = arith.constant 0 : i32
    %c0_i32_1 = arith.constant 0 : i32
    return %c0_i32, %c0_i32_0 : i32, i32
  }
}

</mosaic_0001>

<llo_original>
// kernel: tpu_custom_call.1
$region0: #{tpu_custom_call.1}
  #allocation0 [shape = 'u32[]', space=smem, size = 0x4, offset = 0x4, fixed_abs, tag = 'smem constant byte address 0x4 - core index']
  #allocation1 [shape = 'u32[144,128]{1,0:T(1,128)}', space=vmem, size = 0x12000, scoped, tag = 'internal scratch']
  %s0 = inlined_call_operand.vmem [shape: f32[128,128], index: 0, kind: input, shape index: {}]
  %s1 = inlined_call_operand.vmem [shape: f32[1,128], index: 1, kind: input, shape index: {}]
  %s2 = inlined_call_operand.vmem [shape: f32[1,128], index: 2, kind: input, shape index: {}]
  %s3 = inlined_call_operand.vmem [shape: f32[1,128], index: 3, kind: input, shape index: {}]
  %s4 = inlined_call_operand.vmem [shape: f32[1,128], index: 4, kind: input, shape index: {}]
  %s5 = inlined_call_operand.vmem [shape: bf16[4,128,32], index: 5, kind: input, shape index: {}]
  %s6 = inlined_call_operand.vmem [shape: bf16[4,128,32], index: 6, kind: input, shape index: {}]
  %s7 = inlined_call_operand.vmem [shape: bf16[4,128,32], index: 7, kind: input, shape index: {}]
  %s8 = inlined_call_operand.vmem [shape: bf16[4,32,128], index: 8, kind: input, shape index: {}]
  %s9 = inlined_call_operand.vmem [shape: f32[1,128], index: 9, kind: input, shape index: {}]
  %s10 = inlined_call_operand.vmem [shape: bf16[128,512], index: 10, kind: input, shape index: {}]
  %s11 = inlined_call_operand.vmem [shape: f32[1,512], index: 11, kind: input, shape index: {}]
  %s12 = inlined_call_operand.vmem [shape: bf16[512,128], index: 12, kind: input, shape index: {}]
  %s13 = inlined_call_operand.vmem [shape: f32[1,128], index: 13, kind: input, shape index: {}]
  %s14 = inlined_call_operand.hbm [shape: f32[128,128], index: 14, kind: output, shape index: {}]
  %s15 = sld [smem:[#allocation0]]
  $region66: #{tpu_custom_call.1} parent=0
    _
  %s17 = ssub.s32 1, %s15
  %s18 = scalar_select 0, %s17, %s15
  $region1: #{tpu_custom_call.1} parent=0
    #allocation2 [shape = 'u8[65536]{0}', space=vmem, size = 0x10000, scoped, tag = 'output window, operand 0, single buffered']
    #allocation3 [shape = 's32[1]{0}', space=sflag, size = 0x4, scoped, tag = 'scoped memory for tpu_custom_call.1']
    %19 = vsyncpa [#allocation3], 0
    // Predicated region
    $region2: #{tpu_custom_call.1} parent=1 // pred_check
      _
    $region3: #{tpu_custom_call.1} parent=1 // pred_check_branch
      %21 = sbr.rel (0) target = $region5
    $region4: #{tpu_custom_call.1} parent=1 // pred_region
      _
    $region5: #{tpu_custom_call.1} parent=1 // pred_fallthru
      _
    // Predicated region
    $region6: #{tpu_custom_call.1} parent=1 // pred_check
      _
    $region7: #{tpu_custom_call.1} parent=1 // pred_check_branch
      %23 = sbr.rel (0) target = $region9
    $region8: #{tpu_custom_call.1} parent=1 // pred_region
      _
    $region9: #{tpu_custom_call.1} parent=1 // pred_fallthru
      _
    // Predicated region
    $region10: #{tpu_custom_call.1} parent=1 // pred_check
      _
    $region11: #{tpu_custom_call.1} parent=1 // pred_check_branch
      %25 = sbr.rel (0) target = $region13
    $region12: #{tpu_custom_call.1} parent=1 // pred_region
      _
    $region13: #{tpu_custom_call.1} parent=1 // pred_fallthru
      _
    // Predicated region
    $region14: #{tpu_custom_call.1} parent=1 // pred_check
      _
    $region15: #{tpu_custom_call.1} parent=1 // pred_check_branch
      %27 = sbr.rel (0) target = $region17
    $region16: #{tpu_custom_call.1} parent=1 // pred_region
      _
    $region17: #{tpu_custom_call.1} parent=1 // pred_fallthru
      _
    // Predicated region
    $region18: #{tpu_custom_call.1} parent=1 // pred_check
      _
    $region19: #{tpu_custom_call.1} parent=1 // pred_check_branch
      %29 = sbr.rel (0) target = $region21
    $region20: #{tpu_custom_call.1} parent=1 // pred_region
      _
    $region21: #{tpu_custom_call.1} parent=1 // pred_fallthru
      _
    // Predicated region
    $region22: #{tpu_custom_call.1} parent=1 // pred_check
      _
    $region23: #{tpu_custom_call.1} parent=1 // pred_check_branch
      %31 = sbr.rel (0) target = $region25
    $region24: #{tpu_custom_call.1} parent=1 // pred_region
      _
    $region25: #{tpu_custom_call.1} parent=1 // pred_fallthru
      _
    // Predicated region
    $region26: #{tpu_custom_call.1} parent=1 // pred_check
      _
    $region27: #{tpu_custom_call.1} parent=1 // pred_check_branch
      %33 = sbr.rel (0) target = $region29
    $region28: #{tpu_custom_call.1} parent=1 // pred_region
      _
    $region29: #{tpu_custom_call.1} parent=1 // pred_fallthru
      _
    // Predicated region
    $region30: #{tpu_custom_call.1} parent=1 // pred_check
      _
    $region31: #{tpu_custom_call.1} parent=1 // pred_check_branch
      %35 = sbr.rel (0) target = $region33
    $region32: #{tpu_custom_call.1} parent=1 // pred_region
      _
    $region33: #{tpu_custom_call.1} parent=1 // pred_fallthru
      _
    // Predicated region
    $region34: #{tpu_custom_call.1} parent=1 // pred_check
      _
    $region35: #{tpu_custom_call.1} parent=1 // pred_check_branch
      %37 = sbr.rel (0) target = $region37
    $region36: #{tpu_custom_call.1} parent=1 // pred_region
      _
    $region37: #{tpu_custom_call.1} parent=1 // pred_fallthru
      _
    // Predicated region
    $region38: #{tpu_custom_call.1} parent=1 // pred_check
      _
    $region39: #{tpu_custom_call.1} parent=1 // pred_check_branch
      %39 = sbr.rel (0) target = $region41
    $region40: #{tpu_custom_call.1} parent=1 // pred_region
      _
    $region41: #{tpu_custom_call.1} parent=1 // pred_fallthru
      _
    // Predicated region
    $region42: #{tpu_custom_call.1} parent=1 // pred_check
      _
    $region43: #{tpu_custom_call.1} parent=1 // pred_check_branch
      %41 = sbr.rel (0) target = $region45
    $region44: #{tpu_custom_call.1} parent=1 // pred_region
      _
    $region45: #{tpu_custom_call.1} parent=1 // pred_fallthru
      _
    // Predicated region
    $region46: #{tpu_custom_call.1} parent=1 // pred_check
      _
    $region47: #{tpu_custom_call.1} parent=1 // pred_check_branch
      %43 = sbr.rel (0) target = $region49
    $region48: #{tpu_custom_call.1} parent=1 // pred_region
      _
    $region49: #{tpu_custom_call.1} parent=1 // pred_fallthru
      _
    // Predicated region
    $region50: #{tpu_custom_call.1} parent=1 // pred_check
      _
    $region51: #{tpu_custom_call.1} parent=1 // pred_check_branch
      %45 = sbr.rel (0) target = $region53
    $region52: #{tpu_custom_call.1} parent=1 // pred_region
      _
    $region53: #{tpu_custom_call.1} parent=1 // pred_fallthru
      _
    // Predicated region
    $region54: #{tpu_custom_call.1} parent=1 // pred_check
      _
    $region55: #{tpu_custom_call.1} parent=1 // pred_check_branch
      %47 = sbr.rel (0) target = $region57
    $region56: #{tpu_custom_call.1} parent=1 // pred_region
      _
    $region57: #{tpu_custom_call.1} parent=1 // pred_fallthru
      _
    %v49 = vld [vmem:[%s0] sm:$0xff]
    %v50 = vld [vmem:[%s0 + $0x8] sm:$0xff]
    %v51 = vld [vmem:[%s0 + $0x10] sm:$0xff]
    %v52 = vld [vmem:[%s0 + $0x18] sm:$0xff]
    %v53 = vld [vmem:[%s0 + $0x20] sm:$0xff]
    %v54 = vld [vmem:[%s0 + $0x28] sm:$0xff]
    %v55 = vld [vmem:[%s0 + $0x30] sm:$0xff]
    %v56 = vld [vmem:[%s0 + $0x38] sm:$0xff]
    %v57 = vld [vmem:[%s0 + $0x40] sm:$0xff]
    %v58 = vld [vmem:[%s0 + $0x48] sm:$0xff]
    %v59 = vld [vmem:[%s0 + $0x50] sm:$0xff]
    %v60 = vld [vmem:[%s0 + $0x58] sm:$0xff]
    %v61 = vld [vmem:[%s0 + $0x60] sm:$0xff]
    %v62 = vld [vmem:[%s0 + $0x68] sm:$0xff]
    %v63 = vld [vmem:[%s0 + $0x70] sm:$0xff]
    %v64 = vld [vmem:[%s0 + $0x78] sm:$0xff]
    %v65 = vld [vmem:[%s1] sm:$0x1]
    %v66 = vld [vmem:[%s2] sm:$0x1]
    %67 = vadd.xlane.f32.xlu0 %v49
    %v68 = vpop.xlane.xlu0 %67
    %69 = vadd.xlane.f32.xlu0 %v50
    %v70 = vpop.xlane.xlu0 %69
    %71 = vadd.xlane.f32.xlu0 %v51
    %v72 = vpop.xlane.xlu0 %71
    %73 = vadd.xlane.f32.xlu0 %v52
    %v74 = vpop.xlane.xlu0 %73
    %75 = vadd.xlane.f32.xlu0 %v53
    %v76 = vpop.xlane.xlu0 %75
    %77 = vadd.xlane.f32.xlu0 %v54
    %v78 = vpop.xlane.xlu0 %77
    %79 = vadd.xlane.f32.xlu0 %v55
    %v80 = vpop.xlane.xlu0 %79
    %81 = vadd.xlane.f32.xlu0 %v56
    %v82 = vpop.xlane.xlu0 %81
    %83 = vadd.xlane.f32.xlu0 %v57
    %v84 = vpop.xlane.xlu0 %83
    %85 = vadd.xlane.f32.xlu0 %v58
    %v86 = vpop.xlane.xlu0 %85
    %87 = vadd.xlane.f32.xlu0 %v59
    %v88 = vpop.xlane.xlu0 %87
    %89 = vadd.xlane.f32.xlu0 %v60
    %v90 = vpop.xlane.xlu0 %89
    %91 = vadd.xlane.f32.xlu0 %v61
    %v92 = vpop.xlane.xlu0 %91
    %93 = vadd.xlane.f32.xlu0 %v62
    %v94 = vpop.xlane.xlu0 %93
    %95 = vadd.xlane.f32.xlu0 %v63
    %v96 = vpop.xlane.xlu0 %95
    %97 = vadd.xlane.f32.xlu0 %v64
    %v98 = vpop.xlane.xlu0 %97
    %v99 = vrcp.pop 128.0
    %v100 = vmul.f32 %v68, %v99
    %v101 = vmul.f32 %v70, %v99
    %v102 = vmul.f32 %v72, %v99
    %v103 = vmul.f32 %v74, %v99
    %v104 = vmul.f32 %v76, %v99
    %v105 = vmul.f32 %v78, %v99
    %v106 = vmul.f32 %v80, %v99
    %v107 = vmul.f32 %v82, %v99
    %v108 = vmul.f32 %v84, %v99
    %v109 = vmul.f32 %v86, %v99
    %v110 = vmul.f32 %v88, %v99
    %v111 = vmul.f32 %v90, %v99
    %v112 = vmul.f32 %v92, %v99
    %v113 = vmul.f32 %v94, %v99
    %v114 = vmul.f32 %v96, %v99
    %v115 = vmul.f32 %v98, %v99
    %v116 = vsub.f32 %v49, %v100
    %v117 = vsub.f32 %v50, %v101
    %v118 = vsub.f32 %v51, %v102
    %v119 = vsub.f32 %v52, %v103
    %v120 = vsub.f32 %v53, %v104
    %v121 = vsub.f32 %v54, %v105
    %v122 = vsub.f32 %v55, %v106
    %v123 = vsub.f32 %v56, %v107
    %v124 = vsub.f32 %v57, %v108
    %v125 = vsub.f32 %v58, %v109
    %v126 = vsub.f32 %v59, %v110
    %v127 = vsub.f32 %v60, %v111
    %v128 = vsub.f32 %v61, %v112
    %v129 = vsub.f32 %v62, %v113
    %v130 = vsub.f32 %v63, %v114
    %v131 = vsub.f32 %v64, %v115
    %v132 = vmul.f32 %v116, %v116
    %v133 = vmul.f32 %v117, %v117
    %v134 = vmul.f32 %v118, %v118
    %v135 = vmul.f32 %v119, %v119
    %v136 = vmul.f32 %v120, %v120
    %v137 = vmul.f32 %v121, %v121
    %v138 = vmul.f32 %v122, %v122
    %v139 = vmul.f32 %v123, %v123
    %v140 = vmul.f32 %v124, %v124
    %v141 = vmul.f32 %v125, %v125
    %v142 = vmul.f32 %v126, %v126
    %v143 = vmul.f32 %v127, %v127
    %v144 = vmul.f32 %v128, %v128
    %v145 = vmul.f32 %v129, %v129
    %v146 = vmul.f32 %v130, %v130
    %v147 = vmul.f32 %v131, %v131
    %148 = vadd.xlane.f32.xlu0 %v132
    %v149 = vpop.xlane.xlu0 %148
    %150 = vadd.xlane.f32.xlu0 %v133
    %v151 = vpop.xlane.xlu0 %150
    %152 = vadd.xlane.f32.xlu0 %v134
    %v153 = vpop.xlane.xlu0 %152
    %154 = vadd.xlane.f32.xlu0 %v135
    %v155 = vpop.xlane.xlu0 %154
    %156 = vadd.xlane.f32.xlu0 %v136
    %v157 = vpop.xlane.xlu0 %156
    %158 = vadd.xlane.f32.xlu0 %v137
    %v159 = vpop.xlane.xlu0 %158
    %160 = vadd.xlane.f32.xlu0 %v138
    %v161 = vpop.xlane.xlu0 %160
    %162 = vadd.xlane.f32.xlu0 %v139
    %v163 = vpop.xlane.xlu0 %162
    %164 = vadd.xlane.f32.xlu0 %v140
    %v165 = vpop.xlane.xlu0 %164
    %166 = vadd.xlane.f32.xlu0 %v141
    %v167 = vpop.xlane.xlu0 %166
    %168 = vadd.xlane.f32.xlu0 %v142
    %v169 = vpop.xlane.xlu0 %168
    %170 = vadd.xlane.f32.xlu0 %v143
    %v171 = vpop.xlane.xlu0 %170
    %172 = vadd.xlane.f32.xlu0 %v144
    %v173 = vpop.xlane.xlu0 %172
    %174 = vadd.xlane.f32.xlu0 %v145
    %v175 = vpop.xlane.xlu0 %174
    %176 = vadd.xlane.f32.xlu0 %v146
    %v177 = vpop.xlane.xlu0 %176
    %178 = vadd.xlane.f32.xlu0 %v147
    %v179 = vpop.xlane.xlu0 %178
    %v180 = vmul.f32 %v149, %v99
    %v181 = vmul.f32 %v151, %v99
    %v182 = vmul.f32 %v153, %v99
    %v183 = vmul.f32 %v155, %v99
    %v184 = vmul.f32 %v157, %v99
    %v185 = vmul.f32 %v159, %v99
    %v186 = vmul.f32 %v161, %v99
    %v187 = vmul.f32 %v163, %v99
    %v188 = vmul.f32 %v165, %v99
    %v189 = vmul.f32 %v167, %v99
    %v190 = vmul.f32 %v169, %v99
    %v191 = vmul.f32 %v171, %v99
    %v192 = vmul.f32 %v173, %v99
    %v193 = vmul.f32 %v175, %v99
    %v194 = vmul.f32 %v177, %v99
    %v195 = vmul.f32 %v179, %v99
    %v196 = vadd.f32 %v180, 1e-05
    %v197 = vadd.f32 %v181, 1e-05
    %v198 = vadd.f32 %v182, 1e-05
    %v199 = vadd.f32 %v183, 1e-05
    %v200 = vadd.f32 %v184, 1e-05
    %v201 = vadd.f32 %v185, 1e-05
    %v202 = vadd.f32 %v186, 1e-05
    %v203 = vadd.f32 %v187, 1e-05
    %v204 = vadd.f32 %v188, 1e-05
    %v205 = vadd.f32 %v189, 1e-05
    %v206 = vadd.f32 %v190, 1e-05
    %v207 = vadd.f32 %v191, 1e-05
    %v208 = vadd.f32 %v192, 1e-05
    %v209 = vadd.f32 %v193, 1e-05
    %v210 = vadd.f32 %v194, 1e-05
    %v211 = vadd.f32 %v195, 1e-05
    %v212 = vrsqrt.pop %v196
    %v213 = vrsqrt.pop %v197
    %v214 = vrsqrt.pop %v198
    %v215 = vrsqrt.pop %v199
    %v216 = vrsqrt.pop %v200
    %v217 = vrsqrt.pop %v201
    %v218 = vrsqrt.pop %v202
    %v219 = vrsqrt.pop %v203
    %v220 = vrsqrt.pop %v204
    %v221 = vrsqrt.pop %v205
    %v222 = vrsqrt.pop %v206
    %v223 = vrsqrt.pop %v207
    %v224 = vrsqrt.pop %v208
    %v225 = vrsqrt.pop %v209
    %v226 = vrsqrt.pop %v210
    %v227 = vrsqrt.pop %v211
    %v228 = vmul.f32 %v116, %v212
    %v229 = vmul.f32 %v117, %v213
    %v230 = vmul.f32 %v118, %v214
    %v231 = vmul.f32 %v119, %v215
    %v232 = vmul.f32 %v120, %v216
    %v233 = vmul.f32 %v121, %v217
    %v234 = vmul.f32 %v122, %v218
    %v235 = vmul.f32 %v123, %v219
    %v236 = vmul.f32 %v124, %v220
    %v237 = vmul.f32 %v125, %v221
    %v238 = vmul.f32 %v126, %v222
    %v239 = vmul.f32 %v127, %v223
    %v240 = vmul.f32 %v128, %v224
    %v241 = vmul.f32 %v129, %v225
    %v242 = vmul.f32 %v130, %v226
    %v243 = vmul.f32 %v131, %v227
    %v245 = vlaneseq
    %v246 = vshrl.u32 %v245, 7
    %v247 = vsub.s32 0, %v246
    %v248 = vrot.slane %v65, %v247
    %v250 = vmul.f32 %v228, %v248
    %v251 = vmul.f32 %v229, %v248
    %v252 = vmul.f32 %v230, %v248
    %v253 = vmul.f32 %v231, %v248
    %v254 = vmul.f32 %v232, %v248
    %v255 = vmul.f32 %v233, %v248
    %v256 = vmul.f32 %v234, %v248
    %v257 = vmul.f32 %v235, %v248
    %v258 = vmul.f32 %v236, %v248
    %v259 = vmul.f32 %v237, %v248
    %v260 = vmul.f32 %v238, %v248
    %v261 = vmul.f32 %v239, %v248
    %v262 = vmul.f32 %v240, %v248
    %v263 = vmul.f32 %v241, %v248
    %v264 = vmul.f32 %v242, %v248
    %v265 = vmul.f32 %v243, %v248
    %v267 = vlaneseq
    %v268 = vshrl.u32 %v267, 7
    %v269 = vsub.s32 0, %v268
    %v270 = vrot.slane %v66, %v269
    %v272 = vadd.f32 %v250, %v270
    %v273 = vadd.f32 %v251, %v270
    %v274 = vadd.f32 %v252, %v270
    %v275 = vadd.f32 %v253, %v270
    %v276 = vadd.f32 %v254, %v270
    %v277 = vadd.f32 %v255, %v270
    %v278 = vadd.f32 %v256, %v270
    %v279 = vadd.f32 %v257, %v270
    %v280 = vadd.f32 %v258, %v270
    %v281 = vadd.f32 %v259, %v270
    %v282 = vadd.f32 %v260, %v270
    %v283 = vadd.f32 %v261, %v270
    %v284 = vadd.f32 %v262, %v270
    %v285 = vadd.f32 %v263, %v270
    %v286 = vadd.f32 %v264, %v270
    %v287 = vadd.f32 %v265, %v270
    %v288 = vpack.c.bf16 %v273, %v272
    %v289 = vpack.c.bf16 %v275, %v274
    %v290 = vpack.c.bf16 %v277, %v276
    %v291 = vpack.c.bf16 %v279, %v278
    %v292 = vpack.c.bf16 %v281, %v280
    %v293 = vpack.c.bf16 %v283, %v282
    %v294 = vpack.c.bf16 %v285, %v284
    %v295 = vpack.c.bf16 %v287, %v286
    %v296 = vlaneseq
    %v297 = vshrl.u32 %v296, 7
    %v298 = vadd.s32 %v297, 8
    %v299 = vadd.s32 %v297, 16
    %v300 = vadd.s32 %v297, 24
    %v301 = vadd.s32 %v297, 32
    %v302 = vadd.s32 %v297, 40
    %v303 = vadd.s32 %v297, 48
    %v304 = vadd.s32 %v297, 56
    %v305 = vlaneseq
    %v306 = vand.u32 %v305, 127
    %vm307 = vcmp.le.s32.totalorder %v297, %v306
    %vm308 = vcmp.le.s32.totalorder %v298, %v306
    %vm309 = vcmp.le.s32.totalorder %v299, %v306
    %vm310 = vcmp.le.s32.totalorder %v300, %v306
    %vm311 = vcmp.le.s32.totalorder %v301, %v306
    %vm312 = vcmp.le.s32.totalorder %v302, %v306
    %vm313 = vcmp.le.s32.totalorder %v303, %v306
    %vm314 = vcmp.le.s32.totalorder %v304, %v306
    %v315 = vld [vmem:[%s5] sm:$0xf]
    %v316 = vld [vmem:[%s5 + $0x4] sm:$0xf]
    %v317 = vld [vmem:[%s5 + $0x8] sm:$0xf]
    %v318 = vld [vmem:[%s5 + $0xc] sm:$0xf]
    %v319 = vld [vmem:[%s5 + $0x10] sm:$0xf]
    %v320 = vld [vmem:[%s5 + $0x14] sm:$0xf]
    %v321 = vld [vmem:[%s5 + $0x18] sm:$0xf]
    %v322 = vld [vmem:[%s5 + $0x1c] sm:$0xf]
    %v323 = vld [vmem:[%s5 + $0x20] sm:$0xf]
    %v324 = vld [vmem:[%s5 + $0x24] sm:$0xf]
    %v325 = vld [vmem:[%s5 + $0x28] sm:$0xf]
    %v326 = vld [vmem:[%s5 + $0x2c] sm:$0xf]
    %v327 = vld [vmem:[%s5 + $0x30] sm:$0xf]
    %v328 = vld [vmem:[%s5 + $0x34] sm:$0xf]
    %v329 = vld [vmem:[%s5 + $0x38] sm:$0xf]
    %v330 = vld [vmem:[%s5 + $0x3c] sm:$0xf]
    %v347 = vunpack.c.l.b16 %v315
    %v348 = vunpack.c.l.b16 %v316
    %v349 = vunpack.c.l.b16 %v317
    %v350 = vunpack.c.l.b16 %v318
    %v351 = vunpack.c.l.b16 %v319
    %v352 = vunpack.c.l.b16 %v320
    %v353 = vunpack.c.l.b16 %v321
    %v354 = vunpack.c.l.b16 %v322
    %v355 = vunpack.c.l.b16 %v323
    %v356 = vunpack.c.l.b16 %v324
    %v357 = vunpack.c.l.b16 %v325
    %v358 = vunpack.c.l.b16 %v326
    %v359 = vunpack.c.l.b16 %v327
    %v360 = vunpack.c.l.b16 %v328
    %v361 = vunpack.c.l.b16 %v329
    %v362 = vunpack.c.l.b16 %v330
    %v363 = vpack.c.b16 %v348, %v347
    %v364 = vpack.c.b16 %v350, %v349
    %v365 = vpack.c.b16 %v352, %v351
    %v366 = vpack.c.b16 %v354, %v353
    %v367 = vpack.c.b16 %v356, %v355
    %v368 = vpack.c.b16 %v358, %v357
    %v369 = vpack.c.b16 %v360, %v359
    %v370 = vpack.c.b16 %v362, %v361
    %379 = vmatprep.subr.bf16.mxu0 0
    %380 = vmatpush1.bf16.msra.mxu0 %v363
    %381 = vmatprep.subr.bf16.mxu0 0
    %382 = vmatpush1.bf16.msra.mxu0 %v364
    %383 = vmatprep.subr.bf16.mxu0 0
    %384 = vmatpush1.bf16.msra.mxu0 %v365
    %385 = vmatprep.subr.bf16.mxu0 0
    %386 = vmatpush1.bf16.msra.mxu0 %v366
    %387 = vmatprep.subr.bf16.mxu0 0
    %388 = vmatpush1.bf16.msra.mxu0 %v367
    %389 = vmatprep.subr.bf16.mxu0 0
    %390 = vmatpush1.bf16.msra.mxu0 %v368
    %391 = vmatprep.subr.bf16.mxu0 0
    %392 = vmatpush1.bf16.msra.mxu0 %v369
    %393 = vmatprep.subr.bf16.mxu0 0
    %394 = vmatpush1.bf16.msra.mxu0 %v370
    %395 = vmatprep.subr.bf16.mxu0 0
    %396 = vmatpush1.bf16.msra.mxu0 0
    %397 = vmatprep.subr.bf16.mxu0 0
    %398 = vmatpush1.bf16.msra.mxu0 0
    %399 = vmatprep.subr.bf16.mxu0 0
    %400 = vmatpush1.bf16.msra.mxu0 0
    %401 = vmatprep.subr.bf16.mxu0 0
    %402 = vmatpush1.bf16.msra.mxu0 0
    %403 = vmatprep.subr.bf16.mxu0 0
    %404 = vmatpush1.bf16.msra.mxu0 0
    %405 = vmatprep.subr.bf16.mxu0 0
    %406 = vmatpush1.bf16.msra.mxu0 0
    %407 = vmatprep.subr.bf16.mxu0 0
    %408 = vmatpush1.bf16.msra.mxu0 0
    %409 = vmatprep.subr.bf16.mxu0 0
    %410 = vmatpush1.bf16.msra.mxu0 0
    %411 = vmatprep.mubr.bf16.mxu0 0
    %412 = vmatmul.mubr.bf16.gmra.mrb[0].mxu0 %v288
    %v413 = vpop.f32.mrb[0].mxu0
    %v414 = vadd.f32 0.0, %v413
    %v415 = vpop.f32.mrb[0].mxu0
    %v416 = vpop.f32.mrb[0].mxu0
    %v417 = vadd.f32 0.0, %v416
    %v418 = vpop.f32.mrb[0].mxu0
    %419 = vmatprep.mubr.bf16.mxu0 0
    %420 = vmatmul.mubr.bf16.gmra.mrb[0].mxu0 %v289
    %v421 = vpop.f32.mrb[0].mxu0
    %v422 = vadd.f32 0.0, %v421
    %v423 = vpop.f32.mrb[0].mxu0
    %v424 = vpop.f32.mrb[0].mxu0
    %v425 = vadd.f32 0.0, %v424
    %v426 = vpop.f32.mrb[0].mxu0
    %427 = vmatprep.mubr.bf16.mxu0 0
    %428 = vmatmul.mubr.bf16.gmra.mrb[0].mxu0 %v290
    %v429 = vpop.f32.mrb[0].mxu0
    %v430 = vadd.f32 0.0, %v429
    %v431 = vpop.f32.mrb[0].mxu0
    %v432 = vpop.f32.mrb[0].mxu0
    %v433 = vadd.f32 0.0, %v432
    %v434 = vpop.f32.mrb[0].mxu0
    %435 = vmatprep.mubr.bf16.mxu0 0
    %436 = vmatmul.mubr.bf16.gmra.mrb[0].mxu0 %v291
    %v437 = vpop.f32.mrb[0].mxu0
    %v438 = vadd.f32 0.0, %v437
    %v439 = vpop.f32.mrb[0].mxu0
    %v440 = vpop.f32.mrb[0].mxu0
    %v441 = vadd.f32 0.0, %v440
    %v442 = vpop.f32.mrb[0].mxu0
    %443 = vmatprep.mubr.bf16.mxu0 0
    %444 = vmatmul.mubr.bf16.gmra.mrb[0].mxu0 %v292
    %v445 = vpop.f32.mrb[0].mxu0
    %v446 = vadd.f32 0.0, %v445
    %v447 = vpop.f32.mrb[0].mxu0
    %v448 = vpop.f32.mrb[0].mxu0
    %v449 = vadd.f32 0.0, %v448
    %v450 = vpop.f32.mrb[0].mxu0
    %451 = vmatprep.mubr.bf16.mxu0 0
    %452 = vmatmul.mubr.bf16.gmra.mrb[0].mxu0 %v293
    %v453 = vpop.f32.mrb[0].mxu0
    %v454 = vadd.f32 0.0, %v453
    %v455 = vpop.f32.mrb[0].mxu0
    %v456 = vpop.f32.mrb[0].mxu0
    %v457 = vadd.f32 0.0, %v456
    %v458 = vpop.f32.mrb[0].mxu0
    %459 = vmatprep.mubr.bf16.mxu0 0
    %460 = vmatmul.mubr.bf16.gmra.mrb[0].mxu0 %v294
    %v461 = vpop.f32.mrb[0].mxu0
    %v462 = vadd.f32 0.0, %v461
    %v463 = vpop.f32.mrb[0].mxu0
    %v464 = vpop.f32.mrb[0].mxu0
    %v465 = vadd.f32 0.0, %v464
    %v466 = vpop.f32.mrb[0].mxu0
    %467 = vmatprep.mubr.bf16.mxu0 0
    %468 = vmatmul.mubr.bf16.gmra.mrb[0].mxu0 %v295
    %v469 = vpop.f32.mrb[0].mxu0
    %v470 = vadd.f32 0.0, %v469
    %v471 = vpop.f32.mrb[0].mxu0
    %v472 = vpop.f32.mrb[0].mxu0
    %v473 = vadd.f32 0.0, %v472
    %v474 = vpop.f32.mrb[0].mxu0
    %475 = vdwg.mxu0
    %v476 = vld [vmem:[%s6] sm:$0xf]
    %v477 = vld [vmem:[%s6 + $0x4] sm:$0xf]
    %v478 = vld [vmem:[%s6 + $0x8] sm:$0xf]
    %v479 = vld [vmem:[%s6 + $0xc] sm:$0xf]
    %v480 = vld [vmem:[%s6 + $0x10] sm:$0xf]
    %v481 = vld [vmem:[%s6 + $0x14] sm:$0xf]
    %v482 = vld [vmem:[%s6 + $0x18] sm:$0xf]
    %v483 = vld [vmem:[%s6 + $0x1c] sm:$0xf]
    %v484 = vld [vmem:[%s6 + $0x20] sm:$0xf]
    %v485 = vld [vmem:[%s6 + $0x24] sm:$0xf]
    %v486 = vld [vmem:[%s6 + $0x28] sm:$0xf]
    %v487 = vld [vmem:[%s6 + $0x2c] sm:$0xf]
    %v488 = vld [vmem:[%s6 + $0x30] sm:$0xf]
    %v489 = vld [vmem:[%s6 + $0x34] sm:$0xf]
    %v490 = vld [vmem:[%s6 + $0x38] sm:$0xf]
    %v491 = vld [vmem:[%s6 + $0x3c] sm:$0xf]
    %v508 = vunpack.c.l.b16 %v476
    %v509 = vunpack.c.l.b16 %v477
    %v510 = vunpack.c.l.b16 %v478
    %v511 = vunpack.c.l.b16 %v479
    %v512 = vunpack.c.l.b16 %v480
    %v513 = vunpack.c.l.b16 %v481
    %v514 = vunpack.c.l.b16 %v482
    %v515 = vunpack.c.l.b16 %v483
    %v516 = vunpack.c.l.b16 %v484
    %v517 = vunpack.c.l.b16 %v485
    %v518 = vunpack.c.l.b16 %v486
    %v519 = vunpack.c.l.b16 %v487
    %v520 = vunpack.c.l.b16 %v488
    %v521 = vunpack.c.l.b16 %v489
    %v522 = vunpack.c.l.b16 %v490
    %v523 = vunpack.c.l.b16 %v491
    %v524 = vpack.c.b16 %v509, %v508
    %v525 = vpack.c.b16 %v511, %v510
    %v526 = vpack.c.b16 %v513, %v512
    %v527 = vpack.c.b16 %v515, %v514
    %v528 = vpack.c.b16 %v517, %v516
    %v529 = vpack.c.b16 %v519, %v518
    %v530 = vpack.c.b16 %v521, %v520
    %v531 = vpack.c.b16 %v523, %v522
    %540 = vmatprep.subr.bf16.mxu0 0
    %541 = vmatpush1.bf16.msra.mxu0 %v524
    %542 = vmatprep.subr.bf16.mxu0 0
    %543 = vmatpush1.bf16.msra.mxu0 %v525
    %544 = vmatprep.subr.bf16.mxu0 0
    %545 = vmatpush1.bf16.msra.mxu0 %v526
    %546 = vmatprep.subr.bf16.mxu0 0
    %547 = vmatpush1.bf16.msra.mxu0 %v527
    %548 = vmatprep.subr.bf16.mxu0 0
    %549 = vmatpush1.bf16.msra.mxu0 %v528
    %550 = vmatprep.subr.bf16.mxu0 0
    %551 = vmatpush1.bf16.msra.mxu0 %v529
    %552 = vmatprep.subr.bf16.mxu0 0
    %553 = vmatpush1.bf16.msra.mxu0 %v530
    %554 = vmatprep.subr.bf16.mxu0 0
    %555 = vmatpush1.bf16.msra.mxu0 %v531
    %556 = vmatprep.subr.bf16.mxu0 0
    %557 = vmatpush1.bf16.msra.mxu0 0
    %558 = vmatprep.subr.bf16.mxu0 0
    %559 = vmatpush1.bf16.msra.mxu0 0
    %560 = vmatprep.subr.bf16.mxu0 0
    %561 = vmatpush1.bf16.msra.mxu0 0
    %562 = vmatprep.subr.bf16.mxu0 0
    %563 = vmatpush1.bf16.msra.mxu0 0
    %564 = vmatprep.subr.bf16.mxu0 0
    %565 = vmatpush1.bf16.msra.mxu0 0
    %566 = vmatprep.subr.bf16.mxu0 0
    %567 = vmatpush1.bf16.msra.mxu0 0
    %568 = vmatprep.subr.bf16.mxu0 0
    %569 = vmatpush1.bf16.msra.mxu0 0
    %570 = vmatprep.subr.bf16.mxu0 0
    %571 = vmatpush1.bf16.msra.mxu0 0
    %572 = vmatprep.mubr.bf16.mxu0 0
    %573 = vmatmul.mubr.bf16.gmra.mrb[0].mxu0 %v288
    %v574 = vpop.f32.mrb[0].mxu0
    %v575 = vadd.f32 0.0, %v574
    %v576 = vpop.f32.mrb[0].mxu0
    %v577 = vpop.f32.mrb[0].mxu0
    %v578 = vadd.f32 0.0, %v577
    %v579 = vpop.f32.mrb[0].mxu0
    %580 = vmatprep.mubr.bf16.mxu0 0
    %581 = vmatmul.mubr.bf16.gmra.mrb[0].mxu0 %v289
    %v582 = vpop.f32.mrb[0].mxu0
    %v583 = vadd.f32 0.0, %v582
    %v584 = vpop.f32.mrb[0].mxu0
    %v585 = vpop.f32.mrb[0].mxu0
    %v586 = vadd.f32 0.0, %v585
    %v587 = vpop.f32.mrb[0].mxu0
    %588 = vmatprep.mubr.bf16.mxu0 0
    %589 = vmatmul.mubr.bf16.gmra.mrb[0].mxu0 %v290
    %v590 = vpop.f32.mrb[0].mxu0
    %v591 = vadd.f32 0.0, %v590
    %v592 = vpop.f32.mrb[0].mxu0
    %v593 = vpop.f32.mrb[0].mxu0
    %v594 = vadd.f32 0.0, %v593
    %v595 = vpop.f32.mrb[0].mxu0
    %596 = vmatprep.mubr.bf16.mxu0 0
    %597 = vmatmul.mubr.bf16.gmra.mrb[0].mxu0 %v291
    %v598 = vpop.f32.mrb[0].mxu0
    %v599 = vadd.f32 0.0, %v598
    %v600 = vpop.f32.mrb[0].mxu0
    %v601 = vpop.f32.mrb[0].mxu0
    %v602 = vadd.f32 0.0, %v601
    %v603 = vpop.f32.mrb[0].mxu0
    %604 = vmatprep.mubr.bf16.mxu0 0
    %605 = vmatmul.mubr.bf16.gmra.mrb[0].mxu0 %v292
    %v606 = vpop.f32.mrb[0].mxu0
    %v607 = vadd.f32 0.0, %v606
    %v608 = vpop.f32.mrb[0].mxu0
    %v609 = vpop.f32.mrb[0].mxu0
    %v610 = vadd.f32 0.0, %v609
    %v611 = vpop.f32.mrb[0].mxu0
    %612 = vmatprep.mubr.bf16.mxu0 0
    %613 = vmatmul.mubr.bf16.gmra.mrb[0].mxu0 %v293
    %v614 = vpop.f32.mrb[0].mxu0
    %v615 = vadd.f32 0.0, %v614
    %v616 = vpop.f32.mrb[0].mxu0
    %v617 = vpop.f32.mrb[0].mxu0
    %v618 = vadd.f32 0.0, %v617
    %v619 = vpop.f32.mrb[0].mxu0
    %620 = vmatprep.mubr.bf16.mxu0 0
    %621 = vmatmul.mubr.bf16.gmra.mrb[0].mxu0 %v294
    %v622 = vpop.f32.mrb[0].mxu0
    %v623 = vadd.f32 0.0, %v622
    %v624 = vpop.f32.mrb[0].mxu0
    %v625 = vpop.f32.mrb[0].mxu0
    %v626 = vadd.f32 0.0, %v625
    %v627 = vpop.f32.mrb[0].mxu0
    %628 = vmatprep.mubr.bf16.mxu0 0
    %629 = vmatmul.mubr.bf16.gmra.mrb[0].mxu0 %v295
    %v630 = vpop.f32.mrb[0].mxu0
    %v631 = vadd.f32 0.0, %v630
    %v632 = vpop.f32.mrb[0].mxu0
    %v633 = vpop.f32.mrb[0].mxu0
    %v634 = vadd.f32 0.0, %v633
    %v635 = vpop.f32.mrb[0].mxu0
    %636 = vdwg.mxu0
    %v637 = vld [vmem:[%s7] sm:$0xf]
    %v638 = vld [vmem:[%s7 + $0x4] sm:$0xf]
    %v639 = vld [vmem:[%s7 + $0x8] sm:$0xf]
    %v640 = vld [vmem:[%s7 + $0xc] sm:$0xf]
    %v641 = vld [vmem:[%s7 + $0x10] sm:$0xf]
    %v642 = vld [vmem:[%s7 + $0x14] sm:$0xf]
    %v643 = vld [vmem:[%s7 + $0x18] sm:$0xf]
    %v644 = vld [vmem:[%s7 + $0x1c] sm:$0xf]
    %v645 = vld [vmem:[%s7 + $0x20] sm:$0xf]
    %v646 = vld [vmem:[%s7 + $0x24] sm:$0xf]
    %v647 = vld [vmem:[%s7 + $0x28] sm:$0xf]
    %v648 = vld [vmem:[%s7 + $0x2c] sm:$0xf]
    %v649 = vld [vmem:[%s7 + $0x30] sm:$0xf]
    %v650 = vld [vmem:[%s7 + $0x34] sm:$0xf]
    %v651 = vld [vmem:[%s7 + $0x38] sm:$0xf]
    %v652 = vld [vmem:[%s7 + $0x3c] sm:$0xf]
    %v669 = vunpack.c.l.b16 %v637
    %v670 = vunpack.c.l.b16 %v638
    %v671 = vunpack.c.l.b16 %v639
    %v672 = vunpack.c.l.b16 %v640
    %v673 = vunpack.c.l.b16 %v641
    %v674 = vunpack.c.l.b16 %v642
    %v675 = vunpack.c.l.b16 %v643
    %v676 = vunpack.c.l.b16 %v644
    %v677 = vunpack.c.l.b16 %v645
    %v678 = vunpack.c.l.b16 %v646
    %v679 = vunpack.c.l.b16 %v647
    %v680 = vunpack.c.l.b16 %v648
    %v681 = vunpack.c.l.b16 %v649
    %v682 = vunpack.c.l.b16 %v650
    %v683 = vunpack.c.l.b16 %v651
    %v684 = vunpack.c.l.b16 %v652
    %v685 = vpack.c.b16 %v670, %v669
    %v686 = vpack.c.b16 %v672, %v671
    %v687 = vpack.c.b16 %v674, %v673
    %v688 = vpack.c.b16 %v676, %v675
    %v689 = vpack.c.b16 %v678, %v677
    %v690 = vpack.c.b16 %v680, %v679
    %v691 = vpack.c.b16 %v682, %v681
    %v692 = vpack.c.b16 %v684, %v683
    %701 = vmatprep.subr.bf16.mxu0 0
    %702 = vmatpush1.bf16.msra.mxu0 %v685
    %703 = vmatprep.subr.bf16.mxu0 0
    %704 = vmatpush1.bf16.msra.mxu0 %v686
    %705 = vmatprep.subr.bf16.mxu0 0
    %706 = vmatpush1.bf16.msra.mxu0 %v687
    %707 = vmatprep.subr.bf16.mxu0 0
    %708 = vmatpush1.bf16.msra.mxu0 %v688
    %709 = vmatprep.subr.bf16.mxu0 0
    %710 = vmatpush1.bf16.msra.mxu0 %v689
    %711 = vmatprep.subr.bf16.mxu0 0
    %712 = vmatpush1.bf16.msra.mxu0 %v690
    %713 = vmatprep.subr.bf16.mxu0 0
    %714 = vmatpush1.bf16.msra.mxu0 %v691
    %715 = vmatprep.subr.bf16.mxu0 0
    %716 = vmatpush1.bf16.msra.mxu0 %v692
    %717 = vmatprep.subr.bf16.mxu0 0
    %718 = vmatpush1.bf16.msra.mxu0 0
    %719 = vmatprep.subr.bf16.mxu0 0
    %720 = vmatpush1.bf16.msra.mxu0 0
    %721 = vmatprep.subr.bf16.mxu0 0
    %722 = vmatpush1.bf16.msra.mxu0 0
    %723 = vmatprep.subr.bf16.mxu0 0
    %724 = vmatpush1.bf16.msra.mxu0 0
    %725 = vmatprep.subr.bf16.mxu0 0
    %726 = vmatpush1.bf16.msra.mxu0 0
    %727 = vmatprep.subr.bf16.mxu0 0
    %728 = vmatpush1.bf16.msra.mxu0 0
    %729 = vmatprep.subr.bf16.mxu0 0
    %730 = vmatpush1.bf16.msra.mxu0 0
    %731 = vmatprep.subr.bf16.mxu0 0
    %732 = vmatpush1.bf16.msra.mxu0 0
    %733 = vmatprep.mubr.bf16.mxu0 0
    %734 = vmatmul.mubr.bf16.gmra.mrb[0].mxu0 %v288
    %v735 = vpop.f32.mrb[0].mxu0
    %v736 = vadd.f32 0.0, %v735
    %v737 = vpop.f32.mrb[0].mxu0
    %v738 = vpop.f32.mrb[0].mxu0
    %v739 = vadd.f32 0.0, %v738
    %v740 = vpop.f32.mrb[0].mxu0
    %741 = vmatprep.mubr.bf16.mxu0 0
    %742 = vmatmul.mubr.bf16.gmra.mrb[0].mxu0 %v289
    %v743 = vpop.f32.mrb[0].mxu0
    %v744 = vadd.f32 0.0, %v743
    %v745 = vpop.f32.mrb[0].mxu0
    %v746 = vpop.f32.mrb[0].mxu0
    %v747 = vadd.f32 0.0, %v746
    %v748 = vpop.f32.mrb[0].mxu0
    %749 = vmatprep.mubr.bf16.mxu0 0
    %750 = vmatmul.mubr.bf16.gmra.mrb[0].mxu0 %v290
    %v751 = vpop.f32.mrb[0].mxu0
    %v752 = vadd.f32 0.0, %v751
    %v753 = vpop.f32.mrb[0].mxu0
    %v754 = vpop.f32.mrb[0].mxu0
    %v755 = vadd.f32 0.0, %v754
    %v756 = vpop.f32.mrb[0].mxu0
    %757 = vmatprep.mubr.bf16.mxu0 0
    %758 = vmatmul.mubr.bf16.gmra.mrb[0].mxu0 %v291
    %v759 = vpop.f32.mrb[0].mxu0
    %v760 = vadd.f32 0.0, %v759
    %v761 = vpop.f32.mrb[0].mxu0
    %v762 = vpop.f32.mrb[0].mxu0
    %v763 = vadd.f32 0.0, %v762
    %v764 = vpop.f32.mrb[0].mxu0
    %765 = vmatprep.mubr.bf16.mxu0 0
    %766 = vmatmul.mubr.bf16.gmra.mrb[0].mxu0 %v292
    %v767 = vpop.f32.mrb[0].mxu0
    %v768 = vadd.f32 0.0, %v767
    %v769 = vpop.f32.mrb[0].mxu0
    %v770 = vpop.f32.mrb[0].mxu0
    %v771 = vadd.f32 0.0, %v770
    %v772 = vpop.f32.mrb[0].mxu0
    %773 = vmatprep.mubr.bf16.mxu0 0
    %774 = vmatmul.mubr.bf16.gmra.mrb[0].mxu0 %v293
    %v775 = vpop.f32.mrb[0].mxu0
    %v776 = vadd.f32 0.0, %v775
    %v777 = vpop.f32.mrb[0].mxu0
    %v778 = vpop.f32.mrb[0].mxu0
    %v779 = vadd.f32 0.0, %v778
    %v780 = vpop.f32.mrb[0].mxu0
    %781 = vmatprep.mubr.bf16.mxu0 0
    %782 = vmatmul.mubr.bf16.gmra.mrb[0].mxu0 %v294
    %v783 = vpop.f32.mrb[0].mxu0
    %v784 = vadd.f32 0.0, %v783
    %v785 = vpop.f32.mrb[0].mxu0
    %v786 = vpop.f32.mrb[0].mxu0
    %v787 = vadd.f32 0.0, %v786
    %v788 = vpop.f32.mrb[0].mxu0
    %789 = vmatprep.mubr.bf16.mxu0 0
    %790 = vmatmul.mubr.bf16.gmra.mrb[0].mxu0 %v295
    %v791 = vpop.f32.mrb[0].mxu0
    %v792 = vadd.f32 0.0, %v791
    %v793 = vpop.f32.mrb[0].mxu0
    %v794 = vpop.f32.mrb[0].mxu0
    %v795 = vadd.f32 0.0, %v794
    %v796 = vpop.f32.mrb[0].mxu0
    %797 = vdwg.mxu0
    %v798 = vpack.c.bf16 %v417, %v414
    %v799 = vpack.c.bf16 %v425, %v422
    %v800 = vpack.c.bf16 %v433, %v430
    %v801 = vpack.c.bf16 %v441, %v438
    %v802 = vpack.c.bf16 %v449, %v446
    %v803 = vpack.c.bf16 %v457, %v454
    %v804 = vpack.c.bf16 %v465, %v462
    %v805 = vpack.c.bf16 %v473, %v470
    %v806 = vpack.c.bf16 %v578, %v575
    %v807 = vpack.c.bf16 %v586, %v583
    %v808 = vpack.c.bf16 %v594, %v591
    %v809 = vpack.c.bf16 %v602, %v599
    %v810 = vpack.c.bf16 %v610, %v607
    %v811 = vpack.c.bf16 %v618, %v615
    %v812 = vpack.c.bf16 %v626, %v623
    %v813 = vpack.c.bf16 %v634, %v631
    %v814 = vpack.c.bf16 %v739, %v736
    %v815 = vpack.c.bf16 %v747, %v744
    %v816 = vpack.c.bf16 %v755, %v752
    %v817 = vpack.c.bf16 %v763, %v760
    %v818 = vpack.c.bf16 %v771, %v768
    %v819 = vpack.c.bf16 %v779, %v776
    %v820 = vpack.c.bf16 %v787, %v784
    %v821 = vpack.c.bf16 %v795, %v792
    %vm822 = vcmask 261120
    %v824 = vsel %vm822, %v806, 0
    %v827 = vsel %vm822, %v807, 0
    %v830 = vsel %vm822, %v808, 0
    %v833 = vsel %vm822, %v809, 0
    %v836 = vsel %vm822, %v798, 0
    %v839 = vsel %vm822, %v799, 0
    %v842 = vsel %vm822, %v800, 0
    %v845 = vsel %vm822, %v801, 0
    %847 = vmatprep.subr.bf16.mxu0 0
    %848 = vmatpush1.bf16.xpose.msra.mxu0 %v836
    %849 = vmatprep.subr.bf16.mxu0 0
    %850 = vmatpush1.bf16.xpose.msra.mxu0 %v839
    %851 = vmatprep.subr.bf16.mxu0 0
    %852 = vmatpush1.bf16.xpose.msra.mxu0 %v842
    %853 = vmatprep.subr.bf16.mxu0 0
    %854 = vmatpush1.bf16.xpose.msra.mxu0 %v845
    %855 = vmatprep.subr.bf16.mxu0 0
    %856 = vmatpush1.bf16.xpose.msra.mxu0 0
    %857 = vmatprep.subr.bf16.mxu0 0
    %858 = vmatpush1.bf16.xpose.msra.mxu0 0
    %859 = vmatprep.subr.bf16.mxu0 0
    %860 = vmatpush1.bf16.xpose.msra.mxu0 0
    %861 = vmatprep.subr.bf16.mxu0 0
    %862 = vmatpush1.bf16.xpose.msra.mxu0 0
    %863 = vmatprep.subr.bf16.mxu0 0
    %864 = vmatpush1.bf16.xpose.msra.mxu0 0
    %865 = vmatprep.subr.bf16.mxu0 0
    %866 = vmatpush1.bf16.xpose.msra.mxu0 0
    %867 = vmatprep.subr.bf16.mxu0 0
    %868 = vmatpush1.bf16.xpose.msra.mxu0 0
    %869 = vmatprep.subr.bf16.mxu0 0
    %870 = vmatpush1.bf16.xpose.msra.mxu0 0
    %871 = vmatprep.subr.bf16.mxu0 0
    %872 = vmatpush1.bf16.xpose.msra.mxu0 0
    %873 = vmatprep.subr.bf16.mxu0 0
    %874 = vmatpush1.bf16.xpose.msra.mxu0 0
    %875 = vmatprep.subr.bf16.mxu0 0
    %876 = vmatpush1.bf16.xpose.msra.mxu0 0
    %877 = vmatprep.subr.bf16.mxu0 0
    %878 = vmatpush1.bf16.xpose.msra.mxu0 0
    %879 = vmatprep.mubr.bf16.mxu0 0
    %880 = vmatmul.mubr.bf16.gmra.mrb[0].mxu0 %v824
    %v881 = vpop.f32.mrb[0].mxu0
    %v882 = vadd.f32 0.0, %v881
    %v883 = vpop.f32.mrb[0].mxu0
    %v884 = vpop.f32.mrb[0].mxu0
    %v885 = vadd.f32 0.0, %v884
    %v886 = vpop.f32.mrb[0].mxu0
    %887 = vmatprep.mubr.bf16.mxu0 0
    %888 = vmatmul.mubr.bf16.gmra.mrb[0].mxu0 %v827
    %v889 = vpop.f32.mrb[0].mxu0
    %v890 = vadd.f32 0.0, %v889
    %v891 = vpop.f32.mrb[0].mxu0
    %v892 = vpop.f32.mrb[0].mxu0
    %v893 = vadd.f32 0.0, %v892
    %v894 = vpop.f32.mrb[0].mxu0
    %895 = vmatprep.mubr.bf16.mxu0 0
    %896 = vmatmul.mubr.bf16.gmra.mrb[0].mxu0 %v830
    %v897 = vpop.f32.mrb[0].mxu0
    %v898 = vadd.f32 0.0, %v897
    %v899 = vpop.f32.mrb[0].mxu0
    %v900 = vpop.f32.mrb[0].mxu0
    %v901 = vadd.f32 0.0, %v900
    %v902 = vpop.f32.mrb[0].mxu0
    %903 = vmatprep.mubr.bf16.mxu0 0
    %904 = vmatmul.mubr.bf16.gmra.mrb[0].mxu0 %v833
    %v905 = vpop.f32.mrb[0].mxu0
    %v906 = vadd.f32 0.0, %v905
    %v907 = vpop.f32.mrb[0].mxu0
    %v908 = vpop.f32.mrb[0].mxu0
    %v909 = vadd.f32 0.0, %v908
    %v910 = vpop.f32.mrb[0].mxu0
    %911 = vdwg.mxu0
    %v913 = vsel %vm822, %v810, 0
    %v916 = vsel %vm822, %v811, 0
    %v919 = vsel %vm822, %v812, 0
    %v922 = vsel %vm822, %v813, 0
    %v925 = vsel %vm822, %v802, 0
    %v928 = vsel %vm822, %v803, 0
    %v931 = vsel %vm822, %v804, 0
    %v934 = vsel %vm822, %v805, 0
    %936 = vmatprep.subr.bf16.mxu0 0
    %937 = vmatpush1.bf16.xpose.msra.mxu0 %v925
    %938 = vmatprep.subr.bf16.mxu0 0
    %939 = vmatpush1.bf16.xpose.msra.mxu0 %v928
    %940 = vmatprep.subr.bf16.mxu0 0
    %941 = vmatpush1.bf16.xpose.msra.mxu0 %v931
    %942 = vmatprep.subr.bf16.mxu0 0
    %943 = vmatpush1.bf16.xpose.msra.mxu0 %v934
    %944 = vmatprep.subr.bf16.mxu0 0
    %945 = vmatpush1.bf16.xpose.msra.mxu0 0
    %946 = vmatprep.subr.bf16.mxu0 0
    %947 = vmatpush1.bf16.xpose.msra.mxu0 0
    %948 = vmatprep.subr.bf16.mxu0 0
    %949 = vmatpush1.bf16.xpose.msra.mxu0 0
    %950 = vmatprep.subr.bf16.mxu0 0
    %951 = vmatpush1.bf16.xpose.msra.mxu0 0
    %952 = vmatprep.subr.bf16.mxu0 0
    %953 = vmatpush1.bf16.xpose.msra.mxu0 0
    %954 = vmatprep.subr.bf16.mxu0 0
    %955 = vmatpush1.bf16.xpose.msra.mxu0 0
    %956 = vmatprep.subr.bf16.mxu0 0
    %957 = vmatpush1.bf16.xpose.msra.mxu0 0
    %958 = vmatprep.subr.bf16.mxu0 0
    %959 = vmatpush1.bf16.xpose.msra.mxu0 0
    %960 = vmatprep.subr.bf16.mxu0 0
    %961 = vmatpush1.bf16.xpose.msra.mxu0 0
    %962 = vmatprep.subr.bf16.mxu0 0
    %963 = vmatpush1.bf16.xpose.msra.mxu0 0
    %964 = vmatprep.subr.bf16.mxu0 0
    %965 = vmatpush1.bf16.xpose.msra.mxu0 0
    %966 = vmatprep.subr.bf16.mxu0 0
    %967 = vmatpush1.bf16.xpose.msra.mxu0 0
    %968 = vmatprep.mubr.bf16.mxu0 0
    %969 = vmatmul.mubr.bf16.gmra.mrb[0].mxu0 %v913
    %v970 = vpop.f32.mrb[0].mxu0
    %v971 = vadd.f32 0.0, %v970
    %v972 = vpop.f32.mrb[0].mxu0
    %v973 = vpop.f32.mrb[0].mxu0
    %v974 = vadd.f32 0.0, %v973
    %v975 = vpop.f32.mrb[0].mxu0
    %976 = vmatprep.mubr.bf16.mxu0 0
    %977 = vmatmul.mubr.bf16.gmra.mrb[0].mxu0 %v916
    %v978 = vpop.f32.mrb[0].mxu0
    %v979 = vadd.f32 0.0, %v978
    %v980 = vpop.f32.mrb[0].mxu0
    %v981 = vpop.f32.mrb[0].mxu0
    %v982 = vadd.f32 0.0, %v981
    %v983 = vpop.f32.mrb[0].mxu0
    %984 = vmatprep.mubr.bf16.mxu0 0
    %985 = vmatmul.mubr.bf16.gmra.mrb[0].mxu0 %v919
    %v986 = vpop.f32.mrb[0].mxu0
    %v987 = vadd.f32 0.0, %v986
    %v988 = vpop.f32.mrb[0].mxu0
    %v989 = vpop.f32.mrb[0].mxu0
    %v990 = vadd.f32 0.0, %v989
    %v991 = vpop.f32.mrb[0].mxu0
    %992 = vmatprep.mubr.bf16.mxu0 0
    %993 = vmatmul.mubr.bf16.gmra.mrb[0].mxu0 %v922
    %v994 = vpop.f32.mrb[0].mxu0
    %v995 = vadd.f32 0.0, %v994
    %v996 = vpop.f32.mrb[0].mxu0
    %v997 = vpop.f32.mrb[0].mxu0
    %v998 = vadd.f32 0.0, %v997
    %v999 = vpop.f32.mrb[0].mxu0
    %1000 = vdwg.mxu0
    %v1001 = vmul.f32 %v882, 5.656854
    %v1002 = vmul.f32 %v885, 5.656854
    %v1003 = vmul.f32 %v890, 5.656854
    %v1004 = vmul.f32 %v893, 5.656854
    %v1005 = vmul.f32 %v898, 5.656854
    %v1006 = vmul.f32 %v901, 5.656854
    %v1007 = vmul.f32 %v906, 5.656854
    %v1008 = vmul.f32 %v909, 5.656854
    %v1009 = vmul.f32 %v971, 5.656854
    %v1010 = vmul.f32 %v974, 5.656854
    %v1011 = vmul.f32 %v979, 5.656854
    %v1012 = vmul.f32 %v982, 5.656854
    %v1013 = vmul.f32 %v987, 5.656854
    %v1014 = vmul.f32 %v990, 5.656854
    %v1015 = vmul.f32 %v995, 5.656854
    %v1016 = vmul.f32 %v998, 5.656854
    %v1017 = vsel %vm307, 1, 0
    %v1018 = vsel %vm308, 1, 0
    %v1019 = vsel %vm309, 1, 0
    %v1020 = vsel %vm310, 1, 0
    %v1021 = vsel %vm311, 1, 0
    %v1022 = vsel %vm312, 1, 0
    %v1023 = vsel %vm313, 1, 0
    %v1024 = vsel %vm314, 1, 0
    %vm1025 = vcmp.eq.s32.totalorder %v1017, 1
    %vm1026 = vcmp.eq.s32.totalorder %v1018, 1
    %vm1027 = vcmp.eq.s32.totalorder %v1019, 1
    %vm1028 = vcmp.eq.s32.totalorder %v1020, 1
    %vm1029 = vcmp.eq.s32.totalorder %v1021, 1
    %vm1030 = vcmp.eq.s32.totalorder %v1022, 1
    %vm1031 = vcmp.eq.s32.totalorder %v1023, 1
    %vm1032 = vcmp.eq.s32.totalorder %v1024, 1
    %v1033 = vsel %vm1025, %v1001, -1e+30
    %v1034 = vsel %vm1026, %v1002, -1e+30
    %v1035 = vsel %vm1027, %v1003, -1e+30
    %v1036 = vsel %vm1028, %v1004, -1e+30
    %v1037 = vsel %vm1029, %v1005, -1e+30
    %v1038 = vsel %vm1030, %v1006, -1e+30
    %v1039 = vsel %vm1031, %v1007, -1e+30
    %v1040 = vsel %vm1032, %v1008, -1e+30
    %v1041 = vsel %vm1025, %v1009, -1e+30
    %v1042 = vsel %vm1026, %v1010, -1e+30
    %v1043 = vsel %vm1027, %v1011, -1e+30
    %v1044 = vsel %vm1028, %v1012, -1e+30
    %v1045 = vsel %vm1029, %v1013, -1e+30
    %v1046 = vsel %vm1030, %v1014, -1e+30
    %v1047 = vsel %vm1031, %v1015, -1e+30
    %v1048 = vsel %vm1032, %v1016, -1e+30
    %vm1049 = vcmask 523264
    %v1050 = vsel %vm1049, %v1033, -inf
    %1051 = vmax.xlane.f32.xlu0 %v1050
    %v1052 = vpop.xlane.xlu0 %1051
    %v1053 = vsel %vm1049, %v1034, -inf
    %1054 = vmax.xlane.f32.xlu0 %v1053
    %v1055 = vpop.xlane.xlu0 %1054
    %v1056 = vsel %vm1049, %v1035, -inf
    %1057 = vmax.xlane.f32.xlu0 %v1056
    %v1058 = vpop.xlane.xlu0 %1057
    %v1059 = vsel %vm1049, %v1036, -inf
    %1060 = vmax.xlane.f32.xlu0 %v1059
    %v1061 = vpop.xlane.xlu0 %1060
    %v1062 = vsel %vm1049, %v1037, -inf
    %1063 = vmax.xlane.f32.xlu0 %v1062
    %v1064 = vpop.xlane.xlu0 %1063
    %v1065 = vsel %vm1049, %v1038, -inf
    %1066 = vmax.xlane.f32.xlu0 %v1065
    %v1067 = vpop.xlane.xlu0 %1066
    %v1068 = vsel %vm1049, %v1039, -inf
    %1069 = vmax.xlane.f32.xlu0 %v1068
    %v1070 = vpop.xlane.xlu0 %1069
    %v1071 = vsel %vm1049, %v1040, -inf
    %1072 = vmax.xlane.f32.xlu0 %v1071
    %v1073 = vpop.xlane.xlu0 %1072
    %v1074 = vsel %vm1049, %v1041, -inf
    %1075 = vmax.xlane.f32.xlu0 %v1074
    %v1076 = vpop.xlane.xlu0 %1075
    %v1077 = vsel %vm1049, %v1042, -inf
    %1078 = vmax.xlane.f32.xlu0 %v1077
    %v1079 = vpop.xlane.xlu0 %1078
    %v1080 = vsel %vm1049, %v1043, -inf
    %1081 = vmax.xlane.f32.xlu0 %v1080
    %v1082 = vpop.xlane.xlu0 %1081
    %v1083 = vsel %vm1049, %v1044, -inf
    %1084 = vmax.xlane.f32.xlu0 %v1083
    %v1085 = vpop.xlane.xlu0 %1084
    %v1086 = vsel %vm1049, %v1045, -inf
    %1087 = vmax.xlane.f32.xlu0 %v1086
    %v1088 = vpop.xlane.xlu0 %1087
    %v1089 = vsel %vm1049, %v1046, -inf
    %1090 = vmax.xlane.f32.xlu0 %v1089
    %v1091 = vpop.xlane.xlu0 %1090
    %v1092 = vsel %vm1049, %v1047, -inf
    %1093 = vmax.xlane.f32.xlu0 %v1092
    %v1094 = vpop.xlane.xlu0 %1093
    %v1095 = vsel %vm1049, %v1048, -inf
    %1096 = vmax.xlane.f32.xlu0 %v1095
    %v1097 = vpop.xlane.xlu0 %1096
    %v1098 = vsub.f32 %v1033, %v1052
    %v1099 = vsub.f32 %v1034, %v1055
    %v1100 = vsub.f32 %v1035, %v1058
    %v1101 = vsub.f32 %v1036, %v1061
    %v1102 = vsub.f32 %v1037, %v1064
    %v1103 = vsub.f32 %v1038, %v1067
    %v1104 = vsub.f32 %v1039, %v1070
    %v1105 = vsub.f32 %v1040, %v1073
    %v1106 = vsub.f32 %v1041, %v1076
    %v1107 = vsub.f32 %v1042, %v1079
    %v1108 = vsub.f32 %v1043, %v1082
    %v1109 = vsub.f32 %v1044, %v1085
    %v1110 = vsub.f32 %v1045, %v1088
    %v1111 = vsub.f32 %v1046, %v1091
    %v1112 = vsub.f32 %v1047, %v1094
    %v1113 = vsub.f32 %v1048, %v1097
    %v1114 = vmul.f32 %v1098, 1.442695
    %v1115 = vpow.pop %v1114
    %v1116 = vmul.f32 %v1099, 1.442695
    %v1117 = vpow.pop %v1116
    %v1118 = vmul.f32 %v1100, 1.442695
    %v1119 = vpow.pop %v1118
    %v1120 = vmul.f32 %v1101, 1.442695
    %v1121 = vpow.pop %v1120
    %v1122 = vmul.f32 %v1102, 1.442695
    %v1123 = vpow.pop %v1122
    %v1124 = vmul.f32 %v1103, 1.442695
    %v1125 = vpow.pop %v1124
    %v1126 = vmul.f32 %v1104, 1.442695
    %v1127 = vpow.pop %v1126
    %v1128 = vmul.f32 %v1105, 1.442695
    %v1129 = vpow.pop %v1128
    %v1130 = vmul.f32 %v1106, 1.442695
    %v1131 = vpow.pop %v1130
    %v1132 = vmul.f32 %v1107, 1.442695
    %v1133 = vpow.pop %v1132
    %v1134 = vmul.f32 %v1108, 1.442695
    %v1135 = vpow.pop %v1134
    %v1136 = vmul.f32 %v1109, 1.442695
    %v1137 = vpow.pop %v1136
    %v1138 = vmul.f32 %v1110, 1.442695
    %v1139 = vpow.pop %v1138
    %v1140 = vmul.f32 %v1111, 1.442695
    %v1141 = vpow.pop %v1140
    %v1142 = vmul.f32 %v1112, 1.442695
    %v1143 = vpow.pop %v1142
    %v1144 = vmul.f32 %v1113, 1.442695
    %v1145 = vpow.pop %v1144
    %v1146 = vsel %vm1049, %v1115, 0.0
    %1147 = vadd.xlane.f32.xlu0 %v1146
    %v1148 = vpop.xlane.xlu0 %1147
    %v1149 = vsel %vm1049, %v1117, 0.0
    %1150 = vadd.xlane.f32.xlu0 %v1149
    %v1151 = vpop.xlane.xlu0 %1150
    %v1152 = vsel %vm1049, %v1119, 0.0
    %1153 = vadd.xlane.f32.xlu0 %v1152
    %v1154 = vpop.xlane.xlu0 %1153
    %v1155 = vsel %vm1049, %v1121, 0.0
    %1156 = vadd.xlane.f32.xlu0 %v1155
    %v1157 = vpop.xlane.xlu0 %1156
    %v1158 = vsel %vm1049, %v1123, 0.0
    %1159 = vadd.xlane.f32.xlu0 %v1158
    %v1160 = vpop.xlane.xlu0 %1159
    %v1161 = vsel %vm1049, %v1125, 0.0
    %1162 = vadd.xlane.f32.xlu0 %v1161
    %v1163 = vpop.xlane.xlu0 %1162
    %v1164 = vsel %vm1049, %v1127, 0.0
    %1165 = vadd.xlane.f32.xlu0 %v1164
    %v1166 = vpop.xlane.xlu0 %1165
    %v1167 = vsel %vm1049, %v1129, 0.0
    %1168 = vadd.xlane.f32.xlu0 %v1167
    %v1169 = vpop.xlane.xlu0 %1168
    %v1170 = vsel %vm1049, %v1131, 0.0
    %1171 = vadd.xlane.f32.xlu0 %v1170
    %v1172 = vpop.xlane.xlu0 %1171
    %v1173 = vsel %vm1049, %v1133, 0.0
    %1174 = vadd.xlane.f32.xlu0 %v1173
    %v1175 = vpop.xlane.xlu0 %1174
    %v1176 = vsel %vm1049, %v1135, 0.0
    %1177 = vadd.xlane.f32.xlu0 %v1176
    %v1178 = vpop.xlane.xlu0 %1177
    %v1179 = vsel %vm1049, %v1137, 0.0
    %1180 = vadd.xlane.f32.xlu0 %v1179
    %v1181 = vpop.xlane.xlu0 %1180
    %v1182 = vsel %vm1049, %v1139, 0.0
    %1183 = vadd.xlane.f32.xlu0 %v1182
    %v1184 = vpop.xlane.xlu0 %1183
    %v1185 = vsel %vm1049, %v1141, 0.0
    %1186 = vadd.xlane.f32.xlu0 %v1185
    %v1187 = vpop.xlane.xlu0 %1186
    %v1188 = vsel %vm1049, %v1143, 0.0
    %1189 = vadd.xlane.f32.xlu0 %v1188
    %v1190 = vpop.xlane.xlu0 %1189
    %v1191 = vsel %vm1049, %v1145, 0.0
    %1192 = vadd.xlane.f32.xlu0 %v1191
    %v1193 = vpop.xlane.xlu0 %1192
    %v1194 = vrcp.pop %v1148
    %v1195 = vrcp.pop %v1151
    %v1196 = vrcp.pop %v1154
    %v1197 = vrcp.pop %v1157
    %v1198 = vrcp.pop %v1160
    %v1199 = vrcp.pop %v1163
    %v1200 = vrcp.pop %v1166
    %v1201 = vrcp.pop %v1169
    %v1202 = vrcp.pop %v1172
    %v1203 = vrcp.pop %v1175
    %v1204 = vrcp.pop %v1178
    %v1205 = vrcp.pop %v1181
    %v1206 = vrcp.pop %v1184
    %v1207 = vrcp.pop %v1187
    %v1208 = vrcp.pop %v1190
    %v1209 = vrcp.pop %v1193
    %v1210 = vmul.f32 %v1115, %v1194
    %v1211 = vmul.f32 %v1117, %v1195
    %v1212 = vmul.f32 %v1119, %v1196
    %v1213 = vmul.f32 %v1121, %v1197
    %v1214 = vmul.f32 %v1123, %v1198
    %v1215 = vmul.f32 %v1125, %v1199
    %v1216 = vmul.f32 %v1127, %v1200
    %v1217 = vmul.f32 %v1129, %v1201
    %v1218 = vmul.f32 %v1131, %v1202
    %v1219 = vmul.f32 %v1133, %v1203
    %v1220 = vmul.f32 %v1135, %v1204
    %v1221 = vmul.f32 %v1137, %v1205
    %v1222 = vmul.f32 %v1139, %v1206
    %v1223 = vmul.f32 %v1141, %v1207
    %v1224 = vmul.f32 %v1143, %v1208
    %v1225 = vmul.f32 %v1145, %v1209
    %v1226 = vpack.c.bf16 %v1211, %v1210
    %v1227 = vpack.c.bf16 %v1213, %v1212
    %v1228 = vpack.c.bf16 %v1215, %v1214
    %v1229 = vpack.c.bf16 %v1217, %v1216
    %v1230 = vpack.c.bf16 %v1219, %v1218
    %v1231 = vpack.c.bf16 %v1221, %v1220
    %v1232 = vpack.c.bf16 %v1223, %v1222
    %v1233 = vpack.c.bf16 %v1225, %v1224
    %1234 = vxpose.xlu0.c.b16.start [1/8] %v1226, 128
    %1235 = vxpose.xlu0.c.b16.cont [2/8] %v1227, 128
    %1236 = vxpose.xlu0.c.b16.cont [3/8] %v1228, 128
    %1237 = vxpose.xlu0.c.b16.cont [4/8] %v1229, 128
    %1238 = vxpose.xlu0.c.b16.cont [5/8] 0, 128
    %1239 = vxpose.xlu0.c.b16.cont [6/8] 0, 128
    %1240 = vxpose.xlu0.c.b16.cont [7/8] 0, 128
    %1241 = vxpose.xlu0.c.b16.end [8/8] 0, 128
    %v1242 = vpop.trf.xlu0
    %v1243 = vpop.trf.xlu0
    %v1244 = vpop.trf.xlu0
    %v1245 = vpop.trf.xlu0
    %v1246 = vpop.trf.xlu0
    %v1247 = vpop.trf.xlu0
    %v1248 = vpop.trf.xlu0
    %v1249 = vpop.trf.xlu0
    %v1251 = vsel %vm1049, %v1242, 0
    %v1254 = vsel %vm1049, %v1243, 0
    %v1257 = vsel %vm1049, %v1244, 0
    %v1260 = vsel %vm1049, %v1245, 0
    %1262 = vmatprep.subr.bf16.mxu0 0
    %1263 = vmatpush1.bf16.msra.mxu0 %v814
    %1264 = vmatprep.subr.bf16.mxu0 0
    %1265 = vmatpush1.bf16.msra.mxu0 %v815
    %1266 = vmatprep.subr.bf16.mxu0 0
    %1267 = vmatpush1.bf16.msra.mxu0 %v816
    %1268 = vmatprep.subr.bf16.mxu0 0
    %1269 = vmatpush1.bf16.msra.mxu0 %v817
    %1270 = vmatprep.subr.bf16.mxu0 0
    %1271 = vmatpush1.bf16.msra.mxu0 0
    %1272 = vmatprep.subr.bf16.mxu0 0
    %1273 = vmatpush1.bf16.msra.mxu0 0
    %1274 = vmatprep.subr.bf16.mxu0 0
    %1275 = vmatpush1.bf16.msra.mxu0 0
    %1276 = vmatprep.subr.bf16.mxu0 0
    %1277 = vmatpush1.bf16.msra.mxu0 0
    %1278 = vmatprep.subr.bf16.mxu0 0
    %1279 = vmatpush1.bf16.msra.mxu0 0
    %1280 = vmatprep.subr.bf16.mxu0 0
    %1281 = vmatpush1.bf16.msra.mxu0 0
    %1282 = vmatprep.subr.bf16.mxu0 0
    %1283 = vmatpush1.bf16.msra.mxu0 0
    %1284 = vmatprep.subr.bf16.mxu0 0
    %1285 = vmatpush1.bf16.msra.mxu0 0
    %1286 = vmatprep.subr.bf16.mxu0 0
    %1287 = vmatpush1.bf16.msra.mxu0 0
    %1288 = vmatprep.subr.bf16.mxu0 0
    %1289 = vmatpush1.bf16.msra.mxu0 0
    %1290 = vmatprep.subr.bf16.mxu0 0
    %1291 = vmatpush1.bf16.msra.mxu0 0
    %1292 = vmatprep.subr.bf16.mxu0 0
    %1293 = vmatpush1.bf16.msra.mxu0 0
    %1294 = vmatprep.mubr.bf16.mxu0 0
    %1295 = vmatmul.mubr.bf16.gmra.mrb[0].mxu0 %v1251
    %v1296 = vpop.f32.mrb[0].mxu0
    %v1297 = vadd.f32 0.0, %v1296
    %v1298 = vpop.f32.mrb[0].mxu0
    %v1299 = vpop.f32.mrb[0].mxu0
    %v1300 = vadd.f32 0.0, %v1299
    %v1301 = vpop.f32.mrb[0].mxu0
    %1302 = vmatprep.mubr.bf16.mxu0 0
    %1303 = vmatmul.mubr.bf16.gmra.mrb[0].mxu0 %v1254
    %v1304 = vpop.f32.mrb[0].mxu0
    %v1305 = vadd.f32 0.0, %v1304
    %v1306 = vpop.f32.mrb[0].mxu0
    %v1307 = vpop.f32.mrb[0].mxu0
    %v1308 = vadd.f32 0.0, %v1307
    %v1309 = vpop.f32.mrb[0].mxu0
    %1310 = vmatprep.mubr.bf16.mxu0 0
    %1311 = vmatmul.mubr.bf16.gmra.mrb[0].mxu0 %v1257
    %v1312 = vpop.f32.mrb[0].mxu0
    %v1313 = vadd.f32 0.0, %v1312
    %v1314 = vpop.f32.mrb[0].mxu0
    %v1315 = vpop.f32.mrb[0].mxu0
    %v1316 = vadd.f32 0.0, %v1315
    %v1317 = vpop.f32.mrb[0].mxu0
    %1318 = vmatprep.mubr.bf16.mxu0 0
    %1319 = vmatmul.mubr.bf16.gmra.mrb[0].mxu0 %v1260
    %v1320 = vpop.f32.mrb[0].mxu0
    %v1321 = vadd.f32 0.0, %v1320
    %v1322 = vpop.f32.mrb[0].mxu0
    %v1323 = vpop.f32.mrb[0].mxu0
    %v1324 = vadd.f32 0.0, %v1323
    %v1325 = vpop.f32.mrb[0].mxu0
    %1326 = vdwg.mxu0
    %1327 = vxpose.xlu0.c.b16.start [1/8] %v1230, 128
    %1328 = vxpose.xlu0.c.b16.cont [2/8] %v1231, 128
    %1329 = vxpose.xlu0.c.b16.cont [3/8] %v1232, 128
    %1330 = vxpose.xlu0.c.b16.cont [4/8] %v1233, 128
    %1331 = vxpose.xlu0.c.b16.cont [5/8] 0, 128
    %1332 = vxpose.xlu0.c.b16.cont [6/8] 0, 128
    %1333 = vxpose.xlu0.c.b16.cont [7/8] 0, 128
    %1334 = vxpose.xlu0.c.b16.end [8/8] 0, 128
    %v1335 = vpop.trf.xlu0
    %v1336 = vpop.trf.xlu0
    %v1337 = vpop.trf.xlu0
    %v1338 = vpop.trf.xlu0
    %v1339 = vpop.trf.xlu0
    %v1340 = vpop.trf.xlu0
    %v1341 = vpop.trf.xlu0
    %v1342 = vpop.trf.xlu0
    %v1344 = vsel %vm1049, %v1335, 0
    %v1347 = vsel %vm1049, %v1336, 0
    %v1350 = vsel %vm1049, %v1337, 0
    %v1353 = vsel %vm1049, %v1338, 0
    %1355 = vmatprep.subr.bf16.mxu0 0
    %1356 = vmatpush1.bf16.msra.mxu0 %v818
    %1357 = vmatprep.subr.bf16.mxu0 0
    %1358 = vmatpush1.bf16.msra.mxu0 %v819
    %1359 = vmatprep.subr.bf16.mxu0 0
    %1360 = vmatpush1.bf16.msra.mxu0 %v820
    %1361 = vmatprep.subr.bf16.mxu0 0
    %1362 = vmatpush1.bf16.msra.mxu0 %v821
    %1363 = vmatprep.subr.bf16.mxu0 0
    %1364 = vmatpush1.bf16.msra.mxu0 0
    %1365 = vmatprep.subr.bf16.mxu0 0
    %1366 = vmatpush1.bf16.msra.mxu0 0
    %1367 = vmatprep.subr.bf16.mxu0 0
    %1368 = vmatpush1.bf16.msra.mxu0 0
    %1369 = vmatprep.subr.bf16.mxu0 0
    %1370 = vmatpush1.bf16.msra.mxu0 0
    %1371 = vmatprep.subr.bf16.mxu0 0
    %1372 = vmatpush1.bf16.msra.mxu0 0
    %1373 = vmatprep.subr.bf16.mxu0 0
    %1374 = vmatpush1.bf16.msra.mxu0 0
    %1375 = vmatprep.subr.bf16.mxu0 0
    %1376 = vmatpush1.bf16.msra.mxu0 0
    %1377 = vmatprep.subr.bf16.mxu0 0
    %1378 = vmatpush1.bf16.msra.mxu0 0
    %1379 = vmatprep.subr.bf16.mxu0 0
    %1380 = vmatpush1.bf16.msra.mxu0 0
    %1381 = vmatprep.subr.bf16.mxu0 0
    %1382 = vmatpush1.bf16.msra.mxu0 0
    %1383 = vmatprep.subr.bf16.mxu0 0
    %1384 = vmatpush1.bf16.msra.mxu0 0
    %1385 = vmatprep.subr.bf16.mxu0 0
    %1386 = vmatpush1.bf16.msra.mxu0 0
    %1387 = vmatprep.mubr.bf16.mxu0 0
    %1388 = vmatmul.mubr.bf16.gmra.mrb[0].mxu0 %v1344
    %v1389 = vpop.f32.mrb[0].mxu0
    %v1390 = vadd.f32 0.0, %v1389
    %v1391 = vpop.f32.mrb[0].mxu0
    %v1392 = vpop.f32.mrb[0].mxu0
    %v1393 = vadd.f32 0.0, %v1392
    %v1394 = vpop.f32.mrb[0].mxu0
    %1395 = vmatprep.mubr.bf16.mxu0 0
    %1396 = vmatmul.mubr.bf16.gmra.mrb[0].mxu0 %v1347
    %v1397 = vpop.f32.mrb[0].mxu0
    %v1398 = vadd.f32 0.0, %v1397
    %v1399 = vpop.f32.mrb[0].mxu0
    %v1400 = vpop.f32.mrb[0].mxu0
    %v1401 = vadd.f32 0.0, %v1400
    %v1402 = vpop.f32.mrb[0].mxu0
    %1403 = vmatprep.mubr.bf16.mxu0 0
    %1404 = vmatmul.mubr.bf16.gmra.mrb[0].mxu0 %v1350
    %v1405 = vpop.f32.mrb[0].mxu0
    %v1406 = vadd.f32 0.0, %v1405
    %v1407 = vpop.f32.mrb[0].mxu0
    %v1408 = vpop.f32.mrb[0].mxu0
    %v1409 = vadd.f32 0.0, %v1408
    %v1410 = vpop.f32.mrb[0].mxu0
    %1411 = vmatprep.mubr.bf16.mxu0 0
    %1412 = vmatmul.mubr.bf16.gmra.mrb[0].mxu0 %v1353
    %v1413 = vpop.f32.mrb[0].mxu0
    %v1414 = vadd.f32 0.0, %v1413
    %v1415 = vpop.f32.mrb[0].mxu0
    %v1416 = vpop.f32.mrb[0].mxu0
    %v1417 = vadd.f32 0.0, %v1416
    %v1418 = vpop.f32.mrb[0].mxu0
    %1419 = vdwg.mxu0
    %v1420 = vpack.c.bf16 %v1300, %v1297
    %v1421 = vpack.c.bf16 %v1308, %v1305
    %v1422 = vpack.c.bf16 %v1316, %v1313
    %v1423 = vpack.c.bf16 %v1324, %v1321
    %v1424 = vpack.c.bf16 %v1393, %v1390
    %v1425 = vpack.c.bf16 %v1401, %v1398
    %v1426 = vpack.c.bf16 %v1409, %v1406
    %v1427 = vpack.c.bf16 %v1417, %v1414
    %v1428 = vld [vmem:[%s8] sm:$0xf]
    %v1429 = vld [vmem:[%s8 + $0x4] sm:$0xf]
    %v1430 = vld [vmem:[%s8 + $0x8] sm:$0xf]
    %v1431 = vld [vmem:[%s8 + $0xc] sm:$0xf]
    %s1432 = scalar_lea.vmem %s5, 64
    %v1433 = vld [vmem:[%s1432] sm:$0xf]
    %v1434 = vld [vmem:[%s1432 + $0x4] sm:$0xf]
    %v1435 = vld [vmem:[%s1432 + $0x8] sm:$0xf]
    %v1436 = vld [vmem:[%s1432 + $0xc] sm:$0xf]
    %v1437 = vld [vmem:[%s1432 + $0x10] sm:$0xf]
    %v1438 = vld [vmem:[%s1432 + $0x14] sm:$0xf]
    %v1439 = vld [vmem:[%s1432 + $0x18] sm:$0xf]
    %v1440 = vld [vmem:[%s1432 + $0x1c] sm:$0xf]
    %v1441 = vld [vmem:[%s1432 + $0x20] sm:$0xf]
    %v1442 = vld [vmem:[%s1432 + $0x24] sm:$0xf]
    %v1443 = vld [vmem:[%s1432 + $0x28] sm:$0xf]
    %v1444 = vld [vmem:[%s1432 + $0x2c] sm:$0xf]
    %v1445 = vld [vmem:[%s1432 + $0x30] sm:$0xf]
    %v1446 = vld [vmem:[%s1432 + $0x34] sm:$0xf]
    %v1447 = vld [vmem:[%s1432 + $0x38] sm:$0xf]
    %v1448 = vld [vmem:[%s1432 + $0x3c] sm:$0xf]
    %v1465 = vunpack.c.l.b16 %v1433
    %v1466 = vunpack.c.l.b16 %v1434
    %v1467 = vunpack.c.l.b16 %v1435
    %v1468 = vunpack.c.l.b16 %v1436
    %v1469 = vunpack.c.l.b16 %v1437
    %v1470 = vunpack.c.l.b16 %v1438
    %v1471 = vunpack.c.l.b16 %v1439
    %v1472 = vunpack.c.l.b16 %v1440
    %v1473 = vunpack.c.l.b16 %v1441
    %v1474 = vunpack.c.l.b16 %v1442
    %v1475 = vunpack.c.l.b16 %v1443
    %v1476 = vunpack.c.l.b16 %v1444
    %v1477 = vunpack.c.l.b16 %v1445
    %v1478 = vunpack.c.l.b16 %v1446
    %v1479 = vunpack.c.l.b16 %v1447
    %v1480 = vunpack.c.l.b16 %v1448
    %v1481 = vpack.c.b16 %v1466, %v1465
    %v1482 = vpack.c.b16 %v1468, %v1467
    %v1483 = vpack.c.b16 %v1470, %v1469
    %v1484 = vpack.c.b16 %v1472, %v1471
    %v1485 = vpack.c.b16 %v1474, %v1473
    %v1486 = vpack.c.b16 %v1476, %v1475
    %v1487 = vpack.c.b16 %v1478, %v1477
    %v1488 = vpack.c.b16 %v1480, %v1479
    %1497 = vmatprep.subr.bf16.mxu0 0
    %1498 = vmatpush1.bf16.msra.mxu0 %v1481
    %1499 = vmatprep.subr.bf16.mxu0 0
    %1500 = vmatpush1.bf16.msra.mxu0 %v1482
    %1501 = vmatprep.subr.bf16.mxu0 0
    %1502 = vmatpush1.bf16.msra.mxu0 %v1483
    %1503 = vmatprep.subr.bf16.mxu0 0
    %1504 = vmatpush1.bf16.msra.mxu0 %v1484
    %1505 = vmatprep.subr.bf16.mxu0 0
    %1506 = vmatpush1.bf16.msra.mxu0 %v1485
    %1507 = vmatprep.subr.bf16.mxu0 0
    %1508 = vmatpush1.bf16.msra.mxu0 %v1486
    %1509 = vmatprep.subr.bf16.mxu0 0
    %1510 = vmatpush1.bf16.msra.mxu0 %v1487
    %1511 = vmatprep.subr.bf16.mxu0 0
    %1512 = vmatpush1.bf16.msra.mxu0 %v1488
    %1513 = vmatprep.subr.bf16.mxu0 0
    %1514 = vmatpush1.bf16.msra.mxu0 0
    %1515 = vmatprep.subr.bf16.mxu0 0
    %1516 = vmatpush1.bf16.msra.mxu0 0
    %1517 = vmatprep.subr.bf16.mxu0 0
    %1518 = vmatpush1.bf16.msra.mxu0 0
    %1519 = vmatprep.subr.bf16.mxu0 0
    %1520 = vmatpush1.bf16.msra.mxu0 0
    %1521 = vmatprep.subr.bf16.mxu0 0
    %1522 = vmatpush1.bf16.msra.mxu0 0
    %1523 = vmatprep.subr.bf16.mxu0 0
    %1524 = vmatpush1.bf16.msra.mxu0 0
    %1525 = vmatprep.subr.bf16.mxu0 0
    %1526 = vmatpush1.bf16.msra.mxu0 0
    %1527 = vmatprep.subr.bf16.mxu0 0
    %1528 = vmatpush1.bf16.msra.mxu0 0
    %1529 = vmatprep.mubr.bf16.mxu0 0
    %1530 = vmatmul.mubr.bf16.gmra.mrb[0].mxu0 %v288
    %v1531 = vpop.f32.mrb[0].mxu0
    %v1532 = vadd.f32 0.0, %v1531
    %v1533 = vpop.f32.mrb[0].mxu0
    %v1534 = vpop.f32.mrb[0].mxu0
    %v1535 = vadd.f32 0.0, %v1534
    %v1536 = vpop.f32.mrb[0].mxu0
    %1537 = vmatprep.mubr.bf16.mxu0 0
    %1538 = vmatmul.mubr.bf16.gmra.mrb[0].mxu0 %v289
    %v1539 = vpop.f32.mrb[0].mxu0
    %v1540 = vadd.f32 0.0, %v1539
    %v1541 = vpop.f32.mrb[0].mxu0
    %v1542 = vpop.f32.mrb[0].mxu0
    %v1543 = vadd.f32 0.0, %v1542
    %v1544 = vpop.f32.mrb[0].mxu0
    %1545 = vmatprep.mubr.bf16.mxu0 0
    %1546 = vmatmul.mubr.bf16.gmra.mrb[0].mxu0 %v290
    %v1547 = vpop.f32.mrb[0].mxu0
    %v1548 = vadd.f32 0.0, %v1547
    %v1549 = vpop.f32.mrb[0].mxu0
    %v1550 = vpop.f32.mrb[0].mxu0
    %v1551 = vadd.f32 0.0, %v1550
    %v1552 = vpop.f32.mrb[0].mxu0
    %1553 = vmatprep.mubr.bf16.mxu0 0
    %1554 = vmatmul.mubr.bf16.gmra.mrb[0].mxu0 %v291
    %v1555 = vpop.f32.mrb[0].mxu0
    %v1556 = vadd.f32 0.0, %v1555
    %v1557 = vpop.f32.mrb[0].mxu0
    %v1558 = vpop.f32.mrb[0].mxu0
    %v1559 = vadd.f32 0.0, %v1558
    %v1560 = vpop.f32.mrb[0].mxu0
    %1561 = vmatprep.mubr.bf16.mxu0 0
    %1562 = vmatmul.mubr.bf16.gmra.mrb[0].mxu0 %v292
    %v1563 = vpop.f32.mrb[0].mxu0
    %v1564 = vadd.f32 0.0, %v1563
    %v1565 = vpop.f32.mrb[0].mxu0
    %v1566 = vpop.f32.mrb[0].mxu0
    %v1567 = vadd.f32 0.0, %v1566
    %v1568 = vpop.f32.mrb[0].mxu0
    %1569 = vmatprep.mubr.bf16.mxu0 0
    %1570 = vmatmul.mubr.bf16.gmra.mrb[0].mxu0 %v293
    %v1571 = vpop.f32.mrb[0].mxu0
    %v1572 = vadd.f32 0.0, %v1571
    %v1573 = vpop.f32.mrb[0].mxu0
    %v1574 = vpop.f32.mrb[0].mxu0
    %v1575 = vadd.f32 0.0, %v1574
    %v1576 = vpop.f32.mrb[0].mxu0
    %1577 = vmatprep.mubr.bf16.mxu0 0
    %1578 = vmatmul.mubr.bf16.gmra.mrb[0].mxu0 %v294
    %v1579 = vpop.f32.mrb[0].mxu0
    %v1580 = vadd.f32 0.0, %v1579
    %v1581 = vpop.f32.mrb[0].mxu0
    %v1582 = vpop.f32.mrb[0].mxu0
    %v1583 = vadd.f32 0.0, %v1582
    %v1584 = vpop.f32.mrb[0].mxu0
    %1585 = vmatprep.mubr.bf16.mxu0 0
    %1586 = vmatmul.mubr.bf16.gmra.mrb[0].mxu0 %v295
    %v1587 = vpop.f32.mrb[0].mxu0
    %v1588 = vadd.f32 0.0, %v1587
    %v1589 = vpop.f32.mrb[0].mxu0
    %v1590 = vpop.f32.mrb[0].mxu0
    %v1591 = vadd.f32 0.0, %v1590
    %v1592 = vpop.f32.mrb[0].mxu0
    %1593 = vdwg.mxu0
    %s1594 = scalar_lea.vmem %s6, 64
    %v1595 = vld [vmem:[%s1594] sm:$0xf]
    %v1596 = vld [vmem:[%s1594 + $0x4] sm:$0xf]
    %v1597 = vld [vmem:[%s1594 + $0x8] sm:$0xf]
    %v1598 = vld [vmem:[%s1594 + $0xc] sm:$0xf]
    %v1599 = vld [vmem:[%s1594 + $0x10] sm:$0xf]
    %v1600 = vld [vmem:[%s1594 + $0x14] sm:$0xf]
    %v1601 = vld [vmem:[%s1594 + $0x18] sm:$0xf]
    %v1602 = vld [vmem:[%s1594 + $0x1c] sm:$0xf]
    %v1603 = vld [vmem:[%s1594 + $0x20] sm:$0xf]
    %v1604 = vld [vmem:[%s1594 + $0x24] sm:$0xf]
    %v1605 = vld [vmem:[%s1594 + $0x28] sm:$0xf]
    %v1606 = vld [vmem:[%s1594 + $0x2c] sm:$0xf]
    %v1607 = vld [vmem:[%s1594 + $0x30] sm:$0xf]
    %v1608 = vld [vmem:[%s1594 + $0x34] sm:$0xf]
    %v1609 = vld [vmem:[%s1594 + $0x38] sm:$0xf]
    %v1610 = vld [vmem:[%s1594 + $0x3c] sm:$0xf]
    %v1627 = vunpack.c.l.b16 %v1595
    %v1628 = vunpack.c.l.b16 %v1596
    %v1629 = vunpack.c.l.b16 %v1597
    %v1630 = vunpack.c.l.b16 %v1598
    %v1631 = vunpack.c.l.b16 %v1599
    %v1632 = vunpack.c.l.b16 %v1600
    %v1633 = vunpack.c.l.b16 %v1601
    %v1634 = vunpack.c.l.b16 %v1602
    %v1635 = vunpack.c.l.b16 %v1603
    %v1636 = vunpack.c.l.b16 %v1604
    %v1637 = vunpack.c.l.b16 %v1605
    %v1638 = vunpack.c.l.b16 %v1606
    %v1639 = vunpack.c.l.b16 %v1607
    %v1640 = vunpack.c.l.b16 %v1608
    %v1641 = vunpack.c.l.b16 %v1609
    %v1642 = vunpack.c.l.b16 %v1610
    %v1643 = vpack.c.b16 %v1628, %v1627
    %v1644 = vpack.c.b16 %v1630, %v1629
    %v1645 = vpack.c.b16 %v1632, %v1631
    %v1646 = vpack.c.b16 %v1634, %v1633
    %v1647 = vpack.c.b16 %v1636, %v1635
    %v1648 = vpack.c.b16 %v1638, %v1637
    %v1649 = vpack.c.b16 %v1640, %v1639
    %v1650 = vpack.c.b16 %v1642, %v1641
    %1659 = vmatprep.subr.bf16.mxu0 0
    %1660 = vmatpush1.bf16.msra.mxu0 %v1643
    %1661 = vmatprep.subr.bf16.mxu0 0
    %1662 = vmatpush1.bf16.msra.mxu0 %v1644
    %1663 = vmatprep.subr.bf16.mxu0 0
    %1664 = vmatpush1.bf16.msra.mxu0 %v1645
    %1665 = vmatprep.subr.bf16.mxu0 0
    %1666 = vmatpush1.bf16.msra.mxu0 %v1646
    %1667 = vmatprep.subr.bf16.mxu0 0
    %1668 = vmatpush1.bf16.msra.mxu0 %v1647
    %1669 = vmatprep.subr.bf16.mxu0 0
    %1670 = vmatpush1.bf16.msra.mxu0 %v1648
    %1671 = vmatprep.subr.bf16.mxu0 0
    %1672 = vmatpush1.bf16.msra.mxu0 %v1649
    %1673 = vmatprep.subr.bf16.mxu0 0
    %1674 = vmatpush1.bf16.msra.mxu0 %v1650
    %1675 = vmatprep.subr.bf16.mxu0 0
    %1676 = vmatpush1.bf16.msra.mxu0 0
    %1677 = vmatprep.subr.bf16.mxu0 0
    %1678 = vmatpush1.bf16.msra.mxu0 0
    %1679 = vmatprep.subr.bf16.mxu0 0
    %1680 = vmatpush1.bf16.msra.mxu0 0
    %1681 = vmatprep.subr.bf16.mxu0 0
    %1682 = vmatpush1.bf16.msra.mxu0 0
    %1683 = vmatprep.subr.bf16.mxu0 0
    %1684 = vmatpush1.bf16.msra.mxu0 0
    %1685 = vmatprep.subr.bf16.mxu0 0
    %1686 = vmatpush1.bf16.msra.mxu0 0
    %1687 = vmatprep.subr.bf16.mxu0 0
    %1688 = vmatpush1.bf16.msra.mxu0 0
    %1689 = vmatprep.subr.bf16.mxu0 0
    %1690 = vmatpush1.bf16.msra.mxu0 0
    %1691 = vmatprep.mubr.bf16.mxu0 0
    %1692 = vmatmul.mubr.bf16.gmra.mrb[0].mxu0 %v288
    %v1693 = vpop.f32.mrb[0].mxu0
    %v1694 = vadd.f32 0.0, %v1693
    %v1695 = vpop.f32.mrb[0].mxu0
    %v1696 = vpop.f32.mrb[0].mxu0
    %v1697 = vadd.f32 0.0, %v1696
    %v1698 = vpop.f32.mrb[0].mxu0
    %1699 = vmatprep.mubr.bf16.mxu0 0
    %1700 = vmatmul.mubr.bf16.gmra.mrb[0].mxu0 %v289
    %v1701 = vpop.f32.mrb[0].mxu0
    %v1702 = vadd.f32 0.0, %v1701
    %v1703 = vpop.f32.mrb[0].mxu0
    %v1704 = vpop.f32.mrb[0].mxu0
    %v1705 = vadd.f32 0.0, %v1704
    %v1706 = vpop.f32.mrb[0].mxu0
    %1707 = vmatprep.mubr.bf16.mxu0 0
    %1708 = vmatmul.mubr.bf16.gmra.mrb[0].mxu0 %v290
    %v1709 = vpop.f32.mrb[0].mxu0
    %v1710 = vadd.f32 0.0, %v1709
    %v1711 = vpop.f32.mrb[0].mxu0
    %v1712 = vpop.f32.mrb[0].mxu0
    %v1713 = vadd.f32 0.0, %v1712
    %v1714 = vpop.f32.mrb[0].mxu0
    %1715 = vmatprep.mubr.bf16.mxu0 0
    %1716 = vmatmul.mubr.bf16.gmra.mrb[0].mxu0 %v291
    %v1717 = vpop.f32.mrb[0].mxu0
    %v1718 = vadd.f32 0.0, %v1717
    %v1719 = vpop.f32.mrb[0].mxu0
    %v1720 = vpop.f32.mrb[0].mxu0
    %v1721 = vadd.f32 0.0, %v1720
    %v1722 = vpop.f32.mrb[0].mxu0
    %1723 = vmatprep.mubr.bf16.mxu0 0
    %1724 = vmatmul.mubr.bf16.gmra.mrb[0].mxu0 %v292
    %v1725 = vpop.f32.mrb[0].mxu0
    %v1726 = vadd.f32 0.0, %v1725
    %v1727 = vpop.f32.mrb[0].mxu0
    %v1728 = vpop.f32.mrb[0].mxu0
    %v1729 = vadd.f32 0.0, %v1728
    %v1730 = vpop.f32.mrb[0].mxu0
    %1731 = vmatprep.mubr.bf16.mxu0 0
    %1732 = vmatmul.mubr.bf16.gmra.mrb[0].mxu0 %v293
    %v1733 = vpop.f32.mrb[0].mxu0
    %v1734 = vadd.f32 0.0, %v1733
    %v1735 = vpop.f32.mrb[0].mxu0
    %v1736 = vpop.f32.mrb[0].mxu0
    %v1737 = vadd.f32 0.0, %v1736
    %v1738 = vpop.f32.mrb[0].mxu0
    %1739 = vmatprep.mubr.bf16.mxu0 0
    %1740 = vmatmul.mubr.bf16.gmra.mrb[0].mxu0 %v294
    %v1741 = vpop.f32.mrb[0].mxu0
    %v1742 = vadd.f32 0.0, %v1741
    %v1743 = vpop.f32.mrb[0].mxu0
    %v1744 = vpop.f32.mrb[0].mxu0
    %v1745 = vadd.f32 0.0, %v1744
    %v1746 = vpop.f32.mrb[0].mxu0
    %1747 = vmatprep.mubr.bf16.mxu0 0
    %1748 = vmatmul.mubr.bf16.gmra.mrb[0].mxu0 %v295
    %v1749 = vpop.f32.mrb[0].mxu0
    %v1750 = vadd.f32 0.0, %v1749
    %v1751 = vpop.f32.mrb[0].mxu0
    %v1752 = vpop.f32.mrb[0].mxu0
    %v1753 = vadd.f32 0.0, %v1752
    %v1754 = vpop.f32.mrb[0].mxu0
    %1755 = vdwg.mxu0
    %s1756 = scalar_lea.vmem %s7, 64
    %v1757 = vld [vmem:[%s1756] sm:$0xf]
    %v1758 = vld [vmem:[%s1756 + $0x4] sm:$0xf]
    %v1759 = vld [vmem:[%s1756 + $0x8] sm:$0xf]
    %v1760 = vld [vmem:[%s1756 + $0xc] sm:$0xf]
    %v1761 = vld [vmem:[%s1756 + $0x10] sm:$0xf]
    %v1762 = vld [vmem:[%s1756 + $0x14] sm:$0xf]
    %v1763 = vld [vmem:[%s1756 + $0x18] sm:$0xf]
    %v1764 = vld [vmem:[%s1756 + $0x1c] sm:$0xf]
    %v1765 = vld [vmem:[%s1756 + $0x20] sm:$0xf]
    %v1766 = vld [vmem:[%s1756 + $0x24] sm:$0xf]
    %v1767 = vld [vmem:[%s1756 + $0x28] sm:$0xf]
    %v1768 = vld [vmem:[%s1756 + $0x2c] sm:$0xf]
    %v1769 = vld [vmem:[%s1756 + $0x30] sm:$0xf]
    %v1770 = vld [vmem:[%s1756 + $0x34] sm:$0xf]
    %v1771 = vld [vmem:[%s1756 + $0x38] sm:$0xf]
    %v1772 = vld [vmem:[%s1756 + $0x3c] sm:$0xf]
    %v1789 = vunpack.c.l.b16 %v1757
    %v1790 = vunpack.c.l.b16 %v1758
    %v1791 = vunpack.c.l.b16 %v1759
    %v1792 = vunpack.c.l.b16 %v1760
    %v1793 = vunpack.c.l.b16 %v1761
    %v1794 = vunpack.c.l.b16 %v1762
    %v1795 = vunpack.c.l.b16 %v1763
    %v1796 = vunpack.c.l.b16 %v1764
    %v1797 = vunpack.c.l.b16 %v1765
    %v1798 = vunpack.c.l.b16 %v1766
    %v1799 = vunpack.c.l.b16 %v1767
    %v1800 = vunpack.c.l.b16 %v1768
    %v1801 = vunpack.c.l.b16 %v1769
    %v1802 = vunpack.c.l.b16 %v1770
    %v1803 = vunpack.c.l.b16 %v1771
    %v1804 = vunpack.c.l.b16 %v1772
    %v1805 = vpack.c.b16 %v1790, %v1789
    %v1806 = vpack.c.b16 %v1792, %v1791
    %v1807 = vpack.c.b16 %v1794, %v1793
    %v1808 = vpack.c.b16 %v1796, %v1795
    %v1809 = vpack.c.b16 %v1798, %v1797
    %v1810 = vpack.c.b16 %v1800, %v1799
    %v1811 = vpack.c.b16 %v1802, %v1801
    %v1812 = vpack.c.b16 %v1804, %v1803
    %1821 = vmatprep.subr.bf16.mxu0 0
    %1822 = vmatpush1.bf16.msra.mxu0 %v1805
    %1823 = vmatprep.subr.bf16.mxu0 0
    %1824 = vmatpush1.bf16.msra.mxu0 %v1806
    %1825 = vmatprep.subr.bf16.mxu0 0
    %1826 = vmatpush1.bf16.msra.mxu0 %v1807
    %1827 = vmatprep.subr.bf16.mxu0 0
    %1828 = vmatpush1.bf16.msra.mxu0 %v1808
    %1829 = vmatprep.subr.bf16.mxu0 0
    %1830 = vmatpush1.bf16.msra.mxu0 %v1809
    %1831 = vmatprep.subr.bf16.mxu0 0
    %1832 = vmatpush1.bf16.msra.mxu0 %v1810
    %1833 = vmatprep.subr.bf16.mxu0 0
    %1834 = vmatpush1.bf16.msra.mxu0 %v1811
    %1835 = vmatprep.subr.bf16.mxu0 0
    %1836 = vmatpush1.bf16.msra.mxu0 %v1812
    %1837 = vmatprep.subr.bf16.mxu0 0
    %1838 = vmatpush1.bf16.msra.mxu0 0
    %1839 = vmatprep.subr.bf16.mxu0 0
    %1840 = vmatpush1.bf16.msra.mxu0 0
    %1841 = vmatprep.subr.bf16.mxu0 0
    %1842 = vmatpush1.bf16.msra.mxu0 0
    %1843 = vmatprep.subr.bf16.mxu0 0
    %1844 = vmatpush1.bf16.msra.mxu0 0
    %1845 = vmatprep.subr.bf16.mxu0 0
    %1846 = vmatpush1.bf16.msra.mxu0 0
    %1847 = vmatprep.subr.bf16.mxu0 0
    %1848 = vmatpush1.bf16.msra.mxu0 0
    %1849 = vmatprep.subr.bf16.mxu0 0
    %1850 = vmatpush1.bf16.msra.mxu0 0
    %1851 = vmatprep.subr.bf16.mxu0 0
    %1852 = vmatpush1.bf16.msra.mxu0 0
    %1853 = vmatprep.mubr.bf16.mxu0 0
    %1854 = vmatmul.mubr.bf16.gmra.mrb[0].mxu0 %v288
    %v1855 = vpop.f32.mrb[0].mxu0
    %v1856 = vadd.f32 0.0, %v1855
    %v1857 = vpop.f32.mrb[0].mxu0
    %v1858 = vpop.f32.mrb[0].mxu0
    %v1859 = vadd.f32 0.0, %v1858
    %v1860 = vpop.f32.mrb[0].mxu0
    %1861 = vmatprep.mubr.bf16.mxu0 0
    %1862 = vmatmul.mubr.bf16.gmra.mrb[0].mxu0 %v289
    %v1863 = vpop.f32.mrb[0].mxu0
    %v1864 = vadd.f32 0.0, %v1863
    %v1865 = vpop.f32.mrb[0].mxu0
    %v1866 = vpop.f32.mrb[0].mxu0
    %v1867 = vadd.f32 0.0, %v1866
    %v1868 = vpop.f32.mrb[0].mxu0
    %1869 = vmatprep.mubr.bf16.mxu0 0
    %1870 = vmatmul.mubr.bf16.gmra.mrb[0].mxu0 %v290
    %v1871 = vpop.f32.mrb[0].mxu0
    %v1872 = vadd.f32 0.0, %v1871
    %v1873 = vpop.f32.mrb[0].mxu0
    %v1874 = vpop.f32.mrb[0].mxu0
    %v1875 = vadd.f32 0.0, %v1874
    %v1876 = vpop.f32.mrb[0].mxu0
    %1877 = vmatprep.mubr.bf16.mxu0 0
    %1878 = vmatmul.mubr.bf16.gmra.mrb[0].mxu0 %v291
    %v1879 = vpop.f32.mrb[0].mxu0
    %v1880 = vadd.f32 0.0, %v1879
    %v1881 = vpop.f32.mrb[0].mxu0
    %v1882 = vpop.f32.mrb[0].mxu0
    %v1883 = vadd.f32 0.0, %v1882
    %v1884 = vpop.f32.mrb[0].mxu0
    %1885 = vmatprep.mubr.bf16.mxu0 0
    %1886 = vmatmul.mubr.bf16.gmra.mrb[0].mxu0 %v292
    %v1887 = vpop.f32.mrb[0].mxu0
    %v1888 = vadd.f32 0.0, %v1887
    %v1889 = vpop.f32.mrb[0].mxu0
    %v1890 = vpop.f32.mrb[0].mxu0
    %v1891 = vadd.f32 0.0, %v1890
    %v1892 = vpop.f32.mrb[0].mxu0
    %1893 = vmatprep.mubr.bf16.mxu0 0
    %1894 = vmatmul.mubr.bf16.gmra.mrb[0].mxu0 %v293
    %v1895 = vpop.f32.mrb[0].mxu0
    %v1896 = vadd.f32 0.0, %v1895
    %v1897 = vpop.f32.mrb[0].mxu0
    %v1898 = vpop.f32.mrb[0].mxu0
    %v1899 = vadd.f32 0.0, %v1898
    %v1900 = vpop.f32.mrb[0].mxu0
    %1901 = vmatprep.mubr.bf16.mxu0 0
    %1902 = vmatmul.mubr.bf16.gmra.mrb[0].mxu0 %v294
    %v1903 = vpop.f32.mrb[0].mxu0
    %v1904 = vadd.f32 0.0, %v1903
    %v1905 = vpop.f32.mrb[0].mxu0
    %v1906 = vpop.f32.mrb[0].mxu0
    %v1907 = vadd.f32 0.0, %v1906
    %v1908 = vpop.f32.mrb[0].mxu0
    %1909 = vmatprep.mubr.bf16.mxu0 0
    %1910 = vmatmul.mubr.bf16.gmra.mrb[0].mxu0 %v295
    %v1911 = vpop.f32.mrb[0].mxu0
    %v1912 = vadd.f32 0.0, %v1911
    %v1913 = vpop.f32.mrb[0].mxu0
    %v1914 = vpop.f32.mrb[0].mxu0
    %v1915 = vadd.f32 0.0, %v1914
    %v1916 = vpop.f32.mrb[0].mxu0
    %1917 = vdwg.mxu0
    %v1918 = vpack.c.bf16 %v1535, %v1532
    %v1919 = vpack.c.bf16 %v1543, %v1540
    %v1920 = vpack.c.bf16 %v1551, %v1548
    %v1921 = vpack.c.bf16 %v1559, %v1556
    %v1922 = vpack.c.bf16 %v1567, %v1564
    %v1923 = vpack.c.bf16 %v1575, %v1572
    %v1924 = vpack.c.bf16 %v1583, %v1580
    %v1925 = vpack.c.bf16 %v1591, %v1588
    %v1926 = vpack.c.bf16 %v1697, %v1694
    %v1927 = vpack.c.bf16 %v1705, %v1702
    %v1928 = vpack.c.bf16 %v1713, %v1710
    %v1929 = vpack.c.bf16 %v1721, %v1718
    %v1930 = vpack.c.bf16 %v1729, %v1726
    %v1931 = vpack.c.bf16 %v1737, %v1734
    %v1932 = vpack.c.bf16 %v1745, %v1742
    %v1933 = vpack.c.bf16 %v1753, %v1750
    %v1934 = vpack.c.bf16 %v1859, %v1856
    %v1935 = vpack.c.bf16 %v1867, %v1864
    %v1936 = vpack.c.bf16 %v1875, %v1872
    %v1937 = vpack.c.bf16 %v1883, %v1880
    %v1938 = vpack.c.bf16 %v1891, %v1888
    %v1939 = vpack.c.bf16 %v1899, %v1896
    %v1940 = vpack.c.bf16 %v1907, %v1904
    %v1941 = vpack.c.bf16 %v1915, %v1912
    %v1943 = vsel %vm822, %v1926, 0
    %v1946 = vsel %vm822, %v1927, 0
    %v1949 = vsel %vm822, %v1928, 0
    %v1952 = vsel %vm822, %v1929, 0
    %v1955 = vsel %vm822, %v1918, 0
    %v1958 = vsel %vm822, %v1919, 0
    %v1961 = vsel %vm822, %v1920, 0
    %v1964 = vsel %vm822, %v1921, 0
    %1966 = vmatprep.subr.bf16.mxu0 0
    %1967 = vmatpush1.bf16.xpose.msra.mxu0 %v1955
    %1968 = vmatprep.subr.bf16.mxu0 0
    %1969 = vmatpush1.bf16.xpose.msra.mxu0 %v1958
    %1970 = vmatprep.subr.bf16.mxu0 0
    %1971 = vmatpush1.bf16.xpose.msra.mxu0 %v1961
    %1972 = vmatprep.subr.bf16.mxu0 0
    %1973 = vmatpush1.bf16.xpose.msra.mxu0 %v1964
    %1974 = vmatprep.subr.bf16.mxu0 0
    %1975 = vmatpush1.bf16.xpose.msra.mxu0 0
    %1976 = vmatprep.subr.bf16.mxu0 0
    %1977 = vmatpush1.bf16.xpose.msra.mxu0 0
    %1978 = vmatprep.subr.bf16.mxu0 0
    %1979 = vmatpush1.bf16.xpose.msra.mxu0 0
    %1980 = vmatprep.subr.bf16.mxu0 0
    %1981 = vmatpush1.bf16.xpose.msra.mxu0 0
    %1982 = vmatprep.subr.bf16.mxu0 0
    %1983 = vmatpush1.bf16.xpose.msra.mxu0 0
    %1984 = vmatprep.subr.bf16.mxu0 0
    %1985 = vmatpush1.bf16.xpose.msra.mxu0 0
    %1986 = vmatprep.subr.bf16.mxu0 0
    %1987 = vmatpush1.bf16.xpose.msra.mxu0 0
    %1988 = vmatprep.subr.bf16.mxu0 0
    %1989 = vmatpush1.bf16.xpose.msra.mxu0 0
    %1990 = vmatprep.subr.bf16.mxu0 0
    %1991 = vmatpush1.bf16.xpose.msra.mxu0 0
    %1992 = vmatprep.subr.bf16.mxu0 0
    %1993 = vmatpush1.bf16.xpose.msra.mxu0 0
    %1994 = vmatprep.subr.bf16.mxu0 0
    %1995 = vmatpush1.bf16.xpose.msra.mxu0 0
    %1996 = vmatprep.subr.bf16.mxu0 0
    %1997 = vmatpush1.bf16.xpose.msra.mxu0 0
    %1998 = vmatprep.mubr.bf16.mxu0 0
    %1999 = vmatmul.mubr.bf16.gmra.mrb[0].mxu0 %v1943
    %v2000 = vpop.f32.mrb[0].mxu0
    %v2001 = vadd.f32 0.0, %v2000
    %v2002 = vpop.f32.mrb[0].mxu0
    %v2003 = vpop.f32.mrb[0].mxu0
    %v2004 = vadd.f32 0.0, %v2003
    %v2005 = vpop.f32.mrb[0].mxu0
    %2006 = vmatprep.mubr.bf16.mxu0 0
    %2007 = vmatmul.mubr.bf16.gmra.mrb[0].mxu0 %v1946
    %v2008 = vpop.f32.mrb[0].mxu0
    %v2009 = vadd.f32 0.0, %v2008
    %v2010 = vpop.f32.mrb[0].mxu0
    %v2011 = vpop.f32.mrb[0].mxu0
    %v2012 = vadd.f32 0.0, %v2011
    %v2013 = vpop.f32.mrb[0].mxu0
    %2014 = vmatprep.mubr.bf16.mxu0 0
    %2015 = vmatmul.mubr.bf16.gmra.mrb[0].mxu0 %v1949
    %v2016 = vpop.f32.mrb[0].mxu0
    %v2017 = vadd.f32 0.0, %v2016
    %v2018 = vpop.f32.mrb[0].mxu0
    %v2019 = vpop.f32.mrb[0].mxu0
    %v2020 = vadd.f32 0.0, %v2019
    %v2021 = vpop.f32.mrb[0].mxu0
    %2022 = vmatprep.mubr.bf16.mxu0 0
    %2023 = vmatmul.mubr.bf16.gmra.mrb[0].mxu0 %v1952
    %v2024 = vpop.f32.mrb[0].mxu0
    %v2025 = vadd.f32 0.0, %v2024
    %v2026 = vpop.f32.mrb[0].mxu0
    %v2027 = vpop.f32.mrb[0].mxu0
    %v2028 = vadd.f32 0.0, %v2027
    %v2029 = vpop.f32.mrb[0].mxu0
    %2030 = vdwg.mxu0
    %v2032 = vsel %vm822, %v1930, 0
    %v2035 = vsel %vm822, %v1931, 0
    %v2038 = vsel %vm822, %v1932, 0
    %v2041 = vsel %vm822, %v1933, 0
    %v2044 = vsel %vm822, %v1922, 0
    %v2047 = vsel %vm822, %v1923, 0
    %v2050 = vsel %vm822, %v1924, 0
    %v2053 = vsel %vm822, %v1925, 0
    %2055 = vmatprep.subr.bf16.mxu0 0
    %2056 = vmatpush1.bf16.xpose.msra.mxu0 %v2044
    %2057 = vmatprep.subr.bf16.mxu0 0
    %2058 = vmatpush1.bf16.xpose.msra.mxu0 %v2047
    %2059 = vmatprep.subr.bf16.mxu0 0
    %2060 = vmatpush1.bf16.xpose.msra.mxu0 %v2050
    %2061 = vmatprep.subr.bf16.mxu0 0
    %2062 = vmatpush1.bf16.xpose.msra.mxu0 %v2053
    %2063 = vmatprep.subr.bf16.mxu0 0
    %2064 = vmatpush1.bf16.xpose.msra.mxu0 0
    %2065 = vmatprep.subr.bf16.mxu0 0
    %2066 = vmatpush1.bf16.xpose.msra.mxu0 0
    %2067 = vmatprep.subr.bf16.mxu0 0
    %2068 = vmatpush1.bf16.xpose.msra.mxu0 0
    %2069 = vmatprep.subr.bf16.mxu0 0
    %2070 = vmatpush1.bf16.xpose.msra.mxu0 0
    %2071 = vmatprep.subr.bf16.mxu0 0
    %2072 = vmatpush1.bf16.xpose.msra.mxu0 0
    %2073 = vmatprep.subr.bf16.mxu0 0
    %2074 = vmatpush1.bf16.xpose.msra.mxu0 0
    %2075 = vmatprep.subr.bf16.mxu0 0
    %2076 = vmatpush1.bf16.xpose.msra.mxu0 0
    %2077 = vmatprep.subr.bf16.mxu0 0
    %2078 = vmatpush1.bf16.xpose.msra.mxu0 0
    %2079 = vmatprep.subr.bf16.mxu0 0
    %2080 = vmatpush1.bf16.xpose.msra.mxu0 0
    %2081 = vmatprep.subr.bf16.mxu0 0
    %2082 = vmatpush1.bf16.xpose.msra.mxu0 0
    %2083 = vmatprep.subr.bf16.mxu0 0
    %2084 = vmatpush1.bf16.xpose.msra.mxu0 0
    %2085 = vmatprep.subr.bf16.mxu0 0
    %2086 = vmatpush1.bf16.xpose.msra.mxu0 0
    %2087 = vmatprep.mubr.bf16.mxu0 0
    %2088 = vmatmul.mubr.bf16.gmra.mrb[0].mxu0 %v2032
    %v2089 = vpop.f32.mrb[0].mxu0
    %v2090 = vadd.f32 0.0, %v2089
    %v2091 = vpop.f32.mrb[0].mxu0
    %v2092 = vpop.f32.mrb[0].mxu0
    %v2093 = vadd.f32 0.0, %v2092
    %v2094 = vpop.f32.mrb[0].mxu0
    %2095 = vmatprep.mubr.bf16.mxu0 0
    %2096 = vmatmul.mubr.bf16.gmra.mrb[0].mxu0 %v2035
    %v2097 = vpop.f32.mrb[0].mxu0
    %v2098 = vadd.f32 0.0, %v2097
    %v2099 = vpop.f32.mrb[0].mxu0
    %v2100 = vpop.f32.mrb[0].mxu0
    %v2101 = vadd.f32 0.0, %v2100
    %v2102 = vpop.f32.mrb[0].mxu0
    %2103 = vmatprep.mubr.bf16.mxu0 0
    %2104 = vmatmul.mubr.bf16.gmra.mrb[0].mxu0 %v2038
    %v2105 = vpop.f32.mrb[0].mxu0
    %v2106 = vadd.f32 0.0, %v2105
    %v2107 = vpop.f32.mrb[0].mxu0
    %v2108 = vpop.f32.mrb[0].mxu0
    %v2109 = vadd.f32 0.0, %v2108
    %v2110 = vpop.f32.mrb[0].mxu0
    %2111 = vmatprep.mubr.bf16.mxu0 0
    %2112 = vmatmul.mubr.bf16.gmra.mrb[0].mxu0 %v2041
    %v2113 = vpop.f32.mrb[0].mxu0
    %v2114 = vadd.f32 0.0, %v2113
    %v2115 = vpop.f32.mrb[0].mxu0
    %v2116 = vpop.f32.mrb[0].mxu0
    %v2117 = vadd.f32 0.0, %v2116
    %v2118 = vpop.f32.mrb[0].mxu0
    %2119 = vdwg.mxu0
    %v2120 = vmul.f32 %v2001, 5.656854
    %v2121 = vmul.f32 %v2004, 5.656854
    %v2122 = vmul.f32 %v2009, 5.656854
    %v2123 = vmul.f32 %v2012, 5.656854
    %v2124 = vmul.f32 %v2017, 5.656854
    %v2125 = vmul.f32 %v2020, 5.656854
    %v2126 = vmul.f32 %v2025, 5.656854
    %v2127 = vmul.f32 %v2028, 5.656854
    %v2128 = vmul.f32 %v2090, 5.656854
    %v2129 = vmul.f32 %v2093, 5.656854
    %v2130 = vmul.f32 %v2098, 5.656854
    %v2131 = vmul.f32 %v2101, 5.656854
    %v2132 = vmul.f32 %v2106, 5.656854
    %v2133 = vmul.f32 %v2109, 5.656854
    %v2134 = vmul.f32 %v2114, 5.656854
    %v2135 = vmul.f32 %v2117, 5.656854
    %v2136 = vsel %vm1025, %v2120, -1e+30
    %v2137 = vsel %vm1026, %v2121, -1e+30
    %v2138 = vsel %vm1027, %v2122, -1e+30
    %v2139 = vsel %vm1028, %v2123, -1e+30
    %v2140 = vsel %vm1029, %v2124, -1e+30
    %v2141 = vsel %vm1030, %v2125, -1e+30
    %v2142 = vsel %vm1031, %v2126, -1e+30
    %v2143 = vsel %vm1032, %v2127, -1e+30
    %v2144 = vsel %vm1025, %v2128, -1e+30
    %v2145 = vsel %vm1026, %v2129, -1e+30
    %v2146 = vsel %vm1027, %v2130, -1e+30
    %v2147 = vsel %vm1028, %v2131, -1e+30
    %v2148 = vsel %vm1029, %v2132, -1e+30
    %v2149 = vsel %vm1030, %v2133, -1e+30
    %v2150 = vsel %vm1031, %v2134, -1e+30
    %v2151 = vsel %vm1032, %v2135, -1e+30
    %v2152 = vsel %vm1049, %v2136, -inf
    %2153 = vmax.xlane.f32.xlu0 %v2152
    %v2154 = vpop.xlane.xlu0 %2153
    %v2155 = vsel %vm1049, %v2137, -inf
    %2156 = vmax.xlane.f32.xlu0 %v2155
    %v2157 = vpop.xlane.xlu0 %2156
    %v2158 = vsel %vm1049, %v2138, -inf
    %2159 = vmax.xlane.f32.xlu0 %v2158
    %v2160 = vpop.xlane.xlu0 %2159
    %v2161 = vsel %vm1049, %v2139, -inf
    %2162 = vmax.xlane.f32.xlu0 %v2161
    %v2163 = vpop.xlane.xlu0 %2162
    %v2164 = vsel %vm1049, %v2140, -inf
    %2165 = vmax.xlane.f32.xlu0 %v2164
    %v2166 = vpop.xlane.xlu0 %2165
    %v2167 = vsel %vm1049, %v2141, -inf
    %2168 = vmax.xlane.f32.xlu0 %v2167
    %v2169 = vpop.xlane.xlu0 %2168
    %v2170 = vsel %vm1049, %v2142, -inf
    %2171 = vmax.xlane.f32.xlu0 %v2170
    %v2172 = vpop.xlane.xlu0 %2171
    %v2173 = vsel %vm1049, %v2143, -inf
    %2174 = vmax.xlane.f32.xlu0 %v2173
    %v2175 = vpop.xlane.xlu0 %2174
    %v2176 = vsel %vm1049, %v2144, -inf
    %2177 = vmax.xlane.f32.xlu0 %v2176
    %v2178 = vpop.xlane.xlu0 %2177
    %v2179 = vsel %vm1049, %v2145, -inf
    %2180 = vmax.xlane.f32.xlu0 %v2179
    %v2181 = vpop.xlane.xlu0 %2180
    %v2182 = vsel %vm1049, %v2146, -inf
    %2183 = vmax.xlane.f32.xlu0 %v2182
    %v2184 = vpop.xlane.xlu0 %2183
    %v2185 = vsel %vm1049, %v2147, -inf
    %2186 = vmax.xlane.f32.xlu0 %v2185
    %v2187 = vpop.xlane.xlu0 %2186
    %v2188 = vsel %vm1049, %v2148, -inf
    %2189 = vmax.xlane.f32.xlu0 %v2188
    %v2190 = vpop.xlane.xlu0 %2189
    %v2191 = vsel %vm1049, %v2149, -inf
    %2192 = vmax.xlane.f32.xlu0 %v2191
    %v2193 = vpop.xlane.xlu0 %2192
    %v2194 = vsel %vm1049, %v2150, -inf
    %2195 = vmax.xlane.f32.xlu0 %v2194
    %v2196 = vpop.xlane.xlu0 %2195
    %v2197 = vsel %vm1049, %v2151, -inf
    %2198 = vmax.xlane.f32.xlu0 %v2197
    %v2199 = vpop.xlane.xlu0 %2198
    %v2200 = vsub.f32 %v2136, %v2154
    %v2201 = vsub.f32 %v2137, %v2157
    %v2202 = vsub.f32 %v2138, %v2160
    %v2203 = vsub.f32 %v2139, %v2163
    %v2204 = vsub.f32 %v2140, %v2166
    %v2205 = vsub.f32 %v2141, %v2169
    %v2206 = vsub.f32 %v2142, %v2172
    %v2207 = vsub.f32 %v2143, %v2175
    %v2208 = vsub.f32 %v2144, %v2178
    %v2209 = vsub.f32 %v2145, %v2181
    %v2210 = vsub.f32 %v2146, %v2184
    %v2211 = vsub.f32 %v2147, %v2187
    %v2212 = vsub.f32 %v2148, %v2190
    %v2213 = vsub.f32 %v2149, %v2193
    %v2214 = vsub.f32 %v2150, %v2196
    %v2215 = vsub.f32 %v2151, %v2199
    %v2216 = vmul.f32 %v2200, 1.442695
    %v2217 = vpow.pop %v2216
    %v2218 = vmul.f32 %v2201, 1.442695
    %v2219 = vpow.pop %v2218
    %v2220 = vmul.f32 %v2202, 1.442695
    %v2221 = vpow.pop %v2220
    %v2222 = vmul.f32 %v2203, 1.442695
    %v2223 = vpow.pop %v2222
    %v2224 = vmul.f32 %v2204, 1.442695
    %v2225 = vpow.pop %v2224
    %v2226 = vmul.f32 %v2205, 1.442695
    %v2227 = vpow.pop %v2226
    %v2228 = vmul.f32 %v2206, 1.442695
    %v2229 = vpow.pop %v2228
    %v2230 = vmul.f32 %v2207, 1.442695
    %v2231 = vpow.pop %v2230
    %v2232 = vmul.f32 %v2208, 1.442695
    %v2233 = vpow.pop %v2232
    %v2234 = vmul.f32 %v2209, 1.442695
    %v2235 = vpow.pop %v2234
    %v2236 = vmul.f32 %v2210, 1.442695
    %v2237 = vpow.pop %v2236
    %v2238 = vmul.f32 %v2211, 1.442695
    %v2239 = vpow.pop %v2238
    %v2240 = vmul.f32 %v2212, 1.442695
    %v2241 = vpow.pop %v2240
    %v2242 = vmul.f32 %v2213, 1.442695
    %v2243 = vpow.pop %v2242
    %v2244 = vmul.f32 %v2214, 1.442695
    %v2245 = vpow.pop %v2244
    %v2246 = vmul.f32 %v2215, 1.442695
    %v2247 = vpow.pop %v2246
    %v2248 = vsel %vm1049, %v2217, 0.0
    %2249 = vadd.xlane.f32.xlu0 %v2248
    %v2250 = vpop.xlane.xlu0 %2249
    %v2251 = vsel %vm1049, %v2219, 0.0
    %2252 = vadd.xlane.f32.xlu0 %v2251
    %v2253 = vpop.xlane.xlu0 %2252
    %v2254 = vsel %vm1049, %v2221, 0.0
    %2255 = vadd.xlane.f32.xlu0 %v2254
    %v2256 = vpop.xlane.xlu0 %2255
    %v2257 = vsel %vm1049, %v2223, 0.0
    %2258 = vadd.xlane.f32.xlu0 %v2257
    %v2259 = vpop.xlane.xlu0 %2258
    %v2260 = vsel %vm1049, %v2225, 0.0
    %2261 = vadd.xlane.f32.xlu0 %v2260
    %v2262 = vpop.xlane.xlu0 %2261
    %v2263 = vsel %vm1049, %v2227, 0.0
    %2264 = vadd.xlane.f32.xlu0 %v2263
    %v2265 = vpop.xlane.xlu0 %2264
    %v2266 = vsel %vm1049, %v2229, 0.0
    %2267 = vadd.xlane.f32.xlu0 %v2266
    %v2268 = vpop.xlane.xlu0 %2267
    %v2269 = vsel %vm1049, %v2231, 0.0
    %2270 = vadd.xlane.f32.xlu0 %v2269
    %v2271 = vpop.xlane.xlu0 %2270
    %v2272 = vsel %vm1049, %v2233, 0.0
    %2273 = vadd.xlane.f32.xlu0 %v2272
    %v2274 = vpop.xlane.xlu0 %2273
    %v2275 = vsel %vm1049, %v2235, 0.0
    %2276 = vadd.xlane.f32.xlu0 %v2275
    %v2277 = vpop.xlane.xlu0 %2276
    %v2278 = vsel %vm1049, %v2237, 0.0
    %2279 = vadd.xlane.f32.xlu0 %v2278
    %v2280 = vpop.xlane.xlu0 %2279
    %v2281 = vsel %vm1049, %v2239, 0.0
    %2282 = vadd.xlane.f32.xlu0 %v2281
    %v2283 = vpop.xlane.xlu0 %2282
    %v2284 = vsel %vm1049, %v2241, 0.0
    %2285 = vadd.xlane.f32.xlu0 %v2284
    %v2286 = vpop.xlane.xlu0 %2285
    %v2287 = vsel %vm1049, %v2243, 0.0
    %2288 = vadd.xlane.f32.xlu0 %v2287
    %v2289 = vpop.xlane.xlu0 %2288
    %v2290 = vsel %vm1049, %v2245, 0.0
    %2291 = vadd.xlane.f32.xlu0 %v2290
    %v2292 = vpop.xlane.xlu0 %2291
    %v2293 = vsel %vm1049, %v2247, 0.0
    %2294 = vadd.xlane.f32.xlu0 %v2293
    %v2295 = vpop.xlane.xlu0 %2294
    %v2296 = vrcp.pop %v2250
    %v2297 = vrcp.pop %v2253
    %v2298 = vrcp.pop %v2256
    %v2299 = vrcp.pop %v2259
    %v2300 = vrcp.pop %v2262
    %v2301 = vrcp.pop %v2265
    %v2302 = vrcp.pop %v2268
    %v2303 = vrcp.pop %v2271
    %v2304 = vrcp.pop %v2274
    %v2305 = vrcp.pop %v2277
    %v2306 = vrcp.pop %v2280
    %v2307 = vrcp.pop %v2283
    %v2308 = vrcp.pop %v2286
    %v2309 = vrcp.pop %v2289
    %v2310 = vrcp.pop %v2292
    %v2311 = vrcp.pop %v2295
    %v2312 = vmul.f32 %v2217, %v2296
    %v2313 = vmul.f32 %v2219, %v2297
    %v2314 = vmul.f32 %v2221, %v2298
    %v2315 = vmul.f32 %v2223, %v2299
    %v2316 = vmul.f32 %v2225, %v2300
    %v2317 = vmul.f32 %v2227, %v2301
    %v2318 = vmul.f32 %v2229, %v2302
    %v2319 = vmul.f32 %v2231, %v2303
    %v2320 = vmul.f32 %v2233, %v2304
    %v2321 = vmul.f32 %v2235, %v2305
    %v2322 = vmul.f32 %v2237, %v2306
    %v2323 = vmul.f32 %v2239, %v2307
    %v2324 = vmul.f32 %v2241, %v2308
    %v2325 = vmul.f32 %v2243, %v2309
    %v2326 = vmul.f32 %v2245, %v2310
    %v2327 = vmul.f32 %v2247, %v2311
    %v2328 = vpack.c.bf16 %v2313, %v2312
    %v2329 = vpack.c.bf16 %v2315, %v2314
    %v2330 = vpack.c.bf16 %v2317, %v2316
    %v2331 = vpack.c.bf16 %v2319, %v2318
    %v2332 = vpack.c.bf16 %v2321, %v2320
    %v2333 = vpack.c.bf16 %v2323, %v2322
    %v2334 = vpack.c.bf16 %v2325, %v2324
    %v2335 = vpack.c.bf16 %v2327, %v2326
    %2336 = vxpose.xlu0.c.b16.start [1/8] %v2328, 128
    %2337 = vxpose.xlu0.c.b16.cont [2/8] %v2329, 128
    %2338 = vxpose.xlu0.c.b16.cont [3/8] %v2330, 128
    %2339 = vxpose.xlu0.c.b16.cont [4/8] %v2331, 128
    %2340 = vxpose.xlu0.c.b16.cont [5/8] 0, 128
    %2341 = vxpose.xlu0.c.b16.cont [6/8] 0, 128
    %2342 = vxpose.xlu0.c.b16.cont [7/8] 0, 128
    %2343 = vxpose.xlu0.c.b16.end [8/8] 0, 128
    %v2344 = vpop.trf.xlu0
    %v2345 = vpop.trf.xlu0
    %v2346 = vpop.trf.xlu0
    %v2347 = vpop.trf.xlu0
    %v2348 = vpop.trf.xlu0
    %v2349 = vpop.trf.xlu0
    %v2350 = vpop.trf.xlu0
    %v2351 = vpop.trf.xlu0
    %v2353 = vsel %vm1049, %v2344, 0
    %v2356 = vsel %vm1049, %v2345, 0
    %v2359 = vsel %vm1049, %v2346, 0
    %v2362 = vsel %vm1049, %v2347, 0
    %2364 = vmatprep.subr.bf16.mxu0 0
    %2365 = vmatpush1.bf16.msra.mxu0 %v1934
    %2366 = vmatprep.subr.bf16.mxu0 0
    %2367 = vmatpush1.bf16.msra.mxu0 %v1935
    %2368 = vmatprep.subr.bf16.mxu0 0
    %2369 = vmatpush1.bf16.msra.mxu0 %v1936
    %2370 = vmatprep.subr.bf16.mxu0 0
    %2371 = vmatpush1.bf16.msra.mxu0 %v1937
    %2372 = vmatprep.subr.bf16.mxu0 0
    %2373 = vmatpush1.bf16.msra.mxu0 0
    %2374 = vmatprep.subr.bf16.mxu0 0
    %2375 = vmatpush1.bf16.msra.mxu0 0
    %2376 = vmatprep.subr.bf16.mxu0 0
    %2377 = vmatpush1.bf16.msra.mxu0 0
    %2378 = vmatprep.subr.bf16.mxu0 0
    %2379 = vmatpush1.bf16.msra.mxu0 0
    %2380 = vmatprep.subr.bf16.mxu0 0
    %2381 = vmatpush1.bf16.msra.mxu0 0
    %2382 = vmatprep.subr.bf16.mxu0 0
    %2383 = vmatpush1.bf16.msra.mxu0 0
    %2384 = vmatprep.subr.bf16.mxu0 0
    %2385 = vmatpush1.bf16.msra.mxu0 0
    %2386 = vmatprep.subr.bf16.mxu0 0
    %2387 = vmatpush1.bf16.msra.mxu0 0
    %2388 = vmatprep.subr.bf16.mxu0 0
    %2389 = vmatpush1.bf16.msra.mxu0 0
    %2390 = vmatprep.subr.bf16.mxu0 0
    %2391 = vmatpush1.bf16.msra.mxu0 0
    %2392 = vmatprep.subr.bf16.mxu0 0
    %2393 = vmatpush1.bf16.msra.mxu0 0
    %2394 = vmatprep.subr.bf16.mxu0 0
    %2395 = vmatpush1.bf16.msra.mxu0 0
    %2396 = vmatprep.mubr.bf16.mxu0 0
    %2397 = vmatmul.mubr.bf16.gmra.mrb[0].mxu0 %v2353
    %v2398 = vpop.f32.mrb[0].mxu0
    %v2399 = vadd.f32 0.0, %v2398
    %v2400 = vpop.f32.mrb[0].mxu0
    %v2401 = vpop.f32.mrb[0].mxu0
    %v2402 = vadd.f32 0.0, %v2401
    %v2403 = vpop.f32.mrb[0].mxu0
    %2404 = vmatprep.mubr.bf16.mxu0 0
    %2405 = vmatmul.mubr.bf16.gmra.mrb[0].mxu0 %v2356
    %v2406 = vpop.f32.mrb[0].mxu0
    %v2407 = vadd.f32 0.0, %v2406
    %v2408 = vpop.f32.mrb[0].mxu0
    %v2409 = vpop.f32.mrb[0].mxu0
    %v2410 = vadd.f32 0.0, %v2409
    %v2411 = vpop.f32.mrb[0].mxu0
    %2412 = vmatprep.mubr.bf16.mxu0 0
    %2413 = vmatmul.mubr.bf16.gmra.mrb[0].mxu0 %v2359
    %v2414 = vpop.f32.mrb[0].mxu0
    %v2415 = vadd.f32 0.0, %v2414
    %v2416 = vpop.f32.mrb[0].mxu0
    %v2417 = vpop.f32.mrb[0].mxu0
    %v2418 = vadd.f32 0.0, %v2417
    %v2419 = vpop.f32.mrb[0].mxu0
    %2420 = vmatprep.mubr.bf16.mxu0 0
    %2421 = vmatmul.mubr.bf16.gmra.mrb[0].mxu0 %v2362
    %v2422 = vpop.f32.mrb[0].mxu0
    %v2423 = vadd.f32 0.0, %v2422
    %v2424 = vpop.f32.mrb[0].mxu0
    %v2425 = vpop.f32.mrb[0].mxu0
    %v2426 = vadd.f32 0.0, %v2425
    %v2427 = vpop.f32.mrb[0].mxu0
    %2428 = vdwg.mxu0
    %2429 = vxpose.xlu0.c.b16.start [1/8] %v2332, 128
    %2430 = vxpose.xlu0.c.b16.cont [2/8] %v2333, 128
    %2431 = vxpose.xlu0.c.b16.cont [3/8] %v2334, 128
    %2432 = vxpose.xlu0.c.b16.cont [4/8] %v2335, 128
    %2433 = vxpose.xlu0.c.b16.cont [5/8] 0, 128
    %2434 = vxpose.xlu0.c.b16.cont [6/8] 0, 128
    %2435 = vxpose.xlu0.c.b16.cont [7/8] 0, 128
    %2436 = vxpose.xlu0.c.b16.end [8/8] 0, 128
    %v2437 = vpop.trf.xlu0
    %v2438 = vpop.trf.xlu0
    %v2439 = vpop.trf.xlu0
    %v2440 = vpop.trf.xlu0
    %v2441 = vpop.trf.xlu0
    %v2442 = vpop.trf.xlu0
    %v2443 = vpop.trf.xlu0
    %v2444 = vpop.trf.xlu0
    %v2446 = vsel %vm1049, %v2437, 0
    %v2449 = vsel %vm1049, %v2438, 0
    %v2452 = vsel %vm1049, %v2439, 0
    %v2455 = vsel %vm1049, %v2440, 0
    %2457 = vmatprep.subr.bf16.mxu0 0
    %2458 = vmatpush1.bf16.msra.mxu0 %v1938
    %2459 = vmatprep.subr.bf16.mxu0 0
    %2460 = vmatpush1.bf16.msra.mxu0 %v1939
    %2461 = vmatprep.subr.bf16.mxu0 0
    %2462 = vmatpush1.bf16.msra.mxu0 %v1940
    %2463 = vmatprep.subr.bf16.mxu0 0
    %2464 = vmatpush1.bf16.msra.mxu0 %v1941
    %2465 = vmatprep.subr.bf16.mxu0 0
    %2466 = vmatpush1.bf16.msra.mxu0 0
    %2467 = vmatprep.subr.bf16.mxu0 0
    %2468 = vmatpush1.bf16.msra.mxu0 0
    %2469 = vmatprep.subr.bf16.mxu0 0
    %2470 = vmatpush1.bf16.msra.mxu0 0
    %2471 = vmatprep.subr.bf16.mxu0 0
    %2472 = vmatpush1.bf16.msra.mxu0 0
    %2473 = vmatprep.subr.bf16.mxu0 0
    %2474 = vmatpush1.bf16.msra.mxu0 0
    %2475 = vmatprep.subr.bf16.mxu0 0
    %2476 = vmatpush1.bf16.msra.mxu0 0
    %2477 = vmatprep.subr.bf16.mxu0 0
    %2478 = vmatpush1.bf16.msra.mxu0 0
    %2479 = vmatprep.subr.bf16.mxu0 0
    %2480 = vmatpush1.bf16.msra.mxu0 0
    %2481 = vmatprep.subr.bf16.mxu0 0
    %2482 = vmatpush1.bf16.msra.mxu0 0
    %2483 = vmatprep.subr.bf16.mxu0 0
    %2484 = vmatpush1.bf16.msra.mxu0 0
    %2485 = vmatprep.subr.bf16.mxu0 0
    %2486 = vmatpush1.bf16.msra.mxu0 0
    %2487 = vmatprep.subr.bf16.mxu0 0
    %2488 = vmatpush1.bf16.msra.mxu0 0
    %2489 = vmatprep.mubr.bf16.mxu0 0
    %2490 = vmatmul.mubr.bf16.gmra.mrb[0].mxu0 %v2446
    %v2491 = vpop.f32.mrb[0].mxu0
    %v2492 = vadd.f32 0.0, %v2491
    %v2493 = vpop.f32.mrb[0].mxu0
    %v2494 = vpop.f32.mrb[0].mxu0
    %v2495 = vadd.f32 0.0, %v2494
    %v2496 = vpop.f32.mrb[0].mxu0
    %2497 = vmatprep.mubr.bf16.mxu0 0
    %2498 = vmatmul.mubr.bf16.gmra.mrb[0].mxu0 %v2449
    %v2499 = vpop.f32.mrb[0].mxu0
    %v2500 = vadd.f32 0.0, %v2499
    %v2501 = vpop.f32.mrb[0].mxu0
    %v2502 = vpop.f32.mrb[0].mxu0
    %v2503 = vadd.f32 0.0, %v2502
    %v2504 = vpop.f32.mrb[0].mxu0
    %2505 = vmatprep.mubr.bf16.mxu0 0
    %2506 = vmatmul.mubr.bf16.gmra.mrb[0].mxu0 %v2452
    %v2507 = vpop.f32.mrb[0].mxu0
    %v2508 = vadd.f32 0.0, %v2507
    %v2509 = vpop.f32.mrb[0].mxu0
    %v2510 = vpop.f32.mrb[0].mxu0
    %v2511 = vadd.f32 0.0, %v2510
    %v2512 = vpop.f32.mrb[0].mxu0
    %2513 = vmatprep.mubr.bf16.mxu0 0
    %2514 = vmatmul.mubr.bf16.gmra.mrb[0].mxu0 %v2455
    %v2515 = vpop.f32.mrb[0].mxu0
    %v2516 = vadd.f32 0.0, %v2515
    %v2517 = vpop.f32.mrb[0].mxu0
    %v2518 = vpop.f32.mrb[0].mxu0
    %v2519 = vadd.f32 0.0, %v2518
    %v2520 = vpop.f32.mrb[0].mxu0
    %2521 = vdwg.mxu0
    %v2522 = vpack.c.bf16 %v2402, %v2399
    %v2523 = vpack.c.bf16 %v2410, %v2407
    %v2524 = vpack.c.bf16 %v2418, %v2415
    %v2525 = vpack.c.bf16 %v2426, %v2423
    %v2526 = vpack.c.bf16 %v2495, %v2492
    %v2527 = vpack.c.bf16 %v2503, %v2500
    %v2528 = vpack.c.bf16 %v2511, %v2508
    %v2529 = vpack.c.bf16 %v2519, %v2516
    %s2530 = scalar_lea.vmem %s8, 16
    %v2531 = vld [vmem:[%s2530] sm:$0xf]
    %v2532 = vld [vmem:[%s2530 + $0x4] sm:$0xf]
    %v2533 = vld [vmem:[%s2530 + $0x8] sm:$0xf]
    %v2534 = vld [vmem:[%s2530 + $0xc] sm:$0xf]
    %v2539 = vunpack.c.l.b16 %v2531
    %v2540 = vunpack.c.l.b16 %v2532
    %v2541 = vunpack.c.l.b16 %v2533
    %v2542 = vunpack.c.l.b16 %v2534
    %v2543 = vpack.c.b16 %v2540, %v2539
    %v2544 = vpack.c.b16 %v2542, %v2541
    %v2548 = vsel %vm822, %v2522, 0
    %v2551 = vsel %vm822, %v2523, 0
    %v2554 = vsel %vm822, %v2524, 0
    %v2557 = vsel %vm822, %v2525, 0
    %v2560 = vsel %vm822, %v2526, 0
    %v2563 = vsel %vm822, %v2527, 0
    %v2566 = vsel %vm822, %v2528, 0
    %v2569 = vsel %vm822, %v2529, 0
    %2571 = vmatprep.subr.bf16.mxu0 0
    %2572 = vmatpush1.bf16.msra.mxu0 %v2543
    %2573 = vmatprep.subr.bf16.mxu0 0
    %2574 = vmatpush1.bf16.msra.mxu0 %v2544
    %2575 = vmatprep.subr.bf16.mxu0 0
    %2576 = vmatpush1.bf16.msra.mxu0 0
    %2577 = vmatprep.subr.bf16.mxu0 0
    %2578 = vmatpush1.bf16.msra.mxu0 0
    %2579 = vmatprep.subr.bf16.mxu0 0
    %2580 = vmatpush1.bf16.msra.mxu0 0
    %2581 = vmatprep.subr.bf16.mxu0 0
    %2582 = vmatpush1.bf16.msra.mxu0 0
    %2583 = vmatprep.subr.bf16.mxu0 0
    %2584 = vmatpush1.bf16.msra.mxu0 0
    %2585 = vmatprep.subr.bf16.mxu0 0
    %2586 = vmatpush1.bf16.msra.mxu0 0
    %2587 = vmatprep.subr.bf16.mxu0 0
    %2588 = vmatpush1.bf16.msra.mxu0 0
    %2589 = vmatprep.subr.bf16.mxu0 0
    %2590 = vmatpush1.bf16.msra.mxu0 0
    %2591 = vmatprep.subr.bf16.mxu0 0
    %2592 = vmatpush1.bf16.msra.mxu0 0
    %2593 = vmatprep.subr.bf16.mxu0 0
    %2594 = vmatpush1.bf16.msra.mxu0 0
    %2595 = vmatprep.subr.bf16.mxu0 0
    %2596 = vmatpush1.bf16.msra.mxu0 0
    %2597 = vmatprep.subr.bf16.mxu0 0
    %2598 = vmatpush1.bf16.msra.mxu0 0
    %2599 = vmatprep.subr.bf16.mxu0 0
    %2600 = vmatpush1.bf16.msra.mxu0 0
    %2601 = vmatprep.subr.bf16.mxu0 0
    %2602 = vmatpush1.bf16.msra.mxu0 0
    %2603 = vmatprep.mubr.bf16.mxu0 0
    %2604 = vmatmul.mubr.bf16.gmra.mrb[0].mxu0 %v2548
    %v2605 = vpop.f32.mrb[0].mxu0
    %v2606 = vadd.f32 0.0, %v2605
    %v2607 = vpop.f32.mrb[0].mxu0
    %v2608 = vpop.f32.mrb[0].mxu0
    %v2609 = vadd.f32 0.0, %v2608
    %v2610 = vpop.f32.mrb[0].mxu0
    %2611 = vmatprep.mubr.bf16.mxu0 0
    %2612 = vmatmul.mubr.bf16.gmra.mrb[0].mxu0 %v2551
    %v2613 = vpop.f32.mrb[0].mxu0
    %v2614 = vadd.f32 0.0, %v2613
    %v2615 = vpop.f32.mrb[0].mxu0
    %v2616 = vpop.f32.mrb[0].mxu0
    %v2617 = vadd.f32 0.0, %v2616
    %v2618 = vpop.f32.mrb[0].mxu0
    %2619 = vmatprep.mubr.bf16.mxu0 0
    %2620 = vmatmul.mubr.bf16.gmra.mrb[0].mxu0 %v2554
    %v2621 = vpop.f32.mrb[0].mxu0
    %v2622 = vadd.f32 0.0, %v2621
    %v2623 = vpop.f32.mrb[0].mxu0
    %v2624 = vpop.f32.mrb[0].mxu0
    %v2625 = vadd.f32 0.0, %v2624
    %v2626 = vpop.f32.mrb[0].mxu0
    %2627 = vmatprep.mubr.bf16.mxu0 0
    %2628 = vmatmul.mubr.bf16.gmra.mrb[0].mxu0 %v2557
    %v2629 = vpop.f32.mrb[0].mxu0
    %v2630 = vadd.f32 0.0, %v2629
    %v2631 = vpop.f32.mrb[0].mxu0
    %v2632 = vpop.f32.mrb[0].mxu0
    %v2633 = vadd.f32 0.0, %v2632
    %v2634 = vpop.f32.mrb[0].mxu0
    %2635 = vmatprep.mubr.bf16.mxu0 0
    %2636 = vmatmul.mubr.bf16.gmra.mrb[0].mxu0 %v2560
    %v2637 = vpop.f32.mrb[0].mxu0
    %v2638 = vadd.f32 0.0, %v2637
    %v2639 = vpop.f32.mrb[0].mxu0
    %v2640 = vpop.f32.mrb[0].mxu0
    %v2641 = vadd.f32 0.0, %v2640
    %v2642 = vpop.f32.mrb[0].mxu0
    %2643 = vmatprep.mubr.bf16.mxu0 0
    %2644 = vmatmul.mubr.bf16.gmra.mrb[0].mxu0 %v2563
    %v2645 = vpop.f32.mrb[0].mxu0
    %v2646 = vadd.f32 0.0, %v2645
    %v2647 = vpop.f32.mrb[0].mxu0
    %v2648 = vpop.f32.mrb[0].mxu0
    %v2649 = vadd.f32 0.0, %v2648
    %v2650 = vpop.f32.mrb[0].mxu0
    %2651 = vmatprep.mubr.bf16.mxu0 0
    %2652 = vmatmul.mubr.bf16.gmra.mrb[0].mxu0 %v2566
    %v2653 = vpop.f32.mrb[0].mxu0
    %v2654 = vadd.f32 0.0, %v2653
    %v2655 = vpop.f32.mrb[0].mxu0
    %v2656 = vpop.f32.mrb[0].mxu0
    %v2657 = vadd.f32 0.0, %v2656
    %v2658 = vpop.f32.mrb[0].mxu0
    %2659 = vmatprep.mubr.bf16.mxu0 0
    %2660 = vmatmul.mubr.bf16.gmra.mrb[0].mxu0 %v2569
    %v2661 = vpop.f32.mrb[0].mxu0
    %v2662 = vadd.f32 0.0, %v2661
    %v2663 = vpop.f32.mrb[0].mxu0
    %v2664 = vpop.f32.mrb[0].mxu0
    %v2665 = vadd.f32 0.0, %v2664
    %v2666 = vpop.f32.mrb[0].mxu0
    %2667 = vdwg.mxu0
    %v2672 = vunpack.c.l.b16 %v1428
    %v2673 = vunpack.c.l.b16 %v1429
    %v2674 = vunpack.c.l.b16 %v1430
    %v2675 = vunpack.c.l.b16 %v1431
    %v2676 = vpack.c.b16 %v2673, %v2672
    %v2677 = vpack.c.b16 %v2675, %v2674
    %v2681 = vsel %vm822, %v1420, 0
    %v2684 = vsel %vm822, %v1421, 0
    %v2687 = vsel %vm822, %v1422, 0
    %v2690 = vsel %vm822, %v1423, 0
    %v2693 = vsel %vm822, %v1424, 0
    %v2696 = vsel %vm822, %v1425, 0
    %v2699 = vsel %vm822, %v1426, 0
    %v2702 = vsel %vm822, %v1427, 0
    %2704 = vmatprep.subr.bf16.mxu0 0
    %2705 = vmatpush1.bf16.msra.mxu0 %v2676
    %2706 = vmatprep.subr.bf16.mxu0 0
    %2707 = vmatpush1.bf16.msra.mxu0 %v2677
    %2708 = vmatprep.subr.bf16.mxu0 0
    %2709 = vmatpush1.bf16.msra.mxu0 0
    %2710 = vmatprep.subr.bf16.mxu0 0
    %2711 = vmatpush1.bf16.msra.mxu0 0
    %2712 = vmatprep.subr.bf16.mxu0 0
    %2713 = vmatpush1.bf16.msra.mxu0 0
    %2714 = vmatprep.subr.bf16.mxu0 0
    %2715 = vmatpush1.bf16.msra.mxu0 0
    %2716 = vmatprep.subr.bf16.mxu0 0
    %2717 = vmatpush1.bf16.msra.mxu0 0
    %2718 = vmatprep.subr.bf16.mxu0 0
    %2719 = vmatpush1.bf16.msra.mxu0 0
    %2720 = vmatprep.subr.bf16.mxu0 0
    %2721 = vmatpush1.bf16.msra.mxu0 0
    %2722 = vmatprep.subr.bf16.mxu0 0
    %2723 = vmatpush1.bf16.msra.mxu0 0
    %2724 = vmatprep.subr.bf16.mxu0 0
    %2725 = vmatpush1.bf16.msra.mxu0 0
    %2726 = vmatprep.subr.bf16.mxu0 0
    %2727 = vmatpush1.bf16.msra.mxu0 0
    %2728 = vmatprep.subr.bf16.mxu0 0
    %2729 = vmatpush1.bf16.msra.mxu0 0
    %2730 = vmatprep.subr.bf16.mxu0 0
    %2731 = vmatpush1.bf16.msra.mxu0 0
    %2732 = vmatprep.subr.bf16.mxu0 0
    %2733 = vmatpush1.bf16.msra.mxu0 0
    %2734 = vmatprep.subr.bf16.mxu0 0
    %2735 = vmatpush1.bf16.msra.mxu0 0
    %2736 = vmatprep.mubr.bf16.mxu0 0
    %2737 = vmatmul.mubr.bf16.gmra.mrb[0].mxu0 %v2681
    %v2738 = vpop.f32.mrb[0].mxu0
    %v2739 = vadd.f32 %v2606, %v2738
    %v2740 = vpop.f32.mrb[0].mxu0
    %v2741 = vpop.f32.mrb[0].mxu0
    %v2742 = vadd.f32 %v2609, %v2741
    %v2743 = vpop.f32.mrb[0].mxu0
    %2744 = vmatprep.mubr.bf16.mxu0 0
    %2745 = vmatmul.mubr.bf16.gmra.mrb[0].mxu0 %v2684
    %v2746 = vpop.f32.mrb[0].mxu0
    %v2747 = vadd.f32 %v2614, %v2746
    %v2748 = vpop.f32.mrb[0].mxu0
    %v2749 = vpop.f32.mrb[0].mxu0
    %v2750 = vadd.f32 %v2617, %v2749
    %v2751 = vpop.f32.mrb[0].mxu0
    %2752 = vmatprep.mubr.bf16.mxu0 0
    %2753 = vmatmul.mubr.bf16.gmra.mrb[0].mxu0 %v2687
    %v2754 = vpop.f32.mrb[0].mxu0
    %v2755 = vadd.f32 %v2622, %v2754
    %v2756 = vpop.f32.mrb[0].mxu0
    %v2757 = vpop.f32.mrb[0].mxu0
    %v2758 = vadd.f32 %v2625, %v2757
    %v2759 = vpop.f32.mrb[0].mxu0
    %2760 = vmatprep.mubr.bf16.mxu0 0
    %2761 = vmatmul.mubr.bf16.gmra.mrb[0].mxu0 %v2690
    %v2762 = vpop.f32.mrb[0].mxu0
    %v2763 = vadd.f32 %v2630, %v2762
    %v2764 = vpop.f32.mrb[0].mxu0
    %v2765 = vpop.f32.mrb[0].mxu0
    %v2766 = vadd.f32 %v2633, %v2765
    %v2767 = vpop.f32.mrb[0].mxu0
    %2768 = vmatprep.mubr.bf16.mxu0 0
    %2769 = vmatmul.mubr.bf16.gmra.mrb[0].mxu0 %v2693
    %v2770 = vpop.f32.mrb[0].mxu0
    %v2771 = vadd.f32 %v2638, %v2770
    %v2772 = vpop.f32.mrb[0].mxu0
    %v2773 = vpop.f32.mrb[0].mxu0
    %v2774 = vadd.f32 %v2641, %v2773
    %v2775 = vpop.f32.mrb[0].mxu0
    %2776 = vmatprep.mubr.bf16.mxu0 0
    %2777 = vmatmul.mubr.bf16.gmra.mrb[0].mxu0 %v2696
    %v2778 = vpop.f32.mrb[0].mxu0
    %v2779 = vadd.f32 %v2646, %v2778
    %v2780 = vpop.f32.mrb[0].mxu0
    %v2781 = vpop.f32.mrb[0].mxu0
    %v2782 = vadd.f32 %v2649, %v2781
    %v2783 = vpop.f32.mrb[0].mxu0
    %2784 = vmatprep.mubr.bf16.mxu0 0
    %2785 = vmatmul.mubr.bf16.gmra.mrb[0].mxu0 %v2699
    %v2786 = vpop.f32.mrb[0].mxu0
    %v2787 = vadd.f32 %v2654, %v2786
    %v2788 = vpop.f32.mrb[0].mxu0
    %v2789 = vpop.f32.mrb[0].mxu0
    %v2790 = vadd.f32 %v2657, %v2789
    %v2791 = vpop.f32.mrb[0].mxu0
    %2792 = vmatprep.mubr.bf16.mxu0 0
    %2793 = vmatmul.mubr.bf16.gmra.mrb[0].mxu0 %v2702
    %v2794 = vpop.f32.mrb[0].mxu0
    %v2795 = vadd.f32 %v2662, %v2794
    %v2796 = vpop.f32.mrb[0].mxu0
    %v2797 = vpop.f32.mrb[0].mxu0
    %v2798 = vadd.f32 %v2665, %v2797
    %v2799 = vpop.f32.mrb[0].mxu0
    %2800 = vdwg.mxu0
    %s2801 = scalar_lea.vmem %s5, 128
    %v2802 = vld [vmem:[%s2801] sm:$0xf]
    %v2803 = vld [vmem:[%s2801 + $0x4] sm:$0xf]
    %v2804 = vld [vmem:[%s2801 + $0x8] sm:$0xf]
    %v2805 = vld [vmem:[%s2801 + $0xc] sm:$0xf]
    %v2806 = vld [vmem:[%s2801 + $0x10] sm:$0xf]
    %v2807 = vld [vmem:[%s2801 + $0x14] sm:$0xf]
    %v2808 = vld [vmem:[%s2801 + $0x18] sm:$0xf]
    %v2809 = vld [vmem:[%s2801 + $0x1c] sm:$0xf]
    %v2810 = vld [vmem:[%s2801 + $0x20] sm:$0xf]
    %v2811 = vld [vmem:[%s2801 + $0x24] sm:$0xf]
    %v2812 = vld [vmem:[%s2801 + $0x28] sm:$0xf]
    %v2813 = vld [vmem:[%s2801 + $0x2c] sm:$0xf]
    %v2814 = vld [vmem:[%s2801 + $0x30] sm:$0xf]
    %v2815 = vld [vmem:[%s2801 + $0x34] sm:$0xf]
    %v2816 = vld [vmem:[%s2801 + $0x38] sm:$0xf]
    %v2817 = vld [vmem:[%s2801 + $0x3c] sm:$0xf]
    %v2834 = vunpack.c.l.b16 %v2802
    %v2835 = vunpack.c.l.b16 %v2803
    %v2836 = vunpack.c.l.b16 %v2804
    %v2837 = vunpack.c.l.b16 %v2805
    %v2838 = vunpack.c.l.b16 %v2806
    %v2839 = vunpack.c.l.b16 %v2807
    %v2840 = vunpack.c.l.b16 %v2808
    %v2841 = vunpack.c.l.b16 %v2809
    %v2842 = vunpack.c.l.b16 %v2810
    %v2843 = vunpack.c.l.b16 %v2811
    %v2844 = vunpack.c.l.b16 %v2812
    %v2845 = vunpack.c.l.b16 %v2813
    %v2846 = vunpack.c.l.b16 %v2814
    %v2847 = vunpack.c.l.b16 %v2815
    %v2848 = vunpack.c.l.b16 %v2816
    %v2849 = vunpack.c.l.b16 %v2817
    %v2850 = vpack.c.b16 %v2835, %v2834
    %v2851 = vpack.c.b16 %v2837, %v2836
    %v2852 = vpack.c.b16 %v2839, %v2838
    %v2853 = vpack.c.b16 %v2841, %v2840
    %v2854 = vpack.c.b16 %v2843, %v2842
    %v2855 = vpack.c.b16 %v2845, %v2844
    %v2856 = vpack.c.b16 %v2847, %v2846
    %v2857 = vpack.c.b16 %v2849, %v2848
    %2866 = vmatprep.subr.bf16.mxu0 0
    %2867 = vmatpush1.bf16.msra.mxu0 %v2850
    %2868 = vmatprep.subr.bf16.mxu0 0
    %2869 = vmatpush1.bf16.msra.mxu0 %v2851
    %2870 = vmatprep.subr.bf16.mxu0 0
    %2871 = vmatpush1.bf16.msra.mxu0 %v2852
    %2872 = vmatprep.subr.bf16.mxu0 0
    %2873 = vmatpush1.bf16.msra.mxu0 %v2853
    %2874 = vmatprep.subr.bf16.mxu0 0
    %2875 = vmatpush1.bf16.msra.mxu0 %v2854
    %2876 = vmatprep.subr.bf16.mxu0 0
    %2877 = vmatpush1.bf16.msra.mxu0 %v2855
    %2878 = vmatprep.subr.bf16.mxu0 0
    %2879 = vmatpush1.bf16.msra.mxu0 %v2856
    %2880 = vmatprep.subr.bf16.mxu0 0
    %2881 = vmatpush1.bf16.msra.mxu0 %v2857
    %2882 = vmatprep.subr.bf16.mxu0 0
    %2883 = vmatpush1.bf16.msra.mxu0 0
    %2884 = vmatprep.subr.bf16.mxu0 0
    %2885 = vmatpush1.bf16.msra.mxu0 0
    %2886 = vmatprep.subr.bf16.mxu0 0
    %2887 = vmatpush1.bf16.msra.mxu0 0
    %2888 = vmatprep.subr.bf16.mxu0 0
    %2889 = vmatpush1.bf16.msra.mxu0 0
    %2890 = vmatprep.subr.bf16.mxu0 0
    %2891 = vmatpush1.bf16.msra.mxu0 0
    %2892 = vmatprep.subr.bf16.mxu0 0
    %2893 = vmatpush1.bf16.msra.mxu0 0
    %2894 = vmatprep.subr.bf16.mxu0 0
    %2895 = vmatpush1.bf16.msra.mxu0 0
    %2896 = vmatprep.subr.bf16.mxu0 0
    %2897 = vmatpush1.bf16.msra.mxu0 0
    %2898 = vmatprep.mubr.bf16.mxu0 0
    %2899 = vmatmul.mubr.bf16.gmra.mrb[0].mxu0 %v288
    %v2900 = vpop.f32.mrb[0].mxu0
    %v2901 = vadd.f32 0.0, %v2900
    %v2902 = vpop.f32.mrb[0].mxu0
    %v2903 = vpop.f32.mrb[0].mxu0
    %v2904 = vadd.f32 0.0, %v2903
    %v2905 = vpop.f32.mrb[0].mxu0
    %2906 = vmatprep.mubr.bf16.mxu0 0
    %2907 = vmatmul.mubr.bf16.gmra.mrb[0].mxu0 %v289
    %v2908 = vpop.f32.mrb[0].mxu0
    %v2909 = vadd.f32 0.0, %v2908
    %v2910 = vpop.f32.mrb[0].mxu0
    %v2911 = vpop.f32.mrb[0].mxu0
    %v2912 = vadd.f32 0.0, %v2911
    %v2913 = vpop.f32.mrb[0].mxu0
    %2914 = vmatprep.mubr.bf16.mxu0 0
    %2915 = vmatmul.mubr.bf16.gmra.mrb[0].mxu0 %v290
    %v2916 = vpop.f32.mrb[0].mxu0
    %v2917 = vadd.f32 0.0, %v2916
    %v2918 = vpop.f32.mrb[0].mxu0
    %v2919 = vpop.f32.mrb[0].mxu0
    %v2920 = vadd.f32 0.0, %v2919
    %v2921 = vpop.f32.mrb[0].mxu0
    %2922 = vmatprep.mubr.bf16.mxu0 0
    %2923 = vmatmul.mubr.bf16.gmra.mrb[0].mxu0 %v291
    %v2924 = vpop.f32.mrb[0].mxu0
    %v2925 = vadd.f32 0.0, %v2924
    %v2926 = vpop.f32.mrb[0].mxu0
    %v2927 = vpop.f32.mrb[0].mxu0
    %v2928 = vadd.f32 0.0, %v2927
    %v2929 = vpop.f32.mrb[0].mxu0
    %2930 = vmatprep.mubr.bf16.mxu0 0
    %2931 = vmatmul.mubr.bf16.gmra.mrb[0].mxu0 %v292
    %v2932 = vpop.f32.mrb[0].mxu0
    %v2933 = vadd.f32 0.0, %v2932
    %v2934 = vpop.f32.mrb[0].mxu0
    %v2935 = vpop.f32.mrb[0].mxu0
    %v2936 = vadd.f32 0.0, %v2935
    %v2937 = vpop.f32.mrb[0].mxu0
    %2938 = vmatprep.mubr.bf16.mxu0 0
    %2939 = vmatmul.mubr.bf16.gmra.mrb[0].mxu0 %v293
    %v2940 = vpop.f32.mrb[0].mxu0
    %v2941 = vadd.f32 0.0, %v2940
    %v2942 = vpop.f32.mrb[0].mxu0
    %v2943 = vpop.f32.mrb[0].mxu0
    %v2944 = vadd.f32 0.0, %v2943
    %v2945 = vpop.f32.mrb[0].mxu0
    %2946 = vmatprep.mubr.bf16.mxu0 0
    %2947 = vmatmul.mubr.bf16.gmra.mrb[0].mxu0 %v294
    %v2948 = vpop.f32.mrb[0].mxu0
    %v2949 = vadd.f32 0.0, %v2948
    %v2950 = vpop.f32.mrb[0].mxu0
    %v2951 = vpop.f32.mrb[0].mxu0
    %v2952 = vadd.f32 0.0, %v2951
    %v2953 = vpop.f32.mrb[0].mxu0
    %2954 = vmatprep.mubr.bf16.mxu0 0
    %2955 = vmatmul.mubr.bf16.gmra.mrb[0].mxu0 %v295
    %v2956 = vpop.f32.mrb[0].mxu0
    %v2957 = vadd.f32 0.0, %v2956
    %v2958 = vpop.f32.mrb[0].mxu0
    %v2959 = vpop.f32.mrb[0].mxu0
    %v2960 = vadd.f32 0.0, %v2959
    %v2961 = vpop.f32.mrb[0].mxu0
    %2962 = vdwg.mxu0
    %s2963 = scalar_lea.vmem %s6, 128
    %v2964 = vld [vmem:[%s2963] sm:$0xf]
    %v2965 = vld [vmem:[%s2963 + $0x4] sm:$0xf]
    %v2966 = vld [vmem:[%s2963 + $0x8] sm:$0xf]
    %v2967 = vld [vmem:[%s2963 + $0xc] sm:$0xf]
    %v2968 = vld [vmem:[%s2963 + $0x10] sm:$0xf]
    %v2969 = vld [vmem:[%s2963 + $0x14] sm:$0xf]
    %v2970 = vld [vmem:[%s2963 + $0x18] sm:$0xf]
    %v2971 = vld [vmem:[%s2963 + $0x1c] sm:$0xf]
    %v2972 = vld [vmem:[%s2963 + $0x20] sm:$0xf]
    %v2973 = vld [vmem:[%s2963 + $0x24] sm:$0xf]
    %v2974 = vld [vmem:[%s2963 + $0x28] sm:$0xf]
    %v2975 = vld [vmem:[%s2963 + $0x2c] sm:$0xf]
    %v2976 = vld [vmem:[%s2963 + $0x30] sm:$0xf]
    %v2977 = vld [vmem:[%s2963 + $0x34] sm:$0xf]
    %v2978 = vld [vmem:[%s2963 + $0x38] sm:$0xf]
    %v2979 = vld [vmem:[%s2963 + $0x3c] sm:$0xf]
    %v2996 = vunpack.c.l.b16 %v2964
    %v2997 = vunpack.c.l.b16 %v2965
    %v2998 = vunpack.c.l.b16 %v2966
    %v2999 = vunpack.c.l.b16 %v2967
    %v3000 = vunpack.c.l.b16 %v2968
    %v3001 = vunpack.c.l.b16 %v2969
    %v3002 = vunpack.c.l.b16 %v2970
    %v3003 = vunpack.c.l.b16 %v2971
    %v3004 = vunpack.c.l.b16 %v2972
    %v3005 = vunpack.c.l.b16 %v2973
    %v3006 = vunpack.c.l.b16 %v2974
    %v3007 = vunpack.c.l.b16 %v2975
    %v3008 = vunpack.c.l.b16 %v2976
    %v3009 = vunpack.c.l.b16 %v2977
    %v3010 = vunpack.c.l.b16 %v2978
    %v3011 = vunpack.c.l.b16 %v2979
    %v3012 = vpack.c.b16 %v2997, %v2996
    %v3013 = vpack.c.b16 %v2999, %v2998
    %v3014 = vpack.c.b16 %v3001, %v3000
    %v3015 = vpack.c.b16 %v3003, %v3002
    %v3016 = vpack.c.b16 %v3005, %v3004
    %v3017 = vpack.c.b16 %v3007, %v3006
    %v3018 = vpack.c.b16 %v3009, %v3008
    %v3019 = vpack.c.b16 %v3011, %v3010
    %3028 = vmatprep.subr.bf16.mxu0 0
    %3029 = vmatpush1.bf16.msra.mxu0 %v3012
    %3030 = vmatprep.subr.bf16.mxu0 0
    %3031 = vmatpush1.bf16.msra.mxu0 %v3013
    %3032 = vmatprep.subr.bf16.mxu0 0
    %3033 = vmatpush1.bf16.msra.mxu0 %v3014
    %3034 = vmatprep.subr.bf16.mxu0 0
    %3035 = vmatpush1.bf16.msra.mxu0 %v3015
    %3036 = vmatprep.subr.bf16.mxu0 0
    %3037 = vmatpush1.bf16.msra.mxu0 %v3016
    %3038 = vmatprep.subr.bf16.mxu0 0
    %3039 = vmatpush1.bf16.msra.mxu0 %v3017
    %3040 = vmatprep.subr.bf16.mxu0 0
    %3041 = vmatpush1.bf16.msra.mxu0 %v3018
    %3042 = vmatprep.subr.bf16.mxu0 0
    %3043 = vmatpush1.bf16.msra.mxu0 %v3019
    %3044 = vmatprep.subr.bf16.mxu0 0
    %3045 = vmatpush1.bf16.msra.mxu0 0
    %3046 = vmatprep.subr.bf16.mxu0 0
    %3047 = vmatpush1.bf16.msra.mxu0 0
    %3048 = vmatprep.subr.bf16.mxu0 0
    %3049 = vmatpush1.bf16.msra.mxu0 0
    %3050 = vmatprep.subr.bf16.mxu0 0
    %3051 = vmatpush1.bf16.msra.mxu0 0
    %3052 = vmatprep.subr.bf16.mxu0 0
    %3053 = vmatpush1.bf16.msra.mxu0 0
    %3054 = vmatprep.subr.bf16.mxu0 0
    %3055 = vmatpush1.bf16.msra.mxu0 0
    %3056 = vmatprep.subr.bf16.mxu0 0
    %3057 = vmatpush1.bf16.msra.mxu0 0
    %3058 = vmatprep.subr.bf16.mxu0 0
    %3059 = vmatpush1.bf16.msra.mxu0 0
    %3060 = vmatprep.mubr.bf16.mxu0 0
    %3061 = vmatmul.mubr.bf16.gmra.mrb[0].mxu0 %v288
    %v3062 = vpop.f32.mrb[0].mxu0
    %v3063 = vadd.f32 0.0, %v3062
    %v3064 = vpop.f32.mrb[0].mxu0
    %v3065 = vpop.f32.mrb[0].mxu0
    %v3066 = vadd.f32 0.0, %v3065
    %v3067 = vpop.f32.mrb[0].mxu0
    %3068 = vmatprep.mubr.bf16.mxu0 0
    %3069 = vmatmul.mubr.bf16.gmra.mrb[0].mxu0 %v289
    %v3070 = vpop.f32.mrb[0].mxu0
    %v3071 = vadd.f32 0.0, %v3070
    %v3072 = vpop.f32.mrb[0].mxu0
    %v3073 = vpop.f32.mrb[0].mxu0
    %v3074 = vadd.f32 0.0, %v3073
    %v3075 = vpop.f32.mrb[0].mxu0
    %3076 = vmatprep.mubr.bf16.mxu0 0
    %3077 = vmatmul.mubr.bf16.gmra.mrb[0].mxu0 %v290
    %v3078 = vpop.f32.mrb[0].mxu0
    %v3079 = vadd.f32 0.0, %v3078
    %v3080 = vpop.f32.mrb[0].mxu0
    %v3081 = vpop.f32.mrb[0].mxu0
    %v3082 = vadd.f32 0.0, %v3081
    %v3083 = vpop.f32.mrb[0].mxu0
    %3084 = vmatprep.mubr.bf16.mxu0 0
    %3085 = vmatmul.mubr.bf16.gmra.mrb[0].mxu0 %v291
    %v3086 = vpop.f32.mrb[0].mxu0
    %v3087 = vadd.f32 0.0, %v3086
    %v3088 = vpop.f32.mrb[0].mxu0
    %v3089 = vpop.f32.mrb[0].mxu0
    %v3090 = vadd.f32 0.0, %v3089
    %v3091 = vpop.f32.mrb[0].mxu0
    %3092 = vmatprep.mubr.bf16.mxu0 0
    %3093 = vmatmul.mubr.bf16.gmra.mrb[0].mxu0 %v292
    %v3094 = vpop.f32.mrb[0].mxu0
    %v3095 = vadd.f32 0.0, %v3094
    %v3096 = vpop.f32.mrb[0].mxu0
    %v3097 = vpop.f32.mrb[0].mxu0
    %v3098 = vadd.f32 0.0, %v3097
    %v3099 = vpop.f32.mrb[0].mxu0
    %3100 = vmatprep.mubr.bf16.mxu0 0
    %3101 = vmatmul.mubr.bf16.gmra.mrb[0].mxu0 %v293
    %v3102 = vpop.f32.mrb[0].mxu0
    %v3103 = vadd.f32 0.0, %v3102
    %v3104 = vpop.f32.mrb[0].mxu0
    %v3105 = vpop.f32.mrb[0].mxu0
    %v3106 = vadd.f32 0.0, %v3105
    %v3107 = vpop.f32.mrb[0].mxu0
    %3108 = vmatprep.mubr.bf16.mxu0 0
    %3109 = vmatmul.mubr.bf16.gmra.mrb[0].mxu0 %v294
    %v3110 = vpop.f32.mrb[0].mxu0
    %v3111 = vadd.f32 0.0, %v3110
    %v3112 = vpop.f32.mrb[0].mxu0
    %v3113 = vpop.f32.mrb[0].mxu0
    %v3114 = vadd.f32 0.0, %v3113
    %v3115 = vpop.f32.mrb[0].mxu0
    %3116 = vmatprep.mubr.bf16.mxu0 0
    %3117 = vmatmul.mubr.bf16.gmra.mrb[0].mxu0 %v295
    %v3118 = vpop.f32.mrb[0].mxu0
    %v3119 = vadd.f32 0.0, %v3118
    %v3120 = vpop.f32.mrb[0].mxu0
    %v3121 = vpop.f32.mrb[0].mxu0
    %v3122 = vadd.f32 0.0, %v3121
    %v3123 = vpop.f32.mrb[0].mxu0
    %3124 = vdwg.mxu0
    %s3125 = scalar_lea.vmem %s7, 128
    %v3126 = vld [vmem:[%s3125] sm:$0xf]
    %v3127 = vld [vmem:[%s3125 + $0x4] sm:$0xf]
    %v3128 = vld [vmem:[%s3125 + $0x8] sm:$0xf]
    %v3129 = vld [vmem:[%s3125 + $0xc] sm:$0xf]
    %v3130 = vld [vmem:[%s3125 + $0x10] sm:$0xf]
    %v3131 = vld [vmem:[%s3125 + $0x14] sm:$0xf]
    %v3132 = vld [vmem:[%s3125 + $0x18] sm:$0xf]
    %v3133 = vld [vmem:[%s3125 + $0x1c] sm:$0xf]
    %v3134 = vld [vmem:[%s3125 + $0x20] sm:$0xf]
    %v3135 = vld [vmem:[%s3125 + $0x24] sm:$0xf]
    %v3136 = vld [vmem:[%s3125 + $0x28] sm:$0xf]
    %v3137 = vld [vmem:[%s3125 + $0x2c] sm:$0xf]
    %v3138 = vld [vmem:[%s3125 + $0x30] sm:$0xf]
    %v3139 = vld [vmem:[%s3125 + $0x34] sm:$0xf]
    %v3140 = vld [vmem:[%s3125 + $0x38] sm:$0xf]
    %v3141 = vld [vmem:[%s3125 + $0x3c] sm:$0xf]
    %v3158 = vunpack.c.l.b16 %v3126
    %v3159 = vunpack.c.l.b16 %v3127
    %v3160 = vunpack.c.l.b16 %v3128
    %v3161 = vunpack.c.l.b16 %v3129
    %v3162 = vunpack.c.l.b16 %v3130
    %v3163 = vunpack.c.l.b16 %v3131
    %v3164 = vunpack.c.l.b16 %v3132
    %v3165 = vunpack.c.l.b16 %v3133
    %v3166 = vunpack.c.l.b16 %v3134
    %v3167 = vunpack.c.l.b16 %v3135
    %v3168 = vunpack.c.l.b16 %v3136
    %v3169 = vunpack.c.l.b16 %v3137
    %v3170 = vunpack.c.l.b16 %v3138
    %v3171 = vunpack.c.l.b16 %v3139
    %v3172 = vunpack.c.l.b16 %v3140
    %v3173 = vunpack.c.l.b16 %v3141
    %v3174 = vpack.c.b16 %v3159, %v3158
    %v3175 = vpack.c.b16 %v3161, %v3160
    %v3176 = vpack.c.b16 %v3163, %v3162
    %v3177 = vpack.c.b16 %v3165, %v3164
    %v3178 = vpack.c.b16 %v3167, %v3166
    %v3179 = vpack.c.b16 %v3169, %v3168
    %v3180 = vpack.c.b16 %v3171, %v3170
    %v3181 = vpack.c.b16 %v3173, %v3172
    %3190 = vmatprep.subr.bf16.mxu0 0
    %3191 = vmatpush1.bf16.msra.mxu0 %v3174
    %3192 = vmatprep.subr.bf16.mxu0 0
    %3193 = vmatpush1.bf16.msra.mxu0 %v3175
    %3194 = vmatprep.subr.bf16.mxu0 0
    %3195 = vmatpush1.bf16.msra.mxu0 %v3176
    %3196 = vmatprep.subr.bf16.mxu0 0
    %3197 = vmatpush1.bf16.msra.mxu0 %v3177
    %3198 = vmatprep.subr.bf16.mxu0 0
    %3199 = vmatpush1.bf16.msra.mxu0 %v3178
    %3200 = vmatprep.subr.bf16.mxu0 0
    %3201 = vmatpush1.bf16.msra.mxu0 %v3179
    %3202 = vmatprep.subr.bf16.mxu0 0
    %3203 = vmatpush1.bf16.msra.mxu0 %v3180
    %3204 = vmatprep.subr.bf16.mxu0 0
    %3205 = vmatpush1.bf16.msra.mxu0 %v3181
    %3206 = vmatprep.subr.bf16.mxu0 0
    %3207 = vmatpush1.bf16.msra.mxu0 0
    %3208 = vmatprep.subr.bf16.mxu0 0
    %3209 = vmatpush1.bf16.msra.mxu0 0
    %3210 = vmatprep.subr.bf16.mxu0 0
    %3211 = vmatpush1.bf16.msra.mxu0 0
    %3212 = vmatprep.subr.bf16.mxu0 0
    %3213 = vmatpush1.bf16.msra.mxu0 0
    %3214 = vmatprep.subr.bf16.mxu0 0
    %3215 = vmatpush1.bf16.msra.mxu0 0
    %3216 = vmatprep.subr.bf16.mxu0 0
    %3217 = vmatpush1.bf16.msra.mxu0 0
    %3218 = vmatprep.subr.bf16.mxu0 0
    %3219 = vmatpush1.bf16.msra.mxu0 0
    %3220 = vmatprep.subr.bf16.mxu0 0
    %3221 = vmatpush1.bf16.msra.mxu0 0
    %3222 = vmatprep.mubr.bf16.mxu0 0
    %3223 = vmatmul.mubr.bf16.gmra.mrb[0].mxu0 %v288
    %v3224 = vpop.f32.mrb[0].mxu0
    %v3225 = vadd.f32 0.0, %v3224
    %v3226 = vpop.f32.mrb[0].mxu0
    %v3227 = vpop.f32.mrb[0].mxu0
    %v3228 = vadd.f32 0.0, %v3227
    %v3229 = vpop.f32.mrb[0].mxu0
    %3230 = vmatprep.mubr.bf16.mxu0 0
    %3231 = vmatmul.mubr.bf16.gmra.mrb[0].mxu0 %v289
    %v3232 = vpop.f32.mrb[0].mxu0
    %v3233 = vadd.f32 0.0, %v3232
    %v3234 = vpop.f32.mrb[0].mxu0
    %v3235 = vpop.f32.mrb[0].mxu0
    %v3236 = vadd.f32 0.0, %v3235
    %v3237 = vpop.f32.mrb[0].mxu0
    %3238 = vmatprep.mubr.bf16.mxu0 0
    %3239 = vmatmul.mubr.bf16.gmra.mrb[0].mxu0 %v290
    %v3240 = vpop.f32.mrb[0].mxu0
    %v3241 = vadd.f32 0.0, %v3240
    %v3242 = vpop.f32.mrb[0].mxu0
    %v3243 = vpop.f32.mrb[0].mxu0
    %v3244 = vadd.f32 0.0, %v3243
    %v3245 = vpop.f32.mrb[0].mxu0
    %3246 = vmatprep.mubr.bf16.mxu0 0
    %3247 = vmatmul.mubr.bf16.gmra.mrb[0].mxu0 %v291
    %v3248 = vpop.f32.mrb[0].mxu0
    %v3249 = vadd.f32 0.0, %v3248
    %v3250 = vpop.f32.mrb[0].mxu0
    %v3251 = vpop.f32.mrb[0].mxu0
    %v3252 = vadd.f32 0.0, %v3251
    %v3253 = vpop.f32.mrb[0].mxu0
    %3254 = vmatprep.mubr.bf16.mxu0 0
    %3255 = vmatmul.mubr.bf16.gmra.mrb[0].mxu0 %v292
    %v3256 = vpop.f32.mrb[0].mxu0
    %v3257 = vadd.f32 0.0, %v3256
    %v3258 = vpop.f32.mrb[0].mxu0
    %v3259 = vpop.f32.mrb[0].mxu0
    %v3260 = vadd.f32 0.0, %v3259
    %v3261 = vpop.f32.mrb[0].mxu0
    %3262 = vmatprep.mubr.bf16.mxu0 0
    %3263 = vmatmul.mubr.bf16.gmra.mrb[0].mxu0 %v293
    %v3264 = vpop.f32.mrb[0].mxu0
    %v3265 = vadd.f32 0.0, %v3264
    %v3266 = vpop.f32.mrb[0].mxu0
    %v3267 = vpop.f32.mrb[0].mxu0
    %v3268 = vadd.f32 0.0, %v3267
    %v3269 = vpop.f32.mrb[0].mxu0
    %3270 = vmatprep.mubr.bf16.mxu0 0
    %3271 = vmatmul.mubr.bf16.gmra.mrb[0].mxu0 %v294
    %v3272 = vpop.f32.mrb[0].mxu0
    %v3273 = vadd.f32 0.0, %v3272
    %v3274 = vpop.f32.mrb[0].mxu0
    %v3275 = vpop.f32.mrb[0].mxu0
    %v3276 = vadd.f32 0.0, %v3275
    %v3277 = vpop.f32.mrb[0].mxu0
    %3278 = vmatprep.mubr.bf16.mxu0 0
    %3279 = vmatmul.mubr.bf16.gmra.mrb[0].mxu0 %v295
    %v3280 = vpop.f32.mrb[0].mxu0
    %v3281 = vadd.f32 0.0, %v3280
    %v3282 = vpop.f32.mrb[0].mxu0
    %v3283 = vpop.f32.mrb[0].mxu0
    %v3284 = vadd.f32 0.0, %v3283
    %v3285 = vpop.f32.mrb[0].mxu0
    %3286 = vdwg.mxu0
    %v3287 = vpack.c.bf16 %v2904, %v2901
    %v3288 = vpack.c.bf16 %v2912, %v2909
    %v3289 = vpack.c.bf16 %v2920, %v2917
    %v3290 = vpack.c.bf16 %v2928, %v2925
    %v3291 = vpack.c.bf16 %v2936, %v2933
    %v3292 = vpack.c.bf16 %v2944, %v2941
    %v3293 = vpack.c.bf16 %v2952, %v2949
    %v3294 = vpack.c.bf16 %v2960, %v2957
    %v3295 = vpack.c.bf16 %v3066, %v3063
    %v3296 = vpack.c.bf16 %v3074, %v3071
    %v3297 = vpack.c.bf16 %v3082, %v3079
    %v3298 = vpack.c.bf16 %v3090, %v3087
    %v3299 = vpack.c.bf16 %v3098, %v3095
    %v3300 = vpack.c.bf16 %v3106, %v3103
    %v3301 = vpack.c.bf16 %v3114, %v3111
    %v3302 = vpack.c.bf16 %v3122, %v3119
    %v3303 = vpack.c.bf16 %v3228, %v3225
    %v3304 = vpack.c.bf16 %v3236, %v3233
    %v3305 = vpack.c.bf16 %v3244, %v3241
    %v3306 = vpack.c.bf16 %v3252, %v3249
    %v3307 = vpack.c.bf16 %v3260, %v3257
    %v3308 = vpack.c.bf16 %v3268, %v3265
    %v3309 = vpack.c.bf16 %v3276, %v3273
    %v3310 = vpack.c.bf16 %v3284, %v3281
    %v3312 = vsel %vm822, %v3295, 0
    %v3315 = vsel %vm822, %v3296, 0
    %v3318 = vsel %vm822, %v3297, 0
    %v3321 = vsel %vm822, %v3298, 0
    %v3324 = vsel %vm822, %v3287, 0
    %v3327 = vsel %vm822, %v3288, 0
    %v3330 = vsel %vm822, %v3289, 0
    %v3333 = vsel %vm822, %v3290, 0
    %3335 = vmatprep.subr.bf16.mxu0 0
    %3336 = vmatpush1.bf16.xpose.msra.mxu0 %v3324
    %3337 = vmatprep.subr.bf16.mxu0 0
    %3338 = vmatpush1.bf16.xpose.msra.mxu0 %v3327
    %3339 = vmatprep.subr.bf16.mxu0 0
    %3340 = vmatpush1.bf16.xpose.msra.mxu0 %v3330
    %3341 = vmatprep.subr.bf16.mxu0 0
    %3342 = vmatpush1.bf16.xpose.msra.mxu0 %v3333
    %3343 = vmatprep.subr.bf16.mxu0 0
    %3344 = vmatpush1.bf16.xpose.msra.mxu0 0
    %3345 = vmatprep.subr.bf16.mxu0 0
    %3346 = vmatpush1.bf16.xpose.msra.mxu0 0
    %3347 = vmatprep.subr.bf16.mxu0 0
    %3348 = vmatpush1.bf16.xpose.msra.mxu0 0
    %3349 = vmatprep.subr.bf16.mxu0 0
    %3350 = vmatpush1.bf16.xpose.msra.mxu0 0
    %3351 = vmatprep.subr.bf16.mxu0 0
    %3352 = vmatpush1.bf16.xpose.msra.mxu0 0
    %3353 = vmatprep.subr.bf16.mxu0 0
    %3354 = vmatpush1.bf16.xpose.msra.mxu0 0
    %3355 = vmatprep.subr.bf16.mxu0 0
    %3356 = vmatpush1.bf16.xpose.msra.mxu0 0
    %3357 = vmatprep.subr.bf16.mxu0 0
    %3358 = vmatpush1.bf16.xpose.msra.mxu0 0
    %3359 = vmatprep.subr.bf16.mxu0 0
    %3360 = vmatpush1.bf16.xpose.msra.mxu0 0
    %3361 = vmatprep.subr.bf16.mxu0 0
    %3362 = vmatpush1.bf16.xpose.msra.mxu0 0
    %3363 = vmatprep.subr.bf16.mxu0 0
    %3364 = vmatpush1.bf16.xpose.msra.mxu0 0
    %3365 = vmatprep.subr.bf16.mxu0 0
    %3366 = vmatpush1.bf16.xpose.msra.mxu0 0
    %3367 = vmatprep.mubr.bf16.mxu0 0
    %3368 = vmatmul.mubr.bf16.gmra.mrb[0].mxu0 %v3312
    %v3369 = vpop.f32.mrb[0].mxu0
    %v3370 = vadd.f32 0.0, %v3369
    %v3371 = vpop.f32.mrb[0].mxu0
    %v3372 = vpop.f32.mrb[0].mxu0
    %v3373 = vadd.f32 0.0, %v3372
    %v3374 = vpop.f32.mrb[0].mxu0
    %3375 = vmatprep.mubr.bf16.mxu0 0
    %3376 = vmatmul.mubr.bf16.gmra.mrb[0].mxu0 %v3315
    %v3377 = vpop.f32.mrb[0].mxu0
    %v3378 = vadd.f32 0.0, %v3377
    %v3379 = vpop.f32.mrb[0].mxu0
    %v3380 = vpop.f32.mrb[0].mxu0
    %v3381 = vadd.f32 0.0, %v3380
    %v3382 = vpop.f32.mrb[0].mxu0
    %3383 = vmatprep.mubr.bf16.mxu0 0
    %3384 = vmatmul.mubr.bf16.gmra.mrb[0].mxu0 %v3318
    %v3385 = vpop.f32.mrb[0].mxu0
    %v3386 = vadd.f32 0.0, %v3385
    %v3387 = vpop.f32.mrb[0].mxu0
    %v3388 = vpop.f32.mrb[0].mxu0
    %v3389 = vadd.f32 0.0, %v3388
    %v3390 = vpop.f32.mrb[0].mxu0
    %3391 = vmatprep.mubr.bf16.mxu0 0
    %3392 = vmatmul.mubr.bf16.gmra.mrb[0].mxu0 %v3321
    %v3393 = vpop.f32.mrb[0].mxu0
    %v3394 = vadd.f32 0.0, %v3393
    %v3395 = vpop.f32.mrb[0].mxu0
    %v3396 = vpop.f32.mrb[0].mxu0
    %v3397 = vadd.f32 0.0, %v3396
    %v3398 = vpop.f32.mrb[0].mxu0
    %3399 = vdwg.mxu0
    %v3401 = vsel %vm822, %v3299, 0
    %v3404 = vsel %vm822, %v3300, 0
    %v3407 = vsel %vm822, %v3301, 0
    %v3410 = vsel %vm822, %v3302, 0
    %v3413 = vsel %vm822, %v3291, 0
    %v3416 = vsel %vm822, %v3292, 0
    %v3419 = vsel %vm822, %v3293, 0
    %v3422 = vsel %vm822, %v3294, 0
    %3424 = vmatprep.subr.bf16.mxu0 0
    %3425 = vmatpush1.bf16.xpose.msra.mxu0 %v3413
    %3426 = vmatprep.subr.bf16.mxu0 0
    %3427 = vmatpush1.bf16.xpose.msra.mxu0 %v3416
    %3428 = vmatprep.subr.bf16.mxu0 0
    %3429 = vmatpush1.bf16.xpose.msra.mxu0 %v3419
    %3430 = vmatprep.subr.bf16.mxu0 0
    %3431 = vmatpush1.bf16.xpose.msra.mxu0 %v3422
    %3432 = vmatprep.subr.bf16.mxu0 0
    %3433 = vmatpush1.bf16.xpose.msra.mxu0 0
    %3434 = vmatprep.subr.bf16.mxu0 0
    %3435 = vmatpush1.bf16.xpose.msra.mxu0 0
    %3436 = vmatprep.subr.bf16.mxu0 0
    %3437 = vmatpush1.bf16.xpose.msra.mxu0 0
    %3438 = vmatprep.subr.bf16.mxu0 0
    %3439 = vmatpush1.bf16.xpose.msra.mxu0 0
    %3440 = vmatprep.subr.bf16.mxu0 0
    %3441 = vmatpush1.bf16.xpose.msra.mxu0 0
    %3442 = vmatprep.subr.bf16.mxu0 0
    %3443 = vmatpush1.bf16.xpose.msra.mxu0 0
    %3444 = vmatprep.subr.bf16.mxu0 0
    %3445 = vmatpush1.bf16.xpose.msra.mxu0 0
    %3446 = vmatprep.subr.bf16.mxu0 0
    %3447 = vmatpush1.bf16.xpose.msra.mxu0 0
    %3448 = vmatprep.subr.bf16.mxu0 0
    %3449 = vmatpush1.bf16.xpose.msra.mxu0 0
    %3450 = vmatprep.subr.bf16.mxu0 0
    %3451 = vmatpush1.bf16.xpose.msra.mxu0 0
    %3452 = vmatprep.subr.bf16.mxu0 0
    %3453 = vmatpush1.bf16.xpose.msra.mxu0 0
    %3454 = vmatprep.subr.bf16.mxu0 0
    %3455 = vmatpush1.bf16.xpose.msra.mxu0 0
    %3456 = vmatprep.mubr.bf16.mxu0 0
    %3457 = vmatmul.mubr.bf16.gmra.mrb[0].mxu0 %v3401
    %v3458 = vpop.f32.mrb[0].mxu0
    %v3459 = vadd.f32 0.0, %v3458
    %v3460 = vpop.f32.mrb[0].mxu0
    %v3461 = vpop.f32.mrb[0].mxu0
    %v3462 = vadd.f32 0.0, %v3461
    %v3463 = vpop.f32.mrb[0].mxu0
    %3464 = vmatprep.mubr.bf16.mxu0 0
    %3465 = vmatmul.mubr.bf16.gmra.mrb[0].mxu0 %v3404
    %v3466 = vpop.f32.mrb[0].mxu0
    %v3467 = vadd.f32 0.0, %v3466
    %v3468 = vpop.f32.mrb[0].mxu0
    %v3469 = vpop.f32.mrb[0].mxu0
    %v3470 = vadd.f32 0.0, %v3469
    %v3471 = vpop.f32.mrb[0].mxu0
    %3472 = vmatprep.mubr.bf16.mxu0 0
    %3473 = vmatmul.mubr.bf16.gmra.mrb[0].mxu0 %v3407
    %v3474 = vpop.f32.mrb[0].mxu0
    %v3475 = vadd.f32 0.0, %v3474
    %v3476 = vpop.f32.mrb[0].mxu0
    %v3477 = vpop.f32.mrb[0].mxu0
    %v3478 = vadd.f32 0.0, %v3477
    %v3479 = vpop.f32.mrb[0].mxu0
    %3480 = vmatprep.mubr.bf16.mxu0 0
    %3481 = vmatmul.mubr.bf16.gmra.mrb[0].mxu0 %v3410
    %v3482 = vpop.f32.mrb[0].mxu0
    %v3483 = vadd.f32 0.0, %v3482
    %v3484 = vpop.f32.mrb[0].mxu0
    %v3485 = vpop.f32.mrb[0].mxu0
    %v3486 = vadd.f32 0.0, %v3485
    %v3487 = vpop.f32.mrb[0].mxu0
    %3488 = vdwg.mxu0
    %v3489 = vmul.f32 %v3370, 5.656854
    %v3490 = vmul.f32 %v3373, 5.656854
    %v3491 = vmul.f32 %v3378, 5.656854
    %v3492 = vmul.f32 %v3381, 5.656854
    %v3493 = vmul.f32 %v3386, 5.656854
    %v3494 = vmul.f32 %v3389, 5.656854
    %v3495 = vmul.f32 %v3394, 5.656854
    %v3496 = vmul.f32 %v3397, 5.656854
    %v3497 = vmul.f32 %v3459, 5.656854
    %v3498 = vmul.f32 %v3462, 5.656854
    %v3499 = vmul.f32 %v3467, 5.656854
    %v3500 = vmul.f32 %v3470, 5.656854
    %v3501 = vmul.f32 %v3475, 5.656854
    %v3502 = vmul.f32 %v3478, 5.656854
    %v3503 = vmul.f32 %v3483, 5.656854
    %v3504 = vmul.f32 %v3486, 5.656854
    %v3505 = vsel %vm1025, %v3489, -1e+30
    %v3506 = vsel %vm1026, %v3490, -1e+30
    %v3507 = vsel %vm1027, %v3491, -1e+30
    %v3508 = vsel %vm1028, %v3492, -1e+30
    %v3509 = vsel %vm1029, %v3493, -1e+30
    %v3510 = vsel %vm1030, %v3494, -1e+30
    %v3511 = vsel %vm1031, %v3495, -1e+30
    %v3512 = vsel %vm1032, %v3496, -1e+30
    %v3513 = vsel %vm1025, %v3497, -1e+30
    %v3514 = vsel %vm1026, %v3498, -1e+30
    %v3515 = vsel %vm1027, %v3499, -1e+30
    %v3516 = vsel %vm1028, %v3500, -1e+30
    %v3517 = vsel %vm1029, %v3501, -1e+30
    %v3518 = vsel %vm1030, %v3502, -1e+30
    %v3519 = vsel %vm1031, %v3503, -1e+30
    %v3520 = vsel %vm1032, %v3504, -1e+30
    %v3521 = vsel %vm1049, %v3505, -inf
    %3522 = vmax.xlane.f32.xlu0 %v3521
    %v3523 = vpop.xlane.xlu0 %3522
    %v3524 = vsel %vm1049, %v3506, -inf
    %3525 = vmax.xlane.f32.xlu0 %v3524
    %v3526 = vpop.xlane.xlu0 %3525
    %v3527 = vsel %vm1049, %v3507, -inf
    %3528 = vmax.xlane.f32.xlu0 %v3527
    %v3529 = vpop.xlane.xlu0 %3528
    %v3530 = vsel %vm1049, %v3508, -inf
    %3531 = vmax.xlane.f32.xlu0 %v3530
    %v3532 = vpop.xlane.xlu0 %3531
    %v3533 = vsel %vm1049, %v3509, -inf
    %3534 = vmax.xlane.f32.xlu0 %v3533
    %v3535 = vpop.xlane.xlu0 %3534
    %v3536 = vsel %vm1049, %v3510, -inf
    %3537 = vmax.xlane.f32.xlu0 %v3536
    %v3538 = vpop.xlane.xlu0 %3537
    %v3539 = vsel %vm1049, %v3511, -inf
    %3540 = vmax.xlane.f32.xlu0 %v3539
    %v3541 = vpop.xlane.xlu0 %3540
    %v3542 = vsel %vm1049, %v3512, -inf
    %3543 = vmax.xlane.f32.xlu0 %v3542
    %v3544 = vpop.xlane.xlu0 %3543
    %v3545 = vsel %vm1049, %v3513, -inf
    %3546 = vmax.xlane.f32.xlu0 %v3545
    %v3547 = vpop.xlane.xlu0 %3546
    %v3548 = vsel %vm1049, %v3514, -inf
    %3549 = vmax.xlane.f32.xlu0 %v3548
    %v3550 = vpop.xlane.xlu0 %3549
    %v3551 = vsel %vm1049, %v3515, -inf
    %3552 = vmax.xlane.f32.xlu0 %v3551
    %v3553 = vpop.xlane.xlu0 %3552
    %v3554 = vsel %vm1049, %v3516, -inf
    %3555 = vmax.xlane.f32.xlu0 %v3554
    %v3556 = vpop.xlane.xlu0 %3555
    %v3557 = vsel %vm1049, %v3517, -inf
    %3558 = vmax.xlane.f32.xlu0 %v3557
    %v3559 = vpop.xlane.xlu0 %3558
    %v3560 = vsel %vm1049, %v3518, -inf
    %3561 = vmax.xlane.f32.xlu0 %v3560
    %v3562 = vpop.xlane.xlu0 %3561
    %v3563 = vsel %vm1049, %v3519, -inf
    %3564 = vmax.xlane.f32.xlu0 %v3563
    %v3565 = vpop.xlane.xlu0 %3564
    %v3566 = vsel %vm1049, %v3520, -inf
    %3567 = vmax.xlane.f32.xlu0 %v3566
    %v3568 = vpop.xlane.xlu0 %3567
    %v3569 = vsub.f32 %v3505, %v3523
    %v3570 = vsub.f32 %v3506, %v3526
    %v3571 = vsub.f32 %v3507, %v3529
    %v3572 = vsub.f32 %v3508, %v3532
    %v3573 = vsub.f32 %v3509, %v3535
    %v3574 = vsub.f32 %v3510, %v3538
    %v3575 = vsub.f32 %v3511, %v3541
    %v3576 = vsub.f32 %v3512, %v3544
    %v3577 = vsub.f32 %v3513, %v3547
    %v3578 = vsub.f32 %v3514, %v3550
    %v3579 = vsub.f32 %v3515, %v3553
    %v3580 = vsub.f32 %v3516, %v3556
    %v3581 = vsub.f32 %v3517, %v3559
    %v3582 = vsub.f32 %v3518, %v3562
    %v3583 = vsub.f32 %v3519, %v3565
    %v3584 = vsub.f32 %v3520, %v3568
    %v3585 = vmul.f32 %v3569, 1.442695
    %v3586 = vpow.pop %v3585
    %v3587 = vmul.f32 %v3570, 1.442695
    %v3588 = vpow.pop %v3587
    %v3589 = vmul.f32 %v3571, 1.442695
    %v3590 = vpow.pop %v3589
    %v3591 = vmul.f32 %v3572, 1.442695
    %v3592 = vpow.pop %v3591
    %v3593 = vmul.f32 %v3573, 1.442695
    %v3594 = vpow.pop %v3593
    %v3595 = vmul.f32 %v3574, 1.442695
    %v3596 = vpow.pop %v3595
    %v3597 = vmul.f32 %v3575, 1.442695
    %v3598 = vpow.pop %v3597
    %v3599 = vmul.f32 %v3576, 1.442695
    %v3600 = vpow.pop %v3599
    %v3601 = vmul.f32 %v3577, 1.442695
    %v3602 = vpow.pop %v3601
    %v3603 = vmul.f32 %v3578, 1.442695
    %v3604 = vpow.pop %v3603
    %v3605 = vmul.f32 %v3579, 1.442695
    %v3606 = vpow.pop %v3605
    %v3607 = vmul.f32 %v3580, 1.442695
    %v3608 = vpow.pop %v3607
    %v3609 = vmul.f32 %v3581, 1.442695
    %v3610 = vpow.pop %v3609
    %v3611 = vmul.f32 %v3582, 1.442695
    %v3612 = vpow.pop %v3611
    %v3613 = vmul.f32 %v3583, 1.442695
    %v3614 = vpow.pop %v3613
    %v3615 = vmul.f32 %v3584, 1.442695
    %v3616 = vpow.pop %v3615
    %v3617 = vsel %vm1049, %v3586, 0.0
    %3618 = vadd.xlane.f32.xlu0 %v3617
    %v3619 = vpop.xlane.xlu0 %3618
    %v3620 = vsel %vm1049, %v3588, 0.0
    %3621 = vadd.xlane.f32.xlu0 %v3620
    %v3622 = vpop.xlane.xlu0 %3621
    %v3623 = vsel %vm1049, %v3590, 0.0
    %3624 = vadd.xlane.f32.xlu0 %v3623
    %v3625 = vpop.xlane.xlu0 %3624
    %v3626 = vsel %vm1049, %v3592, 0.0
    %3627 = vadd.xlane.f32.xlu0 %v3626
    %v3628 = vpop.xlane.xlu0 %3627
    %v3629 = vsel %vm1049, %v3594, 0.0
    %3630 = vadd.xlane.f32.xlu0 %v3629
    %v3631 = vpop.xlane.xlu0 %3630
    %v3632 = vsel %vm1049, %v3596, 0.0
    %3633 = vadd.xlane.f32.xlu0 %v3632
    %v3634 = vpop.xlane.xlu0 %3633
    %v3635 = vsel %vm1049, %v3598, 0.0
    %3636 = vadd.xlane.f32.xlu0 %v3635
    %v3637 = vpop.xlane.xlu0 %3636
    %v3638 = vsel %vm1049, %v3600, 0.0
    %3639 = vadd.xlane.f32.xlu0 %v3638
    %v3640 = vpop.xlane.xlu0 %3639
    %v3641 = vsel %vm1049, %v3602, 0.0
    %3642 = vadd.xlane.f32.xlu0 %v3641
    %v3643 = vpop.xlane.xlu0 %3642
    %v3644 = vsel %vm1049, %v3604, 0.0
    %3645 = vadd.xlane.f32.xlu0 %v3644
    %v3646 = vpop.xlane.xlu0 %3645
    %v3647 = vsel %vm1049, %v3606, 0.0
    %3648 = vadd.xlane.f32.xlu0 %v3647
    %v3649 = vpop.xlane.xlu0 %3648
    %v3650 = vsel %vm1049, %v3608, 0.0
    %3651 = vadd.xlane.f32.xlu0 %v3650
    %v3652 = vpop.xlane.xlu0 %3651
    %v3653 = vsel %vm1049, %v3610, 0.0
    %3654 = vadd.xlane.f32.xlu0 %v3653
    %v3655 = vpop.xlane.xlu0 %3654
    %v3656 = vsel %vm1049, %v3612, 0.0
    %3657 = vadd.xlane.f32.xlu0 %v3656
    %v3658 = vpop.xlane.xlu0 %3657
    %v3659 = vsel %vm1049, %v3614, 0.0
    %3660 = vadd.xlane.f32.xlu0 %v3659
    %v3661 = vpop.xlane.xlu0 %3660
    %v3662 = vsel %vm1049, %v3616, 0.0
    %3663 = vadd.xlane.f32.xlu0 %v3662
    %v3664 = vpop.xlane.xlu0 %3663
    %v3665 = vrcp.pop %v3619
    %v3666 = vrcp.pop %v3622
    %v3667 = vrcp.pop %v3625
    %v3668 = vrcp.pop %v3628
    %v3669 = vrcp.pop %v3631
    %v3670 = vrcp.pop %v3634
    %v3671 = vrcp.pop %v3637
    %v3672 = vrcp.pop %v3640
    %v3673 = vrcp.pop %v3643
    %v3674 = vrcp.pop %v3646
    %v3675 = vrcp.pop %v3649
    %v3676 = vrcp.pop %v3652
    %v3677 = vrcp.pop %v3655
    %v3678 = vrcp.pop %v3658
    %v3679 = vrcp.pop %v3661
    %v3680 = vrcp.pop %v3664
    %v3681 = vmul.f32 %v3586, %v3665
    %v3682 = vmul.f32 %v3588, %v3666
    %v3683 = vmul.f32 %v3590, %v3667
    %v3684 = vmul.f32 %v3592, %v3668
    %v3685 = vmul.f32 %v3594, %v3669
    %v3686 = vmul.f32 %v3596, %v3670
    %v3687 = vmul.f32 %v3598, %v3671
    %v3688 = vmul.f32 %v3600, %v3672
    %v3689 = vmul.f32 %v3602, %v3673
    %v3690 = vmul.f32 %v3604, %v3674
    %v3691 = vmul.f32 %v3606, %v3675
    %v3692 = vmul.f32 %v3608, %v3676
    %v3693 = vmul.f32 %v3610, %v3677
    %v3694 = vmul.f32 %v3612, %v3678
    %v3695 = vmul.f32 %v3614, %v3679
    %v3696 = vmul.f32 %v3616, %v3680
    %v3697 = vpack.c.bf16 %v3682, %v3681
    %v3698 = vpack.c.bf16 %v3684, %v3683
    %v3699 = vpack.c.bf16 %v3686, %v3685
    %v3700 = vpack.c.bf16 %v3688, %v3687
    %v3701 = vpack.c.bf16 %v3690, %v3689
    %v3702 = vpack.c.bf16 %v3692, %v3691
    %v3703 = vpack.c.bf16 %v3694, %v3693
    %v3704 = vpack.c.bf16 %v3696, %v3695
    %3705 = vxpose.xlu0.c.b16.start [1/8] %v3697, 128
    %3706 = vxpose.xlu0.c.b16.cont [2/8] %v3698, 128
    %3707 = vxpose.xlu0.c.b16.cont [3/8] %v3699, 128
    %3708 = vxpose.xlu0.c.b16.cont [4/8] %v3700, 128
    %3709 = vxpose.xlu0.c.b16.cont [5/8] 0, 128
    %3710 = vxpose.xlu0.c.b16.cont [6/8] 0, 128
    %3711 = vxpose.xlu0.c.b16.cont [7/8] 0, 128
    %3712 = vxpose.xlu0.c.b16.end [8/8] 0, 128
    %v3713 = vpop.trf.xlu0
    %v3714 = vpop.trf.xlu0
    %v3715 = vpop.trf.xlu0
    %v3716 = vpop.trf.xlu0
    %v3717 = vpop.trf.xlu0
    %v3718 = vpop.trf.xlu0
    %v3719 = vpop.trf.xlu0
    %v3720 = vpop.trf.xlu0
    %v3722 = vsel %vm1049, %v3713, 0
    %v3725 = vsel %vm1049, %v3714, 0
    %v3728 = vsel %vm1049, %v3715, 0
    %v3731 = vsel %vm1049, %v3716, 0
    %3733 = vmatprep.subr.bf16.mxu0 0
    %3734 = vmatpush1.bf16.msra.mxu0 %v3303
    %3735 = vmatprep.subr.bf16.mxu0 0
    %3736 = vmatpush1.bf16.msra.mxu0 %v3304
    %3737 = vmatprep.subr.bf16.mxu0 0
    %3738 = vmatpush1.bf16.msra.mxu0 %v3305
    %3739 = vmatprep.subr.bf16.mxu0 0
    %3740 = vmatpush1.bf16.msra.mxu0 %v3306
    %3741 = vmatprep.subr.bf16.mxu0 0
    %3742 = vmatpush1.bf16.msra.mxu0 0
    %3743 = vmatprep.subr.bf16.mxu0 0
    %3744 = vmatpush1.bf16.msra.mxu0 0
    %3745 = vmatprep.subr.bf16.mxu0 0
    %3746 = vmatpush1.bf16.msra.mxu0 0
    %3747 = vmatprep.subr.bf16.mxu0 0
    %3748 = vmatpush1.bf16.msra.mxu0 0
    %3749 = vmatprep.subr.bf16.mxu0 0
    %3750 = vmatpush1.bf16.msra.mxu0 0
    %3751 = vmatprep.subr.bf16.mxu0 0
    %3752 = vmatpush1.bf16.msra.mxu0 0
    %3753 = vmatprep.subr.bf16.mxu0 0
    %3754 = vmatpush1.bf16.msra.mxu0 0
    %3755 = vmatprep.subr.bf16.mxu0 0
    %3756 = vmatpush1.bf16.msra.mxu0 0
    %3757 = vmatprep.subr.bf16.mxu0 0
    %3758 = vmatpush1.bf16.msra.mxu0 0
    %3759 = vmatprep.subr.bf16.mxu0 0
    %3760 = vmatpush1.bf16.msra.mxu0 0
    %3761 = vmatprep.subr.bf16.mxu0 0
    %3762 = vmatpush1.bf16.msra.mxu0 0
    %3763 = vmatprep.subr.bf16.mxu0 0
    %3764 = vmatpush1.bf16.msra.mxu0 0
    %3765 = vmatprep.mubr.bf16.mxu0 0
    %3766 = vmatmul.mubr.bf16.gmra.mrb[0].mxu0 %v3722
    %v3767 = vpop.f32.mrb[0].mxu0
    %v3768 = vadd.f32 0.0, %v3767
    %v3769 = vpop.f32.mrb[0].mxu0
    %v3770 = vpop.f32.mrb[0].mxu0
    %v3771 = vadd.f32 0.0, %v3770
    %v3772 = vpop.f32.mrb[0].mxu0
    %3773 = vmatprep.mubr.bf16.mxu0 0
    %3774 = vmatmul.mubr.bf16.gmra.mrb[0].mxu0 %v3725
    %v3775 = vpop.f32.mrb[0].mxu0
    %v3776 = vadd.f32 0.0, %v3775
    %v3777 = vpop.f32.mrb[0].mxu0
    %v3778 = vpop.f32.mrb[0].mxu0
    %v3779 = vadd.f32 0.0, %v3778
    %v3780 = vpop.f32.mrb[0].mxu0
    %3781 = vmatprep.mubr.bf16.mxu0 0
    %3782 = vmatmul.mubr.bf16.gmra.mrb[0].mxu0 %v3728
    %v3783 = vpop.f32.mrb[0].mxu0
    %v3784 = vadd.f32 0.0, %v3783
    %v3785 = vpop.f32.mrb[0].mxu0
    %v3786 = vpop.f32.mrb[0].mxu0
    %v3787 = vadd.f32 0.0, %v3786
    %v3788 = vpop.f32.mrb[0].mxu0
    %3789 = vmatprep.mubr.bf16.mxu0 0
    %3790 = vmatmul.mubr.bf16.gmra.mrb[0].mxu0 %v3731
    %v3791 = vpop.f32.mrb[0].mxu0
    %v3792 = vadd.f32 0.0, %v3791
    %v3793 = vpop.f32.mrb[0].mxu0
    %v3794 = vpop.f32.mrb[0].mxu0
    %v3795 = vadd.f32 0.0, %v3794
    %v3796 = vpop.f32.mrb[0].mxu0
    %3797 = vdwg.mxu0
    %3798 = vxpose.xlu0.c.b16.start [1/8] %v3701, 128
    %3799 = vxpose.xlu0.c.b16.cont [2/8] %v3702, 128
    %3800 = vxpose.xlu0.c.b16.cont [3/8] %v3703, 128
    %3801 = vxpose.xlu0.c.b16.cont [4/8] %v3704, 128
    %3802 = vxpose.xlu0.c.b16.cont [5/8] 0, 128
    %3803 = vxpose.xlu0.c.b16.cont [6/8] 0, 128
    %3804 = vxpose.xlu0.c.b16.cont [7/8] 0, 128
    %3805 = vxpose.xlu0.c.b16.end [8/8] 0, 128
    %v3806 = vpop.trf.xlu0
    %v3807 = vpop.trf.xlu0
    %v3808 = vpop.trf.xlu0
    %v3809 = vpop.trf.xlu0
    %v3810 = vpop.trf.xlu0
    %v3811 = vpop.trf.xlu0
    %v3812 = vpop.trf.xlu0
    %v3813 = vpop.trf.xlu0
    %v3815 = vsel %vm1049, %v3806, 0
    %v3818 = vsel %vm1049, %v3807, 0
    %v3821 = vsel %vm1049, %v3808, 0
    %v3824 = vsel %vm1049, %v3809, 0
    %3826 = vmatprep.subr.bf16.mxu0 0
    %3827 = vmatpush1.bf16.msra.mxu0 %v3307
    %3828 = vmatprep.subr.bf16.mxu0 0
    %3829 = vmatpush1.bf16.msra.mxu0 %v3308
    %3830 = vmatprep.subr.bf16.mxu0 0
    %3831 = vmatpush1.bf16.msra.mxu0 %v3309
    %3832 = vmatprep.subr.bf16.mxu0 0
    %3833 = vmatpush1.bf16.msra.mxu0 %v3310
    %3834 = vmatprep.subr.bf16.mxu0 0
    %3835 = vmatpush1.bf16.msra.mxu0 0
    %3836 = vmatprep.subr.bf16.mxu0 0
    %3837 = vmatpush1.bf16.msra.mxu0 0
    %3838 = vmatprep.subr.bf16.mxu0 0
    %3839 = vmatpush1.bf16.msra.mxu0 0
    %3840 = vmatprep.subr.bf16.mxu0 0
    %3841 = vmatpush1.bf16.msra.mxu0 0
    %3842 = vmatprep.subr.bf16.mxu0 0
    %3843 = vmatpush1.bf16.msra.mxu0 0
    %3844 = vmatprep.subr.bf16.mxu0 0
    %3845 = vmatpush1.bf16.msra.mxu0 0
    %3846 = vmatprep.subr.bf16.mxu0 0
    %3847 = vmatpush1.bf16.msra.mxu0 0
    %3848 = vmatprep.subr.bf16.mxu0 0
    %3849 = vmatpush1.bf16.msra.mxu0 0
    %3850 = vmatprep.subr.bf16.mxu0 0
    %3851 = vmatpush1.bf16.msra.mxu0 0
    %3852 = vmatprep.subr.bf16.mxu0 0
    %3853 = vmatpush1.bf16.msra.mxu0 0
    %3854 = vmatprep.subr.bf16.mxu0 0
    %3855 = vmatpush1.bf16.msra.mxu0 0
    %3856 = vmatprep.subr.bf16.mxu0 0
    %3857 = vmatpush1.bf16.msra.mxu0 0
    %3858 = vmatprep.mubr.bf16.mxu0 0
    %3859 = vmatmul.mubr.bf16.gmra.mrb[0].mxu0 %v3815
    %v3860 = vpop.f32.mrb[0].mxu0
    %v3861 = vadd.f32 0.0, %v3860
    %v3862 = vpop.f32.mrb[0].mxu0
    %v3863 = vpop.f32.mrb[0].mxu0
    %v3864 = vadd.f32 0.0, %v3863
    %v3865 = vpop.f32.mrb[0].mxu0
    %3866 = vmatprep.mubr.bf16.mxu0 0
    %3867 = vmatmul.mubr.bf16.gmra.mrb[0].mxu0 %v3818
    %v3868 = vpop.f32.mrb[0].mxu0
    %v3869 = vadd.f32 0.0, %v3868
    %v3870 = vpop.f32.mrb[0].mxu0
    %v3871 = vpop.f32.mrb[0].mxu0
    %v3872 = vadd.f32 0.0, %v3871
    %v3873 = vpop.f32.mrb[0].mxu0
    %3874 = vmatprep.mubr.bf16.mxu0 0
    %3875 = vmatmul.mubr.bf16.gmra.mrb[0].mxu0 %v3821
    %v3876 = vpop.f32.mrb[0].mxu0
    %v3877 = vadd.f32 0.0, %v3876
    %v3878 = vpop.f32.mrb[0].mxu0
    %v3879 = vpop.f32.mrb[0].mxu0
    %v3880 = vadd.f32 0.0, %v3879
    %v3881 = vpop.f32.mrb[0].mxu0
    %3882 = vmatprep.mubr.bf16.mxu0 0
    %3883 = vmatmul.mubr.bf16.gmra.mrb[0].mxu0 %v3824
    %v3884 = vpop.f32.mrb[0].mxu0
    %v3885 = vadd.f32 0.0, %v3884
    %v3886 = vpop.f32.mrb[0].mxu0
    %v3887 = vpop.f32.mrb[0].mxu0
    %v3888 = vadd.f32 0.0, %v3887
    %v3889 = vpop.f32.mrb[0].mxu0
    %3890 = vdwg.mxu0
    %v3891 = vpack.c.bf16 %v3771, %v3768
    %v3892 = vpack.c.bf16 %v3779, %v3776
    %v3893 = vpack.c.bf16 %v3787, %v3784
    %v3894 = vpack.c.bf16 %v3795, %v3792
    %v3895 = vpack.c.bf16 %v3864, %v3861
    %v3896 = vpack.c.bf16 %v3872, %v3869
    %v3897 = vpack.c.bf16 %v3880, %v3877
    %v3898 = vpack.c.bf16 %v3888, %v3885
    %s3899 = scalar_lea.vmem %s8, 32
    %v3900 = vld [vmem:[%s3899] sm:$0xf]
    %v3901 = vld [vmem:[%s3899 + $0x4] sm:$0xf]
    %v3902 = vld [vmem:[%s3899 + $0x8] sm:$0xf]
    %v3903 = vld [vmem:[%s3899 + $0xc] sm:$0xf]
    %v3908 = vunpack.c.l.b16 %v3900
    %v3909 = vunpack.c.l.b16 %v3901
    %v3910 = vunpack.c.l.b16 %v3902
    %v3911 = vunpack.c.l.b16 %v3903
    %v3912 = vpack.c.b16 %v3909, %v3908
    %v3913 = vpack.c.b16 %v3911, %v3910
    %v3917 = vsel %vm822, %v3891, 0
    %v3920 = vsel %vm822, %v3892, 0
    %v3923 = vsel %vm822, %v3893, 0
    %v3926 = vsel %vm822, %v3894, 0
    %v3929 = vsel %vm822, %v3895, 0
    %v3932 = vsel %vm822, %v3896, 0
    %v3935 = vsel %vm822, %v3897, 0
    %v3938 = vsel %vm822, %v3898, 0
    %3940 = vmatprep.subr.bf16.mxu0 0
    %3941 = vmatpush1.bf16.msra.mxu0 %v3912
    %3942 = vmatprep.subr.bf16.mxu0 0
    %3943 = vmatpush1.bf16.msra.mxu0 %v3913
    %3944 = vmatprep.subr.bf16.mxu0 0
    %3945 = vmatpush1.bf16.msra.mxu0 0
    %3946 = vmatprep.subr.bf16.mxu0 0
    %3947 = vmatpush1.bf16.msra.mxu0 0
    %3948 = vmatprep.subr.bf16.mxu0 0
    %3949 = vmatpush1.bf16.msra.mxu0 0
    %3950 = vmatprep.subr.bf16.mxu0 0
    %3951 = vmatpush1.bf16.msra.mxu0 0
    %3952 = vmatprep.subr.bf16.mxu0 0
    %3953 = vmatpush1.bf16.msra.mxu0 0
    %3954 = vmatprep.subr.bf16.mxu0 0
    %3955 = vmatpush1.bf16.msra.mxu0 0
    %3956 = vmatprep.subr.bf16.mxu0 0
    %3957 = vmatpush1.bf16.msra.mxu0 0
    %3958 = vmatprep.subr.bf16.mxu0 0
    %3959 = vmatpush1.bf16.msra.mxu0 0
    %3960 = vmatprep.subr.bf16.mxu0 0
    %3961 = vmatpush1.bf16.msra.mxu0 0
    %3962 = vmatprep.subr.bf16.mxu0 0
    %3963 = vmatpush1.bf16.msra.mxu0 0
    %3964 = vmatprep.subr.bf16.mxu0 0
    %3965 = vmatpush1.bf16.msra.mxu0 0
    %3966 = vmatprep.subr.bf16.mxu0 0
    %3967 = vmatpush1.bf16.msra.mxu0 0
    %3968 = vmatprep.subr.bf16.mxu0 0
    %3969 = vmatpush1.bf16.msra.mxu0 0
    %3970 = vmatprep.subr.bf16.mxu0 0
    %3971 = vmatpush1.bf16.msra.mxu0 0
    %3972 = vmatprep.mubr.bf16.mxu0 0
    %3973 = vmatmul.mubr.bf16.gmra.mrb[0].mxu0 %v3917
    %v3974 = vpop.f32.mrb[0].mxu0
    %v3975 = vadd.f32 0.0, %v3974
    %v3976 = vpop.f32.mrb[0].mxu0
    %v3977 = vpop.f32.mrb[0].mxu0
    %v3978 = vadd.f32 0.0, %v3977
    %v3979 = vpop.f32.mrb[0].mxu0
    %3980 = vmatprep.mubr.bf16.mxu0 0
    %3981 = vmatmul.mubr.bf16.gmra.mrb[0].mxu0 %v3920
    %v3982 = vpop.f32.mrb[0].mxu0
    %v3983 = vadd.f32 0.0, %v3982
    %v3984 = vpop.f32.mrb[0].mxu0
    %v3985 = vpop.f32.mrb[0].mxu0
    %v3986 = vadd.f32 0.0, %v3985
    %v3987 = vpop.f32.mrb[0].mxu0
    %3988 = vmatprep.mubr.bf16.mxu0 0
    %3989 = vmatmul.mubr.bf16.gmra.mrb[0].mxu0 %v3923
    %v3990 = vpop.f32.mrb[0].mxu0
    %v3991 = vadd.f32 0.0, %v3990
    %v3992 = vpop.f32.mrb[0].mxu0
    %v3993 = vpop.f32.mrb[0].mxu0
    %v3994 = vadd.f32 0.0, %v3993
    %v3995 = vpop.f32.mrb[0].mxu0
    %3996 = vmatprep.mubr.bf16.mxu0 0
    %3997 = vmatmul.mubr.bf16.gmra.mrb[0].mxu0 %v3926
    %v3998 = vpop.f32.mrb[0].mxu0
    %v3999 = vadd.f32 0.0, %v3998
    %v4000 = vpop.f32.mrb[0].mxu0
    %v4001 = vpop.f32.mrb[0].mxu0
    %v4002 = vadd.f32 0.0, %v4001
    %v4003 = vpop.f32.mrb[0].mxu0
    %4004 = vmatprep.mubr.bf16.mxu0 0
    %4005 = vmatmul.mubr.bf16.gmra.mrb[0].mxu0 %v3929
    %v4006 = vpop.f32.mrb[0].mxu0
    %v4007 = vadd.f32 0.0, %v4006
    %v4008 = vpop.f32.mrb[0].mxu0
    %v4009 = vpop.f32.mrb[0].mxu0
    %v4010 = vadd.f32 0.0, %v4009
    %v4011 = vpop.f32.mrb[0].mxu0
    %4012 = vmatprep.mubr.bf16.mxu0 0
    %4013 = vmatmul.mubr.bf16.gmra.mrb[0].mxu0 %v3932
    %v4014 = vpop.f32.mrb[0].mxu0
    %v4015 = vadd.f32 0.0, %v4014
    %v4016 = vpop.f32.mrb[0].mxu0
    %v4017 = vpop.f32.mrb[0].mxu0
    %v4018 = vadd.f32 0.0, %v4017
    %v4019 = vpop.f32.mrb[0].mxu0
    %4020 = vmatprep.mubr.bf16.mxu0 0
    %4021 = vmatmul.mubr.bf16.gmra.mrb[0].mxu0 %v3935
    %v4022 = vpop.f32.mrb[0].mxu0
    %v4023 = vadd.f32 0.0, %v4022
    %v4024 = vpop.f32.mrb[0].mxu0
    %v4025 = vpop.f32.mrb[0].mxu0
    %v4026 = vadd.f32 0.0, %v4025
    %v4027 = vpop.f32.mrb[0].mxu0
    %4028 = vmatprep.mubr.bf16.mxu0 0
    %4029 = vmatmul.mubr.bf16.gmra.mrb[0].mxu0 %v3938
    %v4030 = vpop.f32.mrb[0].mxu0
    %v4031 = vadd.f32 0.0, %v4030
    %v4032 = vpop.f32.mrb[0].mxu0
    %v4033 = vpop.f32.mrb[0].mxu0
    %v4034 = vadd.f32 0.0, %v4033
    %v4035 = vpop.f32.mrb[0].mxu0
    %4036 = vdwg.mxu0
    %v4037 = vadd.f32 %v2739, %v3975
    %v4038 = vadd.f32 %v2742, %v3978
    %v4039 = vadd.f32 %v2747, %v3983
    %v4040 = vadd.f32 %v2750, %v3986
    %v4041 = vadd.f32 %v2755, %v3991
    %v4042 = vadd.f32 %v2758, %v3994
    %v4043 = vadd.f32 %v2763, %v3999
    %v4044 = vadd.f32 %v2766, %v4002
    %v4045 = vadd.f32 %v2771, %v4007
    %v4046 = vadd.f32 %v2774, %v4010
    %v4047 = vadd.f32 %v2779, %v4015
    %v4048 = vadd.f32 %v2782, %v4018
    %v4049 = vadd.f32 %v2787, %v4023
    %v4050 = vadd.f32 %v2790, %v4026
    %v4051 = vadd.f32 %v2795, %v4031
    %v4052 = vadd.f32 %v2798, %v4034
    %s4053 = scalar_lea.vmem %s5, 192
    %v4054 = vld [vmem:[%s4053] sm:$0xf]
    %v4055 = vld [vmem:[%s4053 + $0x4] sm:$0xf]
    %v4056 = vld [vmem:[%s4053 + $0x8] sm:$0xf]
    %v4057 = vld [vmem:[%s4053 + $0xc] sm:$0xf]
    %v4058 = vld [vmem:[%s4053 + $0x10] sm:$0xf]
    %v4059 = vld [vmem:[%s4053 + $0x14] sm:$0xf]
    %v4060 = vld [vmem:[%s4053 + $0x18] sm:$0xf]
    %v4061 = vld [vmem:[%s4053 + $0x1c] sm:$0xf]
    %v4062 = vld [vmem:[%s4053 + $0x20] sm:$0xf]
    %v4063 = vld [vmem:[%s4053 + $0x24] sm:$0xf]
    %v4064 = vld [vmem:[%s4053 + $0x28] sm:$0xf]
    %v4065 = vld [vmem:[%s4053 + $0x2c] sm:$0xf]
    %v4066 = vld [vmem:[%s4053 + $0x30] sm:$0xf]
    %v4067 = vld [vmem:[%s4053 + $0x34] sm:$0xf]
    %v4068 = vld [vmem:[%s4053 + $0x38] sm:$0xf]
    %v4069 = vld [vmem:[%s4053 + $0x3c] sm:$0xf]
    %v4086 = vunpack.c.l.b16 %v4054
    %v4087 = vunpack.c.l.b16 %v4055
    %v4088 = vunpack.c.l.b16 %v4056
    %v4089 = vunpack.c.l.b16 %v4057
    %v4090 = vunpack.c.l.b16 %v4058
    %v4091 = vunpack.c.l.b16 %v4059
    %v4092 = vunpack.c.l.b16 %v4060
    %v4093 = vunpack.c.l.b16 %v4061
    %v4094 = vunpack.c.l.b16 %v4062
    %v4095 = vunpack.c.l.b16 %v4063
    %v4096 = vunpack.c.l.b16 %v4064
    %v4097 = vunpack.c.l.b16 %v4065
    %v4098 = vunpack.c.l.b16 %v4066
    %v4099 = vunpack.c.l.b16 %v4067
    %v4100 = vunpack.c.l.b16 %v4068
    %v4101 = vunpack.c.l.b16 %v4069
    %v4102 = vpack.c.b16 %v4087, %v4086
    %v4103 = vpack.c.b16 %v4089, %v4088
    %v4104 = vpack.c.b16 %v4091, %v4090
    %v4105 = vpack.c.b16 %v4093, %v4092
    %v4106 = vpack.c.b16 %v4095, %v4094
    %v4107 = vpack.c.b16 %v4097, %v4096
    %v4108 = vpack.c.b16 %v4099, %v4098
    %v4109 = vpack.c.b16 %v4101, %v4100
    %4118 = vmatprep.subr.bf16.mxu0 0
    %4119 = vmatpush1.bf16.msra.mxu0 %v4102
    %4120 = vmatprep.subr.bf16.mxu0 0
    %4121 = vmatpush1.bf16.msra.mxu0 %v4103
    %4122 = vmatprep.subr.bf16.mxu0 0
    %4123 = vmatpush1.bf16.msra.mxu0 %v4104
    %4124 = vmatprep.subr.bf16.mxu0 0
    %4125 = vmatpush1.bf16.msra.mxu0 %v4105
    %4126 = vmatprep.subr.bf16.mxu0 0
    %4127 = vmatpush1.bf16.msra.mxu0 %v4106
    %4128 = vmatprep.subr.bf16.mxu0 0
    %4129 = vmatpush1.bf16.msra.mxu0 %v4107
    %4130 = vmatprep.subr.bf16.mxu0 0
    %4131 = vmatpush1.bf16.msra.mxu0 %v4108
    %4132 = vmatprep.subr.bf16.mxu0 0
    %4133 = vmatpush1.bf16.msra.mxu0 %v4109
    %4134 = vmatprep.subr.bf16.mxu0 0
    %4135 = vmatpush1.bf16.msra.mxu0 0
    %4136 = vmatprep.subr.bf16.mxu0 0
    %4137 = vmatpush1.bf16.msra.mxu0 0
    %4138 = vmatprep.subr.bf16.mxu0 0
    %4139 = vmatpush1.bf16.msra.mxu0 0
    %4140 = vmatprep.subr.bf16.mxu0 0
    %4141 = vmatpush1.bf16.msra.mxu0 0
    %4142 = vmatprep.subr.bf16.mxu0 0
    %4143 = vmatpush1.bf16.msra.mxu0 0
    %4144 = vmatprep.subr.bf16.mxu0 0
    %4145 = vmatpush1.bf16.msra.mxu0 0
    %4146 = vmatprep.subr.bf16.mxu0 0
    %4147 = vmatpush1.bf16.msra.mxu0 0
    %4148 = vmatprep.subr.bf16.mxu0 0
    %4149 = vmatpush1.bf16.msra.mxu0 0
    %4150 = vmatprep.mubr.bf16.mxu0 0
    %4151 = vmatmul.mubr.bf16.gmra.mrb[0].mxu0 %v288
    %v4152 = vpop.f32.mrb[0].mxu0
    %v4153 = vadd.f32 0.0, %v4152
    %v4154 = vpop.f32.mrb[0].mxu0
    %v4155 = vpop.f32.mrb[0].mxu0
    %v4156 = vadd.f32 0.0, %v4155
    %v4157 = vpop.f32.mrb[0].mxu0
    %4158 = vmatprep.mubr.bf16.mxu0 0
    %4159 = vmatmul.mubr.bf16.gmra.mrb[0].mxu0 %v289
    %v4160 = vpop.f32.mrb[0].mxu0
    %v4161 = vadd.f32 0.0, %v4160
    %v4162 = vpop.f32.mrb[0].mxu0
    %v4163 = vpop.f32.mrb[0].mxu0
    %v4164 = vadd.f32 0.0, %v4163
    %v4165 = vpop.f32.mrb[0].mxu0
    %4166 = vmatprep.mubr.bf16.mxu0 0
    %4167 = vmatmul.mubr.bf16.gmra.mrb[0].mxu0 %v290
    %v4168 = vpop.f32.mrb[0].mxu0
    %v4169 = vadd.f32 0.0, %v4168
    %v4170 = vpop.f32.mrb[0].mxu0
    %v4171 = vpop.f32.mrb[0].mxu0
    %v4172 = vadd.f32 0.0, %v4171
    %v4173 = vpop.f32.mrb[0].mxu0
    %4174 = vmatprep.mubr.bf16.mxu0 0
    %4175 = vmatmul.mubr.bf16.gmra.mrb[0].mxu0 %v291
    %v4176 = vpop.f32.mrb[0].mxu0
    %v4177 = vadd.f32 0.0, %v4176
    %v4178 = vpop.f32.mrb[0].mxu0
    %v4179 = vpop.f32.mrb[0].mxu0
    %v4180 = vadd.f32 0.0, %v4179
    %v4181 = vpop.f32.mrb[0].mxu0
    %4182 = vmatprep.mubr.bf16.mxu0 0
    %4183 = vmatmul.mubr.bf16.gmra.mrb[0].mxu0 %v292
    %v4184 = vpop.f32.mrb[0].mxu0
    %v4185 = vadd.f32 0.0, %v4184
    %v4186 = vpop.f32.mrb[0].mxu0
    %v4187 = vpop.f32.mrb[0].mxu0
    %v4188 = vadd.f32 0.0, %v4187
    %v4189 = vpop.f32.mrb[0].mxu0
    %4190 = vmatprep.mubr.bf16.mxu0 0
    %4191 = vmatmul.mubr.bf16.gmra.mrb[0].mxu0 %v293
    %v4192 = vpop.f32.mrb[0].mxu0
    %v4193 = vadd.f32 0.0, %v4192
    %v4194 = vpop.f32.mrb[0].mxu0
    %v4195 = vpop.f32.mrb[0].mxu0
    %v4196 = vadd.f32 0.0, %v4195
    %v4197 = vpop.f32.mrb[0].mxu0
    %4198 = vmatprep.mubr.bf16.mxu0 0
    %4199 = vmatmul.mubr.bf16.gmra.mrb[0].mxu0 %v294
    %v4200 = vpop.f32.mrb[0].mxu0
    %v4201 = vadd.f32 0.0, %v4200
    %v4202 = vpop.f32.mrb[0].mxu0
    %v4203 = vpop.f32.mrb[0].mxu0
    %v4204 = vadd.f32 0.0, %v4203
    %v4205 = vpop.f32.mrb[0].mxu0
    %4206 = vmatprep.mubr.bf16.mxu0 0
    %4207 = vmatmul.mubr.bf16.gmra.mrb[0].mxu0 %v295
    %v4208 = vpop.f32.mrb[0].mxu0
    %v4209 = vadd.f32 0.0, %v4208
    %v4210 = vpop.f32.mrb[0].mxu0
    %v4211 = vpop.f32.mrb[0].mxu0
    %v4212 = vadd.f32 0.0, %v4211
    %v4213 = vpop.f32.mrb[0].mxu0
    %4214 = vdwg.mxu0
    %s4215 = scalar_lea.vmem %s6, 192
    %v4216 = vld [vmem:[%s4215] sm:$0xf]
    %v4217 = vld [vmem:[%s4215 + $0x4] sm:$0xf]
    %v4218 = vld [vmem:[%s4215 + $0x8] sm:$0xf]
    %v4219 = vld [vmem:[%s4215 + $0xc] sm:$0xf]
    %v4220 = vld [vmem:[%s4215 + $0x10] sm:$0xf]
    %v4221 = vld [vmem:[%s4215 + $0x14] sm:$0xf]
    %v4222 = vld [vmem:[%s4215 + $0x18] sm:$0xf]
    %v4223 = vld [vmem:[%s4215 + $0x1c] sm:$0xf]
    %v4224 = vld [vmem:[%s4215 + $0x20] sm:$0xf]
    %v4225 = vld [vmem:[%s4215 + $0x24] sm:$0xf]
    %v4226 = vld [vmem:[%s4215 + $0x28] sm:$0xf]
    %v4227 = vld [vmem:[%s4215 + $0x2c] sm:$0xf]
    %v4228 = vld [vmem:[%s4215 + $0x30] sm:$0xf]
    %v4229 = vld [vmem:[%s4215 + $0x34] sm:$0xf]
    %v4230 = vld [vmem:[%s4215 + $0x38] sm:$0xf]
    %v4231 = vld [vmem:[%s4215 + $0x3c] sm:$0xf]
    %v4248 = vunpack.c.l.b16 %v4216
    %v4249 = vunpack.c.l.b16 %v4217
    %v4250 = vunpack.c.l.b16 %v4218
    %v4251 = vunpack.c.l.b16 %v4219
    %v4252 = vunpack.c.l.b16 %v4220
    %v4253 = vunpack.c.l.b16 %v4221
    %v4254 = vunpack.c.l.b16 %v4222
    %v4255 = vunpack.c.l.b16 %v4223
    %v4256 = vunpack.c.l.b16 %v4224
    %v4257 = vunpack.c.l.b16 %v4225
    %v4258 = vunpack.c.l.b16 %v4226
    %v4259 = vunpack.c.l.b16 %v4227
    %v4260 = vunpack.c.l.b16 %v4228
    %v4261 = vunpack.c.l.b16 %v4229
    %v4262 = vunpack.c.l.b16 %v4230
    %v4263 = vunpack.c.l.b16 %v4231
    %v4264 = vpack.c.b16 %v4249, %v4248
    %v4265 = vpack.c.b16 %v4251, %v4250
    %v4266 = vpack.c.b16 %v4253, %v4252
    %v4267 = vpack.c.b16 %v4255, %v4254
    %v4268 = vpack.c.b16 %v4257, %v4256
    %v4269 = vpack.c.b16 %v4259, %v4258
    %v4270 = vpack.c.b16 %v4261, %v4260
    %v4271 = vpack.c.b16 %v4263, %v4262
    %4280 = vmatprep.subr.bf16.mxu0 0
    %4281 = vmatpush1.bf16.msra.mxu0 %v4264
    %4282 = vmatprep.subr.bf16.mxu0 0
    %4283 = vmatpush1.bf16.msra.mxu0 %v4265
    %4284 = vmatprep.subr.bf16.mxu0 0
    %4285 = vmatpush1.bf16.msra.mxu0 %v4266
    %4286 = vmatprep.subr.bf16.mxu0 0
    %4287 = vmatpush1.bf16.msra.mxu0 %v4267
    %4288 = vmatprep.subr.bf16.mxu0 0
    %4289 = vmatpush1.bf16.msra.mxu0 %v4268
    %4290 = vmatprep.subr.bf16.mxu0 0
    %4291 = vmatpush1.bf16.msra.mxu0 %v4269
    %4292 = vmatprep.subr.bf16.mxu0 0
    %4293 = vmatpush1.bf16.msra.mxu0 %v4270
    %4294 = vmatprep.subr.bf16.mxu0 0
    %4295 = vmatpush1.bf16.msra.mxu0 %v4271
    %4296 = vmatprep.subr.bf16.mxu0 0
    %4297 = vmatpush1.bf16.msra.mxu0 0
    %4298 = vmatprep.subr.bf16.mxu0 0
    %4299 = vmatpush1.bf16.msra.mxu0 0
    %4300 = vmatprep.subr.bf16.mxu0 0
    %4301 = vmatpush1.bf16.msra.mxu0 0
    %4302 = vmatprep.subr.bf16.mxu0 0
    %4303 = vmatpush1.bf16.msra.mxu0 0
    %4304 = vmatprep.subr.bf16.mxu0 0
    %4305 = vmatpush1.bf16.msra.mxu0 0
    %4306 = vmatprep.subr.bf16.mxu0 0
    %4307 = vmatpush1.bf16.msra.mxu0 0
    %4308 = vmatprep.subr.bf16.mxu0 0
    %4309 = vmatpush1.bf16.msra.mxu0 0
    %4310 = vmatprep.subr.bf16.mxu0 0
    %4311 = vmatpush1.bf16.msra.mxu0 0
    %4312 = vmatprep.mubr.bf16.mxu0 0
    %4313 = vmatmul.mubr.bf16.gmra.mrb[0].mxu0 %v288
    %v4314 = vpop.f32.mrb[0].mxu0
    %v4315 = vadd.f32 0.0, %v4314
    %v4316 = vpop.f32.mrb[0].mxu0
    %v4317 = vpop.f32.mrb[0].mxu0
    %v4318 = vadd.f32 0.0, %v4317
    %v4319 = vpop.f32.mrb[0].mxu0
    %4320 = vmatprep.mubr.bf16.mxu0 0
    %4321 = vmatmul.mubr.bf16.gmra.mrb[0].mxu0 %v289
    %v4322 = vpop.f32.mrb[0].mxu0
    %v4323 = vadd.f32 0.0, %v4322
    %v4324 = vpop.f32.mrb[0].mxu0
    %v4325 = vpop.f32.mrb[0].mxu0
    %v4326 = vadd.f32 0.0, %v4325
    %v4327 = vpop.f32.mrb[0].mxu0
    %4328 = vmatprep.mubr.bf16.mxu0 0
    %4329 = vmatmul.mubr.bf16.gmra.mrb[0].mxu0 %v290
    %v4330 = vpop.f32.mrb[0].mxu0
    %v4331 = vadd.f32 0.0, %v4330
    %v4332 = vpop.f32.mrb[0].mxu0
    %v4333 = vpop.f32.mrb[0].mxu0
    %v4334 = vadd.f32 0.0, %v4333
    %v4335 = vpop.f32.mrb[0].mxu0
    %4336 = vmatprep.mubr.bf16.mxu0 0
    %4337 = vmatmul.mubr.bf16.gmra.mrb[0].mxu0 %v291
    %v4338 = vpop.f32.mrb[0].mxu0
    %v4339 = vadd.f32 0.0, %v4338
    %v4340 = vpop.f32.mrb[0].mxu0
    %v4341 = vpop.f32.mrb[0].mxu0
    %v4342 = vadd.f32 0.0, %v4341
    %v4343 = vpop.f32.mrb[0].mxu0
    %4344 = vmatprep.mubr.bf16.mxu0 0
    %4345 = vmatmul.mubr.bf16.gmra.mrb[0].mxu0 %v292
    %v4346 = vpop.f32.mrb[0].mxu0
    %v4347 = vadd.f32 0.0, %v4346
    %v4348 = vpop.f32.mrb[0].mxu0
    %v4349 = vpop.f32.mrb[0].mxu0
    %v4350 = vadd.f32 0.0, %v4349
    %v4351 = vpop.f32.mrb[0].mxu0
    %4352 = vmatprep.mubr.bf16.mxu0 0
    %4353 = vmatmul.mubr.bf16.gmra.mrb[0].mxu0 %v293
    %v4354 = vpop.f32.mrb[0].mxu0
    %v4355 = vadd.f32 0.0, %v4354
    %v4356 = vpop.f32.mrb[0].mxu0
    %v4357 = vpop.f32.mrb[0].mxu0
    %v4358 = vadd.f32 0.0, %v4357
    %v4359 = vpop.f32.mrb[0].mxu0
    %4360 = vmatprep.mubr.bf16.mxu0 0
    %4361 = vmatmul.mubr.bf16.gmra.mrb[0].mxu0 %v294
    %v4362 = vpop.f32.mrb[0].mxu0
    %v4363 = vadd.f32 0.0, %v4362
    %v4364 = vpop.f32.mrb[0].mxu0
    %v4365 = vpop.f32.mrb[0].mxu0
    %v4366 = vadd.f32 0.0, %v4365
    %v4367 = vpop.f32.mrb[0].mxu0
    %4368 = vmatprep.mubr.bf16.mxu0 0
    %4369 = vmatmul.mubr.bf16.gmra.mrb[0].mxu0 %v295
    %v4370 = vpop.f32.mrb[0].mxu0
    %v4371 = vadd.f32 0.0, %v4370
    %v4372 = vpop.f32.mrb[0].mxu0
    %v4373 = vpop.f32.mrb[0].mxu0
    %v4374 = vadd.f32 0.0, %v4373
    %v4375 = vpop.f32.mrb[0].mxu0
    %4376 = vdwg.mxu0
    %s4377 = scalar_lea.vmem %s7, 192
    %v4378 = vld [vmem:[%s4377] sm:$0xf]
    %v4379 = vld [vmem:[%s4377 + $0x4] sm:$0xf]
    %v4380 = vld [vmem:[%s4377 + $0x8] sm:$0xf]
    %v4381 = vld [vmem:[%s4377 + $0xc] sm:$0xf]
    %v4382 = vld [vmem:[%s4377 + $0x10] sm:$0xf]
    %v4383 = vld [vmem:[%s4377 + $0x14] sm:$0xf]
    %v4384 = vld [vmem:[%s4377 + $0x18] sm:$0xf]
    %v4385 = vld [vmem:[%s4377 + $0x1c] sm:$0xf]
    %v4386 = vld [vmem:[%s4377 + $0x20] sm:$0xf]
    %v4387 = vld [vmem:[%s4377 + $0x24] sm:$0xf]
    %v4388 = vld [vmem:[%s4377 + $0x28] sm:$0xf]
    %v4389 = vld [vmem:[%s4377 + $0x2c] sm:$0xf]
    %v4390 = vld [vmem:[%s4377 + $0x30] sm:$0xf]
    %v4391 = vld [vmem:[%s4377 + $0x34] sm:$0xf]
    %v4392 = vld [vmem:[%s4377 + $0x38] sm:$0xf]
    %v4393 = vld [vmem:[%s4377 + $0x3c] sm:$0xf]
    %v4410 = vunpack.c.l.b16 %v4378
    %v4411 = vunpack.c.l.b16 %v4379
    %v4412 = vunpack.c.l.b16 %v4380
    %v4413 = vunpack.c.l.b16 %v4381
    %v4414 = vunpack.c.l.b16 %v4382
    %v4415 = vunpack.c.l.b16 %v4383
    %v4416 = vunpack.c.l.b16 %v4384
    %v4417 = vunpack.c.l.b16 %v4385
    %v4418 = vunpack.c.l.b16 %v4386
    %v4419 = vunpack.c.l.b16 %v4387
    %v4420 = vunpack.c.l.b16 %v4388
    %v4421 = vunpack.c.l.b16 %v4389
    %v4422 = vunpack.c.l.b16 %v4390
    %v4423 = vunpack.c.l.b16 %v4391
    %v4424 = vunpack.c.l.b16 %v4392
    %v4425 = vunpack.c.l.b16 %v4393
    %v4426 = vpack.c.b16 %v4411, %v4410
    %v4427 = vpack.c.b16 %v4413, %v4412
    %v4428 = vpack.c.b16 %v4415, %v4414
    %v4429 = vpack.c.b16 %v4417, %v4416
    %v4430 = vpack.c.b16 %v4419, %v4418
    %v4431 = vpack.c.b16 %v4421, %v4420
    %v4432 = vpack.c.b16 %v4423, %v4422
    %v4433 = vpack.c.b16 %v4425, %v4424
    %4442 = vmatprep.subr.bf16.mxu0 0
    %4443 = vmatpush1.bf16.msra.mxu0 %v4426
    %4444 = vmatprep.subr.bf16.mxu0 0
    %4445 = vmatpush1.bf16.msra.mxu0 %v4427
    %4446 = vmatprep.subr.bf16.mxu0 0
    %4447 = vmatpush1.bf16.msra.mxu0 %v4428
    %4448 = vmatprep.subr.bf16.mxu0 0
    %4449 = vmatpush1.bf16.msra.mxu0 %v4429
    %4450 = vmatprep.subr.bf16.mxu0 0
    %4451 = vmatpush1.bf16.msra.mxu0 %v4430
    %4452 = vmatprep.subr.bf16.mxu0 0
    %4453 = vmatpush1.bf16.msra.mxu0 %v4431
    %4454 = vmatprep.subr.bf16.mxu0 0
    %4455 = vmatpush1.bf16.msra.mxu0 %v4432
    %4456 = vmatprep.subr.bf16.mxu0 0
    %4457 = vmatpush1.bf16.msra.mxu0 %v4433
    %4458 = vmatprep.subr.bf16.mxu0 0
    %4459 = vmatpush1.bf16.msra.mxu0 0
    %4460 = vmatprep.subr.bf16.mxu0 0
    %4461 = vmatpush1.bf16.msra.mxu0 0
    %4462 = vmatprep.subr.bf16.mxu0 0
    %4463 = vmatpush1.bf16.msra.mxu0 0
    %4464 = vmatprep.subr.bf16.mxu0 0
    %4465 = vmatpush1.bf16.msra.mxu0 0
    %4466 = vmatprep.subr.bf16.mxu0 0
    %4467 = vmatpush1.bf16.msra.mxu0 0
    %4468 = vmatprep.subr.bf16.mxu0 0
    %4469 = vmatpush1.bf16.msra.mxu0 0
    %4470 = vmatprep.subr.bf16.mxu0 0
    %4471 = vmatpush1.bf16.msra.mxu0 0
    %4472 = vmatprep.subr.bf16.mxu0 0
    %4473 = vmatpush1.bf16.msra.mxu0 0
    %4474 = vmatprep.mubr.bf16.mxu0 0
    %4475 = vmatmul.mubr.bf16.gmra.mrb[0].mxu0 %v288
    %v4476 = vpop.f32.mrb[0].mxu0
    %v4477 = vadd.f32 0.0, %v4476
    %v4478 = vpop.f32.mrb[0].mxu0
    %v4479 = vpop.f32.mrb[0].mxu0
    %v4480 = vadd.f32 0.0, %v4479
    %v4481 = vpop.f32.mrb[0].mxu0
    %4482 = vmatprep.mubr.bf16.mxu0 0
    %4483 = vmatmul.mubr.bf16.gmra.mrb[0].mxu0 %v289
    %v4484 = vpop.f32.mrb[0].mxu0
    %v4485 = vadd.f32 0.0, %v4484
    %v4486 = vpop.f32.mrb[0].mxu0
    %v4487 = vpop.f32.mrb[0].mxu0
    %v4488 = vadd.f32 0.0, %v4487
    %v4489 = vpop.f32.mrb[0].mxu0
    %4490 = vmatprep.mubr.bf16.mxu0 0
    %4491 = vmatmul.mubr.bf16.gmra.mrb[0].mxu0 %v290
    %v4492 = vpop.f32.mrb[0].mxu0
    %v4493 = vadd.f32 0.0, %v4492
    %v4494 = vpop.f32.mrb[0].mxu0
    %v4495 = vpop.f32.mrb[0].mxu0
    %v4496 = vadd.f32 0.0, %v4495
    %v4497 = vpop.f32.mrb[0].mxu0
    %4498 = vmatprep.mubr.bf16.mxu0 0
    %4499 = vmatmul.mubr.bf16.gmra.mrb[0].mxu0 %v291
    %v4500 = vpop.f32.mrb[0].mxu0
    %v4501 = vadd.f32 0.0, %v4500
    %v4502 = vpop.f32.mrb[0].mxu0
    %v4503 = vpop.f32.mrb[0].mxu0
    %v4504 = vadd.f32 0.0, %v4503
    %v4505 = vpop.f32.mrb[0].mxu0
    %4506 = vmatprep.mubr.bf16.mxu0 0
    %4507 = vmatmul.mubr.bf16.gmra.mrb[0].mxu0 %v292
    %v4508 = vpop.f32.mrb[0].mxu0
    %v4509 = vadd.f32 0.0, %v4508
    %v4510 = vpop.f32.mrb[0].mxu0
    %v4511 = vpop.f32.mrb[0].mxu0
    %v4512 = vadd.f32 0.0, %v4511
    %v4513 = vpop.f32.mrb[0].mxu0
    %4514 = vmatprep.mubr.bf16.mxu0 0
    %4515 = vmatmul.mubr.bf16.gmra.mrb[0].mxu0 %v293
    %v4516 = vpop.f32.mrb[0].mxu0
    %v4517 = vadd.f32 0.0, %v4516
    %v4518 = vpop.f32.mrb[0].mxu0
    %v4519 = vpop.f32.mrb[0].mxu0
    %v4520 = vadd.f32 0.0, %v4519
    %v4521 = vpop.f32.mrb[0].mxu0
    %4522 = vmatprep.mubr.bf16.mxu0 0
    %4523 = vmatmul.mubr.bf16.gmra.mrb[0].mxu0 %v294
    %v4524 = vpop.f32.mrb[0].mxu0
    %v4525 = vadd.f32 0.0, %v4524
    %v4526 = vpop.f32.mrb[0].mxu0
    %v4527 = vpop.f32.mrb[0].mxu0
    %v4528 = vadd.f32 0.0, %v4527
    %v4529 = vpop.f32.mrb[0].mxu0
    %4530 = vmatprep.mubr.bf16.mxu0 0
    %4531 = vmatmul.mubr.bf16.gmra.mrb[0].mxu0 %v295
    %v4532 = vpop.f32.mrb[0].mxu0
    %v4533 = vadd.f32 0.0, %v4532
    %v4534 = vpop.f32.mrb[0].mxu0
    %v4535 = vpop.f32.mrb[0].mxu0
    %v4536 = vadd.f32 0.0, %v4535
    %v4537 = vpop.f32.mrb[0].mxu0
    %4538 = vdwg.mxu0
    %v4539 = vpack.c.bf16 %v4156, %v4153
    %v4540 = vpack.c.bf16 %v4164, %v4161
    %v4541 = vpack.c.bf16 %v4172, %v4169
    %v4542 = vpack.c.bf16 %v4180, %v4177
    %v4543 = vpack.c.bf16 %v4188, %v4185
    %v4544 = vpack.c.bf16 %v4196, %v4193
    %v4545 = vpack.c.bf16 %v4204, %v4201
    %v4546 = vpack.c.bf16 %v4212, %v4209
    %v4547 = vpack.c.bf16 %v4318, %v4315
    %v4548 = vpack.c.bf16 %v4326, %v4323
    %v4549 = vpack.c.bf16 %v4334, %v4331
    %v4550 = vpack.c.bf16 %v4342, %v4339
    %v4551 = vpack.c.bf16 %v4350, %v4347
    %v4552 = vpack.c.bf16 %v4358, %v4355
    %v4553 = vpack.c.bf16 %v4366, %v4363
    %v4554 = vpack.c.bf16 %v4374, %v4371
    %v4555 = vpack.c.bf16 %v4480, %v4477
    %v4556 = vpack.c.bf16 %v4488, %v4485
    %v4557 = vpack.c.bf16 %v4496, %v4493
    %v4558 = vpack.c.bf16 %v4504, %v4501
    %v4559 = vpack.c.bf16 %v4512, %v4509
    %v4560 = vpack.c.bf16 %v4520, %v4517
    %v4561 = vpack.c.bf16 %v4528, %v4525
    %v4562 = vpack.c.bf16 %v4536, %v4533
    %v4564 = vsel %vm822, %v4547, 0
    %v4567 = vsel %vm822, %v4548, 0
    %v4570 = vsel %vm822, %v4549, 0
    %v4573 = vsel %vm822, %v4550, 0
    %v4576 = vsel %vm822, %v4539, 0
    %v4579 = vsel %vm822, %v4540, 0
    %v4582 = vsel %vm822, %v4541, 0
    %v4585 = vsel %vm822, %v4542, 0
    %4587 = vmatprep.subr.bf16.mxu0 0
    %4588 = vmatpush1.bf16.xpose.msra.mxu0 %v4576
    %4589 = vmatprep.subr.bf16.mxu0 0
    %4590 = vmatpush1.bf16.xpose.msra.mxu0 %v4579
    %4591 = vmatprep.subr.bf16.mxu0 0
    %4592 = vmatpush1.bf16.xpose.msra.mxu0 %v4582
    %4593 = vmatprep.subr.bf16.mxu0 0
    %4594 = vmatpush1.bf16.xpose.msra.mxu0 %v4585
    %4595 = vmatprep.subr.bf16.mxu0 0
    %4596 = vmatpush1.bf16.xpose.msra.mxu0 0
    %4597 = vmatprep.subr.bf16.mxu0 0
    %4598 = vmatpush1.bf16.xpose.msra.mxu0 0
    %4599 = vmatprep.subr.bf16.mxu0 0
    %4600 = vmatpush1.bf16.xpose.msra.mxu0 0
    %4601 = vmatprep.subr.bf16.mxu0 0
    %4602 = vmatpush1.bf16.xpose.msra.mxu0 0
    %4603 = vmatprep.subr.bf16.mxu0 0
    %4604 = vmatpush1.bf16.xpose.msra.mxu0 0
    %4605 = vmatprep.subr.bf16.mxu0 0
    %4606 = vmatpush1.bf16.xpose.msra.mxu0 0
    %4607 = vmatprep.subr.bf16.mxu0 0
    %4608 = vmatpush1.bf16.xpose.msra.mxu0 0
    %4609 = vmatprep.subr.bf16.mxu0 0
    %4610 = vmatpush1.bf16.xpose.msra.mxu0 0
    %4611 = vmatprep.subr.bf16.mxu0 0
    %4612 = vmatpush1.bf16.xpose.msra.mxu0 0
    %4613 = vmatprep.subr.bf16.mxu0 0
    %4614 = vmatpush1.bf16.xpose.msra.mxu0 0
    %4615 = vmatprep.subr.bf16.mxu0 0
    %4616 = vmatpush1.bf16.xpose.msra.mxu0 0
    %4617 = vmatprep.subr.bf16.mxu0 0
    %4618 = vmatpush1.bf16.xpose.msra.mxu0 0
    %4619 = vmatprep.mubr.bf16.mxu0 0
    %4620 = vmatmul.mubr.bf16.gmra.mrb[0].mxu0 %v4564
    %v4621 = vpop.f32.mrb[0].mxu0
    %v4622 = vadd.f32 0.0, %v4621
    %v4623 = vpop.f32.mrb[0].mxu0
    %v4624 = vpop.f32.mrb[0].mxu0
    %v4625 = vadd.f32 0.0, %v4624
    %v4626 = vpop.f32.mrb[0].mxu0
    %4627 = vmatprep.mubr.bf16.mxu0 0
    %4628 = vmatmul.mubr.bf16.gmra.mrb[0].mxu0 %v4567
    %v4629 = vpop.f32.mrb[0].mxu0
    %v4630 = vadd.f32 0.0, %v4629
    %v4631 = vpop.f32.mrb[0].mxu0
    %v4632 = vpop.f32.mrb[0].mxu0
    %v4633 = vadd.f32 0.0, %v4632
    %v4634 = vpop.f32.mrb[0].mxu0
    %4635 = vmatprep.mubr.bf16.mxu0 0
    %4636 = vmatmul.mubr.bf16.gmra.mrb[0].mxu0 %v4570
    %v4637 = vpop.f32.mrb[0].mxu0
    %v4638 = vadd.f32 0.0, %v4637
    %v4639 = vpop.f32.mrb[0].mxu0
    %v4640 = vpop.f32.mrb[0].mxu0
    %v4641 = vadd.f32 0.0, %v4640
    %v4642 = vpop.f32.mrb[0].mxu0
    %4643 = vmatprep.mubr.bf16.mxu0 0
    %4644 = vmatmul.mubr.bf16.gmra.mrb[0].mxu0 %v4573
    %v4645 = vpop.f32.mrb[0].mxu0
    %v4646 = vadd.f32 0.0, %v4645
    %v4647 = vpop.f32.mrb[0].mxu0
    %v4648 = vpop.f32.mrb[0].mxu0
    %v4649 = vadd.f32 0.0, %v4648
    %v4650 = vpop.f32.mrb[0].mxu0
    %4651 = vdwg.mxu0
    %v4653 = vsel %vm822, %v4551, 0
    %v4656 = vsel %vm822, %v4552, 0
    %v4659 = vsel %vm822, %v4553, 0
    %v4662 = vsel %vm822, %v4554, 0
    %v4665 = vsel %vm822, %v4543, 0
    %v4668 = vsel %vm822, %v4544, 0
    %v4671 = vsel %vm822, %v4545, 0
    %v4674 = vsel %vm822, %v4546, 0
    %4676 = vmatprep.subr.bf16.mxu0 0
    %4677 = vmatpush1.bf16.xpose.msra.mxu0 %v4665
    %4678 = vmatprep.subr.bf16.mxu0 0
    %4679 = vmatpush1.bf16.xpose.msra.mxu0 %v4668
    %4680 = vmatprep.subr.bf16.mxu0 0
    %4681 = vmatpush1.bf16.xpose.msra.mxu0 %v4671
    %4682 = vmatprep.subr.bf16.mxu0 0
    %4683 = vmatpush1.bf16.xpose.msra.mxu0 %v4674
    %4684 = vmatprep.subr.bf16.mxu0 0
    %4685 = vmatpush1.bf16.xpose.msra.mxu0 0
    %4686 = vmatprep.subr.bf16.mxu0 0
    %4687 = vmatpush1.bf16.xpose.msra.mxu0 0
    %4688 = vmatprep.subr.bf16.mxu0 0
    %4689 = vmatpush1.bf16.xpose.msra.mxu0 0
    %4690 = vmatprep.subr.bf16.mxu0 0
    %4691 = vmatpush1.bf16.xpose.msra.mxu0 0
    %4692 = vmatprep.subr.bf16.mxu0 0
    %4693 = vmatpush1.bf16.xpose.msra.mxu0 0
    %4694 = vmatprep.subr.bf16.mxu0 0
    %4695 = vmatpush1.bf16.xpose.msra.mxu0 0
    %4696 = vmatprep.subr.bf16.mxu0 0
    %4697 = vmatpush1.bf16.xpose.msra.mxu0 0
    %4698 = vmatprep.subr.bf16.mxu0 0
    %4699 = vmatpush1.bf16.xpose.msra.mxu0 0
    %4700 = vmatprep.subr.bf16.mxu0 0
    %4701 = vmatpush1.bf16.xpose.msra.mxu0 0
    %4702 = vmatprep.subr.bf16.mxu0 0
    %4703 = vmatpush1.bf16.xpose.msra.mxu0 0
    %4704 = vmatprep.subr.bf16.mxu0 0
    %4705 = vmatpush1.bf16.xpose.msra.mxu0 0
    %4706 = vmatprep.subr.bf16.mxu0 0
    %4707 = vmatpush1.bf16.xpose.msra.mxu0 0
    %4708 = vmatprep.mubr.bf16.mxu0 0
    %4709 = vmatmul.mubr.bf16.gmra.mrb[0].mxu0 %v4653
    %v4710 = vpop.f32.mrb[0].mxu0
    %v4711 = vadd.f32 0.0, %v4710
    %v4712 = vpop.f32.mrb[0].mxu0
    %v4713 = vpop.f32.mrb[0].mxu0
    %v4714 = vadd.f32 0.0, %v4713
    %v4715 = vpop.f32.mrb[0].mxu0
    %4716 = vmatprep.mubr.bf16.mxu0 0
    %4717 = vmatmul.mubr.bf16.gmra.mrb[0].mxu0 %v4656
    %v4718 = vpop.f32.mrb[0].mxu0
    %v4719 = vadd.f32 0.0, %v4718
    %v4720 = vpop.f32.mrb[0].mxu0
    %v4721 = vpop.f32.mrb[0].mxu0
    %v4722 = vadd.f32 0.0, %v4721
    %v4723 = vpop.f32.mrb[0].mxu0
    %4724 = vmatprep.mubr.bf16.mxu0 0
    %4725 = vmatmul.mubr.bf16.gmra.mrb[0].mxu0 %v4659
    %v4726 = vpop.f32.mrb[0].mxu0
    %v4727 = vadd.f32 0.0, %v4726
    %v4728 = vpop.f32.mrb[0].mxu0
    %v4729 = vpop.f32.mrb[0].mxu0
    %v4730 = vadd.f32 0.0, %v4729
    %v4731 = vpop.f32.mrb[0].mxu0
    %4732 = vmatprep.mubr.bf16.mxu0 0
    %4733 = vmatmul.mubr.bf16.gmra.mrb[0].mxu0 %v4662
    %v4734 = vpop.f32.mrb[0].mxu0
    %v4735 = vadd.f32 0.0, %v4734
    %v4736 = vpop.f32.mrb[0].mxu0
    %v4737 = vpop.f32.mrb[0].mxu0
    %v4738 = vadd.f32 0.0, %v4737
    %v4739 = vpop.f32.mrb[0].mxu0
    %4740 = vdwg.mxu0
    %v4741 = vmul.f32 %v4622, 5.656854
    %v4742 = vmul.f32 %v4625, 5.656854
    %v4743 = vmul.f32 %v4630, 5.656854
    %v4744 = vmul.f32 %v4633, 5.656854
    %v4745 = vmul.f32 %v4638, 5.656854
    %v4746 = vmul.f32 %v4641, 5.656854
    %v4747 = vmul.f32 %v4646, 5.656854
    %v4748 = vmul.f32 %v4649, 5.656854
    %v4749 = vmul.f32 %v4711, 5.656854
    %v4750 = vmul.f32 %v4714, 5.656854
    %v4751 = vmul.f32 %v4719, 5.656854
    %v4752 = vmul.f32 %v4722, 5.656854
    %v4753 = vmul.f32 %v4727, 5.656854
    %v4754 = vmul.f32 %v4730, 5.656854
    %v4755 = vmul.f32 %v4735, 5.656854
    %v4756 = vmul.f32 %v4738, 5.656854
    %v4757 = vsel %vm1025, %v4741, -1e+30
    %v4758 = vsel %vm1026, %v4742, -1e+30
    %v4759 = vsel %vm1027, %v4743, -1e+30
    %v4760 = vsel %vm1028, %v4744, -1e+30
    %v4761 = vsel %vm1029, %v4745, -1e+30
    %v4762 = vsel %vm1030, %v4746, -1e+30
    %v4763 = vsel %vm1031, %v4747, -1e+30
    %v4764 = vsel %vm1032, %v4748, -1e+30
    %v4765 = vsel %vm1025, %v4749, -1e+30
    %v4766 = vsel %vm1026, %v4750, -1e+30
    %v4767 = vsel %vm1027, %v4751, -1e+30
    %v4768 = vsel %vm1028, %v4752, -1e+30
    %v4769 = vsel %vm1029, %v4753, -1e+30
    %v4770 = vsel %vm1030, %v4754, -1e+30
    %v4771 = vsel %vm1031, %v4755, -1e+30
    %v4772 = vsel %vm1032, %v4756, -1e+30
    %v4773 = vsel %vm1049, %v4757, -inf
    %4774 = vmax.xlane.f32.xlu0 %v4773
    %v4775 = vpop.xlane.xlu0 %4774
    %v4776 = vsel %vm1049, %v4758, -inf
    %4777 = vmax.xlane.f32.xlu0 %v4776
    %v4778 = vpop.xlane.xlu0 %4777
    %v4779 = vsel %vm1049, %v4759, -inf
    %4780 = vmax.xlane.f32.xlu0 %v4779
    %v4781 = vpop.xlane.xlu0 %4780
    %v4782 = vsel %vm1049, %v4760, -inf
    %4783 = vmax.xlane.f32.xlu0 %v4782
    %v4784 = vpop.xlane.xlu0 %4783
    %v4785 = vsel %vm1049, %v4761, -inf
    %4786 = vmax.xlane.f32.xlu0 %v4785
    %v4787 = vpop.xlane.xlu0 %4786
    %v4788 = vsel %vm1049, %v4762, -inf
    %4789 = vmax.xlane.f32.xlu0 %v4788
    %v4790 = vpop.xlane.xlu0 %4789
    %v4791 = vsel %vm1049, %v4763, -inf
    %4792 = vmax.xlane.f32.xlu0 %v4791
    %v4793 = vpop.xlane.xlu0 %4792
    %v4794 = vsel %vm1049, %v4764, -inf
    %4795 = vmax.xlane.f32.xlu0 %v4794
    %v4796 = vpop.xlane.xlu0 %4795
    %v4797 = vsel %vm1049, %v4765, -inf
    %4798 = vmax.xlane.f32.xlu0 %v4797
    %v4799 = vpop.xlane.xlu0 %4798
    %v4800 = vsel %vm1049, %v4766, -inf
    %4801 = vmax.xlane.f32.xlu0 %v4800
    %v4802 = vpop.xlane.xlu0 %4801
    %v4803 = vsel %vm1049, %v4767, -inf
    %4804 = vmax.xlane.f32.xlu0 %v4803
    %v4805 = vpop.xlane.xlu0 %4804
    %v4806 = vsel %vm1049, %v4768, -inf
    %4807 = vmax.xlane.f32.xlu0 %v4806
    %v4808 = vpop.xlane.xlu0 %4807
    %v4809 = vsel %vm1049, %v4769, -inf
    %4810 = vmax.xlane.f32.xlu0 %v4809
    %v4811 = vpop.xlane.xlu0 %4810
    %v4812 = vsel %vm1049, %v4770, -inf
    %4813 = vmax.xlane.f32.xlu0 %v4812
    %v4814 = vpop.xlane.xlu0 %4813
    %v4815 = vsel %vm1049, %v4771, -inf
    %4816 = vmax.xlane.f32.xlu0 %v4815
    %v4817 = vpop.xlane.xlu0 %4816
    %v4818 = vsel %vm1049, %v4772, -inf
    %4819 = vmax.xlane.f32.xlu0 %v4818
    %v4820 = vpop.xlane.xlu0 %4819
    %v4821 = vsub.f32 %v4757, %v4775
    %v4822 = vsub.f32 %v4758, %v4778
    %v4823 = vsub.f32 %v4759, %v4781
    %v4824 = vsub.f32 %v4760, %v4784
    %v4825 = vsub.f32 %v4761, %v4787
    %v4826 = vsub.f32 %v4762, %v4790
    %v4827 = vsub.f32 %v4763, %v4793
    %v4828 = vsub.f32 %v4764, %v4796
    %v4829 = vsub.f32 %v4765, %v4799
    %v4830 = vsub.f32 %v4766, %v4802
    %v4831 = vsub.f32 %v4767, %v4805
    %v4832 = vsub.f32 %v4768, %v4808
    %v4833 = vsub.f32 %v4769, %v4811
    %v4834 = vsub.f32 %v4770, %v4814
    %v4835 = vsub.f32 %v4771, %v4817
    %v4836 = vsub.f32 %v4772, %v4820
    %v4837 = vmul.f32 %v4821, 1.442695
    %v4838 = vpow.pop %v4837
    %v4839 = vmul.f32 %v4822, 1.442695
    %v4840 = vpow.pop %v4839
    %v4841 = vmul.f32 %v4823, 1.442695
    %v4842 = vpow.pop %v4841
    %v4843 = vmul.f32 %v4824, 1.442695
    %v4844 = vpow.pop %v4843
    %v4845 = vmul.f32 %v4825, 1.442695
    %v4846 = vpow.pop %v4845
    %v4847 = vmul.f32 %v4826, 1.442695
    %v4848 = vpow.pop %v4847
    %v4849 = vmul.f32 %v4827, 1.442695
    %v4850 = vpow.pop %v4849
    %v4851 = vmul.f32 %v4828, 1.442695
    %v4852 = vpow.pop %v4851
    %v4853 = vmul.f32 %v4829, 1.442695
    %v4854 = vpow.pop %v4853
    %v4855 = vmul.f32 %v4830, 1.442695
    %v4856 = vpow.pop %v4855
    %v4857 = vmul.f32 %v4831, 1.442695
    %v4858 = vpow.pop %v4857
    %v4859 = vmul.f32 %v4832, 1.442695
    %v4860 = vpow.pop %v4859
    %v4861 = vmul.f32 %v4833, 1.442695
    %v4862 = vpow.pop %v4861
    %v4863 = vmul.f32 %v4834, 1.442695
    %v4864 = vpow.pop %v4863
    %v4865 = vmul.f32 %v4835, 1.442695
    %v4866 = vpow.pop %v4865
    %v4867 = vmul.f32 %v4836, 1.442695
    %v4868 = vpow.pop %v4867
    %v4869 = vsel %vm1049, %v4838, 0.0
    %4870 = vadd.xlane.f32.xlu0 %v4869
    %v4871 = vpop.xlane.xlu0 %4870
    %v4872 = vsel %vm1049, %v4840, 0.0
    %4873 = vadd.xlane.f32.xlu0 %v4872
    %v4874 = vpop.xlane.xlu0 %4873
    %v4875 = vsel %vm1049, %v4842, 0.0
    %4876 = vadd.xlane.f32.xlu0 %v4875
    %v4877 = vpop.xlane.xlu0 %4876
    %v4878 = vsel %vm1049, %v4844, 0.0
    %4879 = vadd.xlane.f32.xlu0 %v4878
    %v4880 = vpop.xlane.xlu0 %4879
    %v4881 = vsel %vm1049, %v4846, 0.0
    %4882 = vadd.xlane.f32.xlu0 %v4881
    %v4883 = vpop.xlane.xlu0 %4882
    %v4884 = vsel %vm1049, %v4848, 0.0
    %4885 = vadd.xlane.f32.xlu0 %v4884
    %v4886 = vpop.xlane.xlu0 %4885
    %v4887 = vsel %vm1049, %v4850, 0.0
    %4888 = vadd.xlane.f32.xlu0 %v4887
    %v4889 = vpop.xlane.xlu0 %4888
    %v4890 = vsel %vm1049, %v4852, 0.0
    %4891 = vadd.xlane.f32.xlu0 %v4890
    %v4892 = vpop.xlane.xlu0 %4891
    %v4893 = vsel %vm1049, %v4854, 0.0
    %4894 = vadd.xlane.f32.xlu0 %v4893
    %v4895 = vpop.xlane.xlu0 %4894
    %v4896 = vsel %vm1049, %v4856, 0.0
    %4897 = vadd.xlane.f32.xlu0 %v4896
    %v4898 = vpop.xlane.xlu0 %4897
    %v4899 = vsel %vm1049, %v4858, 0.0
    %4900 = vadd.xlane.f32.xlu0 %v4899
    %v4901 = vpop.xlane.xlu0 %4900
    %v4902 = vsel %vm1049, %v4860, 0.0
    %4903 = vadd.xlane.f32.xlu0 %v4902
    %v4904 = vpop.xlane.xlu0 %4903
    %v4905 = vsel %vm1049, %v4862, 0.0
    %4906 = vadd.xlane.f32.xlu0 %v4905
    %v4907 = vpop.xlane.xlu0 %4906
    %v4908 = vsel %vm1049, %v4864, 0.0
    %4909 = vadd.xlane.f32.xlu0 %v4908
    %v4910 = vpop.xlane.xlu0 %4909
    %v4911 = vsel %vm1049, %v4866, 0.0
    %4912 = vadd.xlane.f32.xlu0 %v4911
    %v4913 = vpop.xlane.xlu0 %4912
    %v4914 = vsel %vm1049, %v4868, 0.0
    %4915 = vadd.xlane.f32.xlu0 %v4914
    %v4916 = vpop.xlane.xlu0 %4915
    %v4917 = vrcp.pop %v4871
    %v4918 = vrcp.pop %v4874
    %v4919 = vrcp.pop %v4877
    %v4920 = vrcp.pop %v4880
    %v4921 = vrcp.pop %v4883
    %v4922 = vrcp.pop %v4886
    %v4923 = vrcp.pop %v4889
    %v4924 = vrcp.pop %v4892
    %v4925 = vrcp.pop %v4895
    %v4926 = vrcp.pop %v4898
    %v4927 = vrcp.pop %v4901
    %v4928 = vrcp.pop %v4904
    %v4929 = vrcp.pop %v4907
    %v4930 = vrcp.pop %v4910
    %v4931 = vrcp.pop %v4913
    %v4932 = vrcp.pop %v4916
    %v4933 = vmul.f32 %v4838, %v4917
    %v4934 = vmul.f32 %v4840, %v4918
    %v4935 = vmul.f32 %v4842, %v4919
    %v4936 = vmul.f32 %v4844, %v4920
    %v4937 = vmul.f32 %v4846, %v4921
    %v4938 = vmul.f32 %v4848, %v4922
    %v4939 = vmul.f32 %v4850, %v4923
    %v4940 = vmul.f32 %v4852, %v4924
    %v4941 = vmul.f32 %v4854, %v4925
    %v4942 = vmul.f32 %v4856, %v4926
    %v4943 = vmul.f32 %v4858, %v4927
    %v4944 = vmul.f32 %v4860, %v4928
    %v4945 = vmul.f32 %v4862, %v4929
    %v4946 = vmul.f32 %v4864, %v4930
    %v4947 = vmul.f32 %v4866, %v4931
    %v4948 = vmul.f32 %v4868, %v4932
    %v4949 = vpack.c.bf16 %v4934, %v4933
    %v4950 = vpack.c.bf16 %v4936, %v4935
    %v4951 = vpack.c.bf16 %v4938, %v4937
    %v4952 = vpack.c.bf16 %v4940, %v4939
    %v4953 = vpack.c.bf16 %v4942, %v4941
    %v4954 = vpack.c.bf16 %v4944, %v4943
    %v4955 = vpack.c.bf16 %v4946, %v4945
    %v4956 = vpack.c.bf16 %v4948, %v4947
    %4957 = vxpose.xlu0.c.b16.start [1/8] %v4949, 128
    %4958 = vxpose.xlu0.c.b16.cont [2/8] %v4950, 128
    %4959 = vxpose.xlu0.c.b16.cont [3/8] %v4951, 128
    %4960 = vxpose.xlu0.c.b16.cont [4/8] %v4952, 128
    %4961 = vxpose.xlu0.c.b16.cont [5/8] 0, 128
    %4962 = vxpose.xlu0.c.b16.cont [6/8] 0, 128
    %4963 = vxpose.xlu0.c.b16.cont [7/8] 0, 128
    %4964 = vxpose.xlu0.c.b16.end [8/8] 0, 128
    %v4965 = vpop.trf.xlu0
    %v4966 = vpop.trf.xlu0
    %v4967 = vpop.trf.xlu0
    %v4968 = vpop.trf.xlu0
    %v4969 = vpop.trf.xlu0
    %v4970 = vpop.trf.xlu0
    %v4971 = vpop.trf.xlu0
    %v4972 = vpop.trf.xlu0
    %v4974 = vsel %vm1049, %v4965, 0
    %v4977 = vsel %vm1049, %v4966, 0
    %v4980 = vsel %vm1049, %v4967, 0
    %v4983 = vsel %vm1049, %v4968, 0
    %4985 = vmatprep.subr.bf16.mxu0 0
    %4986 = vmatpush1.bf16.msra.mxu0 %v4555
    %4987 = vmatprep.subr.bf16.mxu0 0
    %4988 = vmatpush1.bf16.msra.mxu0 %v4556
    %4989 = vmatprep.subr.bf16.mxu0 0
    %4990 = vmatpush1.bf16.msra.mxu0 %v4557
    %4991 = vmatprep.subr.bf16.mxu0 0
    %4992 = vmatpush1.bf16.msra.mxu0 %v4558
    %4993 = vmatprep.subr.bf16.mxu0 0
    %4994 = vmatpush1.bf16.msra.mxu0 0
    %4995 = vmatprep.subr.bf16.mxu0 0
    %4996 = vmatpush1.bf16.msra.mxu0 0
    %4997 = vmatprep.subr.bf16.mxu0 0
    %4998 = vmatpush1.bf16.msra.mxu0 0
    %4999 = vmatprep.subr.bf16.mxu0 0
    %5000 = vmatpush1.bf16.msra.mxu0 0
    %5001 = vmatprep.subr.bf16.mxu0 0
    %5002 = vmatpush1.bf16.msra.mxu0 0
    %5003 = vmatprep.subr.bf16.mxu0 0
    %5004 = vmatpush1.bf16.msra.mxu0 0
    %5005 = vmatprep.subr.bf16.mxu0 0
    %5006 = vmatpush1.bf16.msra.mxu0 0
    %5007 = vmatprep.subr.bf16.mxu0 0
    %5008 = vmatpush1.bf16.msra.mxu0 0
    %5009 = vmatprep.subr.bf16.mxu0 0
    %5010 = vmatpush1.bf16.msra.mxu0 0
    %5011 = vmatprep.subr.bf16.mxu0 0
    %5012 = vmatpush1.bf16.msra.mxu0 0
    %5013 = vmatprep.subr.bf16.mxu0 0
    %5014 = vmatpush1.bf16.msra.mxu0 0
    %5015 = vmatprep.subr.bf16.mxu0 0
    %5016 = vmatpush1.bf16.msra.mxu0 0
    %5017 = vmatprep.mubr.bf16.mxu0 0
    %5018 = vmatmul.mubr.bf16.gmra.mrb[0].mxu0 %v4974
    %v5019 = vpop.f32.mrb[0].mxu0
    %v5020 = vadd.f32 0.0, %v5019
    %v5021 = vpop.f32.mrb[0].mxu0
    %v5022 = vpop.f32.mrb[0].mxu0
    %v5023 = vadd.f32 0.0, %v5022
    %v5024 = vpop.f32.mrb[0].mxu0
    %5025 = vmatprep.mubr.bf16.mxu0 0
    %5026 = vmatmul.mubr.bf16.gmra.mrb[0].mxu0 %v4977
    %v5027 = vpop.f32.mrb[0].mxu0
    %v5028 = vadd.f32 0.0, %v5027
    %v5029 = vpop.f32.mrb[0].mxu0
    %v5030 = vpop.f32.mrb[0].mxu0
    %v5031 = vadd.f32 0.0, %v5030
    %v5032 = vpop.f32.mrb[0].mxu0
    %5033 = vmatprep.mubr.bf16.mxu0 0
    %5034 = vmatmul.mubr.bf16.gmra.mrb[0].mxu0 %v4980
    %v5035 = vpop.f32.mrb[0].mxu0
    %v5036 = vadd.f32 0.0, %v5035
    %v5037 = vpop.f32.mrb[0].mxu0
    %v5038 = vpop.f32.mrb[0].mxu0
    %v5039 = vadd.f32 0.0, %v5038
    %v5040 = vpop.f32.mrb[0].mxu0
    %5041 = vmatprep.mubr.bf16.mxu0 0
    %5042 = vmatmul.mubr.bf16.gmra.mrb[0].mxu0 %v4983
    %v5043 = vpop.f32.mrb[0].mxu0
    %v5044 = vadd.f32 0.0, %v5043
    %v5045 = vpop.f32.mrb[0].mxu0
    %v5046 = vpop.f32.mrb[0].mxu0
    %v5047 = vadd.f32 0.0, %v5046
    %v5048 = vpop.f32.mrb[0].mxu0
    %5049 = vdwg.mxu0
    %5050 = vxpose.xlu0.c.b16.start [1/8] %v4953, 128
    %5051 = vxpose.xlu0.c.b16.cont [2/8] %v4954, 128
    %5052 = vxpose.xlu0.c.b16.cont [3/8] %v4955, 128
    %5053 = vxpose.xlu0.c.b16.cont [4/8] %v4956, 128
    %5054 = vxpose.xlu0.c.b16.cont [5/8] 0, 128
    %5055 = vxpose.xlu0.c.b16.cont [6/8] 0, 128
    %5056 = vxpose.xlu0.c.b16.cont [7/8] 0, 128
    %5057 = vxpose.xlu0.c.b16.end [8/8] 0, 128
    %v5058 = vpop.trf.xlu0
    %v5059 = vpop.trf.xlu0
    %v5060 = vpop.trf.xlu0
    %v5061 = vpop.trf.xlu0
    %v5062 = vpop.trf.xlu0
    %v5063 = vpop.trf.xlu0
    %v5064 = vpop.trf.xlu0
    %v5065 = vpop.trf.xlu0
    %v5067 = vsel %vm1049, %v5058, 0
    %v5070 = vsel %vm1049, %v5059, 0
    %v5073 = vsel %vm1049, %v5060, 0
    %v5076 = vsel %vm1049, %v5061, 0
    %5078 = vmatprep.subr.bf16.mxu0 0
    %5079 = vmatpush1.bf16.msra.mxu0 %v4559
    %5080 = vmatprep.subr.bf16.mxu0 0
    %5081 = vmatpush1.bf16.msra.mxu0 %v4560
    %5082 = vmatprep.subr.bf16.mxu0 0
    %5083 = vmatpush1.bf16.msra.mxu0 %v4561
    %5084 = vmatprep.subr.bf16.mxu0 0
    %5085 = vmatpush1.bf16.msra.mxu0 %v4562
    %5086 = vmatprep.subr.bf16.mxu0 0
    %5087 = vmatpush1.bf16.msra.mxu0 0
    %5088 = vmatprep.subr.bf16.mxu0 0
    %5089 = vmatpush1.bf16.msra.mxu0 0
    %5090 = vmatprep.subr.bf16.mxu0 0
    %5091 = vmatpush1.bf16.msra.mxu0 0
    %5092 = vmatprep.subr.bf16.mxu0 0
    %5093 = vmatpush1.bf16.msra.mxu0 0
    %5094 = vmatprep.subr.bf16.mxu0 0
    %5095 = vmatpush1.bf16.msra.mxu0 0
    %5096 = vmatprep.subr.bf16.mxu0 0
    %5097 = vmatpush1.bf16.msra.mxu0 0
    %5098 = vmatprep.subr.bf16.mxu0 0
    %5099 = vmatpush1.bf16.msra.mxu0 0
    %5100 = vmatprep.subr.bf16.mxu0 0
    %5101 = vmatpush1.bf16.msra.mxu0 0
    %5102 = vmatprep.subr.bf16.mxu0 0
    %5103 = vmatpush1.bf16.msra.mxu0 0
    %5104 = vmatprep.subr.bf16.mxu0 0
    %5105 = vmatpush1.bf16.msra.mxu0 0
    %5106 = vmatprep.subr.bf16.mxu0 0
    %5107 = vmatpush1.bf16.msra.mxu0 0
    %5108 = vmatprep.subr.bf16.mxu0 0
    %5109 = vmatpush1.bf16.msra.mxu0 0
    %5110 = vmatprep.mubr.bf16.mxu0 0
    %5111 = vmatmul.mubr.bf16.gmra.mrb[0].mxu0 %v5067
    %v5112 = vpop.f32.mrb[0].mxu0
    %v5113 = vadd.f32 0.0, %v5112
    %v5114 = vpop.f32.mrb[0].mxu0
    %v5115 = vpop.f32.mrb[0].mxu0
    %v5116 = vadd.f32 0.0, %v5115
    %v5117 = vpop.f32.mrb[0].mxu0
    %5118 = vmatprep.mubr.bf16.mxu0 0
    %5119 = vmatmul.mubr.bf16.gmra.mrb[0].mxu0 %v5070
    %v5120 = vpop.f32.mrb[0].mxu0
    %v5121 = vadd.f32 0.0, %v5120
    %v5122 = vpop.f32.mrb[0].mxu0
    %v5123 = vpop.f32.mrb[0].mxu0
    %v5124 = vadd.f32 0.0, %v5123
    %v5125 = vpop.f32.mrb[0].mxu0
    %5126 = vmatprep.mubr.bf16.mxu0 0
    %5127 = vmatmul.mubr.bf16.gmra.mrb[0].mxu0 %v5073
    %v5128 = vpop.f32.mrb[0].mxu0
    %v5129 = vadd.f32 0.0, %v5128
    %v5130 = vpop.f32.mrb[0].mxu0
    %v5131 = vpop.f32.mrb[0].mxu0
    %v5132 = vadd.f32 0.0, %v5131
    %v5133 = vpop.f32.mrb[0].mxu0
    %5134 = vmatprep.mubr.bf16.mxu0 0
    %5135 = vmatmul.mubr.bf16.gmra.mrb[0].mxu0 %v5076
    %v5136 = vpop.f32.mrb[0].mxu0
    %v5137 = vadd.f32 0.0, %v5136
    %v5138 = vpop.f32.mrb[0].mxu0
    %v5139 = vpop.f32.mrb[0].mxu0
    %v5140 = vadd.f32 0.0, %v5139
    %v5141 = vpop.f32.mrb[0].mxu0
    %5142 = vdwg.mxu0
    %v5143 = vpack.c.bf16 %v5023, %v5020
    %v5144 = vpack.c.bf16 %v5031, %v5028
    %v5145 = vpack.c.bf16 %v5039, %v5036
    %v5146 = vpack.c.bf16 %v5047, %v5044
    %v5147 = vpack.c.bf16 %v5116, %v5113
    %v5148 = vpack.c.bf16 %v5124, %v5121
    %v5149 = vpack.c.bf16 %v5132, %v5129
    %v5150 = vpack.c.bf16 %v5140, %v5137
    %s5151 = scalar_lea.vmem %s8, 48
    %v5152 = vld [vmem:[%s5151] sm:$0xf]
    %v5153 = vld [vmem:[%s5151 + $0x4] sm:$0xf]
    %v5154 = vld [vmem:[%s5151 + $0x8] sm:$0xf]
    %v5155 = vld [vmem:[%s5151 + $0xc] sm:$0xf]
    %v5160 = vunpack.c.l.b16 %v5152
    %v5161 = vunpack.c.l.b16 %v5153
    %v5162 = vunpack.c.l.b16 %v5154
    %v5163 = vunpack.c.l.b16 %v5155
    %v5164 = vpack.c.b16 %v5161, %v5160
    %v5165 = vpack.c.b16 %v5163, %v5162
    %v5169 = vsel %vm822, %v5143, 0
    %v5172 = vsel %vm822, %v5144, 0
    %v5175 = vsel %vm822, %v5145, 0
    %v5178 = vsel %vm822, %v5146, 0
    %v5181 = vsel %vm822, %v5147, 0
    %v5184 = vsel %vm822, %v5148, 0
    %v5187 = vsel %vm822, %v5149, 0
    %v5190 = vsel %vm822, %v5150, 0
    %5192 = vmatprep.subr.bf16.mxu0 0
    %5193 = vmatpush1.bf16.msra.mxu0 %v5164
    %5194 = vmatprep.subr.bf16.mxu0 0
    %5195 = vmatpush1.bf16.msra.mxu0 %v5165
    %5196 = vmatprep.subr.bf16.mxu0 0
    %5197 = vmatpush1.bf16.msra.mxu0 0
    %5198 = vmatprep.subr.bf16.mxu0 0
    %5199 = vmatpush1.bf16.msra.mxu0 0
    %5200 = vmatprep.subr.bf16.mxu0 0
    %5201 = vmatpush1.bf16.msra.mxu0 0
    %5202 = vmatprep.subr.bf16.mxu0 0
    %5203 = vmatpush1.bf16.msra.mxu0 0
    %5204 = vmatprep.subr.bf16.mxu0 0
    %5205 = vmatpush1.bf16.msra.mxu0 0
    %5206 = vmatprep.subr.bf16.mxu0 0
    %5207 = vmatpush1.bf16.msra.mxu0 0
    %5208 = vmatprep.subr.bf16.mxu0 0
    %5209 = vmatpush1.bf16.msra.mxu0 0
    %5210 = vmatprep.subr.bf16.mxu0 0
    %5211 = vmatpush1.bf16.msra.mxu0 0
    %5212 = vmatprep.subr.bf16.mxu0 0
    %5213 = vmatpush1.bf16.msra.mxu0 0
    %5214 = vmatprep.subr.bf16.mxu0 0
    %5215 = vmatpush1.bf16.msra.mxu0 0
    %5216 = vmatprep.subr.bf16.mxu0 0
    %5217 = vmatpush1.bf16.msra.mxu0 0
    %5218 = vmatprep.subr.bf16.mxu0 0
    %5219 = vmatpush1.bf16.msra.mxu0 0
    %5220 = vmatprep.subr.bf16.mxu0 0
    %5221 = vmatpush1.bf16.msra.mxu0 0
    %5222 = vmatprep.subr.bf16.mxu0 0
    %5223 = vmatpush1.bf16.msra.mxu0 0
    %5224 = vmatprep.mubr.bf16.mxu0 0
    %5225 = vmatmul.mubr.bf16.gmra.mrb[0].mxu0 %v5169
    %v5226 = vpop.f32.mrb[0].mxu0
    %v5227 = vadd.f32 0.0, %v5226
    %v5228 = vpop.f32.mrb[0].mxu0
    %v5229 = vpop.f32.mrb[0].mxu0
    %v5230 = vadd.f32 0.0, %v5229
    %v5231 = vpop.f32.mrb[0].mxu0
    %5232 = vmatprep.mubr.bf16.mxu0 0
    %5233 = vmatmul.mubr.bf16.gmra.mrb[0].mxu0 %v5172
    %v5234 = vpop.f32.mrb[0].mxu0
    %v5235 = vadd.f32 0.0, %v5234
    %v5236 = vpop.f32.mrb[0].mxu0
    %v5237 = vpop.f32.mrb[0].mxu0
    %v5238 = vadd.f32 0.0, %v5237
    %v5239 = vpop.f32.mrb[0].mxu0
    %5240 = vmatprep.mubr.bf16.mxu0 0
    %5241 = vmatmul.mubr.bf16.gmra.mrb[0].mxu0 %v5175
    %v5242 = vpop.f32.mrb[0].mxu0
    %v5243 = vadd.f32 0.0, %v5242
    %v5244 = vpop.f32.mrb[0].mxu0
    %v5245 = vpop.f32.mrb[0].mxu0
    %v5246 = vadd.f32 0.0, %v5245
    %v5247 = vpop.f32.mrb[0].mxu0
    %5248 = vmatprep.mubr.bf16.mxu0 0
    %5249 = vmatmul.mubr.bf16.gmra.mrb[0].mxu0 %v5178
    %v5250 = vpop.f32.mrb[0].mxu0
    %v5251 = vadd.f32 0.0, %v5250
    %v5252 = vpop.f32.mrb[0].mxu0
    %v5253 = vpop.f32.mrb[0].mxu0
    %v5254 = vadd.f32 0.0, %v5253
    %v5255 = vpop.f32.mrb[0].mxu0
    %5256 = vmatprep.mubr.bf16.mxu0 0
    %5257 = vmatmul.mubr.bf16.gmra.mrb[0].mxu0 %v5181
    %v5258 = vpop.f32.mrb[0].mxu0
    %v5259 = vadd.f32 0.0, %v5258
    %v5260 = vpop.f32.mrb[0].mxu0
    %v5261 = vpop.f32.mrb[0].mxu0
    %v5262 = vadd.f32 0.0, %v5261
    %v5263 = vpop.f32.mrb[0].mxu0
    %5264 = vmatprep.mubr.bf16.mxu0 0
    %5265 = vmatmul.mubr.bf16.gmra.mrb[0].mxu0 %v5184
    %v5266 = vpop.f32.mrb[0].mxu0
    %v5267 = vadd.f32 0.0, %v5266
    %v5268 = vpop.f32.mrb[0].mxu0
    %v5269 = vpop.f32.mrb[0].mxu0
    %v5270 = vadd.f32 0.0, %v5269
    %v5271 = vpop.f32.mrb[0].mxu0
    %5272 = vmatprep.mubr.bf16.mxu0 0
    %5273 = vmatmul.mubr.bf16.gmra.mrb[0].mxu0 %v5187
    %v5274 = vpop.f32.mrb[0].mxu0
    %v5275 = vadd.f32 0.0, %v5274
    %v5276 = vpop.f32.mrb[0].mxu0
    %v5277 = vpop.f32.mrb[0].mxu0
    %v5278 = vadd.f32 0.0, %v5277
    %v5279 = vpop.f32.mrb[0].mxu0
    %5280 = vmatprep.mubr.bf16.mxu0 0
    %5281 = vmatmul.mubr.bf16.gmra.mrb[0].mxu0 %v5190
    %v5282 = vpop.f32.mrb[0].mxu0
    %v5283 = vadd.f32 0.0, %v5282
    %v5284 = vpop.f32.mrb[0].mxu0
    %v5285 = vpop.f32.mrb[0].mxu0
    %v5286 = vadd.f32 0.0, %v5285
    %v5287 = vpop.f32.mrb[0].mxu0
    %5288 = vdwg.mxu0
    %v5289 = vadd.f32 %v4037, %v5227
    %v5290 = vadd.f32 %v4038, %v5230
    %v5291 = vadd.f32 %v4039, %v5235
    %v5292 = vadd.f32 %v4040, %v5238
    %v5293 = vadd.f32 %v4041, %v5243
    %v5294 = vadd.f32 %v4042, %v5246
    %v5295 = vadd.f32 %v4043, %v5251
    %v5296 = vadd.f32 %v4044, %v5254
    %v5297 = vadd.f32 %v4045, %v5259
    %v5298 = vadd.f32 %v4046, %v5262
    %v5299 = vadd.f32 %v4047, %v5267
    %v5300 = vadd.f32 %v4048, %v5270
    %v5301 = vadd.f32 %v4049, %v5275
    %v5302 = vadd.f32 %v4050, %v5278
    %v5303 = vadd.f32 %v4051, %v5283
    %v5304 = vadd.f32 %v4052, %v5286
    %v5305 = vadd.f32 %v49, %v5289
    %v5306 = vadd.f32 %v50, %v5290
    %v5307 = vadd.f32 %v51, %v5291
    %v5308 = vadd.f32 %v52, %v5292
    %v5309 = vadd.f32 %v53, %v5293
    %v5310 = vadd.f32 %v54, %v5294
    %v5311 = vadd.f32 %v55, %v5295
    %v5312 = vadd.f32 %v56, %v5296
    %v5313 = vadd.f32 %v57, %v5297
    %v5314 = vadd.f32 %v58, %v5298
    %v5315 = vadd.f32 %v59, %v5299
    %v5316 = vadd.f32 %v60, %v5300
    %v5317 = vadd.f32 %v61, %v5301
    %v5318 = vadd.f32 %v62, %v5302
    %v5319 = vadd.f32 %v63, %v5303
    %v5320 = vadd.f32 %v64, %v5304
    %v5321 = vld [vmem:[%s9] sm:$0x1]
    %v5323 = vlaneseq
    %v5324 = vshrl.u32 %v5323, 7
    %v5325 = vsub.s32 0, %v5324
    %v5326 = vrot.slane %v5321, %v5325
    %v5328 = vadd.f32 %v5305, %v5326
    %v5329 = vadd.f32 %v5306, %v5326
    %v5330 = vadd.f32 %v5307, %v5326
    %v5331 = vadd.f32 %v5308, %v5326
    %v5332 = vadd.f32 %v5309, %v5326
    %v5333 = vadd.f32 %v5310, %v5326
    %v5334 = vadd.f32 %v5311, %v5326
    %v5335 = vadd.f32 %v5312, %v5326
    %v5336 = vadd.f32 %v5313, %v5326
    %v5337 = vadd.f32 %v5314, %v5326
    %v5338 = vadd.f32 %v5315, %v5326
    %v5339 = vadd.f32 %v5316, %v5326
    %v5340 = vadd.f32 %v5317, %v5326
    %v5341 = vadd.f32 %v5318, %v5326
    %v5342 = vadd.f32 %v5319, %v5326
    %v5343 = vadd.f32 %v5320, %v5326
    %v5344 = vld [vmem:[%s3] sm:$0x1]
    %v5345 = vld [vmem:[%s4] sm:$0x1]
    %5346 = vadd.xlane.f32.xlu0 %v5328
    %v5347 = vpop.xlane.xlu0 %5346
    %5348 = vadd.xlane.f32.xlu0 %v5329
    %v5349 = vpop.xlane.xlu0 %5348
    %5350 = vadd.xlane.f32.xlu0 %v5330
    %v5351 = vpop.xlane.xlu0 %5350
    %5352 = vadd.xlane.f32.xlu0 %v5331
    %v5353 = vpop.xlane.xlu0 %5352
    %5354 = vadd.xlane.f32.xlu0 %v5332
    %v5355 = vpop.xlane.xlu0 %5354
    %5356 = vadd.xlane.f32.xlu0 %v5333
    %v5357 = vpop.xlane.xlu0 %5356
    %5358 = vadd.xlane.f32.xlu0 %v5334
    %v5359 = vpop.xlane.xlu0 %5358
    %5360 = vadd.xlane.f32.xlu0 %v5335
    %v5361 = vpop.xlane.xlu0 %5360
    %5362 = vadd.xlane.f32.xlu0 %v5336
    %v5363 = vpop.xlane.xlu0 %5362
    %5364 = vadd.xlane.f32.xlu0 %v5337
    %v5365 = vpop.xlane.xlu0 %5364
    %5366 = vadd.xlane.f32.xlu0 %v5338
    %v5367 = vpop.xlane.xlu0 %5366
    %5368 = vadd.xlane.f32.xlu0 %v5339
    %v5369 = vpop.xlane.xlu0 %5368
    %5370 = vadd.xlane.f32.xlu0 %v5340
    %v5371 = vpop.xlane.xlu0 %5370
    %5372 = vadd.xlane.f32.xlu0 %v5341
    %v5373 = vpop.xlane.xlu0 %5372
    %5374 = vadd.xlane.f32.xlu0 %v5342
    %v5375 = vpop.xlane.xlu0 %5374
    %5376 = vadd.xlane.f32.xlu0 %v5343
    %v5377 = vpop.xlane.xlu0 %5376
    %v5378 = vmul.f32 %v5347, %v99
    %v5379 = vmul.f32 %v5349, %v99
    %v5380 = vmul.f32 %v5351, %v99
    %v5381 = vmul.f32 %v5353, %v99
    %v5382 = vmul.f32 %v5355, %v99
    %v5383 = vmul.f32 %v5357, %v99
    %v5384 = vmul.f32 %v5359, %v99
    %v5385 = vmul.f32 %v5361, %v99
    %v5386 = vmul.f32 %v5363, %v99
    %v5387 = vmul.f32 %v5365, %v99
    %v5388 = vmul.f32 %v5367, %v99
    %v5389 = vmul.f32 %v5369, %v99
    %v5390 = vmul.f32 %v5371, %v99
    %v5391 = vmul.f32 %v5373, %v99
    %v5392 = vmul.f32 %v5375, %v99
    %v5393 = vmul.f32 %v5377, %v99
    %v5394 = vsub.f32 %v5328, %v5378
    %v5395 = vsub.f32 %v5329, %v5379
    %v5396 = vsub.f32 %v5330, %v5380
    %v5397 = vsub.f32 %v5331, %v5381
    %v5398 = vsub.f32 %v5332, %v5382
    %v5399 = vsub.f32 %v5333, %v5383
    %v5400 = vsub.f32 %v5334, %v5384
    %v5401 = vsub.f32 %v5335, %v5385
    %v5402 = vsub.f32 %v5336, %v5386
    %v5403 = vsub.f32 %v5337, %v5387
    %v5404 = vsub.f32 %v5338, %v5388
    %v5405 = vsub.f32 %v5339, %v5389
    %v5406 = vsub.f32 %v5340, %v5390
    %v5407 = vsub.f32 %v5341, %v5391
    %v5408 = vsub.f32 %v5342, %v5392
    %v5409 = vsub.f32 %v5343, %v5393
    %v5410 = vmul.f32 %v5394, %v5394
    %v5411 = vmul.f32 %v5395, %v5395
    %v5412 = vmul.f32 %v5396, %v5396
    %v5413 = vmul.f32 %v5397, %v5397
    %v5414 = vmul.f32 %v5398, %v5398
    %v5415 = vmul.f32 %v5399, %v5399
    %v5416 = vmul.f32 %v5400, %v5400
    %v5417 = vmul.f32 %v5401, %v5401
    %v5418 = vmul.f32 %v5402, %v5402
    %v5419 = vmul.f32 %v5403, %v5403
    %v5420 = vmul.f32 %v5404, %v5404
    %v5421 = vmul.f32 %v5405, %v5405
    %v5422 = vmul.f32 %v5406, %v5406
    %v5423 = vmul.f32 %v5407, %v5407
    %v5424 = vmul.f32 %v5408, %v5408
    %v5425 = vmul.f32 %v5409, %v5409
    %5426 = vadd.xlane.f32.xlu0 %v5410
    %v5427 = vpop.xlane.xlu0 %5426
    %5428 = vadd.xlane.f32.xlu0 %v5411
    %v5429 = vpop.xlane.xlu0 %5428
    %5430 = vadd.xlane.f32.xlu0 %v5412
    %v5431 = vpop.xlane.xlu0 %5430
    %5432 = vadd.xlane.f32.xlu0 %v5413
    %v5433 = vpop.xlane.xlu0 %5432
    %5434 = vadd.xlane.f32.xlu0 %v5414
    %v5435 = vpop.xlane.xlu0 %5434
    %5436 = vadd.xlane.f32.xlu0 %v5415
    %v5437 = vpop.xlane.xlu0 %5436
    %5438 = vadd.xlane.f32.xlu0 %v5416
    %v5439 = vpop.xlane.xlu0 %5438
    %5440 = vadd.xlane.f32.xlu0 %v5417
    %v5441 = vpop.xlane.xlu0 %5440
    %5442 = vadd.xlane.f32.xlu0 %v5418
    %v5443 = vpop.xlane.xlu0 %5442
    %5444 = vadd.xlane.f32.xlu0 %v5419
    %v5445 = vpop.xlane.xlu0 %5444
    %5446 = vadd.xlane.f32.xlu0 %v5420
    %v5447 = vpop.xlane.xlu0 %5446
    %5448 = vadd.xlane.f32.xlu0 %v5421
    %v5449 = vpop.xlane.xlu0 %5448
    %5450 = vadd.xlane.f32.xlu0 %v5422
    %v5451 = vpop.xlane.xlu0 %5450
    %5452 = vadd.xlane.f32.xlu0 %v5423
    %v5453 = vpop.xlane.xlu0 %5452
    %5454 = vadd.xlane.f32.xlu0 %v5424
    %v5455 = vpop.xlane.xlu0 %5454
    %5456 = vadd.xlane.f32.xlu0 %v5425
    %v5457 = vpop.xlane.xlu0 %5456
    %v5458 = vmul.f32 %v5427, %v99
    %v5459 = vmul.f32 %v5429, %v99
    %v5460 = vmul.f32 %v5431, %v99
    %v5461 = vmul.f32 %v5433, %v99
    %v5462 = vmul.f32 %v5435, %v99
    %v5463 = vmul.f32 %v5437, %v99
    %v5464 = vmul.f32 %v5439, %v99
    %v5465 = vmul.f32 %v5441, %v99
    %v5466 = vmul.f32 %v5443, %v99
    %v5467 = vmul.f32 %v5445, %v99
    %v5468 = vmul.f32 %v5447, %v99
    %v5469 = vmul.f32 %v5449, %v99
    %v5470 = vmul.f32 %v5451, %v99
    %v5471 = vmul.f32 %v5453, %v99
    %v5472 = vmul.f32 %v5455, %v99
    %v5473 = vmul.f32 %v5457, %v99
    %v5474 = vadd.f32 %v5458, 1e-05
    %v5475 = vadd.f32 %v5459, 1e-05
    %v5476 = vadd.f32 %v5460, 1e-05
    %v5477 = vadd.f32 %v5461, 1e-05
    %v5478 = vadd.f32 %v5462, 1e-05
    %v5479 = vadd.f32 %v5463, 1e-05
    %v5480 = vadd.f32 %v5464, 1e-05
    %v5481 = vadd.f32 %v5465, 1e-05
    %v5482 = vadd.f32 %v5466, 1e-05
    %v5483 = vadd.f32 %v5467, 1e-05
    %v5484 = vadd.f32 %v5468, 1e-05
    %v5485 = vadd.f32 %v5469, 1e-05
    %v5486 = vadd.f32 %v5470, 1e-05
    %v5487 = vadd.f32 %v5471, 1e-05
    %v5488 = vadd.f32 %v5472, 1e-05
    %v5489 = vadd.f32 %v5473, 1e-05
    %v5490 = vrsqrt.pop %v5474
    %v5491 = vrsqrt.pop %v5475
    %v5492 = vrsqrt.pop %v5476
    %v5493 = vrsqrt.pop %v5477
    %v5494 = vrsqrt.pop %v5478
    %v5495 = vrsqrt.pop %v5479
    %v5496 = vrsqrt.pop %v5480
    %v5497 = vrsqrt.pop %v5481
    %v5498 = vrsqrt.pop %v5482
    %v5499 = vrsqrt.pop %v5483
    %v5500 = vrsqrt.pop %v5484
    %v5501 = vrsqrt.pop %v5485
    %v5502 = vrsqrt.pop %v5486
    %v5503 = vrsqrt.pop %v5487
    %v5504 = vrsqrt.pop %v5488
    %v5505 = vrsqrt.pop %v5489
    %v5506 = vmul.f32 %v5394, %v5490
    %v5507 = vmul.f32 %v5395, %v5491
    %v5508 = vmul.f32 %v5396, %v5492
    %v5509 = vmul.f32 %v5397, %v5493
    %v5510 = vmul.f32 %v5398, %v5494
    %v5511 = vmul.f32 %v5399, %v5495
    %v5512 = vmul.f32 %v5400, %v5496
    %v5513 = vmul.f32 %v5401, %v5497
    %v5514 = vmul.f32 %v5402, %v5498
    %v5515 = vmul.f32 %v5403, %v5499
    %v5516 = vmul.f32 %v5404, %v5500
    %v5517 = vmul.f32 %v5405, %v5501
    %v5518 = vmul.f32 %v5406, %v5502
    %v5519 = vmul.f32 %v5407, %v5503
    %v5520 = vmul.f32 %v5408, %v5504
    %v5521 = vmul.f32 %v5409, %v5505
    %v5523 = vlaneseq
    %v5524 = vshrl.u32 %v5523, 7
    %v5525 = vsub.s32 0, %v5524
    %v5526 = vrot.slane %v5344, %v5525
    %v5528 = vmul.f32 %v5506, %v5526
    %v5529 = vmul.f32 %v5507, %v5526
    %v5530 = vmul.f32 %v5508, %v5526
    %v5531 = vmul.f32 %v5509, %v5526
    %v5532 = vmul.f32 %v5510, %v5526
    %v5533 = vmul.f32 %v5511, %v5526
    %v5534 = vmul.f32 %v5512, %v5526
    %v5535 = vmul.f32 %v5513, %v5526
    %v5536 = vmul.f32 %v5514, %v5526
    %v5537 = vmul.f32 %v5515, %v5526
    %v5538 = vmul.f32 %v5516, %v5526
    %v5539 = vmul.f32 %v5517, %v5526
    %v5540 = vmul.f32 %v5518, %v5526
    %v5541 = vmul.f32 %v5519, %v5526
    %v5542 = vmul.f32 %v5520, %v5526
    %v5543 = vmul.f32 %v5521, %v5526
    %v5545 = vlaneseq
    %v5546 = vshrl.u32 %v5545, 7
    %v5547 = vsub.s32 0, %v5546
    %v5548 = vrot.slane %v5345, %v5547
    %v5550 = vadd.f32 %v5528, %v5548
    %v5551 = vadd.f32 %v5529, %v5548
    %v5552 = vadd.f32 %v5530, %v5548
    %v5553 = vadd.f32 %v5531, %v5548
    %v5554 = vadd.f32 %v5532, %v5548
    %v5555 = vadd.f32 %v5533, %v5548
    %v5556 = vadd.f32 %v5534, %v5548
    %v5557 = vadd.f32 %v5535, %v5548
    %v5558 = vadd.f32 %v5536, %v5548
    %v5559 = vadd.f32 %v5537, %v5548
    %v5560 = vadd.f32 %v5538, %v5548
    %v5561 = vadd.f32 %v5539, %v5548
    %v5562 = vadd.f32 %v5540, %v5548
    %v5563 = vadd.f32 %v5541, %v5548
    %v5564 = vadd.f32 %v5542, %v5548
    %v5565 = vadd.f32 %v5543, %v5548
    %v5566 = vpack.c.bf16 %v5551, %v5550
    %v5567 = vpack.c.bf16 %v5553, %v5552
    %v5568 = vpack.c.bf16 %v5555, %v5554
    %v5569 = vpack.c.bf16 %v5557, %v5556
    %v5570 = vpack.c.bf16 %v5559, %v5558
    %v5571 = vpack.c.bf16 %v5561, %v5560
    %v5572 = vpack.c.bf16 %v5563, %v5562
    %v5573 = vpack.c.bf16 %v5565, %v5564
    %v5574 = vld [vmem:[%s10] sm:$0xff]
    %v5575 = vld [vmem:[%s10 + $0x8] sm:$0xff]
    %v5576 = vld [vmem:[%s10 + $0x10] sm:$0xff]
    %v5577 = vld [vmem:[%s10 + $0x18] sm:$0xff]
    %v5578 = vld [vmem:[%s10 + $0x20] sm:$0xff]
    %v5579 = vld [vmem:[%s10 + $0x28] sm:$0xff]
    %v5580 = vld [vmem:[%s10 + $0x30] sm:$0xff]
    %v5581 = vld [vmem:[%s10 + $0x38] sm:$0xff]
    %v5582 = vld [vmem:[%s10 + $0x40] sm:$0xff]
    %v5583 = vld [vmem:[%s10 + $0x48] sm:$0xff]
    %v5584 = vld [vmem:[%s10 + $0x50] sm:$0xff]
    %v5585 = vld [vmem:[%s10 + $0x58] sm:$0xff]
    %v5586 = vld [vmem:[%s10 + $0x60] sm:$0xff]
    %v5587 = vld [vmem:[%s10 + $0x68] sm:$0xff]
    %v5588 = vld [vmem:[%s10 + $0x70] sm:$0xff]
    %v5589 = vld [vmem:[%s10 + $0x78] sm:$0xff]
    %v5590 = vld [vmem:[%s10 + $0x80] sm:$0xff]
    %v5591 = vld [vmem:[%s10 + $0x88] sm:$0xff]
    %v5592 = vld [vmem:[%s10 + $0x90] sm:$0xff]
    %v5593 = vld [vmem:[%s10 + $0x98] sm:$0xff]
    %v5594 = vld [vmem:[%s10 + $0xa0] sm:$0xff]
    %v5595 = vld [vmem:[%s10 + $0xa8] sm:$0xff]
    %v5596 = vld [vmem:[%s10 + $0xb0] sm:$0xff]
    %v5597 = vld [vmem:[%s10 + $0xb8] sm:$0xff]
    %v5598 = vld [vmem:[%s10 + $0xc0] sm:$0xff]
    %v5599 = vld [vmem:[%s10 + $0xc8] sm:$0xff]
    %v5600 = vld [vmem:[%s10 + $0xd0] sm:$0xff]
    %v5601 = vld [vmem:[%s10 + $0xd8] sm:$0xff]
    %v5602 = vld [vmem:[%s10 + $0xe0] sm:$0xff]
    %v5603 = vld [vmem:[%s10 + $0xe8] sm:$0xff]
    %v5604 = vld [vmem:[%s10 + $0xf0] sm:$0xff]
    %v5605 = vld [vmem:[%s10 + $0xf8] sm:$0xff]
    %v5606 = vld [vmem:[%s11] sm:$0xf]
    %v5608 = vlaneseq
    %v5609 = vshrl.u32 %v5608, 7
    %v5610 = vsub.s32 0, %v5609
    %v5611 = vrot.slane %v5606, %v5610
    %v5612 = vlaneseq
    %v5613 = vshrl.u32 %v5612, 7
    %v5614 = vsub.s32 1, %v5613
    %v5615 = vrot.slane %v5606, %v5614
    %v5616 = vlaneseq
    %v5617 = vshrl.u32 %v5616, 7
    %v5618 = vsub.s32 2, %v5617
    %v5619 = vrot.slane %v5606, %v5618
    %v5620 = vlaneseq
    %v5621 = vshrl.u32 %v5620, 7
    %v5622 = vsub.s32 3, %v5621
    %v5623 = vrot.slane %v5606, %v5622
    %v5660 = vunpack.c.l.b16 %v5574
    %v5661 = vunpack.c.h.b16 %v5574
    %v5662 = vunpack.c.l.b16 %v5575
    %v5663 = vunpack.c.h.b16 %v5575
    %v5664 = vunpack.c.l.b16 %v5576
    %v5665 = vunpack.c.h.b16 %v5576
    %v5666 = vunpack.c.l.b16 %v5577
    %v5667 = vunpack.c.h.b16 %v5577
    %v5668 = vunpack.c.l.b16 %v5578
    %v5669 = vunpack.c.h.b16 %v5578
    %v5670 = vunpack.c.l.b16 %v5579
    %v5671 = vunpack.c.h.b16 %v5579
    %v5672 = vunpack.c.l.b16 %v5580
    %v5673 = vunpack.c.h.b16 %v5580
    %v5674 = vunpack.c.l.b16 %v5581
    %v5675 = vunpack.c.h.b16 %v5581
    %v5676 = vunpack.c.l.b16 %v5582
    %v5677 = vunpack.c.h.b16 %v5582
    %v5678 = vunpack.c.l.b16 %v5583
    %v5679 = vunpack.c.h.b16 %v5583
    %v5680 = vunpack.c.l.b16 %v5584
    %v5681 = vunpack.c.h.b16 %v5584
    %v5682 = vunpack.c.l.b16 %v5585
    %v5683 = vunpack.c.h.b16 %v5585
    %v5684 = vunpack.c.l.b16 %v5586
    %v5685 = vunpack.c.h.b16 %v5586
    %v5686 = vunpack.c.l.b16 %v5587
    %v5687 = vunpack.c.h.b16 %v5587
    %v5688 = vunpack.c.l.b16 %v5588
    %v5689 = vunpack.c.h.b16 %v5588
    %v5690 = vunpack.c.l.b16 %v5589
    %v5691 = vunpack.c.h.b16 %v5589
    %v5692 = vunpack.c.l.b16 %v5590
    %v5693 = vunpack.c.h.b16 %v5590
    %v5694 = vunpack.c.l.b16 %v5591
    %v5695 = vunpack.c.h.b16 %v5591
    %v5696 = vunpack.c.l.b16 %v5592
    %v5697 = vunpack.c.h.b16 %v5592
    %v5698 = vunpack.c.l.b16 %v5593
    %v5699 = vunpack.c.h.b16 %v5593
    %v5700 = vunpack.c.l.b16 %v5594
    %v5701 = vunpack.c.h.b16 %v5594
    %v5702 = vunpack.c.l.b16 %v5595
    %v5703 = vunpack.c.h.b16 %v5595
    %v5704 = vunpack.c.l.b16 %v5596
    %v5705 = vunpack.c.h.b16 %v5596
    %v5706 = vunpack.c.l.b16 %v5597
    %v5707 = vunpack.c.h.b16 %v5597
    %v5708 = vunpack.c.l.b16 %v5598
    %v5709 = vunpack.c.h.b16 %v5598
    %v5710 = vunpack.c.l.b16 %v5599
    %v5711 = vunpack.c.h.b16 %v5599
    %v5712 = vunpack.c.l.b16 %v5600
    %v5713 = vunpack.c.h.b16 %v5600
    %v5714 = vunpack.c.l.b16 %v5601
    %v5715 = vunpack.c.h.b16 %v5601
    %v5716 = vunpack.c.l.b16 %v5602
    %v5717 = vunpack.c.h.b16 %v5602
    %v5718 = vunpack.c.l.b16 %v5603
    %v5719 = vunpack.c.h.b16 %v5603
    %v5720 = vunpack.c.l.b16 %v5604
    %v5721 = vunpack.c.h.b16 %v5604
    %v5722 = vunpack.c.l.b16 %v5605
    %v5723 = vunpack.c.h.b16 %v5605
    %v5724 = vpack.c.b16 %v5664, %v5660
    %v5725 = vpack.c.b16 %v5665, %v5661
    %v5726 = vpack.c.b16 %v5666, %v5662
    %v5727 = vpack.c.b16 %v5667, %v5663
    %v5728 = vpack.c.b16 %v5672, %v5668
    %v5729 = vpack.c.b16 %v5673, %v5669
    %v5730 = vpack.c.b16 %v5674, %v5670
    %v5731 = vpack.c.b16 %v5675, %v5671
    %v5732 = vpack.c.b16 %v5680, %v5676
    %v5733 = vpack.c.b16 %v5681, %v5677
    %v5734 = vpack.c.b16 %v5682, %v5678
    %v5735 = vpack.c.b16 %v5683, %v5679
    %v5736 = vpack.c.b16 %v5688, %v5684
    %v5737 = vpack.c.b16 %v5689, %v5685
    %v5738 = vpack.c.b16 %v5690, %v5686
    %v5739 = vpack.c.b16 %v5691, %v5687
    %v5740 = vpack.c.b16 %v5696, %v5692
    %v5741 = vpack.c.b16 %v5697, %v5693
    %v5742 = vpack.c.b16 %v5698, %v5694
    %v5743 = vpack.c.b16 %v5699, %v5695
    %v5744 = vpack.c.b16 %v5704, %v5700
    %v5745 = vpack.c.b16 %v5705, %v5701
    %v5746 = vpack.c.b16 %v5706, %v5702
    %v5747 = vpack.c.b16 %v5707, %v5703
    %v5748 = vpack.c.b16 %v5712, %v5708
    %v5749 = vpack.c.b16 %v5713, %v5709
    %v5750 = vpack.c.b16 %v5714, %v5710
    %v5751 = vpack.c.b16 %v5715, %v5711
    %v5752 = vpack.c.b16 %v5720, %v5716
    %v5753 = vpack.c.b16 %v5721, %v5717
    %v5754 = vpack.c.b16 %v5722, %v5718
    %v5755 = vpack.c.b16 %v5723, %v5719
    %5788 = vmatprep.subr.bf16.mxu0 %v5725
    %5789 = vmatpush1.bf16.msra.mxu0 %v5724
    %5790 = vmatprep.subr.bf16.mxu0 %v5729
    %5791 = vmatpush1.bf16.msra.mxu0 %v5728
    %5792 = vmatprep.subr.bf16.mxu0 %v5733
    %5793 = vmatpush1.bf16.msra.mxu0 %v5732
    %5794 = vmatprep.subr.bf16.mxu0 %v5737
    %5795 = vmatpush1.bf16.msra.mxu0 %v5736
    %5796 = vmatprep.subr.bf16.mxu0 %v5741
    %5797 = vmatpush1.bf16.msra.mxu0 %v5740
    %5798 = vmatprep.subr.bf16.mxu0 %v5745
    %5799 = vmatpush1.bf16.msra.mxu0 %v5744
    %5800 = vmatprep.subr.bf16.mxu0 %v5749
    %5801 = vmatpush1.bf16.msra.mxu0 %v5748
    %5802 = vmatprep.subr.bf16.mxu0 %v5753
    %5803 = vmatpush1.bf16.msra.mxu0 %v5752
    %5804 = vmatprep.subr.bf16.mxu0 0
    %5805 = vmatpush1.bf16.msra.mxu0 0
    %5806 = vmatprep.subr.bf16.mxu0 0
    %5807 = vmatpush1.bf16.msra.mxu0 0
    %5808 = vmatprep.subr.bf16.mxu0 0
    %5809 = vmatpush1.bf16.msra.mxu0 0
    %5810 = vmatprep.subr.bf16.mxu0 0
    %5811 = vmatpush1.bf16.msra.mxu0 0
    %5812 = vmatprep.subr.bf16.mxu0 0
    %5813 = vmatpush1.bf16.msra.mxu0 0
    %5814 = vmatprep.subr.bf16.mxu0 0
    %5815 = vmatpush1.bf16.msra.mxu0 0
    %5816 = vmatprep.subr.bf16.mxu0 0
    %5817 = vmatpush1.bf16.msra.mxu0 0
    %5818 = vmatprep.subr.bf16.mxu0 0
    %5819 = vmatpush1.bf16.msra.mxu0 0
    %5820 = vmatprep.mubr.bf16.mxu0 0
    %5821 = vmatmul.mubr.bf16.gmra.mrb[0].mxu0 %v5566
    %v5822 = vpop.f32.mrb[0].mxu0
    %v5823 = vadd.f32 %v5611, %v5822
    %v5824 = vpop.f32.mrb[0].mxu0
    %v5825 = vadd.f32 %v5615, %v5824
    %v5826 = vpop.f32.mrb[0].mxu0
    %v5827 = vadd.f32 %v5611, %v5826
    %v5828 = vpop.f32.mrb[0].mxu0
    %v5829 = vadd.f32 %v5615, %v5828
    %5830 = vmatprep.mubr.bf16.mxu0 0
    %5831 = vmatmul.mubr.bf16.gmra.mrb[0].mxu0 %v5567
    %v5832 = vpop.f32.mrb[0].mxu0
    %v5833 = vadd.f32 %v5611, %v5832
    %v5834 = vpop.f32.mrb[0].mxu0
    %v5835 = vadd.f32 %v5615, %v5834
    %v5836 = vpop.f32.mrb[0].mxu0
    %v5837 = vadd.f32 %v5611, %v5836
    %v5838 = vpop.f32.mrb[0].mxu0
    %v5839 = vadd.f32 %v5615, %v5838
    %5840 = vmatprep.mubr.bf16.mxu0 0
    %5841 = vmatmul.mubr.bf16.gmra.mrb[0].mxu0 %v5568
    %v5842 = vpop.f32.mrb[0].mxu0
    %v5843 = vadd.f32 %v5611, %v5842
    %v5844 = vpop.f32.mrb[0].mxu0
    %v5845 = vadd.f32 %v5615, %v5844
    %v5846 = vpop.f32.mrb[0].mxu0
    %v5847 = vadd.f32 %v5611, %v5846
    %v5848 = vpop.f32.mrb[0].mxu0
    %v5849 = vadd.f32 %v5615, %v5848
    %5850 = vmatprep.mubr.bf16.mxu0 0
    %5851 = vmatmul.mubr.bf16.gmra.mrb[0].mxu0 %v5569
    %v5852 = vpop.f32.mrb[0].mxu0
    %v5853 = vadd.f32 %v5611, %v5852
    %v5854 = vpop.f32.mrb[0].mxu0
    %v5855 = vadd.f32 %v5615, %v5854
    %v5856 = vpop.f32.mrb[0].mxu0
    %v5857 = vadd.f32 %v5611, %v5856
    %v5858 = vpop.f32.mrb[0].mxu0
    %v5859 = vadd.f32 %v5615, %v5858
    %5860 = vmatprep.mubr.bf16.mxu0 0
    %5861 = vmatmul.mubr.bf16.gmra.mrb[0].mxu0 %v5570
    %v5862 = vpop.f32.mrb[0].mxu0
    %v5863 = vadd.f32 %v5611, %v5862
    %v5864 = vpop.f32.mrb[0].mxu0
    %v5865 = vadd.f32 %v5615, %v5864
    %v5866 = vpop.f32.mrb[0].mxu0
    %v5867 = vadd.f32 %v5611, %v5866
    %v5868 = vpop.f32.mrb[0].mxu0
    %v5869 = vadd.f32 %v5615, %v5868
    %5870 = vmatprep.mubr.bf16.mxu0 0
    %5871 = vmatmul.mubr.bf16.gmra.mrb[0].mxu0 %v5571
    %v5872 = vpop.f32.mrb[0].mxu0
    %v5873 = vadd.f32 %v5611, %v5872
    %v5874 = vpop.f32.mrb[0].mxu0
    %v5875 = vadd.f32 %v5615, %v5874
    %v5876 = vpop.f32.mrb[0].mxu0
    %v5877 = vadd.f32 %v5611, %v5876
    %v5878 = vpop.f32.mrb[0].mxu0
    %v5879 = vadd.f32 %v5615, %v5878
    %5880 = vmatprep.mubr.bf16.mxu0 0
    %5881 = vmatmul.mubr.bf16.gmra.mrb[0].mxu0 %v5572
    %v5882 = vpop.f32.mrb[0].mxu0
    %v5883 = vadd.f32 %v5611, %v5882
    %v5884 = vpop.f32.mrb[0].mxu0
    %v5885 = vadd.f32 %v5615, %v5884
    %v5886 = vpop.f32.mrb[0].mxu0
    %v5887 = vadd.f32 %v5611, %v5886
    %v5888 = vpop.f32.mrb[0].mxu0
    %v5889 = vadd.f32 %v5615, %v5888
    %5890 = vmatprep.mubr.bf16.mxu0 0
    %5891 = vmatmul.mubr.bf16.gmra.mrb[0].mxu0 %v5573
    %v5892 = vpop.f32.mrb[0].mxu0
    %v5893 = vadd.f32 %v5611, %v5892
    %v5894 = vpop.f32.mrb[0].mxu0
    %v5895 = vadd.f32 %v5615, %v5894
    %v5896 = vpop.f32.mrb[0].mxu0
    %v5897 = vadd.f32 %v5611, %v5896
    %v5898 = vpop.f32.mrb[0].mxu0
    %v5899 = vadd.f32 %v5615, %v5898
    %5900 = vdwg.mxu0
    %5901 = vmatprep.subr.bf16.mxu0 %v5727
    %5902 = vmatpush1.bf16.msra.mxu0 %v5726
    %5903 = vmatprep.subr.bf16.mxu0 %v5731
    %5904 = vmatpush1.bf16.msra.mxu0 %v5730
    %5905 = vmatprep.subr.bf16.mxu0 %v5735
    %5906 = vmatpush1.bf16.msra.mxu0 %v5734
    %5907 = vmatprep.subr.bf16.mxu0 %v5739
    %5908 = vmatpush1.bf16.msra.mxu0 %v5738
    %5909 = vmatprep.subr.bf16.mxu0 %v5743
    %5910 = vmatpush1.bf16.msra.mxu0 %v5742
    %5911 = vmatprep.subr.bf16.mxu0 %v5747
    %5912 = vmatpush1.bf16.msra.mxu0 %v5746
    %5913 = vmatprep.subr.bf16.mxu0 %v5751
    %5914 = vmatpush1.bf16.msra.mxu0 %v5750
    %5915 = vmatprep.subr.bf16.mxu0 %v5755
    %5916 = vmatpush1.bf16.msra.mxu0 %v5754
    %5917 = vmatprep.subr.bf16.mxu0 0
    %5918 = vmatpush1.bf16.msra.mxu0 0
    %5919 = vmatprep.subr.bf16.mxu0 0
    %5920 = vmatpush1.bf16.msra.mxu0 0
    %5921 = vmatprep.subr.bf16.mxu0 0
    %5922 = vmatpush1.bf16.msra.mxu0 0
    %5923 = vmatprep.subr.bf16.mxu0 0
    %5924 = vmatpush1.bf16.msra.mxu0 0
    %5925 = vmatprep.subr.bf16.mxu0 0
    %5926 = vmatpush1.bf16.msra.mxu0 0
    %5927 = vmatprep.subr.bf16.mxu0 0
    %5928 = vmatpush1.bf16.msra.mxu0 0
    %5929 = vmatprep.subr.bf16.mxu0 0
    %5930 = vmatpush1.bf16.msra.mxu0 0
    %5931 = vmatprep.subr.bf16.mxu0 0
    %5932 = vmatpush1.bf16.msra.mxu0 0
    %5933 = vmatprep.mubr.bf16.mxu0 0
    %5934 = vmatmul.mubr.bf16.gmra.mrb[0].mxu0 %v5566
    %v5935 = vpop.f32.mrb[0].mxu0
    %v5936 = vadd.f32 %v5619, %v5935
    %v5937 = vpop.f32.mrb[0].mxu0
    %v5938 = vadd.f32 %v5623, %v5937
    %v5939 = vpop.f32.mrb[0].mxu0
    %v5940 = vadd.f32 %v5619, %v5939
    %v5941 = vpop.f32.mrb[0].mxu0
    %v5942 = vadd.f32 %v5623, %v5941
    %5943 = vmatprep.mubr.bf16.mxu0 0
    %5944 = vmatmul.mubr.bf16.gmra.mrb[0].mxu0 %v5567
    %v5945 = vpop.f32.mrb[0].mxu0
    %v5946 = vadd.f32 %v5619, %v5945
    %v5947 = vpop.f32.mrb[0].mxu0
    %v5948 = vadd.f32 %v5623, %v5947
    %v5949 = vpop.f32.mrb[0].mxu0
    %v5950 = vadd.f32 %v5619, %v5949
    %v5951 = vpop.f32.mrb[0].mxu0
    %v5952 = vadd.f32 %v5623, %v5951
    %5953 = vmatprep.mubr.bf16.mxu0 0
    %5954 = vmatmul.mubr.bf16.gmra.mrb[0].mxu0 %v5568
    %v5955 = vpop.f32.mrb[0].mxu0
    %v5956 = vadd.f32 %v5619, %v5955
    %v5957 = vpop.f32.mrb[0].mxu0
    %v5958 = vadd.f32 %v5623, %v5957
    %v5959 = vpop.f32.mrb[0].mxu0
    %v5960 = vadd.f32 %v5619, %v5959
    %v5961 = vpop.f32.mrb[0].mxu0
    %v5962 = vadd.f32 %v5623, %v5961
    %5963 = vmatprep.mubr.bf16.mxu0 0
    %5964 = vmatmul.mubr.bf16.gmra.mrb[0].mxu0 %v5569
    %v5965 = vpop.f32.mrb[0].mxu0
    %v5966 = vadd.f32 %v5619, %v5965
    %v5967 = vpop.f32.mrb[0].mxu0
    %v5968 = vadd.f32 %v5623, %v5967
    %v5969 = vpop.f32.mrb[0].mxu0
    %v5970 = vadd.f32 %v5619, %v5969
    %v5971 = vpop.f32.mrb[0].mxu0
    %v5972 = vadd.f32 %v5623, %v5971
    %5973 = vmatprep.mubr.bf16.mxu0 0
    %5974 = vmatmul.mubr.bf16.gmra.mrb[0].mxu0 %v5570
    %v5975 = vpop.f32.mrb[0].mxu0
    %v5976 = vadd.f32 %v5619, %v5975
    %v5977 = vpop.f32.mrb[0].mxu0
    %v5978 = vadd.f32 %v5623, %v5977
    %v5979 = vpop.f32.mrb[0].mxu0
    %v5980 = vadd.f32 %v5619, %v5979
    %v5981 = vpop.f32.mrb[0].mxu0
    %v5982 = vadd.f32 %v5623, %v5981
    %5983 = vmatprep.mubr.bf16.mxu0 0
    %5984 = vmatmul.mubr.bf16.gmra.mrb[0].mxu0 %v5571
    %v5985 = vpop.f32.mrb[0].mxu0
    %v5986 = vadd.f32 %v5619, %v5985
    %v5987 = vpop.f32.mrb[0].mxu0
    %v5988 = vadd.f32 %v5623, %v5987
    %v5989 = vpop.f32.mrb[0].mxu0
    %v5990 = vadd.f32 %v5619, %v5989
    %v5991 = vpop.f32.mrb[0].mxu0
    %v5992 = vadd.f32 %v5623, %v5991
    %5993 = vmatprep.mubr.bf16.mxu0 0
    %5994 = vmatmul.mubr.bf16.gmra.mrb[0].mxu0 %v5572
    %v5995 = vpop.f32.mrb[0].mxu0
    %v5996 = vadd.f32 %v5619, %v5995
    %v5997 = vpop.f32.mrb[0].mxu0
    %v5998 = vadd.f32 %v5623, %v5997
    %v5999 = vpop.f32.mrb[0].mxu0
    %v6000 = vadd.f32 %v5619, %v5999
    %v6001 = vpop.f32.mrb[0].mxu0
    %v6002 = vadd.f32 %v5623, %v6001
    %6003 = vmatprep.mubr.bf16.mxu0 0
    %6004 = vmatmul.mubr.bf16.gmra.mrb[0].mxu0 %v5573
    %v6005 = vpop.f32.mrb[0].mxu0
    %v6006 = vadd.f32 %v5619, %v6005
    %v6007 = vpop.f32.mrb[0].mxu0
    %v6008 = vadd.f32 %v5623, %v6007
    %v6009 = vpop.f32.mrb[0].mxu0
    %v6010 = vadd.f32 %v5619, %v6009
    %v6011 = vpop.f32.mrb[0].mxu0
    %v6012 = vadd.f32 %v5623, %v6011
    %6013 = vdwg.mxu0
    %v6014 = vmax.f32 %v5823, 0.0
    %v6015 = vmax.f32 %v5825, 0.0
    %v6016 = vmax.f32 %v5936, 0.0
    %v6017 = vmax.f32 %v5938, 0.0
    %v6018 = vmax.f32 %v5827, 0.0
    %v6019 = vmax.f32 %v5829, 0.0
    %v6020 = vmax.f32 %v5940, 0.0
    %v6021 = vmax.f32 %v5942, 0.0
    %v6022 = vmax.f32 %v5833, 0.0
    %v6023 = vmax.f32 %v5835, 0.0
    %v6024 = vmax.f32 %v5946, 0.0
    %v6025 = vmax.f32 %v5948, 0.0
    %v6026 = vmax.f32 %v5837, 0.0
    %v6027 = vmax.f32 %v5839, 0.0
    %v6028 = vmax.f32 %v5950, 0.0
    %v6029 = vmax.f32 %v5952, 0.0
    %v6030 = vmax.f32 %v5843, 0.0
    %v6031 = vmax.f32 %v5845, 0.0
    %v6032 = vmax.f32 %v5956, 0.0
    %v6033 = vmax.f32 %v5958, 0.0
    %v6034 = vmax.f32 %v5847, 0.0
    %v6035 = vmax.f32 %v5849, 0.0
    %v6036 = vmax.f32 %v5960, 0.0
    %v6037 = vmax.f32 %v5962, 0.0
    %v6038 = vmax.f32 %v5853, 0.0
    %v6039 = vmax.f32 %v5855, 0.0
    %v6040 = vmax.f32 %v5966, 0.0
    %v6041 = vmax.f32 %v5968, 0.0
    %v6042 = vmax.f32 %v5857, 0.0
    %v6043 = vmax.f32 %v5859, 0.0
    %v6044 = vmax.f32 %v5970, 0.0
    %v6045 = vmax.f32 %v5972, 0.0
    %v6046 = vmax.f32 %v5863, 0.0
    %v6047 = vmax.f32 %v5865, 0.0
    %v6048 = vmax.f32 %v5976, 0.0
    %v6049 = vmax.f32 %v5978, 0.0
    %v6050 = vmax.f32 %v5867, 0.0
    %v6051 = vmax.f32 %v5869, 0.0
    %v6052 = vmax.f32 %v5980, 0.0
    %v6053 = vmax.f32 %v5982, 0.0
    %v6054 = vmax.f32 %v5873, 0.0
    %v6055 = vmax.f32 %v5875, 0.0
    %v6056 = vmax.f32 %v5986, 0.0
    %v6057 = vmax.f32 %v5988, 0.0
    %v6058 = vmax.f32 %v5877, 0.0
    %v6059 = vmax.f32 %v5879, 0.0
    %v6060 = vmax.f32 %v5990, 0.0
    %v6061 = vmax.f32 %v5992, 0.0
    %v6062 = vmax.f32 %v5883, 0.0
    %v6063 = vmax.f32 %v5885, 0.0
    %v6064 = vmax.f32 %v5996, 0.0
    %v6065 = vmax.f32 %v5998, 0.0
    %v6066 = vmax.f32 %v5887, 0.0
    %v6067 = vmax.f32 %v5889, 0.0
    %v6068 = vmax.f32 %v6000, 0.0
    %v6069 = vmax.f32 %v6002, 0.0
    %v6070 = vmax.f32 %v5893, 0.0
    %v6071 = vmax.f32 %v5895, 0.0
    %v6072 = vmax.f32 %v6006, 0.0
    %v6073 = vmax.f32 %v6008, 0.0
    %v6074 = vmax.f32 %v5897, 0.0
    %v6075 = vmax.f32 %v5899, 0.0
    %v6076 = vmax.f32 %v6010, 0.0
    %v6077 = vmax.f32 %v6012, 0.0
    %v6078 = vpack.c.bf16 %v6018, %v6014
    %v6079 = vpack.c.bf16 %v6019, %v6015
    %v6080 = vpack.c.bf16 %v6020, %v6016
    %v6081 = vpack.c.bf16 %v6021, %v6017
    %v6082 = vpack.c.bf16 %v6026, %v6022
    %v6083 = vpack.c.bf16 %v6027, %v6023
    %v6084 = vpack.c.bf16 %v6028, %v6024
    %v6085 = vpack.c.bf16 %v6029, %v6025
    %v6086 = vpack.c.bf16 %v6034, %v6030
    %v6087 = vpack.c.bf16 %v6035, %v6031
    %v6088 = vpack.c.bf16 %v6036, %v6032
    %v6089 = vpack.c.bf16 %v6037, %v6033
    %v6090 = vpack.c.bf16 %v6042, %v6038
    %v6091 = vpack.c.bf16 %v6043, %v6039
    %v6092 = vpack.c.bf16 %v6044, %v6040
    %v6093 = vpack.c.bf16 %v6045, %v6041
    %v6094 = vpack.c.bf16 %v6050, %v6046
    %v6095 = vpack.c.bf16 %v6051, %v6047
    %v6096 = vpack.c.bf16 %v6052, %v6048
    %v6097 = vpack.c.bf16 %v6053, %v6049
    %v6098 = vpack.c.bf16 %v6058, %v6054
    %v6099 = vpack.c.bf16 %v6059, %v6055
    %v6100 = vpack.c.bf16 %v6060, %v6056
    %v6101 = vpack.c.bf16 %v6061, %v6057
    %v6102 = vpack.c.bf16 %v6066, %v6062
    %v6103 = vpack.c.bf16 %v6067, %v6063
    %v6104 = vpack.c.bf16 %v6068, %v6064
    %v6105 = vpack.c.bf16 %v6069, %v6065
    %v6106 = vpack.c.bf16 %v6074, %v6070
    %v6107 = vpack.c.bf16 %v6075, %v6071
    %v6108 = vpack.c.bf16 %v6076, %v6072
    %v6109 = vpack.c.bf16 %v6077, %v6073
    %v6110 = vld [vmem:[%s12] sm:$0xf]
    %v6111 = vld [vmem:[%s12 + $0x4] sm:$0xf]
    %v6112 = vld [vmem:[%s12 + $0x8] sm:$0xf]
    %v6113 = vld [vmem:[%s12 + $0xc] sm:$0xf]
    %v6114 = vld [vmem:[%s12 + $0x10] sm:$0xf]
    %v6115 = vld [vmem:[%s12 + $0x14] sm:$0xf]
    %v6116 = vld [vmem:[%s12 + $0x18] sm:$0xf]
    %v6117 = vld [vmem:[%s12 + $0x1c] sm:$0xf]
    %v6118 = vld [vmem:[%s12 + $0x20] sm:$0xf]
    %v6119 = vld [vmem:[%s12 + $0x24] sm:$0xf]
    %v6120 = vld [vmem:[%s12 + $0x28] sm:$0xf]
    %v6121 = vld [vmem:[%s12 + $0x2c] sm:$0xf]
    %v6122 = vld [vmem:[%s12 + $0x30] sm:$0xf]
    %v6123 = vld [vmem:[%s12 + $0x34] sm:$0xf]
    %v6124 = vld [vmem:[%s12 + $0x38] sm:$0xf]
    %v6125 = vld [vmem:[%s12 + $0x3c] sm:$0xf]
    %v6126 = vld [vmem:[%s12 + $0x40] sm:$0xf]
    %v6127 = vld [vmem:[%s12 + $0x44] sm:$0xf]
    %v6128 = vld [vmem:[%s12 + $0x48] sm:$0xf]
    %v6129 = vld [vmem:[%s12 + $0x4c] sm:$0xf]
    %v6130 = vld [vmem:[%s12 + $0x50] sm:$0xf]
    %v6131 = vld [vmem:[%s12 + $0x54] sm:$0xf]
    %v6132 = vld [vmem:[%s12 + $0x58] sm:$0xf]
    %v6133 = vld [vmem:[%s12 + $0x5c] sm:$0xf]
    %v6134 = vld [vmem:[%s12 + $0x60] sm:$0xf]
    %v6135 = vld [vmem:[%s12 + $0x64] sm:$0xf]
    %v6136 = vld [vmem:[%s12 + $0x68] sm:$0xf]
    %v6137 = vld [vmem:[%s12 + $0x6c] sm:$0xf]
    %v6138 = vld [vmem:[%s12 + $0x70] sm:$0xf]
    %v6139 = vld [vmem:[%s12 + $0x74] sm:$0xf]
    %v6140 = vld [vmem:[%s12 + $0x78] sm:$0xf]
    %v6141 = vld [vmem:[%s12 + $0x7c] sm:$0xf]
    %v6142 = vld [vmem:[%s12 + $0x80] sm:$0xf]
    %v6143 = vld [vmem:[%s12 + $0x84] sm:$0xf]
    %v6144 = vld [vmem:[%s12 + $0x88] sm:$0xf]
    %v6145 = vld [vmem:[%s12 + $0x8c] sm:$0xf]
    %v6146 = vld [vmem:[%s12 + $0x90] sm:$0xf]
    %v6147 = vld [vmem:[%s12 + $0x94] sm:$0xf]
    %v6148 = vld [vmem:[%s12 + $0x98] sm:$0xf]
    %v6149 = vld [vmem:[%s12 + $0x9c] sm:$0xf]
    %v6150 = vld [vmem:[%s12 + $0xa0] sm:$0xf]
    %v6151 = vld [vmem:[%s12 + $0xa4] sm:$0xf]
    %v6152 = vld [vmem:[%s12 + $0xa8] sm:$0xf]
    %v6153 = vld [vmem:[%s12 + $0xac] sm:$0xf]
    %v6154 = vld [vmem:[%s12 + $0xb0] sm:$0xf]
    %v6155 = vld [vmem:[%s12 + $0xb4] sm:$0xf]
    %v6156 = vld [vmem:[%s12 + $0xb8] sm:$0xf]
    %v6157 = vld [vmem:[%s12 + $0xbc] sm:$0xf]
    %v6158 = vld [vmem:[%s12 + $0xc0] sm:$0xf]
    %v6159 = vld [vmem:[%s12 + $0xc4] sm:$0xf]
    %v6160 = vld [vmem:[%s12 + $0xc8] sm:$0xf]
    %v6161 = vld [vmem:[%s12 + $0xcc] sm:$0xf]
    %v6162 = vld [vmem:[%s12 + $0xd0] sm:$0xf]
    %v6163 = vld [vmem:[%s12 + $0xd4] sm:$0xf]
    %v6164 = vld [vmem:[%s12 + $0xd8] sm:$0xf]
    %v6165 = vld [vmem:[%s12 + $0xdc] sm:$0xf]
    %v6166 = vld [vmem:[%s12 + $0xe0] sm:$0xf]
    %v6167 = vld [vmem:[%s12 + $0xe4] sm:$0xf]
    %v6168 = vld [vmem:[%s12 + $0xe8] sm:$0xf]
    %v6169 = vld [vmem:[%s12 + $0xec] sm:$0xf]
    %v6170 = vld [vmem:[%s12 + $0xf0] sm:$0xf]
    %v6171 = vld [vmem:[%s12 + $0xf4] sm:$0xf]
    %v6172 = vld [vmem:[%s12 + $0xf8] sm:$0xf]
    %v6173 = vld [vmem:[%s12 + $0xfc] sm:$0xf]
    %v6174 = vld [vmem:[%s13] sm:$0x1]
    %v6176 = vlaneseq
    %v6177 = vshrl.u32 %v6176, 7
    %v6178 = vsub.s32 0, %v6177
    %v6179 = vrot.slane %v6174, %v6178
    %v6245 = vunpack.c.l.b16 %v6110
    %v6246 = vunpack.c.l.b16 %v6111
    %v6247 = vunpack.c.l.b16 %v6112
    %v6248 = vunpack.c.l.b16 %v6113
    %v6249 = vunpack.c.l.b16 %v6114
    %v6250 = vunpack.c.l.b16 %v6115
    %v6251 = vunpack.c.l.b16 %v6116
    %v6252 = vunpack.c.l.b16 %v6117
    %v6253 = vunpack.c.l.b16 %v6118
    %v6254 = vunpack.c.l.b16 %v6119
    %v6255 = vunpack.c.l.b16 %v6120
    %v6256 = vunpack.c.l.b16 %v6121
    %v6257 = vunpack.c.l.b16 %v6122
    %v6258 = vunpack.c.l.b16 %v6123
    %v6259 = vunpack.c.l.b16 %v6124
    %v6260 = vunpack.c.l.b16 %v6125
    %v6261 = vunpack.c.l.b16 %v6126
    %v6262 = vunpack.c.l.b16 %v6127
    %v6263 = vunpack.c.l.b16 %v6128
    %v6264 = vunpack.c.l.b16 %v6129
    %v6265 = vunpack.c.l.b16 %v6130
    %v6266 = vunpack.c.l.b16 %v6131
    %v6267 = vunpack.c.l.b16 %v6132
    %v6268 = vunpack.c.l.b16 %v6133
    %v6269 = vunpack.c.l.b16 %v6134
    %v6270 = vunpack.c.l.b16 %v6135
    %v6271 = vunpack.c.l.b16 %v6136
    %v6272 = vunpack.c.l.b16 %v6137
    %v6273 = vunpack.c.l.b16 %v6138
    %v6274 = vunpack.c.l.b16 %v6139
    %v6275 = vunpack.c.l.b16 %v6140
    %v6276 = vunpack.c.l.b16 %v6141
    %v6277 = vunpack.c.l.b16 %v6142
    %v6278 = vunpack.c.l.b16 %v6143
    %v6279 = vunpack.c.l.b16 %v6144
    %v6280 = vunpack.c.l.b16 %v6145
    %v6281 = vunpack.c.l.b16 %v6146
    %v6282 = vunpack.c.l.b16 %v6147
    %v6283 = vunpack.c.l.b16 %v6148
    %v6284 = vunpack.c.l.b16 %v6149
    %v6285 = vunpack.c.l.b16 %v6150
    %v6286 = vunpack.c.l.b16 %v6151
    %v6287 = vunpack.c.l.b16 %v6152
    %v6288 = vunpack.c.l.b16 %v6153
    %v6289 = vunpack.c.l.b16 %v6154
    %v6290 = vunpack.c.l.b16 %v6155
    %v6291 = vunpack.c.l.b16 %v6156
    %v6292 = vunpack.c.l.b16 %v6157
    %v6293 = vunpack.c.l.b16 %v6158
    %v6294 = vunpack.c.l.b16 %v6159
    %v6295 = vunpack.c.l.b16 %v6160
    %v6296 = vunpack.c.l.b16 %v6161
    %v6297 = vunpack.c.l.b16 %v6162
    %v6298 = vunpack.c.l.b16 %v6163
    %v6299 = vunpack.c.l.b16 %v6164
    %v6300 = vunpack.c.l.b16 %v6165
    %v6301 = vunpack.c.l.b16 %v6166
    %v6302 = vunpack.c.l.b16 %v6167
    %v6303 = vunpack.c.l.b16 %v6168
    %v6304 = vunpack.c.l.b16 %v6169
    %v6305 = vunpack.c.l.b16 %v6170
    %v6306 = vunpack.c.l.b16 %v6171
    %v6307 = vunpack.c.l.b16 %v6172
    %v6308 = vunpack.c.l.b16 %v6173
    %v6309 = vpack.c.b16 %v6246, %v6245
    %v6310 = vpack.c.b16 %v6248, %v6247
    %v6311 = vpack.c.b16 %v6250, %v6249
    %v6312 = vpack.c.b16 %v6252, %v6251
    %v6313 = vpack.c.b16 %v6254, %v6253
    %v6314 = vpack.c.b16 %v6256, %v6255
    %v6315 = vpack.c.b16 %v6258, %v6257
    %v6316 = vpack.c.b16 %v6260, %v6259
    %v6317 = vpack.c.b16 %v6262, %v6261
    %v6318 = vpack.c.b16 %v6264, %v6263
    %v6319 = vpack.c.b16 %v6266, %v6265
    %v6320 = vpack.c.b16 %v6268, %v6267
    %v6321 = vpack.c.b16 %v6270, %v6269
    %v6322 = vpack.c.b16 %v6272, %v6271
    %v6323 = vpack.c.b16 %v6274, %v6273
    %v6324 = vpack.c.b16 %v6276, %v6275
    %v6325 = vpack.c.b16 %v6278, %v6277
    %v6326 = vpack.c.b16 %v6280, %v6279
    %v6327 = vpack.c.b16 %v6282, %v6281
    %v6328 = vpack.c.b16 %v6284, %v6283
    %v6329 = vpack.c.b16 %v6286, %v6285
    %v6330 = vpack.c.b16 %v6288, %v6287
    %v6331 = vpack.c.b16 %v6290, %v6289
    %v6332 = vpack.c.b16 %v6292, %v6291
    %v6333 = vpack.c.b16 %v6294, %v6293
    %v6334 = vpack.c.b16 %v6296, %v6295
    %v6335 = vpack.c.b16 %v6298, %v6297
    %v6336 = vpack.c.b16 %v6300, %v6299
    %v6337 = vpack.c.b16 %v6302, %v6301
    %v6338 = vpack.c.b16 %v6304, %v6303
    %v6339 = vpack.c.b16 %v6306, %v6305
    %v6340 = vpack.c.b16 %v6308, %v6307
    %6373 = vmatprep.subr.bf16.mxu0 0
    %6374 = vmatpush1.bf16.msra.mxu0 %v6309
    %6375 = vmatprep.subr.bf16.mxu0 0
    %6376 = vmatpush1.bf16.msra.mxu0 %v6310
    %6377 = vmatprep.subr.bf16.mxu0 0
    %6378 = vmatpush1.bf16.msra.mxu0 %v6311
    %6379 = vmatprep.subr.bf16.mxu0 0
    %6380 = vmatpush1.bf16.msra.mxu0 %v6312
    %6381 = vmatprep.subr.bf16.mxu0 0
    %6382 = vmatpush1.bf16.msra.mxu0 %v6313
    %6383 = vmatprep.subr.bf16.mxu0 0
    %6384 = vmatpush1.bf16.msra.mxu0 %v6314
    %6385 = vmatprep.subr.bf16.mxu0 0
    %6386 = vmatpush1.bf16.msra.mxu0 %v6315
    %6387 = vmatprep.subr.bf16.mxu0 0
    %6388 = vmatpush1.bf16.msra.mxu0 %v6316
    %6389 = vmatprep.subr.bf16.mxu0 0
    %6390 = vmatpush1.bf16.msra.mxu0 %v6317
    %6391 = vmatprep.subr.bf16.mxu0 0
    %6392 = vmatpush1.bf16.msra.mxu0 %v6318
    %6393 = vmatprep.subr.bf16.mxu0 0
    %6394 = vmatpush1.bf16.msra.mxu0 %v6319
    %6395 = vmatprep.subr.bf16.mxu0 0
    %6396 = vmatpush1.bf16.msra.mxu0 %v6320
    %6397 = vmatprep.subr.bf16.mxu0 0
    %6398 = vmatpush1.bf16.msra.mxu0 %v6321
    %6399 = vmatprep.subr.bf16.mxu0 0
    %6400 = vmatpush1.bf16.msra.mxu0 %v6322
    %6401 = vmatprep.subr.bf16.mxu0 0
    %6402 = vmatpush1.bf16.msra.mxu0 %v6323
    %6403 = vmatprep.subr.bf16.mxu0 0
    %6404 = vmatpush1.bf16.msra.mxu0 %v6324
    %6405 = vmatprep.mubr.bf16.mxu0 %v6079
    %6406 = vmatmul.mubr.bf16.gmra.mrb[0].mxu0 %v6078
    %v6407 = vpop.f32.mrb[0].mxu0
    %v6408 = vadd.f32 %v6179, %v6407
    %v6409 = vpop.f32.mrb[0].mxu0
    %v6410 = vpop.f32.mrb[0].mxu0
    %v6411 = vadd.f32 %v6179, %v6410
    %v6412 = vpop.f32.mrb[0].mxu0
    %6413 = vmatprep.mubr.bf16.mxu0 %v6083
    %6414 = vmatmul.mubr.bf16.gmra.mrb[0].mxu0 %v6082
    %v6415 = vpop.f32.mrb[0].mxu0
    %v6416 = vadd.f32 %v6179, %v6415
    %v6417 = vpop.f32.mrb[0].mxu0
    %v6418 = vpop.f32.mrb[0].mxu0
    %v6419 = vadd.f32 %v6179, %v6418
    %v6420 = vpop.f32.mrb[0].mxu0
    %6421 = vmatprep.mubr.bf16.mxu0 %v6087
    %6422 = vmatmul.mubr.bf16.gmra.mrb[0].mxu0 %v6086
    %v6423 = vpop.f32.mrb[0].mxu0
    %v6424 = vadd.f32 %v6179, %v6423
    %v6425 = vpop.f32.mrb[0].mxu0
    %v6426 = vpop.f32.mrb[0].mxu0
    %v6427 = vadd.f32 %v6179, %v6426
    %v6428 = vpop.f32.mrb[0].mxu0
    %6429 = vmatprep.mubr.bf16.mxu0 %v6091
    %6430 = vmatmul.mubr.bf16.gmra.mrb[0].mxu0 %v6090
    %v6431 = vpop.f32.mrb[0].mxu0
    %v6432 = vadd.f32 %v6179, %v6431
    %v6433 = vpop.f32.mrb[0].mxu0
    %v6434 = vpop.f32.mrb[0].mxu0
    %v6435 = vadd.f32 %v6179, %v6434
    %v6436 = vpop.f32.mrb[0].mxu0
    %6437 = vmatprep.mubr.bf16.mxu0 %v6095
    %6438 = vmatmul.mubr.bf16.gmra.mrb[0].mxu0 %v6094
    %v6439 = vpop.f32.mrb[0].mxu0
    %v6440 = vadd.f32 %v6179, %v6439
    %v6441 = vpop.f32.mrb[0].mxu0
    %v6442 = vpop.f32.mrb[0].mxu0
    %v6443 = vadd.f32 %v6179, %v6442
    %v6444 = vpop.f32.mrb[0].mxu0
    %6445 = vmatprep.mubr.bf16.mxu0 %v6099
    %6446 = vmatmul.mubr.bf16.gmra.mrb[0].mxu0 %v6098
    %v6447 = vpop.f32.mrb[0].mxu0
    %v6448 = vadd.f32 %v6179, %v6447
    %v6449 = vpop.f32.mrb[0].mxu0
    %v6450 = vpop.f32.mrb[0].mxu0
    %v6451 = vadd.f32 %v6179, %v6450
    %v6452 = vpop.f32.mrb[0].mxu0
    %6453 = vmatprep.mubr.bf16.mxu0 %v6103
    %6454 = vmatmul.mubr.bf16.gmra.mrb[0].mxu0 %v6102
    %v6455 = vpop.f32.mrb[0].mxu0
    %v6456 = vadd.f32 %v6179, %v6455
    %v6457 = vpop.f32.mrb[0].mxu0
    %v6458 = vpop.f32.mrb[0].mxu0
    %v6459 = vadd.f32 %v6179, %v6458
    %v6460 = vpop.f32.mrb[0].mxu0
    %6461 = vmatprep.mubr.bf16.mxu0 %v6107
    %6462 = vmatmul.mubr.bf16.gmra.mrb[0].mxu0 %v6106
    %v6463 = vpop.f32.mrb[0].mxu0
    %v6464 = vadd.f32 %v6179, %v6463
    %v6465 = vpop.f32.mrb[0].mxu0
    %v6466 = vpop.f32.mrb[0].mxu0
    %v6467 = vadd.f32 %v6179, %v6466
    %v6468 = vpop.f32.mrb[0].mxu0
    %6469 = vdwg.mxu0
    %6470 = vmatprep.subr.bf16.mxu0 0
    %6471 = vmatpush1.bf16.msra.mxu0 %v6325
    %6472 = vmatprep.subr.bf16.mxu0 0
    %6473 = vmatpush1.bf16.msra.mxu0 %v6326
    %6474 = vmatprep.subr.bf16.mxu0 0
    %6475 = vmatpush1.bf16.msra.mxu0 %v6327
    %6476 = vmatprep.subr.bf16.mxu0 0
    %6477 = vmatpush1.bf16.msra.mxu0 %v6328
    %6478 = vmatprep.subr.bf16.mxu0 0
    %6479 = vmatpush1.bf16.msra.mxu0 %v6329
    %6480 = vmatprep.subr.bf16.mxu0 0
    %6481 = vmatpush1.bf16.msra.mxu0 %v6330
    %6482 = vmatprep.subr.bf16.mxu0 0
    %6483 = vmatpush1.bf16.msra.mxu0 %v6331
    %6484 = vmatprep.subr.bf16.mxu0 0
    %6485 = vmatpush1.bf16.msra.mxu0 %v6332
    %6486 = vmatprep.subr.bf16.mxu0 0
    %6487 = vmatpush1.bf16.msra.mxu0 %v6333
    %6488 = vmatprep.subr.bf16.mxu0 0
    %6489 = vmatpush1.bf16.msra.mxu0 %v6334
    %6490 = vmatprep.subr.bf16.mxu0 0
    %6491 = vmatpush1.bf16.msra.mxu0 %v6335
    %6492 = vmatprep.subr.bf16.mxu0 0
    %6493 = vmatpush1.bf16.msra.mxu0 %v6336
    %6494 = vmatprep.subr.bf16.mxu0 0
    %6495 = vmatpush1.bf16.msra.mxu0 %v6337
    %6496 = vmatprep.subr.bf16.mxu0 0
    %6497 = vmatpush1.bf16.msra.mxu0 %v6338
    %6498 = vmatprep.subr.bf16.mxu0 0
    %6499 = vmatpush1.bf16.msra.mxu0 %v6339
    %6500 = vmatprep.subr.bf16.mxu0 0
    %6501 = vmatpush1.bf16.msra.mxu0 %v6340
    %6502 = vmatprep.mubr.bf16.mxu0 %v6081
    %6503 = vmatmul.mubr.bf16.gmra.mrb[0].mxu0 %v6080
    %v6504 = vpop.f32.mrb[0].mxu0
    %v6505 = vadd.f32 %v6408, %v6504
    %v6506 = vpop.f32.mrb[0].mxu0
    %v6507 = vpop.f32.mrb[0].mxu0
    %v6508 = vadd.f32 %v6411, %v6507
    %v6509 = vpop.f32.mrb[0].mxu0
    %6510 = vmatprep.mubr.bf16.mxu0 %v6085
    %6511 = vmatmul.mubr.bf16.gmra.mrb[0].mxu0 %v6084
    %v6512 = vpop.f32.mrb[0].mxu0
    %v6513 = vadd.f32 %v6416, %v6512
    %v6514 = vpop.f32.mrb[0].mxu0
    %v6515 = vpop.f32.mrb[0].mxu0
    %v6516 = vadd.f32 %v6419, %v6515
    %v6517 = vpop.f32.mrb[0].mxu0
    %6518 = vmatprep.mubr.bf16.mxu0 %v6089
    %6519 = vmatmul.mubr.bf16.gmra.mrb[0].mxu0 %v6088
    %v6520 = vpop.f32.mrb[0].mxu0
    %v6521 = vadd.f32 %v6424, %v6520
    %v6522 = vpop.f32.mrb[0].mxu0
    %v6523 = vpop.f32.mrb[0].mxu0
    %v6524 = vadd.f32 %v6427, %v6523
    %v6525 = vpop.f32.mrb[0].mxu0
    %6526 = vmatprep.mubr.bf16.mxu0 %v6093
    %6527 = vmatmul.mubr.bf16.gmra.mrb[0].mxu0 %v6092
    %v6528 = vpop.f32.mrb[0].mxu0
    %v6529 = vadd.f32 %v6432, %v6528
    %v6530 = vpop.f32.mrb[0].mxu0
    %v6531 = vpop.f32.mrb[0].mxu0
    %v6532 = vadd.f32 %v6435, %v6531
    %v6533 = vpop.f32.mrb[0].mxu0
    %6534 = vmatprep.mubr.bf16.mxu0 %v6097
    %6535 = vmatmul.mubr.bf16.gmra.mrb[0].mxu0 %v6096
    %v6536 = vpop.f32.mrb[0].mxu0
    %v6537 = vadd.f32 %v6440, %v6536
    %v6538 = vpop.f32.mrb[0].mxu0
    %v6539 = vpop.f32.mrb[0].mxu0
    %v6540 = vadd.f32 %v6443, %v6539
    %v6541 = vpop.f32.mrb[0].mxu0
    %6542 = vmatprep.mubr.bf16.mxu0 %v6101
    %6543 = vmatmul.mubr.bf16.gmra.mrb[0].mxu0 %v6100
    %v6544 = vpop.f32.mrb[0].mxu0
    %v6545 = vadd.f32 %v6448, %v6544
    %v6546 = vpop.f32.mrb[0].mxu0
    %v6547 = vpop.f32.mrb[0].mxu0
    %v6548 = vadd.f32 %v6451, %v6547
    %v6549 = vpop.f32.mrb[0].mxu0
    %6550 = vmatprep.mubr.bf16.mxu0 %v6105
    %6551 = vmatmul.mubr.bf16.gmra.mrb[0].mxu0 %v6104
    %v6552 = vpop.f32.mrb[0].mxu0
    %v6553 = vadd.f32 %v6456, %v6552
    %v6554 = vpop.f32.mrb[0].mxu0
    %v6555 = vpop.f32.mrb[0].mxu0
    %v6556 = vadd.f32 %v6459, %v6555
    %v6557 = vpop.f32.mrb[0].mxu0
    %6558 = vmatprep.mubr.bf16.mxu0 %v6109
    %6559 = vmatmul.mubr.bf16.gmra.mrb[0].mxu0 %v6108
    %v6560 = vpop.f32.mrb[0].mxu0
    %v6561 = vadd.f32 %v6464, %v6560
    %v6562 = vpop.f32.mrb[0].mxu0
    %v6563 = vpop.f32.mrb[0].mxu0
    %v6564 = vadd.f32 %v6467, %v6563
    %v6565 = vpop.f32.mrb[0].mxu0
    %6566 = vdwg.mxu0
    %v6567 = vadd.f32 %v5328, %v6505
    %v6568 = vadd.f32 %v5329, %v6508
    %v6569 = vadd.f32 %v5330, %v6513
    %v6570 = vadd.f32 %v5331, %v6516
    %v6571 = vadd.f32 %v5332, %v6521
    %v6572 = vadd.f32 %v5333, %v6524
    %v6573 = vadd.f32 %v5334, %v6529
    %v6574 = vadd.f32 %v5335, %v6532
    %v6575 = vadd.f32 %v5336, %v6537
    %v6576 = vadd.f32 %v5337, %v6540
    %v6577 = vadd.f32 %v5338, %v6545
    %v6578 = vadd.f32 %v5339, %v6548
    %v6579 = vadd.f32 %v5340, %v6553
    %v6580 = vadd.f32 %v5341, %v6556
    %v6581 = vadd.f32 %v5342, %v6561
    %v6582 = vadd.f32 %v5343, %v6564
    %6583 = vst [vmem:[#allocation2] sm:$0xff] %v6567
    %6584 = vst [vmem:[#allocation2 + $0x8] sm:$0xff] %v6568
    %6585 = vst [vmem:[#allocation2 + $0x10] sm:$0xff] %v6569
    %6586 = vst [vmem:[#allocation2 + $0x18] sm:$0xff] %v6570
    %6587 = vst [vmem:[#allocation2 + $0x20] sm:$0xff] %v6571
    %6588 = vst [vmem:[#allocation2 + $0x28] sm:$0xff] %v6572
    %6589 = vst [vmem:[#allocation2 + $0x30] sm:$0xff] %v6573
    %6590 = vst [vmem:[#allocation2 + $0x38] sm:$0xff] %v6574
    %6591 = vst [vmem:[#allocation2 + $0x40] sm:$0xff] %v6575
    %6592 = vst [vmem:[#allocation2 + $0x48] sm:$0xff] %v6576
    %6593 = vst [vmem:[#allocation2 + $0x50] sm:$0xff] %v6577
    %6594 = vst [vmem:[#allocation2 + $0x58] sm:$0xff] %v6578
    %6595 = vst [vmem:[#allocation2 + $0x60] sm:$0xff] %v6579
    %6596 = vst [vmem:[#allocation2 + $0x68] sm:$0xff] %v6580
    %6597 = vst [vmem:[#allocation2 + $0x70] sm:$0xff] %v6581
    %6598 = vst [vmem:[#allocation2 + $0x78] sm:$0xff] %v6582
    // Predicated region
    $region58: #{tpu_custom_call.1} parent=1 // pred_check
      _
    $region59: #{tpu_custom_call.1} parent=1 // pred_check_branch
      %6600 = sbr.rel (0) target = $region61
    $region60: #{tpu_custom_call.1} parent=1 // pred_region
      %s6602 = ssub.s32 2048, 2048
      %6603 = vsyncadd [#allocation3], %s6602
      %s6604 = sshll.u32 [#allocation2], 4
      %s6605 = int_to_ptr.vmem [resolvable:$true] %s6604
      %6610 = dma.vmem_to_hbm [thread:$0]  %s6605, 2048, %s14, [#allocation3], 128, 128, 8
    $region61: #{tpu_custom_call.1} parent=1 // pred_fallthru
      _
    // Predicated region
    $region62: #{tpu_custom_call.1} parent=1 // pred_check
      _
    $region63: #{tpu_custom_call.1} parent=1 // pred_check_branch
      %6612 = sbr.rel (0) target = $region65
    $region64: #{tpu_custom_call.1} parent=1 // pred_region
      %6613 = dma.done [#allocation3], 2048
    $region65: #{tpu_custom_call.1} parent=1 // pred_fallthru
      _
    %6614 = vsyncpa [#allocation3], 1

</llo_original>
